<compile_context>
chip_gen: v5e
topology: v5e:2x2
jax: 0.10.0
libtpu: 0.0.40
codegen_flags: <defaults>
</compile_context>

<pallas_src>
import functools

import numpy as np
import jax
import jax.numpy as jnp
from jax import lax
from jax.experimental import pallas as pl
from jax.experimental.pallas import tpu as pltpu

CP = 128            # lane-dense padded channel / feature width
BN_EPS = 1e-5
LN_EPS = 1e-5
NEG_INF = -1e9


def _round_up(x, m):
    return (x + m - 1) // m * m


# ---------------------------------------------------------------------------
# Flat padded-spatial layout
# ---------------------------------------------------------------------------
class Grid:
    """Channels-last, spatially +1-padded, flattened (B*S_pad, CP) layout."""

    def __init__(self, B, H, W):
        self.B, self.H, self.W = B, H, W
        self.P = W + 2                        # padded row width
        self.S = (H + 2) * (W + 2)            # padded pixels per image
        self.S_pad = _round_up(self.S, 8)
        self.Nmain = B * self.S_pad
        self.count = B * H * W
        self.offsets = tuple((kh - 1) * self.P + (kw - 1)
                             for kh in range(3) for kw in range(3))

    def as_spec(self):
        return {'Nmain': self.Nmain, 'S_pad': self.S_pad,
                'offsets': self.offsets, 'inv_count': 1.0 / self.count}


def make_masks_np(g):
    """(Nmain,1) valid-pixel mask and (Nmain,B) one-hot batch mask."""
    mask = np.zeros((g.Nmain, 1), np.float32)
    bmask = np.zeros((g.Nmain, g.B), np.float32)
    for b in range(g.B):
        for i in range(1, g.H + 1):
            for j in range(1, g.W + 1):
                r = b * g.S_pad + i * g.P + j
                mask[r, 0] = 1.0
                bmask[r, b] = 1.0
    return mask, bmask


def make_m2f_mask_np(bmask, M):
    """(B*M, Nmain) additive mask: token of batch b sees valid pixels of b."""
    N, B = bmask.shape
    out = np.full((B * M, N), NEG_INF, np.float32)
    for b in range(B):
        out[b * M:(b + 1) * M, :] = np.where(bmask[:, b] > 0, 0.0, NEG_INF)
    return out


def make_f2m_mask_np(g, M):
    """(Nmain, B*M) additive mask: pixel rows of batch b see tokens of b."""
    out = np.full((g.Nmain, g.B * M), NEG_INF, np.float32)
    for b in range(g.B):
        out[b * g.S_pad:(b + 1) * g.S_pad, b * M:(b + 1) * M] = 0.0
    return out


def make_former_mask_np(B, M):
    out = np.full((B * M, B * M), NEG_INF, np.float32)
    for b in range(B):
        out[b * M:(b + 1) * M, b * M:(b + 1) * M] = 0.0
    return out


def make_sel(gin, gout):
    """0/1 decimation matrix selecting stride-2 centers of gin onto gout."""
    sel = np.zeros((gout.Nmain, gin.Nmain), np.float32)
    for b in range(gin.B):
        for io in range(1, gout.H + 1):
            for jo in range(1, gout.W + 1):
                r_out = b * gout.S_pad + io * gout.P + jo
                r_in = b * gin.S_pad + (2 * io - 1) * gin.P + (2 * jo - 1)
                sel[r_out, r_in] = 1.0
    return jnp.asarray(sel)


def to_flat(x_nchw, g):
    """NCHW input -> padded-flat (Nmain, CP) with zero halo + padded channels."""
    B, C, H, W = x_nchw.shape
    x = jnp.transpose(x_nchw.astype(jnp.float32), (0, 2, 3, 1))
    xp = jnp.zeros((B, H + 2, W + 2, CP), jnp.float32)
    xp = xp.at[:, 1:H + 1, 1:W + 1, :C].set(x)
    flat = xp.reshape(B, (H + 2) * (W + 2), CP)
    out = jnp.zeros((B, g.S_pad, CP), jnp.float32).at[:, :g.S, :].set(flat)
    return out.reshape(B * g.S_pad, CP)


# ---------------------------------------------------------------------------
# In-kernel math helpers
# ---------------------------------------------------------------------------
def _act(x, kind):
    if kind == "hardswish":
        return x * jnp.clip(x + 3.0, 0.0, 6.0) * (1.0 / 6.0)
    if kind == "relu":
        return jnp.maximum(x, 0.0)
    if kind == "gelu":
        # TODO(synk): tanh-approx GELU (torch default is erf GELU).
        return jax.nn.gelu(x, approximate=True)
    return x


def _sigmoid(x):
    return 1.0 / (1.0 + jnp.exp(-x))


def _mm(a, b):
    """activation @ bf16 weight on the MXU, f32 accumulate."""
    return jnp.dot(a.astype(b.dtype), b, preferred_element_type=jnp.float32)


def _mm_att(a, b):
    """activation @ activation (attention), bf16 inputs, f32 accumulate."""
    return jnp.dot(a.astype(jnp.bfloat16), b.astype(jnp.bfloat16),
                   preferred_element_type=jnp.float32)


def _mm_nt(a, b):
    """a @ b.T (contract last dims), bf16 on the MXU, no transpose in VMEM."""
    return lax.dot_general(a.astype(jnp.bfloat16), b.astype(jnp.bfloat16),
                           (((1,), (1,)), ((), ())),
                           preferred_element_type=jnp.float32)


def _mm_f32(a, b):
    """Exact f32 matmul (0/1 selection / broadcast matrices)."""
    return jnp.dot(a, b, preferred_element_type=jnp.float32)


def _sum_rows(w, x):
    """w^T @ x without a transpose: (N, K) x (N, C) -> (K, C), f32 on MXU."""
    return lax.dot_general(w, x, (((0,), (0,)), ((), ())),
                           preferred_element_type=jnp.float32)


def _softmax(x):
    m = jnp.max(x, axis=-1, keepdims=True)
    e = jnp.exp(x - m)
    return e * pl.reciprocal(jnp.sum(e, axis=-1, keepdims=True), approx=True)


def _bn(x, gamma, beta, mask, inv_count):
    """Training-mode BatchNorm over valid rows; statistics via mask^T @ x on
    the MXU (invalid/halo rows never pollute mean/var); output re-masked."""
    mean = _sum_rows(mask, x) * inv_count
    diff = (x - mean) * mask
    var = _sum_rows(mask, diff * diff) * inv_count
    return (diff * lax.rsqrt(var + BN_EPS) * gamma + beta) * mask


def _ln(z, gamma, beta, dmask, d_real):
    mean = jnp.sum(z, axis=-1, keepdims=True) * (1.0 / d_real)
    diff = (z - mean) * dmask
    var = jnp.sum(diff * diff, axis=-1, keepdims=True) * (1.0 / d_real)
    return diff * lax.rsqrt(var + LN_EPS) * gamma + beta


def _roll_rows(x, off):
    """out[r] = x[r + off] (wrap rows land on masked halo/padding rows)."""
    n = x.shape[0]
    s = (-off) % n
    return x if s == 0 else pltpu.roll(x, shift=s, axis=0)


def _roll_lanes(x, off):
    """out[:, c] = x[:, (c - off) mod CP]."""
    s = off % CP
    return x if s == 0 else pltpu.roll(x, shift=s, axis=1)


def _conv3x3(cur, offsets, tap_fn):
    """3x3 conv as 9 XLU row-rolls of the in-register tile + tap combine."""
    acc = None
    for t, off in enumerate(offsets):
        c = tap_fn(t, _roll_rows(cur, off))
        acc = c if acc is None else acc + c
    return acc


def _lane_mask(lo, hi):
    lane = lax.broadcasted_iota(jnp.int32, (1, CP), 1)
    return ((lane >= lo) & (lane < hi)).astype(jnp.float32)


def _sel_first_token(B, M):
    """(B, B*M) 0/1 selector of each batch's token 0 (built from iota)."""
    rows = lax.broadcasted_iota(jnp.int32, (B, B * M), 0)
    cols = lax.broadcasted_iota(jnp.int32, (B, B * M), 1)
    return (cols == rows * M).astype(jnp.float32)


# ---------------------------------------------------------------------------
# Fused kernels
# ---------------------------------------------------------------------------
def stem_bneck_kernel(x_ref, mask_ref, mats_ref, vecs_ref, dws_ref,
                      out_ref, *, spec):
    getm = lambda i: mats_ref[i]
    getv = lambda i: vecs_ref[i]
    offs = spec['offsets']
    inv_count = spec['inv_count']
    mask = mask_ref[...]

    cur = x_ref[...]

    # stem: dense 3x3 conv (no bias) + BN + hardswish
    cur = _conv3x3(cur, offs,
                   lambda t, sh: _mm(sh, getm(spec['stem_w'][t])))
    cur = _bn(cur, getv(spec['stem_bn_g']), getv(spec['stem_bn_b']),
              mask, inv_count)
    cur = _act(cur, "hardswish")

    # bneck: grouped 3x3 conv (bias) + hardswish
    xr = _mm(cur, getm(spec['bneck_R']))
    dwm = dws_ref[spec['bneck_dw']]
    cur = _conv3x3(xr, offs, lambda t, sh: sh * dwm[t:t + 1, :])
    cur = _act(cur + getv(spec['bneck_dw_b']), "hardswish")

    # bneck: 1x1 conv (bias) + BN
    cur = _mm(cur, getm(spec['bneck_pw_w'])) + getv(spec['bneck_pw_b'])
    out_ref[...] = _bn(cur, getv(spec['bneck_bn_g']), getv(spec['bneck_bn_b']),
                       mask, inv_count)


def baseblock_kernel(*refs, spec):
    if spec['stride'] == 2:
        (x_ref, z_ref, m2f_mask_ref, f2m_mask_ref, fmr_mask_ref,
         mask_ref, bmask_ref, mats_ref, vecs_ref, dws_ref, sel_ref,
         xo_ref, zo_ref) = refs
    else:
        (x_ref, z_ref, m2f_mask_ref, f2m_mask_ref, fmr_mask_ref,
         mask_ref, bmask_ref, mats_ref, vecs_ref, dws_ref,
         xo_ref, zo_ref) = refs
        sel_ref = None

    getm = lambda i: mats_ref[i]
    getv = lambda i: vecs_ref[i]
    B, M = spec['B'], spec['M']
    heads = spec['heads']
    c_in, c_out = spec['inp'], spec['out']
    d_real = spec['D']
    gin, gout = spec['gin'], spec['gout']

    mask = mask_ref[...]                 # (Nmain_out, 1)
    bmask = bmask_ref[...]               # (Nmain_out, B)
    dmask = (lax.broadcasted_iota(jnp.int32, (1, CP), 1) < d_real
             ).astype(jnp.float32)

    xin = x_ref[...]                     # (Nmain_in, CP)
    z = z_ref[...]                       # (B*M, CP)

    # ---- Mobile2Former: tokens attend to pixels (all batches at once) ----
    m2f = spec['m2f']
    m2f_amask = m2f_mask_ref[...]
    q_all = _mm(z, getm(m2f['q_w'])) + getv(m2f['q_b'])   # scale folded in
    ctx = None
    for h in range(heads):
        qh = _roll_lanes(q_all, -h * c_in)
        p = _softmax(_mm_nt(qh, xin) + m2f_amask)          # (B*M, Nmain_in)
        c = _roll_lanes(_mm_att(p, xin), h * c_in)
        ctx = c if ctx is None else ctx + c
    z = z + _mm(ctx, getm(m2f['out_w'])) + getv(m2f['out_b'])

    # ---- Former: one pre-norm transformer layer on the tokens ----
    fmr = spec['former']
    fmr_amask = fmr_mask_ref[...]
    dh = spec['fdim_head']
    zn = _ln(z, getv(fmr['ln1_g']), getv(fmr['ln1_b']), dmask, d_real)
    q = _mm(zn, getm(fmr['q_w']))                          # scale folded in
    k = _mm(zn, getm(fmr['k_w']))
    v = _mm(zn, getm(fmr['v_w']))
    att = None
    for h in range(spec['fheads']):
        hm = _lane_mask(h * dh, (h + 1) * dh)
        p = _softmax(_mm_nt(q, k * hm) + fmr_amask)        # (B*M, B*M)
        c = _mm_att(p, v) * hm
        att = c if att is None else att + c
    z = z + _mm(att, getm(fmr['o_w'])) + getv(fmr['o_b'])
    zn = _ln(z, getv(fmr['ln2_g']), getv(fmr['ln2_b']), dmask, d_real)
    h1 = _act(_mm(zn, getm(fmr['ff1_w'])) + getv(fmr['ff1_b']), "gelu")
    z = z + _mm(h1, getm(fmr['ff2_w'])) + getv(fmr['ff2_b'])
    zo_ref[...] = z

    # per-batch DyReLU coefficient source: first token of every batch
    z0 = _mm_f32(_sel_first_token(B, M), z)                # (B, CP)

    def dyrelu(cur, idx):
        hdn = jnp.maximum(_mm(z0, getm(idx['fc1_w'])) + getv(idx['fc1_b']), 0.0)
        th = [2.0 * _sigmoid(_mm(hdn, getm(idx['fc2_w'][kk]))
                             + getv(idx['fc2_b'][kk])) - 1.0
              for kk in range(4)]
        a1 = _mm_f32(bmask, th[0] + 1.0)                   # broadcast on MXU
        a2 = _mm_f32(bmask, th[1])
        b1 = _mm_f32(bmask, 0.5 * th[2])
        b2 = _mm_f32(bmask, 0.5 * th[3])
        return jnp.maximum(a1 * cur + b1, a2 * cur + b2)

    # ---- Mobile / MobileDown (pixels, DyReLU conditioned on z_out) ----
    mob = spec['mobile']
    if spec['stride'] == 1:
        g = gin
        cur = _mm(xin, getm(mob['w1']))
        cur = _bn(cur, getv(mob['bn1_g']), getv(mob['bn1_b']), mask, g['inv_count'])
        cur = dyrelu(cur, mob['act1'])
        dwm = dws_ref[mob['dw']]
        cur = _conv3x3(cur, g['offsets'], lambda t, sh: sh * dwm[t:t + 1, :])
        cur = _bn(cur, getv(mob['bn2_g']), getv(mob['bn2_b']), mask, g['inv_count'])
        cur = dyrelu(cur, mob['act2'])
        cur = _mm(cur, getm(mob['w3']))
        x_hid = _bn(cur, getv(mob['bn3_g']), getv(mob['bn3_b']), mask, g['inv_count'])
    else:
        # grouped dw3x3 stride-2: taps on the input grid, 0/1-select centers
        # onto the output grid.
        xr = _mm(xin, getm(mob['R']))
        dwm = dws_ref[mob['dw1']]
        acc = _conv3x3(xr, gin['offsets'], lambda t, sh: sh * dwm[t:t + 1, :])
        cur = _mm_f32(sel_ref[...], acc)                   # (Nmain_out, CP)
        cur = _bn(cur, getv(mob['dwbn1_g']), getv(mob['dwbn1_b']), mask, gout['inv_count'])
        cur = dyrelu(cur, mob['act1'])
        cur = _mm(cur, getm(mob['pw1']))
        cur = _bn(cur, getv(mob['pwbn1_g']), getv(mob['pwbn1_b']), mask, gout['inv_count'])
        cur = jnp.maximum(cur, 0.0)
        xr = _mm(cur, getm(mob['R']))
        dwm = dws_ref[mob['dw2']]
        cur = _conv3x3(xr, gout['offsets'], lambda t, sh: sh * dwm[t:t + 1, :])
        cur = _bn(cur, getv(mob['dwbn2_g']), getv(mob['dwbn2_b']), mask, gout['inv_count'])
        cur = dyrelu(cur, mob['act2'])
        cur = _mm(cur, getm(mob['pw2']))
        x_hid = _bn(cur, getv(mob['pwbn2_g']), getv(mob['pwbn2_b']), mask, gout['inv_count'])

    # ---- Former2Mobile: pixels attend to tokens (all batches at once) ----
    f2m = spec['f2m']
    f2m_amask = f2m_mask_ref[...]
    k_all = _mm(z, getm(f2m['k_w'])) + getv(f2m['k_b'])    # scale folded in
    v_all = _mm(z, getm(f2m['v_w'])) + getv(f2m['v_b'])
    ctx = None
    for h in range(heads):
        kh = _roll_lanes(k_all, -h * c_out)
        p = _softmax(_mm_nt(x_hid, kh) + f2m_amask)        # (Nmain_out, B*M)
        c = _mm_att(p, v_all) * _lane_mask(h * c_out, (h + 1) * c_out)
        ctx = c if ctx is None else ctx + c
    xo_ref[...] = (x_hid + _mm(ctx, getm(f2m['o_w'])) + getv(f2m['o_b'])) * mask


def head_kernel(x_ref, z_ref, mask_ref, bmask_ref, mats_ref, vecs_ref,
                out_ref, *, spec):
    getm = lambda i: mats_ref[i]
    getv = lambda i: vecs_ref[i]
    B, M = spec['B'], spec['M']
    mask = mask_ref[...]
    bmask = bmask_ref[...]

    cur = _mm(x_ref[...], getm(spec['conv_w']))
    cur = _bn(cur, getv(spec['bn_g']), getv(spec['bn_b']), mask, spec['inv_count'])
    # TODO(synk): AvgPool2d((7,7)) implemented as a global average over the
    # final feature map (exact for 14x14 inputs -> 7x7 final maps).
    pooled = _sum_rows(bmask, cur) * spec['inv_hw']        # (B, CP) on MXU

    z0 = _mm_f32(_sel_first_token(B, M), z_ref[...])       # (B, CP)
    h = _act(_mm(pooled, getm(spec['h1x_w'])) + _mm(z0, getm(spec['h1z_w']))
             + getv(spec['h1_b']), "hardswish")
    out_ref[...] = _mm(h, getm(spec['h2_w'])) + getv(spec['h2_b'])


# ---------------------------------------------------------------------------
# Deterministic parameter construction (lane-dense padded packing)
# ---------------------------------------------------------------------------
class ParamGen:
    def __init__(self, seed=0):
        self.key = jax.random.PRNGKey(seed)
        self.count = 0

    def normal(self, shape, std=0.05):
        self.count += 1
        k = jax.random.fold_in(self.key, self.count)
        return std * jax.random.normal(k, shape, jnp.float32)

    def zeros(self, shape):
        return jnp.zeros(shape, jnp.float32)

    def ones(self, shape):
        return jnp.ones(shape, jnp.float32)


class Pack:
    """Packs padded (CP,CP) matrices (bf16), (1,CP) vectors and (9,CP) dw taps
    into stacked arrays addressed with static indices inside the kernels."""

    def __init__(self):
        self.mats, self.vecs, self.dws = [], [], []

    def mat(self, m):
        self.mats.append(m)
        return len(self.mats) - 1

    def vec(self, v):
        self.vecs.append(v)
        return len(self.vecs) - 1

    def dw(self, d):
        self.dws.append(d)
        return len(self.dws) - 1

    def arrays(self):
        mats = (jnp.stack(self.mats).astype(jnp.bfloat16) if self.mats
                else jnp.zeros((1, CP, CP), jnp.bfloat16))
        vecs = (jnp.stack(self.vecs)[:, None, :] if self.vecs
                else jnp.zeros((1, 1, CP), jnp.float32))
        dws = (jnp.stack(self.dws) if self.dws
               else jnp.zeros((1, 9, CP), jnp.float32))
        return mats, vecs, dws


def pad_mat(w):
    return jnp.zeros((CP, CP), jnp.float32).at[:w.shape[0], :w.shape[1]].set(w)


def pad_vec(v):
    return jnp.zeros((CP,), jnp.float32).at[:v.shape[0]].set(v)


def pad_dw(w):
    return jnp.zeros((9, CP), jnp.float32).at[:, :w.shape[1]].set(w)


def group_expand_mat(cin, cout):
    """0/1 map: grouped-conv expanded channel oc reads input channel oc // mult."""
    mult = cout // cin
    m = np.zeros((CP, CP), np.float32)
    for oc in range(cout):
        m[oc // mult, oc] = 1.0
    return jnp.asarray(m)


def build_dyrelu(pg, pk, channel, dim):
    red = dim // 4
    fc1_w = pg.normal((dim, red))
    fc1_b = pg.zeros((red,))
    fc2_w = pg.normal((red, 4 * channel))
    fc2_b = pg.zeros((4 * channel,))
    return {
        'fc1_w': pk.mat(pad_mat(fc1_w)), 'fc1_b': pk.vec(pad_vec(fc1_b)),
        'fc2_w': [pk.mat(pad_mat(fc2_w[:, k * channel:(k + 1) * channel]))
                  for k in range(4)],
        'fc2_b': [pk.vec(pad_vec(fc2_b[k * channel:(k + 1) * channel]))
                  for k in range(4)],
    }


def build_mobile(pg, pk, inp, exp, out, stride, dim):
    if stride == 1:
        return {
            'stride': 1,
            'w1': pk.mat(pad_mat(pg.normal((inp, exp), 0.1))),
            'bn1_g': pk.vec(pad_vec(pg.ones((exp,)))),
            'bn1_b': pk.vec(pad_vec(pg.zeros((exp,)))),
            'act1': build_dyrelu(pg, pk, exp, dim),
            'dw': pk.dw(pad_dw(pg.normal((9, exp), 0.1))),
            'bn2_g': pk.vec(pad_vec(pg.ones((exp,)))),
            'bn2_b': pk.vec(pad_vec(pg.zeros((exp,)))),
            'act2': build_dyrelu(pg, pk, exp, dim),
            'w3': pk.mat(pad_mat(pg.normal((exp, out), 0.1))),
            'bn3_g': pk.vec(pad_vec(pg.ones((out,)))),
            'bn3_b': pk.vec(pad_vec(pg.zeros((out,)))),
        }
    return {
        'stride': 2,
        'R': pk.mat(group_expand_mat(inp, exp)),
        'dw1': pk.dw(pad_dw(pg.normal((9, exp), 0.1))),
        'dwbn1_g': pk.vec(pad_vec(pg.ones((exp,)))),
        'dwbn1_b': pk.vec(pad_vec(pg.zeros((exp,)))),
        'act1': build_dyrelu(pg, pk, exp, dim),
        'pw1': pk.mat(pad_mat(pg.normal((exp, inp), 0.1))),
        'pwbn1_g': pk.vec(pad_vec(pg.ones((inp,)))),
        'pwbn1_b': pk.vec(pad_vec(pg.zeros((inp,)))),
        'dw2': pk.dw(pad_dw(pg.normal((9, exp), 0.1))),
        'dwbn2_g': pk.vec(pad_vec(pg.ones((exp,)))),
        'dwbn2_b': pk.vec(pad_vec(pg.zeros((exp,)))),
        'act2': build_dyrelu(pg, pk, exp, dim),
        'pw2': pk.mat(pad_mat(pg.normal((exp, out), 0.1))),
        'pwbn2_g': pk.vec(pad_vec(pg.ones((out,)))),
        'pwbn2_b': pk.vec(pad_vec(pg.zeros((out,)))),
    }


def build_former(pg, pk, dim, heads=2, dim_head=16):
    inner = heads * dim_head
    mlp = dim * 2
    scale = float(dim_head) ** -0.5
    qkv_w = pg.normal((dim, 3 * inner))
    ao_w = pg.normal((inner, dim))
    return {
        'fheads': heads, 'fdim_head': dim_head,
        'ln1_g': pk.vec(pad_vec(pg.ones((dim,)))),
        'ln1_b': pk.vec(pad_vec(pg.zeros((dim,)))),
        'q_w': pk.mat(pad_mat(qkv_w[:, 0 * inner:1 * inner] * scale)),
        'k_w': pk.mat(pad_mat(qkv_w[:, 1 * inner:2 * inner])),
        'v_w': pk.mat(pad_mat(qkv_w[:, 2 * inner:3 * inner])),
        'o_w': pk.mat(pad_mat(ao_w)),
        'o_b': pk.vec(pad_vec(pg.zeros((dim,)))),
        'ln2_g': pk.vec(pad_vec(pg.ones((dim,)))),
        'ln2_b': pk.vec(pad_vec(pg.zeros((dim,)))),
        'ff1_w': pk.mat(pad_mat(pg.normal((dim, mlp)))),
        'ff1_b': pk.vec(pad_vec(pg.zeros((mlp,)))),
        'ff2_w': pk.mat(pad_mat(pg.normal((mlp, dim)))),
        'ff2_b': pk.vec(pad_vec(pg.zeros((dim,)))),
    }


def build_m2f(pg, pk, dim, heads, channel):
    scale = float(channel) ** -0.5
    q_w = pg.normal((dim, heads * channel))
    q_b = pg.zeros((heads * channel,))
    o_w = pg.normal((heads * channel, dim))
    o_b = pg.zeros((dim,))
    return {
        'q_w': pk.mat(pad_mat(q_w * scale)),
        'q_b': pk.vec(pad_vec(q_b * scale)),
        'out_w': pk.mat(pad_mat(o_w)),
        'out_b': pk.vec(pad_vec(o_b)),
    }


def build_f2m(pg, pk, dim, heads, channel):
    scale = float(channel) ** -0.5
    k_w = pg.normal((dim, heads * channel))
    k_b = pg.zeros((heads * channel,))
    v_w = pg.normal((dim, heads * channel))
    v_b = pg.zeros((heads * channel,))
    o_w = pg.normal((heads * channel, channel))
    o_b = pg.zeros((channel,))
    return {
        'k_w': pk.mat(pad_mat(k_w * scale)),
        'k_b': pk.vec(pad_vec(k_b * scale)),
        'v_w': pk.mat(pad_mat(v_w)),
        'v_b': pk.vec(pad_vec(v_b)),
        'o_w': pk.mat(pad_mat(o_w)),
        'o_b': pk.vec(pad_vec(o_b)),
    }


def build_block(pg, bc, cfg):
    pk = Pack()
    idx = {
        'm2f': build_m2f(pg, pk, cfg['embed'], bc['heads'], bc['inp']),
        'former': build_former(pg, pk, cfg['embed']),
        'mobile': build_mobile(pg, pk, bc['inp'], bc['exp'], bc['out'],
                               bc['stride'], cfg['embed']),
        'f2m': build_f2m(pg, pk, cfg['embed'], bc['heads'], bc['out']),
    }
    mats, vecs, dws = pk.arrays()
    return {'idx': idx, 'mats': mats, 'vecs': vecs, 'dws': dws}


def build_stem(pg, cfg):
    pk = Pack()
    stem_w = pg.normal((9, 3, cfg['stem']), 0.1)
    e, o = cfg['bneck']['e'], cfg['bneck']['o']
    idx = {
        'stem_w': [pk.mat(pad_mat(stem_w[t])) for t in range(9)],
        'stem_bn_g': pk.vec(pad_vec(pg.ones((cfg['stem'],)))),
        'stem_bn_b': pk.vec(pad_vec(pg.zeros((cfg['stem'],)))),
        'bneck_R': pk.mat(group_expand_mat(cfg['stem'], e)),
        'bneck_dw': pk.dw(pad_dw(pg.normal((9, e), 0.1))),
        'bneck_dw_b': pk.vec(pad_vec(pg.zeros((e,)))),
        'bneck_pw_w': pk.mat(pad_mat(pg.normal((e, o), 0.1))),
        'bneck_pw_b': pk.vec(pad_vec(pg.zeros((o,)))),
        'bneck_bn_g': pk.vec(pad_vec(pg.ones((o,)))),
        'bneck_bn_b': pk.vec(pad_vec(pg.zeros((o,)))),
    }
    mats, vecs, dws = pk.arrays()
    return {'idx': idx, 'mats': mats, 'vecs': vecs, 'dws': dws}


def build_head(pg, cfg):
    pk = Pack()
    inp = cfg['body'][-1]['out']
    exp = cfg['body'][-1]['exp']
    h1 = pg.normal((exp + cfg['embed'], cfg['fc1']))
    idx = {
        'conv_w': pk.mat(pad_mat(pg.normal((inp, exp), 0.1))),
        'bn_g': pk.vec(pad_vec(pg.ones((exp,)))),
        'bn_b': pk.vec(pad_vec(pg.zeros((exp,)))),
        'h1x_w': pk.mat(pad_mat(h1[:exp, :])),
        'h1z_w': pk.mat(pad_mat(h1[exp:, :])),
        'h1_b': pk.vec(pad_vec(pg.zeros((cfg['fc1'],)))),
        'h2_w': pk.mat(pad_mat(pg.normal((cfg['fc1'], cfg['fc2'])))),
        'h2_b': pk.vec(pad_vec(pg.zeros((cfg['fc2'],)))),
    }
    mats, vecs, _ = pk.arrays()
    return {'idx': idx, 'mats': mats, 'vecs': vecs}


def build_params(cfg, seed=0):
    pg = ParamGen(seed)
    return {
        'token': pg.normal((1, cfg['token'], cfg['embed']), 1.0),
        'stem': build_stem(pg, cfg),
        'blocks': [build_block(pg, bc, cfg) for bc in cfg['body']],
        'head': build_head(pg, cfg),
    }


# ---------------------------------------------------------------------------
# Full forward pass (4 pallas_calls total)
# ---------------------------------------------------------------------------
def mobileformer_forward(params, x_nchw, cfg):
    B, _, H, W = x_nchw.shape
    M = cfg['token']
    D = cfg['embed']
    g = Grid(B, H, W)
    x = to_flat(x_nchw, g)
    mask_np, bmask_np = make_masks_np(g)
    mask, bmask = jnp.asarray(mask_np), jnp.asarray(bmask_np)

    # tokens carried as a lane-dense (B*M, CP) slab
    z = jnp.zeros((B * M, CP), jnp.float32)
    z = z.at[:, :D].set(jnp.tile(params['token'][0], (B, 1)))

    if cfg['bneck']['s'] != 1:
        # TODO(synk): stride-2 bneck not implemented in the fused stem kernel.
        raise NotImplementedError("bneck stride != 1")

    st = params['stem']
    spec = dict(st['idx'])
    spec.update(g.as_spec())
    x = pl.pallas_call(
        functools.partial(stem_bneck_kernel, spec=spec),
        out_shape=jax.ShapeDtypeStruct((g.Nmain, CP), jnp.float32),
    )(x, mask, st['mats'], st['vecs'], st['dws'])

    former_mask = jnp.asarray(make_former_mask_np(B, M))

    for bc, bp in zip(cfg['body'], params['blocks']):
        gin = g
        bmask_in_np = bmask_np
        if bc['stride'] == 2:
            gout = Grid(B, (gin.H + 1) // 2, (gin.W + 1) // 2)
            mask_np_o, bmask_np_o = make_masks_np(gout)
        else:
            gout = gin
            mask_np_o, bmask_np_o = mask_np, bmask_np

        m2f_mask = jnp.asarray(make_m2f_mask_np(bmask_in_np, M))
        f2m_mask = jnp.asarray(make_f2m_mask_np(gout, M))
        mask_o = jnp.asarray(mask_np_o)
        bmask_o = jnp.asarray(bmask_np_o)

        spec = {
            'stride': bc['stride'], 'B': B, 'M': M, 'heads': bc['heads'],
            'inp': bc['inp'], 'out': bc['out'], 'D': D,
            'fheads': bp['idx']['former']['fheads'],
            'fdim_head': bp['idx']['former']['fdim_head'],
            'gin': gin.as_spec(), 'gout': gout.as_spec(),
            'm2f': bp['idx']['m2f'], 'former': bp['idx']['former'],
            'mobile': bp['idx']['mobile'], 'f2m': bp['idx']['f2m'],
        }
        inputs = [x, z, m2f_mask, f2m_mask, former_mask, mask_o, bmask_o,
                  bp['mats'], bp['vecs'], bp['dws']]
        if bc['stride'] == 2:
            # TODO(synk): dense 0/1 decimation is O(Npix^2); fine at 14x14.
            inputs.append(make_sel(gin, gout))

        x, z = pl.pallas_call(
            functools.partial(baseblock_kernel, spec=spec),
            out_shape=(jax.ShapeDtypeStruct((gout.Nmain, CP), jnp.float32),
                       jax.ShapeDtypeStruct((B * M, CP), jnp.float32)),
        )(*inputs)

        g = gout
        mask_np, bmask_np = mask_np_o, bmask_np_o
        mask, bmask = mask_o, bmask_o

    hd = params['head']
    spec = dict(hd['idx'])
    spec.update({'B': B, 'M': M, 'inv_count': 1.0 / g.count,
                 'inv_hw': 1.0 / float(g.H * g.W)})
    out = pl.pallas_call(
        functools.partial(head_kernel, spec=spec),
        out_shape=jax.ShapeDtypeStruct((B, CP), jnp.float32),
    )(x, z, mask, bmask, hd['mats'], hd['vecs'])
    return out[:, :cfg['fc2']]


CFG = {
    "token": 3,
    "embed": 32,
    "stem": 8,
    "bneck": {"e": 8, "s": 1, "o": 8},
    "body": [
        {"inp": 8, "exp": 16, "out": 8, "se": None, "stride": 1, "heads": 2},
        {"inp": 8, "exp": 16, "out": 12, "se": None, "stride": 2, "heads": 2},
    ],
    "fc1": 32,
    "fc2": 10,
}


if __name__ == "__main__":
    params = build_params(CFG, seed=0)
    x = jax.random.normal(jax.random.PRNGKey(0), (2, 3, 14, 14), jnp.float32)
    out = mobileformer_forward(params, x, CFG)
    out = jax.block_until_ready(out)
    assert out.shape == (2, CFG["fc2"]), out.shape
    assert bool(jnp.all(jnp.isfinite(out)))
    print("KERNEL_OK")
</pallas_src>

<mosaic_0001>
module attributes {stable_mosaic.version = 11 : i64} {
  func.func @stem_bneck_kernel(%arg0: memref<512x128xf32, #tpu.memory_space<vmem>>, %arg1: memref<512x1xf32, #tpu.memory_space<vmem>>, %arg2: memref<11x128x128xbf16, #tpu.memory_space<vmem>>, %arg3: memref<6x1x128xf32, #tpu.memory_space<vmem>>, %arg4: memref<1x9x128xf32, #tpu.memory_space<vmem>>, %arg5: memref<512x128xf32, #tpu.memory_space<vmem>>) attributes {dimension_semantics = [], scalar_prefetch = 0 : i64, scratch_operands = 0 : i64, tpu.core_type = #tpu.core_type<tc>} {
    %c0 = arith.constant 0 : index
    %c0_0 = arith.constant 0 : index
    %0 = vector.load %arg1[%c0, %c0_0] : memref<512x1xf32, #tpu.memory_space<vmem>>, vector<512x1xf32>
    %c0_1 = arith.constant 0 : index
    %c0_2 = arith.constant 0 : index
    %1 = vector.load %arg0[%c0_1, %c0_2] : memref<512x128xf32, #tpu.memory_space<vmem>>, vector<512x128xf32>
    %c17_i32 = arith.constant 17 : i32
    %2 = tpu.dynamic_rotate %1 by %c17_i32 dim 0 : vector<512x128xf32>, i32 -> vector<512x128xf32>
    %c0_3 = arith.constant 0 : index
    %c0_4 = arith.constant 0 : index
    %c0_5 = arith.constant 0 : index
    %3 = vector.load %arg2[%c0_3, %c0_4, %c0_5] : memref<11x128x128xbf16, #tpu.memory_space<vmem>>, vector<1x128x128xbf16>
    %4 = vector.shape_cast %3 : vector<1x128x128xbf16> to vector<128x128xbf16>
    %5 = arith.truncf %2 : vector<512x128xf32> to vector<512x128xbf16>
    %cst = arith.constant dense<0.000000e+00> : vector<512x128xf32>
    %6 = tpu.matmul %5, %4, %cst {dimension_numbers = #tpu.dot_dimension_numbers<[1], [0], [0], [1], [0, 0, 1, 1], [], []>} : vector<512x128xbf16>, vector<128x128xbf16>, vector<512x128xf32> -> vector<512x128xf32>
    %c16_i32 = arith.constant 16 : i32
    %7 = tpu.dynamic_rotate %1 by %c16_i32 dim 0 : vector<512x128xf32>, i32 -> vector<512x128xf32>
    %c1 = arith.constant 1 : index
    %c0_6 = arith.constant 0 : index
    %c0_7 = arith.constant 0 : index
    %8 = vector.load %arg2[%c1, %c0_6, %c0_7] : memref<11x128x128xbf16, #tpu.memory_space<vmem>>, vector<1x128x128xbf16>
    %9 = vector.shape_cast %8 : vector<1x128x128xbf16> to vector<128x128xbf16>
    %10 = arith.truncf %7 : vector<512x128xf32> to vector<512x128xbf16>
    %cst_8 = arith.constant dense<0.000000e+00> : vector<512x128xf32>
    %11 = tpu.matmul %10, %9, %cst_8 {dimension_numbers = #tpu.dot_dimension_numbers<[1], [0], [0], [1], [0, 0, 1, 1], [], []>} : vector<512x128xbf16>, vector<128x128xbf16>, vector<512x128xf32> -> vector<512x128xf32>
    %12 = arith.addf %6, %11 : vector<512x128xf32>
    %c15_i32 = arith.constant 15 : i32
    %13 = tpu.dynamic_rotate %1 by %c15_i32 dim 0 : vector<512x128xf32>, i32 -> vector<512x128xf32>
    %c2 = arith.constant 2 : index
    %c0_9 = arith.constant 0 : index
    %c0_10 = arith.constant 0 : index
    %14 = vector.load %arg2[%c2, %c0_9, %c0_10] : memref<11x128x128xbf16, #tpu.memory_space<vmem>>, vector<1x128x128xbf16>
    %15 = vector.shape_cast %14 : vector<1x128x128xbf16> to vector<128x128xbf16>
    %16 = arith.truncf %13 : vector<512x128xf32> to vector<512x128xbf16>
    %cst_11 = arith.constant dense<0.000000e+00> : vector<512x128xf32>
    %17 = tpu.matmul %16, %15, %cst_11 {dimension_numbers = #tpu.dot_dimension_numbers<[1], [0], [0], [1], [0, 0, 1, 1], [], []>} : vector<512x128xbf16>, vector<128x128xbf16>, vector<512x128xf32> -> vector<512x128xf32>
    %18 = arith.addf %12, %17 : vector<512x128xf32>
    %c1_i32 = arith.constant 1 : i32
    %19 = tpu.dynamic_rotate %1 by %c1_i32 dim 0 : vector<512x128xf32>, i32 -> vector<512x128xf32>
    %c3 = arith.constant 3 : index
    %c0_12 = arith.constant 0 : index
    %c0_13 = arith.constant 0 : index
    %20 = vector.load %arg2[%c3, %c0_12, %c0_13] : memref<11x128x128xbf16, #tpu.memory_space<vmem>>, vector<1x128x128xbf16>
    %21 = vector.shape_cast %20 : vector<1x128x128xbf16> to vector<128x128xbf16>
    %22 = arith.truncf %19 : vector<512x128xf32> to vector<512x128xbf16>
    %cst_14 = arith.constant dense<0.000000e+00> : vector<512x128xf32>
    %23 = tpu.matmul %22, %21, %cst_14 {dimension_numbers = #tpu.dot_dimension_numbers<[1], [0], [0], [1], [0, 0, 1, 1], [], []>} : vector<512x128xbf16>, vector<128x128xbf16>, vector<512x128xf32> -> vector<512x128xf32>
    %24 = arith.addf %18, %23 : vector<512x128xf32>
    %c4 = arith.constant 4 : index
    %c0_15 = arith.constant 0 : index
    %c0_16 = arith.constant 0 : index
    %25 = vector.load %arg2[%c4, %c0_15, %c0_16] : memref<11x128x128xbf16, #tpu.memory_space<vmem>>, vector<1x128x128xbf16>
    %26 = vector.shape_cast %25 : vector<1x128x128xbf16> to vector<128x128xbf16>
    %27 = arith.truncf %1 : vector<512x128xf32> to vector<512x128xbf16>
    %cst_17 = arith.constant dense<0.000000e+00> : vector<512x128xf32>
    %28 = tpu.matmul %27, %26, %cst_17 {dimension_numbers = #tpu.dot_dimension_numbers<[1], [0], [0], [1], [0, 0, 1, 1], [], []>} : vector<512x128xbf16>, vector<128x128xbf16>, vector<512x128xf32> -> vector<512x128xf32>
    %29 = arith.addf %24, %28 : vector<512x128xf32>
    %c511_i32 = arith.constant 511 : i32
    %30 = tpu.dynamic_rotate %1 by %c511_i32 dim 0 : vector<512x128xf32>, i32 -> vector<512x128xf32>
    %c5 = arith.constant 5 : index
    %c0_18 = arith.constant 0 : index
    %c0_19 = arith.constant 0 : index
    %31 = vector.load %arg2[%c5, %c0_18, %c0_19] : memref<11x128x128xbf16, #tpu.memory_space<vmem>>, vector<1x128x128xbf16>
    %32 = vector.shape_cast %31 : vector<1x128x128xbf16> to vector<128x128xbf16>
    %33 = arith.truncf %30 : vector<512x128xf32> to vector<512x128xbf16>
    %cst_20 = arith.constant dense<0.000000e+00> : vector<512x128xf32>
    %34 = tpu.matmul %33, %32, %cst_20 {dimension_numbers = #tpu.dot_dimension_numbers<[1], [0], [0], [1], [0, 0, 1, 1], [], []>} : vector<512x128xbf16>, vector<128x128xbf16>, vector<512x128xf32> -> vector<512x128xf32>
    %35 = arith.addf %29, %34 : vector<512x128xf32>
    %c497_i32 = arith.constant 497 : i32
    %36 = tpu.dynamic_rotate %1 by %c497_i32 dim 0 : vector<512x128xf32>, i32 -> vector<512x128xf32>
    %c6 = arith.constant 6 : index
    %c0_21 = arith.constant 0 : index
    %c0_22 = arith.constant 0 : index
    %37 = vector.load %arg2[%c6, %c0_21, %c0_22] : memref<11x128x128xbf16, #tpu.memory_space<vmem>>, vector<1x128x128xbf16>
    %38 = vector.shape_cast %37 : vector<1x128x128xbf16> to vector<128x128xbf16>
    %39 = arith.truncf %36 : vector<512x128xf32> to vector<512x128xbf16>
    %cst_23 = arith.constant dense<0.000000e+00> : vector<512x128xf32>
    %40 = tpu.matmul %39, %38, %cst_23 {dimension_numbers = #tpu.dot_dimension_numbers<[1], [0], [0], [1], [0, 0, 1, 1], [], []>} : vector<512x128xbf16>, vector<128x128xbf16>, vector<512x128xf32> -> vector<512x128xf32>
    %41 = arith.addf %35, %40 : vector<512x128xf32>
    %c496_i32 = arith.constant 496 : i32
    %42 = tpu.dynamic_rotate %1 by %c496_i32 dim 0 : vector<512x128xf32>, i32 -> vector<512x128xf32>
    %c7 = arith.constant 7 : index
    %c0_24 = arith.constant 0 : index
    %c0_25 = arith.constant 0 : index
    %43 = vector.load %arg2[%c7, %c0_24, %c0_25] : memref<11x128x128xbf16, #tpu.memory_space<vmem>>, vector<1x128x128xbf16>
    %44 = vector.shape_cast %43 : vector<1x128x128xbf16> to vector<128x128xbf16>
    %45 = arith.truncf %42 : vector<512x128xf32> to vector<512x128xbf16>
    %cst_26 = arith.constant dense<0.000000e+00> : vector<512x128xf32>
    %46 = tpu.matmul %45, %44, %cst_26 {dimension_numbers = #tpu.dot_dimension_numbers<[1], [0], [0], [1], [0, 0, 1, 1], [], []>} : vector<512x128xbf16>, vector<128x128xbf16>, vector<512x128xf32> -> vector<512x128xf32>
    %47 = arith.addf %41, %46 : vector<512x128xf32>
    %c495_i32 = arith.constant 495 : i32
    %48 = tpu.dynamic_rotate %1 by %c495_i32 dim 0 : vector<512x128xf32>, i32 -> vector<512x128xf32>
    %c8 = arith.constant 8 : index
    %c0_27 = arith.constant 0 : index
    %c0_28 = arith.constant 0 : index
    %49 = vector.load %arg2[%c8, %c0_27, %c0_28] : memref<11x128x128xbf16, #tpu.memory_space<vmem>>, vector<1x128x128xbf16>
    %50 = vector.shape_cast %49 : vector<1x128x128xbf16> to vector<128x128xbf16>
    %51 = arith.truncf %48 : vector<512x128xf32> to vector<512x128xbf16>
    %cst_29 = arith.constant dense<0.000000e+00> : vector<512x128xf32>
    %52 = tpu.matmul %51, %50, %cst_29 {dimension_numbers = #tpu.dot_dimension_numbers<[1], [0], [0], [1], [0, 0, 1, 1], [], []>} : vector<512x128xbf16>, vector<128x128xbf16>, vector<512x128xf32> -> vector<512x128xf32>
    %53 = arith.addf %47, %52 : vector<512x128xf32>
    %c0_30 = arith.constant 0 : index
    %c0_31 = arith.constant 0 : index
    %c0_32 = arith.constant 0 : index
    %54 = vector.load %arg3[%c0_30, %c0_31, %c0_32] : memref<6x1x128xf32, #tpu.memory_space<vmem>>, vector<1x1x128xf32>
    %55 = vector.shape_cast %54 : vector<1x1x128xf32> to vector<1x128xf32>
    %c1_33 = arith.constant 1 : index
    %c0_34 = arith.constant 0 : index
    %c0_35 = arith.constant 0 : index
    %56 = vector.load %arg3[%c1_33, %c0_34, %c0_35] : memref<6x1x128xf32, #tpu.memory_space<vmem>>, vector<1x1x128xf32>
    %57 = vector.shape_cast %56 : vector<1x1x128xf32> to vector<1x128xf32>
    %cst_36 = arith.constant dense<0.000000e+00> : vector<1x128xf32>
    %58 = tpu.matmul %0, %53, %cst_36 {dimension_numbers = #tpu.dot_dimension_numbers<[0], [0], [1], [1], [0, 1, 1, 1], [], []>} : vector<512x1xf32>, vector<512x128xf32>, vector<1x128xf32> -> vector<1x128xf32>
    %cst_37 = arith.constant 0.00255102036 : f32
    %59 = vector.broadcast %cst_37 : f32 to vector<1x128xf32>
    %60 = arith.mulf %58, %59 : vector<1x128xf32>
    %61 = vector.broadcast %60 : vector<1x128xf32> to vector<512x128xf32>
    %62 = arith.subf %53, %61 : vector<512x128xf32>
    %63 = vector.broadcast %0 : vector<512x1xf32> to vector<512x128xf32>
    %64 = arith.mulf %62, %63 : vector<512x128xf32>
    %65 = arith.mulf %64, %64 : vector<512x128xf32>
    %cst_38 = arith.constant dense<0.000000e+00> : vector<1x128xf32>
    %66 = tpu.matmul %0, %65, %cst_38 {dimension_numbers = #tpu.dot_dimension_numbers<[0], [0], [1], [1], [0, 1, 1, 1], [], []>} : vector<512x1xf32>, vector<512x128xf32>, vector<1x128xf32> -> vector<1x128xf32>
    %cst_39 = arith.constant 0.00255102036 : f32
    %67 = vector.broadcast %cst_39 : f32 to vector<1x128xf32>
    %68 = arith.mulf %66, %67 : vector<1x128xf32>
    %cst_40 = arith.constant 9.99999974E-6 : f32
    %69 = vector.broadcast %cst_40 : f32 to vector<1x128xf32>
    %70 = arith.addf %68, %69 : vector<1x128xf32>
    %71 = math.rsqrt %70 : vector<1x128xf32>
    %72 = vector.broadcast %71 : vector<1x128xf32> to vector<512x128xf32>
    %73 = arith.mulf %64, %72 : vector<512x128xf32>
    %74 = vector.broadcast %55 : vector<1x128xf32> to vector<512x128xf32>
    %75 = arith.mulf %73, %74 : vector<512x128xf32>
    %76 = vector.broadcast %57 : vector<1x128xf32> to vector<512x128xf32>
    %77 = arith.addf %75, %76 : vector<512x128xf32>
    %78 = vector.broadcast %0 : vector<512x1xf32> to vector<512x128xf32>
    %79 = arith.mulf %77, %78 : vector<512x128xf32>
    %cst_41 = arith.constant 3.000000e+00 : f32
    %80 = vector.broadcast %cst_41 : f32 to vector<512x128xf32>
    %81 = arith.addf %79, %80 : vector<512x128xf32>
    %cst_42 = arith.constant 0.000000e+00 : f32
    %cst_43 = arith.constant 6.000000e+00 : f32
    %82 = vector.broadcast %cst_42 : f32 to vector<512x128xf32>
    %83 = arith.maximumf %82, %81 : vector<512x128xf32>
    %84 = vector.broadcast %cst_43 : f32 to vector<512x128xf32>
    %85 = arith.minimumf %84, %83 : vector<512x128xf32>
    %86 = arith.mulf %79, %85 : vector<512x128xf32>
    %cst_44 = arith.constant 0.166666672 : f32
    %87 = vector.broadcast %cst_44 : f32 to vector<512x128xf32>
    %88 = arith.mulf %86, %87 : vector<512x128xf32>
    %c9 = arith.constant 9 : index
    %c0_45 = arith.constant 0 : index
    %c0_46 = arith.constant 0 : index
    %89 = vector.load %arg2[%c9, %c0_45, %c0_46] : memref<11x128x128xbf16, #tpu.memory_space<vmem>>, vector<1x128x128xbf16>
    %90 = vector.shape_cast %89 : vector<1x128x128xbf16> to vector<128x128xbf16>
    %91 = arith.truncf %88 : vector<512x128xf32> to vector<512x128xbf16>
    %cst_47 = arith.constant dense<0.000000e+00> : vector<512x128xf32>
    %92 = tpu.matmul %91, %90, %cst_47 {dimension_numbers = #tpu.dot_dimension_numbers<[1], [0], [0], [1], [0, 0, 1, 1], [], []>} : vector<512x128xbf16>, vector<128x128xbf16>, vector<512x128xf32> -> vector<512x128xf32>
    %c0_48 = arith.constant 0 : index
    %c0_49 = arith.constant 0 : index
    %c0_50 = arith.constant 0 : index
    %93 = vector.load %arg4[%c0_48, %c0_49, %c0_50] : memref<1x9x128xf32, #tpu.memory_space<vmem>>, vector<1x9x128xf32>
    %94 = vector.shape_cast %93 : vector<1x9x128xf32> to vector<9x128xf32>
    %c17_i32_51 = arith.constant 17 : i32
    %95 = tpu.dynamic_rotate %92 by %c17_i32_51 dim 0 : vector<512x128xf32>, i32 -> vector<512x128xf32>
    %96 = vector.extract_strided_slice %94 {offsets = [0, 0], sizes = [1, 128], strides = [1, 1]} : vector<9x128xf32> to vector<1x128xf32>
    %97 = vector.broadcast %96 : vector<1x128xf32> to vector<512x128xf32>
    %98 = arith.mulf %95, %97 : vector<512x128xf32>
    %c16_i32_52 = arith.constant 16 : i32
    %99 = tpu.dynamic_rotate %92 by %c16_i32_52 dim 0 : vector<512x128xf32>, i32 -> vector<512x128xf32>
    %100 = vector.extract_strided_slice %94 {offsets = [1, 0], sizes = [1, 128], strides = [1, 1]} : vector<9x128xf32> to vector<1x128xf32>
    %101 = vector.broadcast %100 : vector<1x128xf32> to vector<512x128xf32>
    %102 = arith.mulf %99, %101 : vector<512x128xf32>
    %103 = arith.addf %98, %102 : vector<512x128xf32>
    %c15_i32_53 = arith.constant 15 : i32
    %104 = tpu.dynamic_rotate %92 by %c15_i32_53 dim 0 : vector<512x128xf32>, i32 -> vector<512x128xf32>
    %105 = vector.extract_strided_slice %94 {offsets = [2, 0], sizes = [1, 128], strides = [1, 1]} : vector<9x128xf32> to vector<1x128xf32>
    %106 = vector.broadcast %105 : vector<1x128xf32> to vector<512x128xf32>
    %107 = arith.mulf %104, %106 : vector<512x128xf32>
    %108 = arith.addf %103, %107 : vector<512x128xf32>
    %c1_i32_54 = arith.constant 1 : i32
    %109 = tpu.dynamic_rotate %92 by %c1_i32_54 dim 0 : vector<512x128xf32>, i32 -> vector<512x128xf32>
    %110 = vector.extract_strided_slice %94 {offsets = [3, 0], sizes = [1, 128], strides = [1, 1]} : vector<9x128xf32> to vector<1x128xf32>
    %111 = vector.broadcast %110 : vector<1x128xf32> to vector<512x128xf32>
    %112 = arith.mulf %109, %111 : vector<512x128xf32>
    %113 = arith.addf %108, %112 : vector<512x128xf32>
    %114 = vector.extract_strided_slice %94 {offsets = [4, 0], sizes = [1, 128], strides = [1, 1]} : vector<9x128xf32> to vector<1x128xf32>
    %115 = vector.broadcast %114 : vector<1x128xf32> to vector<512x128xf32>
    %116 = arith.mulf %92, %115 : vector<512x128xf32>
    %117 = arith.addf %113, %116 : vector<512x128xf32>
    %c511_i32_55 = arith.constant 511 : i32
    %118 = tpu.dynamic_rotate %92 by %c511_i32_55 dim 0 : vector<512x128xf32>, i32 -> vector<512x128xf32>
    %119 = vector.extract_strided_slice %94 {offsets = [5, 0], sizes = [1, 128], strides = [1, 1]} : vector<9x128xf32> to vector<1x128xf32>
    %120 = vector.broadcast %119 : vector<1x128xf32> to vector<512x128xf32>
    %121 = arith.mulf %118, %120 : vector<512x128xf32>
    %122 = arith.addf %117, %121 : vector<512x128xf32>
    %c497_i32_56 = arith.constant 497 : i32
    %123 = tpu.dynamic_rotate %92 by %c497_i32_56 dim 0 : vector<512x128xf32>, i32 -> vector<512x128xf32>
    %124 = vector.extract_strided_slice %94 {offsets = [6, 0], sizes = [1, 128], strides = [1, 1]} : vector<9x128xf32> to vector<1x128xf32>
    %125 = vector.broadcast %124 : vector<1x128xf32> to vector<512x128xf32>
    %126 = arith.mulf %123, %125 : vector<512x128xf32>
    %127 = arith.addf %122, %126 : vector<512x128xf32>
    %c496_i32_57 = arith.constant 496 : i32
    %128 = tpu.dynamic_rotate %92 by %c496_i32_57 dim 0 : vector<512x128xf32>, i32 -> vector<512x128xf32>
    %129 = vector.extract_strided_slice %94 {offsets = [7, 0], sizes = [1, 128], strides = [1, 1]} : vector<9x128xf32> to vector<1x128xf32>
    %130 = vector.broadcast %129 : vector<1x128xf32> to vector<512x128xf32>
    %131 = arith.mulf %128, %130 : vector<512x128xf32>
    %132 = arith.addf %127, %131 : vector<512x128xf32>
    %c495_i32_58 = arith.constant 495 : i32
    %133 = tpu.dynamic_rotate %92 by %c495_i32_58 dim 0 : vector<512x128xf32>, i32 -> vector<512x128xf32>
    %134 = vector.extract_strided_slice %94 {offsets = [8, 0], sizes = [1, 128], strides = [1, 1]} : vector<9x128xf32> to vector<1x128xf32>
    %135 = vector.broadcast %134 : vector<1x128xf32> to vector<512x128xf32>
    %136 = arith.mulf %133, %135 : vector<512x128xf32>
    %137 = arith.addf %132, %136 : vector<512x128xf32>
    %c2_59 = arith.constant 2 : index
    %c0_60 = arith.constant 0 : index
    %c0_61 = arith.constant 0 : index
    %138 = vector.load %arg3[%c2_59, %c0_60, %c0_61] : memref<6x1x128xf32, #tpu.memory_space<vmem>>, vector<1x1x128xf32>
    %139 = vector.shape_cast %138 : vector<1x1x128xf32> to vector<1x128xf32>
    %140 = vector.broadcast %139 : vector<1x128xf32> to vector<512x128xf32>
    %141 = arith.addf %137, %140 : vector<512x128xf32>
    %cst_62 = arith.constant 3.000000e+00 : f32
    %142 = vector.broadcast %cst_62 : f32 to vector<512x128xf32>
    %143 = arith.addf %141, %142 : vector<512x128xf32>
    %cst_63 = arith.constant 0.000000e+00 : f32
    %cst_64 = arith.constant 6.000000e+00 : f32
    %144 = vector.broadcast %cst_63 : f32 to vector<512x128xf32>
    %145 = arith.maximumf %144, %143 : vector<512x128xf32>
    %146 = vector.broadcast %cst_64 : f32 to vector<512x128xf32>
    %147 = arith.minimumf %146, %145 : vector<512x128xf32>
    %148 = arith.mulf %141, %147 : vector<512x128xf32>
    %cst_65 = arith.constant 0.166666672 : f32
    %149 = vector.broadcast %cst_65 : f32 to vector<512x128xf32>
    %150 = arith.mulf %148, %149 : vector<512x128xf32>
    %c10 = arith.constant 10 : index
    %c0_66 = arith.constant 0 : index
    %c0_67 = arith.constant 0 : index
    %151 = vector.load %arg2[%c10, %c0_66, %c0_67] : memref<11x128x128xbf16, #tpu.memory_space<vmem>>, vector<1x128x128xbf16>
    %152 = vector.shape_cast %151 : vector<1x128x128xbf16> to vector<128x128xbf16>
    %153 = arith.truncf %150 : vector<512x128xf32> to vector<512x128xbf16>
    %cst_68 = arith.constant dense<0.000000e+00> : vector<512x128xf32>
    %154 = tpu.matmul %153, %152, %cst_68 {dimension_numbers = #tpu.dot_dimension_numbers<[1], [0], [0], [1], [0, 0, 1, 1], [], []>} : vector<512x128xbf16>, vector<128x128xbf16>, vector<512x128xf32> -> vector<512x128xf32>
    %c3_69 = arith.constant 3 : index
    %c0_70 = arith.constant 0 : index
    %c0_71 = arith.constant 0 : index
    %155 = vector.load %arg3[%c3_69, %c0_70, %c0_71] : memref<6x1x128xf32, #tpu.memory_space<vmem>>, vector<1x1x128xf32>
    %156 = vector.shape_cast %155 : vector<1x1x128xf32> to vector<1x128xf32>
    %157 = vector.broadcast %156 : vector<1x128xf32> to vector<512x128xf32>
    %158 = arith.addf %154, %157 : vector<512x128xf32>
    %c4_72 = arith.constant 4 : index
    %c0_73 = arith.constant 0 : index
    %c0_74 = arith.constant 0 : index
    %159 = vector.load %arg3[%c4_72, %c0_73, %c0_74] : memref<6x1x128xf32, #tpu.memory_space<vmem>>, vector<1x1x128xf32>
    %160 = vector.shape_cast %159 : vector<1x1x128xf32> to vector<1x128xf32>
    %c5_75 = arith.constant 5 : index
    %c0_76 = arith.constant 0 : index
    %c0_77 = arith.constant 0 : index
    %161 = vector.load %arg3[%c5_75, %c0_76, %c0_77] : memref<6x1x128xf32, #tpu.memory_space<vmem>>, vector<1x1x128xf32>
    %162 = vector.shape_cast %161 : vector<1x1x128xf32> to vector<1x128xf32>
    %cst_78 = arith.constant dense<0.000000e+00> : vector<1x128xf32>
    %163 = tpu.matmul %0, %158, %cst_78 {dimension_numbers = #tpu.dot_dimension_numbers<[0], [0], [1], [1], [0, 1, 1, 1], [], []>} : vector<512x1xf32>, vector<512x128xf32>, vector<1x128xf32> -> vector<1x128xf32>
    %cst_79 = arith.constant 0.00255102036 : f32
    %164 = vector.broadcast %cst_79 : f32 to vector<1x128xf32>
    %165 = arith.mulf %163, %164 : vector<1x128xf32>
    %166 = vector.broadcast %165 : vector<1x128xf32> to vector<512x128xf32>
    %167 = arith.subf %158, %166 : vector<512x128xf32>
    %168 = vector.broadcast %0 : vector<512x1xf32> to vector<512x128xf32>
    %169 = arith.mulf %167, %168 : vector<512x128xf32>
    %170 = arith.mulf %169, %169 : vector<512x128xf32>
    %cst_80 = arith.constant dense<0.000000e+00> : vector<1x128xf32>
    %171 = tpu.matmul %0, %170, %cst_80 {dimension_numbers = #tpu.dot_dimension_numbers<[0], [0], [1], [1], [0, 1, 1, 1], [], []>} : vector<512x1xf32>, vector<512x128xf32>, vector<1x128xf32> -> vector<1x128xf32>
    %cst_81 = arith.constant 0.00255102036 : f32
    %172 = vector.broadcast %cst_81 : f32 to vector<1x128xf32>
    %173 = arith.mulf %171, %172 : vector<1x128xf32>
    %cst_82 = arith.constant 9.99999974E-6 : f32
    %174 = vector.broadcast %cst_82 : f32 to vector<1x128xf32>
    %175 = arith.addf %173, %174 : vector<1x128xf32>
    %176 = math.rsqrt %175 : vector<1x128xf32>
    %177 = vector.broadcast %176 : vector<1x128xf32> to vector<512x128xf32>
    %178 = arith.mulf %169, %177 : vector<512x128xf32>
    %179 = vector.broadcast %160 : vector<1x128xf32> to vector<512x128xf32>
    %180 = arith.mulf %178, %179 : vector<512x128xf32>
    %181 = vector.broadcast %162 : vector<1x128xf32> to vector<512x128xf32>
    %182 = arith.addf %180, %181 : vector<512x128xf32>
    %183 = vector.broadcast %0 : vector<512x1xf32> to vector<512x128xf32>
    %184 = arith.mulf %182, %183 : vector<512x128xf32>
    %c0_83 = arith.constant 0 : index
    %c0_84 = arith.constant 0 : index
    %185 = vector.load %arg5[%c0_83, %c0_84] : memref<512x128xf32, #tpu.memory_space<vmem>>, vector<512x128xf32>
    tpu.vector_store %arg5[%c0_83, %c0_84], %184 {strides = array<i32>} : memref<512x128xf32, #tpu.memory_space<vmem>>, vector<512x128xf32>,
    return
  }
}

</mosaic_0001>

<llo_original>
// kernel: tpu_custom_call.1
$region0: #{tpu_custom_call.1}
  #allocation0 [shape = 'u32[]', space=smem, size = 0x4, offset = 0x4, fixed_abs, tag = 'smem constant byte address 0x4 - core index']
  #allocation1 [shape = 'u32[72,128]{1,0:T(1,128)}', space=vmem, size = 0x9000, scoped, tag = 'internal scratch']
  %s0 = inlined_call_operand.vmem [shape: f32[512,128], index: 0, kind: input, shape index: {}]
  %s1 = inlined_call_operand.vmem [shape: f32[512,1], index: 1, kind: input, shape index: {}]
  %s2 = inlined_call_operand.hbm [shape: bf16[11,128,128], index: 2, kind: input, shape index: {}]
  %s3 = inlined_call_operand.vmem [shape: f32[6,1,128], index: 3, kind: input, shape index: {}]
  %s4 = inlined_call_operand.vmem [shape: f32[1,9,128], index: 4, kind: input, shape index: {}]
  %s5 = inlined_call_operand.hbm [shape: f32[512,128], index: 5, kind: output, shape index: {}]
  %s6 = sld [smem:[#allocation0]]
  $region34: #{tpu_custom_call.1} parent=0
    _
  %s8 = ssub.s32 1, %s6
  %s9 = scalar_select 0, %s8, %s6
  $region1: #{tpu_custom_call.1} parent=0
    #allocation2 [shape = 'u8[360448]{0}', space=vmem, size = 0x58000, scoped, tag = 'input window, operand 2, single buffered']
    #allocation3 [shape = 's32[1]{0}', space=sflag, size = 0x4, scoped, tag = 'scoped memory for tpu_custom_call.1']
    #allocation4 [shape = 's32[1]{0}', space=sflag, size = 0x4, scoped, tag = 'scoped memory for tpu_custom_call.1']
    #allocation5 [shape = 'u8[262144]{0}', space=vmem, size = 0x40000, scoped, tag = 'output window, operand 0, single buffered']
    %10 = vsyncpa [#allocation3], 0
    %11 = vsyncpa [#allocation4], 0
    // Predicated region
    $region2: #{tpu_custom_call.1} parent=1 // pred_check
      _
    $region3: #{tpu_custom_call.1} parent=1 // pred_check_branch
      %13 = sbr.rel (0) target = $region5
    $region4: #{tpu_custom_call.1} parent=1 // pred_region
      _
    $region5: #{tpu_custom_call.1} parent=1 // pred_fallthru
      _
    // Predicated region
    $region6: #{tpu_custom_call.1} parent=1 // pred_check
      _
    $region7: #{tpu_custom_call.1} parent=1 // pred_check_branch
      %15 = sbr.rel (0) target = $region9
    $region8: #{tpu_custom_call.1} parent=1 // pred_region
      _
    $region9: #{tpu_custom_call.1} parent=1 // pred_fallthru
      _
    // Predicated region
    $region10: #{tpu_custom_call.1} parent=1 // pred_check
      _
    $region11: #{tpu_custom_call.1} parent=1 // pred_check_branch
      %17 = sbr.rel (0) target = $region13
    $region12: #{tpu_custom_call.1} parent=1 // pred_region
      %19 = vsyncadd [#allocation3], 0
      %s20 = sshll.u32 %s2, 4
      %s21 = int_to_ptr.hbm [resolvable:$true] %s20
      %s22 = sshll.u32 [#allocation2], 4
      %s23 = int_to_ptr.vmem [resolvable:$true] %s22
      %28 = dma.hbm_to_vmem [thread:$0]  %s21, 11264, %s23, [#allocation3], 64, 64, 4
    $region13: #{tpu_custom_call.1} parent=1 // pred_fallthru
      _
    // Predicated region
    $region14: #{tpu_custom_call.1} parent=1 // pred_check
      _
    $region15: #{tpu_custom_call.1} parent=1 // pred_check_branch
      %30 = sbr.rel (0) target = $region17
    $region16: #{tpu_custom_call.1} parent=1 // pred_region
      _
    $region17: #{tpu_custom_call.1} parent=1 // pred_fallthru
      _
    // Predicated region
    $region18: #{tpu_custom_call.1} parent=1 // pred_check
      _
    $region19: #{tpu_custom_call.1} parent=1 // pred_check_branch
      %32 = sbr.rel (0) target = $region21
    $region20: #{tpu_custom_call.1} parent=1 // pred_region
      _
    $region21: #{tpu_custom_call.1} parent=1 // pred_fallthru
      _
    // Predicated region
    $region22: #{tpu_custom_call.1} parent=1 // pred_check
      _
    $region23: #{tpu_custom_call.1} parent=1 // pred_check_branch
      %34 = sbr.rel (0) target = $region25
    $region24: #{tpu_custom_call.1} parent=1 // pred_region
      %36 = dma.done [#allocation3], 11264
    $region25: #{tpu_custom_call.1} parent=1 // pred_fallthru
      _
    %v37 = vld [vmem:[%s1] sm:$0xff]
    %v38 = vld [vmem:[%s1 + $0x8] sm:$0xff]
    %v39 = vld [vmem:[%s1 + $0x10] sm:$0xff]
    %v40 = vld [vmem:[%s1 + $0x18] sm:$0xff]
    %v41 = vld [vmem:[%s1 + $0x20] sm:$0xff]
    %v42 = vld [vmem:[%s1 + $0x28] sm:$0xff]
    %v43 = vld [vmem:[%s1 + $0x30] sm:$0xff]
    %v44 = vld [vmem:[%s1 + $0x38] sm:$0xff]
    %v45 = vld [vmem:[%s1 + $0x40] sm:$0xff]
    %v46 = vld [vmem:[%s1 + $0x48] sm:$0xff]
    %v47 = vld [vmem:[%s1 + $0x50] sm:$0xff]
    %v48 = vld [vmem:[%s1 + $0x58] sm:$0xff]
    %v49 = vld [vmem:[%s1 + $0x60] sm:$0xff]
    %v50 = vld [vmem:[%s1 + $0x68] sm:$0xff]
    %v51 = vld [vmem:[%s1 + $0x70] sm:$0xff]
    %v52 = vld [vmem:[%s1 + $0x78] sm:$0xff]
    %v53 = vld [vmem:[%s1 + $0x80] sm:$0xff]
    %v54 = vld [vmem:[%s1 + $0x88] sm:$0xff]
    %v55 = vld [vmem:[%s1 + $0x90] sm:$0xff]
    %v56 = vld [vmem:[%s1 + $0x98] sm:$0xff]
    %v57 = vld [vmem:[%s1 + $0xa0] sm:$0xff]
    %v58 = vld [vmem:[%s1 + $0xa8] sm:$0xff]
    %v59 = vld [vmem:[%s1 + $0xb0] sm:$0xff]
    %v60 = vld [vmem:[%s1 + $0xb8] sm:$0xff]
    %v61 = vld [vmem:[%s1 + $0xc0] sm:$0xff]
    %v62 = vld [vmem:[%s1 + $0xc8] sm:$0xff]
    %v63 = vld [vmem:[%s1 + $0xd0] sm:$0xff]
    %v64 = vld [vmem:[%s1 + $0xd8] sm:$0xff]
    %v65 = vld [vmem:[%s1 + $0xe0] sm:$0xff]
    %v66 = vld [vmem:[%s1 + $0xe8] sm:$0xff]
    %v67 = vld [vmem:[%s1 + $0xf0] sm:$0xff]
    %v68 = vld [vmem:[%s1 + $0xf8] sm:$0xff]
    %v69 = vld [vmem:[%s1 + $0x100] sm:$0xff]
    %v70 = vld [vmem:[%s1 + $0x108] sm:$0xff]
    %v71 = vld [vmem:[%s1 + $0x110] sm:$0xff]
    %v72 = vld [vmem:[%s1 + $0x118] sm:$0xff]
    %v73 = vld [vmem:[%s1 + $0x120] sm:$0xff]
    %v74 = vld [vmem:[%s1 + $0x128] sm:$0xff]
    %v75 = vld [vmem:[%s1 + $0x130] sm:$0xff]
    %v76 = vld [vmem:[%s1 + $0x138] sm:$0xff]
    %v77 = vld [vmem:[%s1 + $0x140] sm:$0xff]
    %v78 = vld [vmem:[%s1 + $0x148] sm:$0xff]
    %v79 = vld [vmem:[%s1 + $0x150] sm:$0xff]
    %v80 = vld [vmem:[%s1 + $0x158] sm:$0xff]
    %v81 = vld [vmem:[%s1 + $0x160] sm:$0xff]
    %v82 = vld [vmem:[%s1 + $0x168] sm:$0xff]
    %v83 = vld [vmem:[%s1 + $0x170] sm:$0xff]
    %v84 = vld [vmem:[%s1 + $0x178] sm:$0xff]
    %v85 = vld [vmem:[%s1 + $0x180] sm:$0xff]
    %v86 = vld [vmem:[%s1 + $0x188] sm:$0xff]
    %v87 = vld [vmem:[%s1 + $0x190] sm:$0xff]
    %v88 = vld [vmem:[%s1 + $0x198] sm:$0xff]
    %v89 = vld [vmem:[%s1 + $0x1a0] sm:$0xff]
    %v90 = vld [vmem:[%s1 + $0x1a8] sm:$0xff]
    %v91 = vld [vmem:[%s1 + $0x1b0] sm:$0xff]
    %v92 = vld [vmem:[%s1 + $0x1b8] sm:$0xff]
    %v93 = vld [vmem:[%s1 + $0x1c0] sm:$0xff]
    %v94 = vld [vmem:[%s1 + $0x1c8] sm:$0xff]
    %v95 = vld [vmem:[%s1 + $0x1d0] sm:$0xff]
    %v96 = vld [vmem:[%s1 + $0x1d8] sm:$0xff]
    %v97 = vld [vmem:[%s1 + $0x1e0] sm:$0xff]
    %v98 = vld [vmem:[%s1 + $0x1e8] sm:$0xff]
    %v99 = vld [vmem:[%s1 + $0x1f0] sm:$0xff]
    %v100 = vld [vmem:[%s1 + $0x1f8] sm:$0xff]
    %v101 = vld [vmem:[%s0] sm:$0xff]
    %v102 = vld [vmem:[%s0 + $0x8] sm:$0xff]
    %v103 = vld [vmem:[%s0 + $0x10] sm:$0xff]
    %v104 = vld [vmem:[%s0 + $0x18] sm:$0xff]
    %v105 = vld [vmem:[%s0 + $0x20] sm:$0xff]
    %v106 = vld [vmem:[%s0 + $0x28] sm:$0xff]
    %v107 = vld [vmem:[%s0 + $0x30] sm:$0xff]
    %v108 = vld [vmem:[%s0 + $0x38] sm:$0xff]
    %v109 = vld [vmem:[%s0 + $0x40] sm:$0xff]
    %v110 = vld [vmem:[%s0 + $0x48] sm:$0xff]
    %v111 = vld [vmem:[%s0 + $0x50] sm:$0xff]
    %v112 = vld [vmem:[%s0 + $0x58] sm:$0xff]
    %v113 = vld [vmem:[%s0 + $0x60] sm:$0xff]
    %v114 = vld [vmem:[%s0 + $0x68] sm:$0xff]
    %v115 = vld [vmem:[%s0 + $0x70] sm:$0xff]
    %v116 = vld [vmem:[%s0 + $0x78] sm:$0xff]
    %v117 = vld [vmem:[%s0 + $0x80] sm:$0xff]
    %v118 = vld [vmem:[%s0 + $0x88] sm:$0xff]
    %v119 = vld [vmem:[%s0 + $0x90] sm:$0xff]
    %v120 = vld [vmem:[%s0 + $0x98] sm:$0xff]
    %v121 = vld [vmem:[%s0 + $0xa0] sm:$0xff]
    %v122 = vld [vmem:[%s0 + $0xa8] sm:$0xff]
    %v123 = vld [vmem:[%s0 + $0xb0] sm:$0xff]
    %v124 = vld [vmem:[%s0 + $0xb8] sm:$0xff]
    %v125 = vld [vmem:[%s0 + $0xc0] sm:$0xff]
    %v126 = vld [vmem:[%s0 + $0xc8] sm:$0xff]
    %v127 = vld [vmem:[%s0 + $0xd0] sm:$0xff]
    %v128 = vld [vmem:[%s0 + $0xd8] sm:$0xff]
    %v129 = vld [vmem:[%s0 + $0xe0] sm:$0xff]
    %v130 = vld [vmem:[%s0 + $0xe8] sm:$0xff]
    %v131 = vld [vmem:[%s0 + $0xf0] sm:$0xff]
    %v132 = vld [vmem:[%s0 + $0xf8] sm:$0xff]
    %v133 = vld [vmem:[%s0 + $0x100] sm:$0xff]
    %v134 = vld [vmem:[%s0 + $0x108] sm:$0xff]
    %v135 = vld [vmem:[%s0 + $0x110] sm:$0xff]
    %v136 = vld [vmem:[%s0 + $0x118] sm:$0xff]
    %v137 = vld [vmem:[%s0 + $0x120] sm:$0xff]
    %v138 = vld [vmem:[%s0 + $0x128] sm:$0xff]
    %v139 = vld [vmem:[%s0 + $0x130] sm:$0xff]
    %v140 = vld [vmem:[%s0 + $0x138] sm:$0xff]
    %v141 = vld [vmem:[%s0 + $0x140] sm:$0xff]
    %v142 = vld [vmem:[%s0 + $0x148] sm:$0xff]
    %v143 = vld [vmem:[%s0 + $0x150] sm:$0xff]
    %v144 = vld [vmem:[%s0 + $0x158] sm:$0xff]
    %v145 = vld [vmem:[%s0 + $0x160] sm:$0xff]
    %v146 = vld [vmem:[%s0 + $0x168] sm:$0xff]
    %v147 = vld [vmem:[%s0 + $0x170] sm:$0xff]
    %v148 = vld [vmem:[%s0 + $0x178] sm:$0xff]
    %v149 = vld [vmem:[%s0 + $0x180] sm:$0xff]
    %v150 = vld [vmem:[%s0 + $0x188] sm:$0xff]
    %v151 = vld [vmem:[%s0 + $0x190] sm:$0xff]
    %v152 = vld [vmem:[%s0 + $0x198] sm:$0xff]
    %v153 = vld [vmem:[%s0 + $0x1a0] sm:$0xff]
    %v154 = vld [vmem:[%s0 + $0x1a8] sm:$0xff]
    %v155 = vld [vmem:[%s0 + $0x1b0] sm:$0xff]
    %v156 = vld [vmem:[%s0 + $0x1b8] sm:$0xff]
    %v157 = vld [vmem:[%s0 + $0x1c0] sm:$0xff]
    %v158 = vld [vmem:[%s0 + $0x1c8] sm:$0xff]
    %v159 = vld [vmem:[%s0 + $0x1d0] sm:$0xff]
    %v160 = vld [vmem:[%s0 + $0x1d8] sm:$0xff]
    %v161 = vld [vmem:[%s0 + $0x1e0] sm:$0xff]
    %v162 = vld [vmem:[%s0 + $0x1e8] sm:$0xff]
    %v163 = vld [vmem:[%s0 + $0x1f0] sm:$0xff]
    %v164 = vld [vmem:[%s0 + $0x1f8] sm:$0xff]
    %v165 = vrot.slane %v101, 7
    %v166 = vrot.slane %v102, 7
    %v167 = vrot.slane %v103, 7
    %v168 = vrot.slane %v104, 7
    %v169 = vrot.slane %v105, 7
    %v170 = vrot.slane %v106, 7
    %v171 = vrot.slane %v107, 7
    %v172 = vrot.slane %v108, 7
    %v173 = vrot.slane %v109, 7
    %v174 = vrot.slane %v110, 7
    %v175 = vrot.slane %v111, 7
    %v176 = vrot.slane %v112, 7
    %v177 = vrot.slane %v113, 7
    %v178 = vrot.slane %v114, 7
    %v179 = vrot.slane %v115, 7
    %v180 = vrot.slane %v116, 7
    %v181 = vrot.slane %v117, 7
    %v182 = vrot.slane %v118, 7
    %v183 = vrot.slane %v119, 7
    %v184 = vrot.slane %v120, 7
    %v185 = vrot.slane %v121, 7
    %v186 = vrot.slane %v122, 7
    %v187 = vrot.slane %v123, 7
    %v188 = vrot.slane %v124, 7
    %v189 = vrot.slane %v125, 7
    %v190 = vrot.slane %v126, 7
    %v191 = vrot.slane %v127, 7
    %v192 = vrot.slane %v128, 7
    %v193 = vrot.slane %v129, 7
    %v194 = vrot.slane %v130, 7
    %v195 = vrot.slane %v131, 7
    %v196 = vrot.slane %v132, 7
    %v197 = vrot.slane %v133, 7
    %v198 = vrot.slane %v134, 7
    %v199 = vrot.slane %v135, 7
    %v200 = vrot.slane %v136, 7
    %v201 = vrot.slane %v137, 7
    %v202 = vrot.slane %v138, 7
    %v203 = vrot.slane %v139, 7
    %v204 = vrot.slane %v140, 7
    %v205 = vrot.slane %v141, 7
    %v206 = vrot.slane %v142, 7
    %v207 = vrot.slane %v143, 7
    %v208 = vrot.slane %v144, 7
    %v209 = vrot.slane %v145, 7
    %v210 = vrot.slane %v146, 7
    %v211 = vrot.slane %v147, 7
    %v212 = vrot.slane %v148, 7
    %v213 = vrot.slane %v149, 7
    %v214 = vrot.slane %v150, 7
    %v215 = vrot.slane %v151, 7
    %v216 = vrot.slane %v152, 7
    %v217 = vrot.slane %v153, 7
    %v218 = vrot.slane %v154, 7
    %v219 = vrot.slane %v155, 7
    %v220 = vrot.slane %v156, 7
    %v221 = vrot.slane %v157, 7
    %v222 = vrot.slane %v158, 7
    %v223 = vrot.slane %v159, 7
    %v224 = vrot.slane %v160, 7
    %v225 = vrot.slane %v161, 7
    %v226 = vrot.slane %v162, 7
    %v227 = vrot.slane %v163, 7
    %v228 = vrot.slane %v164, 7
    %v229 = vlaneseq
    %v230 = vshrl.u32 %v229, 7
    %vm231 = vcmp.lt.s32.totalorder %v230, 1
    %v232 = vsel %vm231, %v227, %v228
    %v233 = vsel %vm231, %v226, %v227
    %v234 = vsel %vm231, %v225, %v226
    %v235 = vsel %vm231, %v224, %v225
    %v236 = vsel %vm231, %v223, %v224
    %v237 = vsel %vm231, %v222, %v223
    %v238 = vsel %vm231, %v221, %v222
    %v239 = vsel %vm231, %v220, %v221
    %v240 = vsel %vm231, %v219, %v220
    %v241 = vsel %vm231, %v218, %v219
    %v242 = vsel %vm231, %v217, %v218
    %v243 = vsel %vm231, %v216, %v217
    %v244 = vsel %vm231, %v215, %v216
    %v245 = vsel %vm231, %v214, %v215
    %v246 = vsel %vm231, %v213, %v214
    %v247 = vsel %vm231, %v212, %v213
    %v248 = vsel %vm231, %v211, %v212
    %v249 = vsel %vm231, %v210, %v211
    %v250 = vsel %vm231, %v209, %v210
    %v251 = vsel %vm231, %v208, %v209
    %v252 = vsel %vm231, %v207, %v208
    %v253 = vsel %vm231, %v206, %v207
    %v254 = vsel %vm231, %v205, %v206
    %v255 = vsel %vm231, %v204, %v205
    %v256 = vsel %vm231, %v203, %v204
    %v257 = vsel %vm231, %v202, %v203
    %v258 = vsel %vm231, %v201, %v202
    %v259 = vsel %vm231, %v200, %v201
    %v260 = vsel %vm231, %v199, %v200
    %v261 = vsel %vm231, %v198, %v199
    %v262 = vsel %vm231, %v197, %v198
    %v263 = vsel %vm231, %v196, %v197
    %v264 = vsel %vm231, %v195, %v196
    %v265 = vsel %vm231, %v194, %v195
    %v266 = vsel %vm231, %v193, %v194
    %v267 = vsel %vm231, %v192, %v193
    %v268 = vsel %vm231, %v191, %v192
    %v269 = vsel %vm231, %v190, %v191
    %v270 = vsel %vm231, %v189, %v190
    %v271 = vsel %vm231, %v188, %v189
    %v272 = vsel %vm231, %v187, %v188
    %v273 = vsel %vm231, %v186, %v187
    %v274 = vsel %vm231, %v185, %v186
    %v275 = vsel %vm231, %v184, %v185
    %v276 = vsel %vm231, %v183, %v184
    %v277 = vsel %vm231, %v182, %v183
    %v278 = vsel %vm231, %v181, %v182
    %v279 = vsel %vm231, %v180, %v181
    %v280 = vsel %vm231, %v179, %v180
    %v281 = vsel %vm231, %v178, %v179
    %v282 = vsel %vm231, %v177, %v178
    %v283 = vsel %vm231, %v176, %v177
    %v284 = vsel %vm231, %v175, %v176
    %v285 = vsel %vm231, %v174, %v175
    %v286 = vsel %vm231, %v173, %v174
    %v287 = vsel %vm231, %v172, %v173
    %v288 = vsel %vm231, %v171, %v172
    %v289 = vsel %vm231, %v170, %v171
    %v290 = vsel %vm231, %v169, %v170
    %v291 = vsel %vm231, %v168, %v169
    %v292 = vsel %vm231, %v167, %v168
    %v293 = vsel %vm231, %v166, %v167
    %v294 = vsel %vm231, %v165, %v166
    %v295 = vsel %vm231, %v228, %v165
    %v296 = vld [vmem:[#allocation2] sm:$0xf]
    %v297 = vld [vmem:[#allocation2 + $0x4] sm:$0xf]
    %v298 = vld [vmem:[#allocation2 + $0x8] sm:$0xf]
    %v299 = vld [vmem:[#allocation2 + $0xc] sm:$0xf]
    %v300 = vld [vmem:[#allocation2 + $0x10] sm:$0xf]
    %v301 = vld [vmem:[#allocation2 + $0x14] sm:$0xf]
    %v302 = vld [vmem:[#allocation2 + $0x18] sm:$0xf]
    %v303 = vld [vmem:[#allocation2 + $0x1c] sm:$0xf]
    %v304 = vld [vmem:[#allocation2 + $0x20] sm:$0xf]
    %v305 = vld [vmem:[#allocation2 + $0x24] sm:$0xf]
    %v306 = vld [vmem:[#allocation2 + $0x28] sm:$0xf]
    %v307 = vld [vmem:[#allocation2 + $0x2c] sm:$0xf]
    %v308 = vld [vmem:[#allocation2 + $0x30] sm:$0xf]
    %v309 = vld [vmem:[#allocation2 + $0x34] sm:$0xf]
    %v310 = vld [vmem:[#allocation2 + $0x38] sm:$0xf]
    %v311 = vld [vmem:[#allocation2 + $0x3c] sm:$0xf]
    %v312 = vpack.c.bf16 %v232, %v233
    %v313 = vpack.c.bf16 %v294, %v295
    %v314 = vpack.c.bf16 %v292, %v293
    %v315 = vpack.c.bf16 %v290, %v291
    %v316 = vpack.c.bf16 %v288, %v289
    %v317 = vpack.c.bf16 %v286, %v287
    %v318 = vpack.c.bf16 %v284, %v285
    %v319 = vpack.c.bf16 %v282, %v283
    %v320 = vpack.c.bf16 %v280, %v281
    %v321 = vpack.c.bf16 %v278, %v279
    %v322 = vpack.c.bf16 %v276, %v277
    %v323 = vpack.c.bf16 %v274, %v275
    %v324 = vpack.c.bf16 %v272, %v273
    %v325 = vpack.c.bf16 %v270, %v271
    %v326 = vpack.c.bf16 %v268, %v269
    %v327 = vpack.c.bf16 %v266, %v267
    %v328 = vpack.c.bf16 %v264, %v265
    %v329 = vpack.c.bf16 %v262, %v263
    %v330 = vpack.c.bf16 %v260, %v261
    %v331 = vpack.c.bf16 %v258, %v259
    %v332 = vpack.c.bf16 %v256, %v257
    %v333 = vpack.c.bf16 %v254, %v255
    %v334 = vpack.c.bf16 %v252, %v253
    %v335 = vpack.c.bf16 %v250, %v251
    %v336 = vpack.c.bf16 %v248, %v249
    %v337 = vpack.c.bf16 %v246, %v247
    %v338 = vpack.c.bf16 %v244, %v245
    %v339 = vpack.c.bf16 %v242, %v243
    %v340 = vpack.c.bf16 %v240, %v241
    %v341 = vpack.c.bf16 %v238, %v239
    %v342 = vpack.c.bf16 %v236, %v237
    %v343 = vpack.c.bf16 %v234, %v235
    %s344 = scalar_lea.vmem [#allocation2], 64
    %v345 = vld [vmem:[%s344] sm:$0xf]
    %v346 = vld [vmem:[%s344 + $0x4] sm:$0xf]
    %v347 = vld [vmem:[%s344 + $0x8] sm:$0xf]
    %v348 = vld [vmem:[%s344 + $0xc] sm:$0xf]
    %v349 = vld [vmem:[%s344 + $0x10] sm:$0xf]
    %v350 = vld [vmem:[%s344 + $0x14] sm:$0xf]
    %v351 = vld [vmem:[%s344 + $0x18] sm:$0xf]
    %v352 = vld [vmem:[%s344 + $0x1c] sm:$0xf]
    %v353 = vld [vmem:[%s344 + $0x20] sm:$0xf]
    %v354 = vld [vmem:[%s344 + $0x24] sm:$0xf]
    %v355 = vld [vmem:[%s344 + $0x28] sm:$0xf]
    %v356 = vld [vmem:[%s344 + $0x2c] sm:$0xf]
    %v357 = vld [vmem:[%s344 + $0x30] sm:$0xf]
    %v358 = vld [vmem:[%s344 + $0x34] sm:$0xf]
    %v359 = vld [vmem:[%s344 + $0x38] sm:$0xf]
    %v360 = vld [vmem:[%s344 + $0x3c] sm:$0xf]
    %v361 = vpack.c.bf16 %v164, %v163
    %v362 = vpack.c.bf16 %v102, %v101
    %v363 = vpack.c.bf16 %v104, %v103
    %v364 = vpack.c.bf16 %v106, %v105
    %v365 = vpack.c.bf16 %v108, %v107
    %v366 = vpack.c.bf16 %v110, %v109
    %v367 = vpack.c.bf16 %v112, %v111
    %v368 = vpack.c.bf16 %v114, %v113
    %v369 = vpack.c.bf16 %v116, %v115
    %v370 = vpack.c.bf16 %v118, %v117
    %v371 = vpack.c.bf16 %v120, %v119
    %v372 = vpack.c.bf16 %v122, %v121
    %v373 = vpack.c.bf16 %v124, %v123
    %v374 = vpack.c.bf16 %v126, %v125
    %v375 = vpack.c.bf16 %v128, %v127
    %v376 = vpack.c.bf16 %v130, %v129
    %v377 = vpack.c.bf16 %v132, %v131
    %v378 = vpack.c.bf16 %v134, %v133
    %v379 = vpack.c.bf16 %v136, %v135
    %v380 = vpack.c.bf16 %v138, %v137
    %v381 = vpack.c.bf16 %v140, %v139
    %v382 = vpack.c.bf16 %v142, %v141
    %v383 = vpack.c.bf16 %v144, %v143
    %v384 = vpack.c.bf16 %v146, %v145
    %v385 = vpack.c.bf16 %v148, %v147
    %v386 = vpack.c.bf16 %v150, %v149
    %v387 = vpack.c.bf16 %v152, %v151
    %v388 = vpack.c.bf16 %v154, %v153
    %v389 = vpack.c.bf16 %v156, %v155
    %v390 = vpack.c.bf16 %v158, %v157
    %v391 = vpack.c.bf16 %v160, %v159
    %v392 = vpack.c.bf16 %v162, %v161
    %v409 = vunpack.c.l.b16 %v345
    %v410 = vunpack.c.l.b16 %v346
    %v411 = vunpack.c.l.b16 %v347
    %v412 = vunpack.c.l.b16 %v348
    %v413 = vunpack.c.l.b16 %v349
    %v414 = vunpack.c.l.b16 %v350
    %v415 = vunpack.c.l.b16 %v351
    %v416 = vunpack.c.l.b16 %v352
    %v417 = vunpack.c.l.b16 %v353
    %v418 = vunpack.c.l.b16 %v354
    %v419 = vunpack.c.l.b16 %v355
    %v420 = vunpack.c.l.b16 %v356
    %v421 = vunpack.c.l.b16 %v357
    %v422 = vunpack.c.l.b16 %v358
    %v423 = vunpack.c.l.b16 %v359
    %v424 = vunpack.c.l.b16 %v360
    %v425 = vpack.c.b16 %v410, %v409
    %v426 = vpack.c.b16 %v412, %v411
    %v427 = vpack.c.b16 %v414, %v413
    %v428 = vpack.c.b16 %v416, %v415
    %v429 = vpack.c.b16 %v418, %v417
    %v430 = vpack.c.b16 %v420, %v419
    %v431 = vpack.c.b16 %v422, %v421
    %v432 = vpack.c.b16 %v424, %v423
    %441 = vmatpush.bf16.msra.mxu0 %v432
    %442 = vmatpush.bf16.msra.mxu0 %v431
    %443 = vmatpush.bf16.msra.mxu0 %v430
    %444 = vmatpush.bf16.msra.mxu0 %v429
    %445 = vmatpush.bf16.msra.mxu0 %v428
    %446 = vmatpush.bf16.msra.mxu0 %v427
    %447 = vmatpush.bf16.msra.mxu0 %v426
    %448 = vmatpush.bf16.msra.mxu0 %v425
    %449 = vmatmul.bf16.gmra.mxu0 %v361
    %v450 = vpop.f32.mrf.mxu0
    %v451 = vadd.f32 0.0, %v450
    %v452 = vpop.f32.mrf.mxu0
    %v453 = vadd.f32 0.0, %v452
    %454 = vmatmul.bf16.gmra.mxu0 %v362
    %v455 = vpop.f32.mrf.mxu0
    %v456 = vadd.f32 0.0, %v455
    %v457 = vpop.f32.mrf.mxu0
    %v458 = vadd.f32 0.0, %v457
    %459 = vmatmul.bf16.gmra.mxu0 %v363
    %v460 = vpop.f32.mrf.mxu0
    %v461 = vadd.f32 0.0, %v460
    %v462 = vpop.f32.mrf.mxu0
    %v463 = vadd.f32 0.0, %v462
    %464 = vmatmul.bf16.gmra.mxu0 %v364
    %v465 = vpop.f32.mrf.mxu0
    %v466 = vadd.f32 0.0, %v465
    %v467 = vpop.f32.mrf.mxu0
    %v468 = vadd.f32 0.0, %v467
    %469 = vmatmul.bf16.gmra.mxu0 %v365
    %v470 = vpop.f32.mrf.mxu0
    %v471 = vadd.f32 0.0, %v470
    %v472 = vpop.f32.mrf.mxu0
    %v473 = vadd.f32 0.0, %v472
    %474 = vmatmul.bf16.gmra.mxu0 %v366
    %v475 = vpop.f32.mrf.mxu0
    %v476 = vadd.f32 0.0, %v475
    %v477 = vpop.f32.mrf.mxu0
    %v478 = vadd.f32 0.0, %v477
    %479 = vmatmul.bf16.gmra.mxu0 %v367
    %v480 = vpop.f32.mrf.mxu0
    %v481 = vadd.f32 0.0, %v480
    %v482 = vpop.f32.mrf.mxu0
    %v483 = vadd.f32 0.0, %v482
    %484 = vmatmul.bf16.gmra.mxu0 %v368
    %v485 = vpop.f32.mrf.mxu0
    %v486 = vadd.f32 0.0, %v485
    %v487 = vpop.f32.mrf.mxu0
    %v488 = vadd.f32 0.0, %v487
    %489 = vmatmul.bf16.gmra.mxu0 %v369
    %v490 = vpop.f32.mrf.mxu0
    %v491 = vadd.f32 0.0, %v490
    %v492 = vpop.f32.mrf.mxu0
    %v493 = vadd.f32 0.0, %v492
    %494 = vmatmul.bf16.gmra.mxu0 %v370
    %v495 = vpop.f32.mrf.mxu0
    %v496 = vadd.f32 0.0, %v495
    %v497 = vpop.f32.mrf.mxu0
    %v498 = vadd.f32 0.0, %v497
    %499 = vmatmul.bf16.gmra.mxu0 %v371
    %v500 = vpop.f32.mrf.mxu0
    %v501 = vadd.f32 0.0, %v500
    %v502 = vpop.f32.mrf.mxu0
    %v503 = vadd.f32 0.0, %v502
    %504 = vmatmul.bf16.gmra.mxu0 %v372
    %v505 = vpop.f32.mrf.mxu0
    %v506 = vadd.f32 0.0, %v505
    %v507 = vpop.f32.mrf.mxu0
    %v508 = vadd.f32 0.0, %v507
    %509 = vmatmul.bf16.gmra.mxu0 %v373
    %v510 = vpop.f32.mrf.mxu0
    %v511 = vadd.f32 0.0, %v510
    %v512 = vpop.f32.mrf.mxu0
    %v513 = vadd.f32 0.0, %v512
    %514 = vmatmul.bf16.gmra.mxu0 %v374
    %v515 = vpop.f32.mrf.mxu0
    %v516 = vadd.f32 0.0, %v515
    %v517 = vpop.f32.mrf.mxu0
    %v518 = vadd.f32 0.0, %v517
    %519 = vmatmul.bf16.gmra.mxu0 %v375
    %v520 = vpop.f32.mrf.mxu0
    %v521 = vadd.f32 0.0, %v520
    %v522 = vpop.f32.mrf.mxu0
    %v523 = vadd.f32 0.0, %v522
    %524 = vmatmul.bf16.gmra.mxu0 %v376
    %v525 = vpop.f32.mrf.mxu0
    %v526 = vadd.f32 0.0, %v525
    %v527 = vpop.f32.mrf.mxu0
    %v528 = vadd.f32 0.0, %v527
    %529 = vmatmul.bf16.gmra.mxu0 %v377
    %v530 = vpop.f32.mrf.mxu0
    %v531 = vadd.f32 0.0, %v530
    %v532 = vpop.f32.mrf.mxu0
    %v533 = vadd.f32 0.0, %v532
    %534 = vmatmul.bf16.gmra.mxu0 %v378
    %v535 = vpop.f32.mrf.mxu0
    %v536 = vadd.f32 0.0, %v535
    %v537 = vpop.f32.mrf.mxu0
    %v538 = vadd.f32 0.0, %v537
    %539 = vmatmul.bf16.gmra.mxu0 %v379
    %v540 = vpop.f32.mrf.mxu0
    %v541 = vadd.f32 0.0, %v540
    %v542 = vpop.f32.mrf.mxu0
    %v543 = vadd.f32 0.0, %v542
    %544 = vmatmul.bf16.gmra.mxu0 %v380
    %v545 = vpop.f32.mrf.mxu0
    %v546 = vadd.f32 0.0, %v545
    %v547 = vpop.f32.mrf.mxu0
    %v548 = vadd.f32 0.0, %v547
    %549 = vmatmul.bf16.gmra.mxu0 %v381
    %v550 = vpop.f32.mrf.mxu0
    %v551 = vadd.f32 0.0, %v550
    %v552 = vpop.f32.mrf.mxu0
    %v553 = vadd.f32 0.0, %v552
    %554 = vmatmul.bf16.gmra.mxu0 %v382
    %v555 = vpop.f32.mrf.mxu0
    %v556 = vadd.f32 0.0, %v555
    %v557 = vpop.f32.mrf.mxu0
    %v558 = vadd.f32 0.0, %v557
    %559 = vmatmul.bf16.gmra.mxu0 %v383
    %v560 = vpop.f32.mrf.mxu0
    %v561 = vadd.f32 0.0, %v560
    %v562 = vpop.f32.mrf.mxu0
    %v563 = vadd.f32 0.0, %v562
    %564 = vmatmul.bf16.gmra.mxu0 %v384
    %v565 = vpop.f32.mrf.mxu0
    %v566 = vadd.f32 0.0, %v565
    %v567 = vpop.f32.mrf.mxu0
    %v568 = vadd.f32 0.0, %v567
    %569 = vmatmul.bf16.gmra.mxu0 %v385
    %v570 = vpop.f32.mrf.mxu0
    %v571 = vadd.f32 0.0, %v570
    %v572 = vpop.f32.mrf.mxu0
    %v573 = vadd.f32 0.0, %v572
    %574 = vmatmul.bf16.gmra.mxu0 %v386
    %v575 = vpop.f32.mrf.mxu0
    %v576 = vadd.f32 0.0, %v575
    %v577 = vpop.f32.mrf.mxu0
    %v578 = vadd.f32 0.0, %v577
    %579 = vmatmul.bf16.gmra.mxu0 %v387
    %v580 = vpop.f32.mrf.mxu0
    %v581 = vadd.f32 0.0, %v580
    %v582 = vpop.f32.mrf.mxu0
    %v583 = vadd.f32 0.0, %v582
    %584 = vmatmul.bf16.gmra.mxu0 %v388
    %v585 = vpop.f32.mrf.mxu0
    %v586 = vadd.f32 0.0, %v585
    %v587 = vpop.f32.mrf.mxu0
    %v588 = vadd.f32 0.0, %v587
    %589 = vmatmul.bf16.gmra.mxu0 %v389
    %v590 = vpop.f32.mrf.mxu0
    %v591 = vadd.f32 0.0, %v590
    %v592 = vpop.f32.mrf.mxu0
    %v593 = vadd.f32 0.0, %v592
    %594 = vmatmul.bf16.gmra.mxu0 %v390
    %v595 = vpop.f32.mrf.mxu0
    %v596 = vadd.f32 0.0, %v595
    %v597 = vpop.f32.mrf.mxu0
    %v598 = vadd.f32 0.0, %v597
    %599 = vmatmul.bf16.gmra.mxu0 %v391
    %v600 = vpop.f32.mrf.mxu0
    %v601 = vadd.f32 0.0, %v600
    %v602 = vpop.f32.mrf.mxu0
    %v603 = vadd.f32 0.0, %v602
    %604 = vmatmul.bf16.gmra.mxu0 %v392
    %v605 = vpop.f32.mrf.mxu0
    %v606 = vadd.f32 0.0, %v605
    %v607 = vpop.f32.mrf.mxu0
    %v608 = vadd.f32 0.0, %v607
    %609 = vdwg.mxu0
    %v626 = vunpack.c.l.b16 %v296
    %v627 = vunpack.c.l.b16 %v297
    %v628 = vunpack.c.l.b16 %v298
    %v629 = vunpack.c.l.b16 %v299
    %v630 = vunpack.c.l.b16 %v300
    %v631 = vunpack.c.l.b16 %v301
    %v632 = vunpack.c.l.b16 %v302
    %v633 = vunpack.c.l.b16 %v303
    %v634 = vunpack.c.l.b16 %v304
    %v635 = vunpack.c.l.b16 %v305
    %v636 = vunpack.c.l.b16 %v306
    %v637 = vunpack.c.l.b16 %v307
    %v638 = vunpack.c.l.b16 %v308
    %v639 = vunpack.c.l.b16 %v309
    %v640 = vunpack.c.l.b16 %v310
    %v641 = vunpack.c.l.b16 %v311
    %v642 = vpack.c.b16 %v627, %v626
    %v643 = vpack.c.b16 %v629, %v628
    %v644 = vpack.c.b16 %v631, %v630
    %v645 = vpack.c.b16 %v633, %v632
    %v646 = vpack.c.b16 %v635, %v634
    %v647 = vpack.c.b16 %v637, %v636
    %v648 = vpack.c.b16 %v639, %v638
    %v649 = vpack.c.b16 %v641, %v640
    %658 = vmatpush.bf16.msra.mxu0 %v649
    %659 = vmatpush.bf16.msra.mxu0 %v648
    %660 = vmatpush.bf16.msra.mxu0 %v647
    %661 = vmatpush.bf16.msra.mxu0 %v646
    %662 = vmatpush.bf16.msra.mxu0 %v645
    %663 = vmatpush.bf16.msra.mxu0 %v644
    %664 = vmatpush.bf16.msra.mxu0 %v643
    %665 = vmatpush.bf16.msra.mxu0 %v642
    %666 = vmatmul.bf16.gmra.mxu0 %v312
    %v667 = vpop.f32.mrf.mxu0
    %v668 = vadd.f32 %v451, %v667
    %v669 = vpop.f32.mrf.mxu0
    %v670 = vadd.f32 %v453, %v669
    %671 = vmatmul.bf16.gmra.mxu0 %v313
    %v672 = vpop.f32.mrf.mxu0
    %v673 = vadd.f32 %v456, %v672
    %v674 = vpop.f32.mrf.mxu0
    %v675 = vadd.f32 %v458, %v674
    %676 = vmatmul.bf16.gmra.mxu0 %v314
    %v677 = vpop.f32.mrf.mxu0
    %v678 = vadd.f32 %v461, %v677
    %v679 = vpop.f32.mrf.mxu0
    %v680 = vadd.f32 %v463, %v679
    %681 = vmatmul.bf16.gmra.mxu0 %v315
    %v682 = vpop.f32.mrf.mxu0
    %v683 = vadd.f32 %v466, %v682
    %v684 = vpop.f32.mrf.mxu0
    %v685 = vadd.f32 %v468, %v684
    %686 = vmatmul.bf16.gmra.mxu0 %v316
    %v687 = vpop.f32.mrf.mxu0
    %v688 = vadd.f32 %v471, %v687
    %v689 = vpop.f32.mrf.mxu0
    %v690 = vadd.f32 %v473, %v689
    %691 = vmatmul.bf16.gmra.mxu0 %v317
    %v692 = vpop.f32.mrf.mxu0
    %v693 = vadd.f32 %v476, %v692
    %v694 = vpop.f32.mrf.mxu0
    %v695 = vadd.f32 %v478, %v694
    %696 = vmatmul.bf16.gmra.mxu0 %v318
    %v697 = vpop.f32.mrf.mxu0
    %v698 = vadd.f32 %v481, %v697
    %v699 = vpop.f32.mrf.mxu0
    %v700 = vadd.f32 %v483, %v699
    %701 = vmatmul.bf16.gmra.mxu0 %v319
    %v702 = vpop.f32.mrf.mxu0
    %v703 = vadd.f32 %v486, %v702
    %v704 = vpop.f32.mrf.mxu0
    %v705 = vadd.f32 %v488, %v704
    %706 = vmatmul.bf16.gmra.mxu0 %v320
    %v707 = vpop.f32.mrf.mxu0
    %v708 = vadd.f32 %v491, %v707
    %v709 = vpop.f32.mrf.mxu0
    %v710 = vadd.f32 %v493, %v709
    %711 = vmatmul.bf16.gmra.mxu0 %v321
    %v712 = vpop.f32.mrf.mxu0
    %v713 = vadd.f32 %v496, %v712
    %v714 = vpop.f32.mrf.mxu0
    %v715 = vadd.f32 %v498, %v714
    %716 = vmatmul.bf16.gmra.mxu0 %v322
    %v717 = vpop.f32.mrf.mxu0
    %v718 = vadd.f32 %v501, %v717
    %v719 = vpop.f32.mrf.mxu0
    %v720 = vadd.f32 %v503, %v719
    %721 = vmatmul.bf16.gmra.mxu0 %v323
    %v722 = vpop.f32.mrf.mxu0
    %v723 = vadd.f32 %v506, %v722
    %v724 = vpop.f32.mrf.mxu0
    %v725 = vadd.f32 %v508, %v724
    %726 = vmatmul.bf16.gmra.mxu0 %v324
    %v727 = vpop.f32.mrf.mxu0
    %v728 = vadd.f32 %v511, %v727
    %v729 = vpop.f32.mrf.mxu0
    %v730 = vadd.f32 %v513, %v729
    %731 = vmatmul.bf16.gmra.mxu0 %v325
    %v732 = vpop.f32.mrf.mxu0
    %v733 = vadd.f32 %v516, %v732
    %v734 = vpop.f32.mrf.mxu0
    %v735 = vadd.f32 %v518, %v734
    %736 = vmatmul.bf16.gmra.mxu0 %v326
    %v737 = vpop.f32.mrf.mxu0
    %v738 = vadd.f32 %v521, %v737
    %v739 = vpop.f32.mrf.mxu0
    %v740 = vadd.f32 %v523, %v739
    %741 = vmatmul.bf16.gmra.mxu0 %v327
    %v742 = vpop.f32.mrf.mxu0
    %v743 = vadd.f32 %v526, %v742
    %v744 = vpop.f32.mrf.mxu0
    %v745 = vadd.f32 %v528, %v744
    %746 = vmatmul.bf16.gmra.mxu0 %v328
    %v747 = vpop.f32.mrf.mxu0
    %v748 = vadd.f32 %v531, %v747
    %v749 = vpop.f32.mrf.mxu0
    %v750 = vadd.f32 %v533, %v749
    %751 = vmatmul.bf16.gmra.mxu0 %v329
    %v752 = vpop.f32.mrf.mxu0
    %v753 = vadd.f32 %v536, %v752
    %v754 = vpop.f32.mrf.mxu0
    %v755 = vadd.f32 %v538, %v754
    %756 = vmatmul.bf16.gmra.mxu0 %v330
    %v757 = vpop.f32.mrf.mxu0
    %v758 = vadd.f32 %v541, %v757
    %v759 = vpop.f32.mrf.mxu0
    %v760 = vadd.f32 %v543, %v759
    %761 = vmatmul.bf16.gmra.mxu0 %v331
    %v762 = vpop.f32.mrf.mxu0
    %v763 = vadd.f32 %v546, %v762
    %v764 = vpop.f32.mrf.mxu0
    %v765 = vadd.f32 %v548, %v764
    %766 = vmatmul.bf16.gmra.mxu0 %v332
    %v767 = vpop.f32.mrf.mxu0
    %v768 = vadd.f32 %v551, %v767
    %v769 = vpop.f32.mrf.mxu0
    %v770 = vadd.f32 %v553, %v769
    %771 = vmatmul.bf16.gmra.mxu0 %v333
    %v772 = vpop.f32.mrf.mxu0
    %v773 = vadd.f32 %v556, %v772
    %v774 = vpop.f32.mrf.mxu0
    %v775 = vadd.f32 %v558, %v774
    %776 = vmatmul.bf16.gmra.mxu0 %v334
    %v777 = vpop.f32.mrf.mxu0
    %v778 = vadd.f32 %v561, %v777
    %v779 = vpop.f32.mrf.mxu0
    %v780 = vadd.f32 %v563, %v779
    %781 = vmatmul.bf16.gmra.mxu0 %v335
    %v782 = vpop.f32.mrf.mxu0
    %v783 = vadd.f32 %v566, %v782
    %v784 = vpop.f32.mrf.mxu0
    %v785 = vadd.f32 %v568, %v784
    %786 = vmatmul.bf16.gmra.mxu0 %v336
    %v787 = vpop.f32.mrf.mxu0
    %v788 = vadd.f32 %v571, %v787
    %v789 = vpop.f32.mrf.mxu0
    %v790 = vadd.f32 %v573, %v789
    %791 = vmatmul.bf16.gmra.mxu0 %v337
    %v792 = vpop.f32.mrf.mxu0
    %v793 = vadd.f32 %v576, %v792
    %v794 = vpop.f32.mrf.mxu0
    %v795 = vadd.f32 %v578, %v794
    %796 = vmatmul.bf16.gmra.mxu0 %v338
    %v797 = vpop.f32.mrf.mxu0
    %v798 = vadd.f32 %v581, %v797
    %v799 = vpop.f32.mrf.mxu0
    %v800 = vadd.f32 %v583, %v799
    %801 = vmatmul.bf16.gmra.mxu0 %v339
    %v802 = vpop.f32.mrf.mxu0
    %v803 = vadd.f32 %v586, %v802
    %v804 = vpop.f32.mrf.mxu0
    %v805 = vadd.f32 %v588, %v804
    %806 = vmatmul.bf16.gmra.mxu0 %v340
    %v807 = vpop.f32.mrf.mxu0
    %v808 = vadd.f32 %v591, %v807
    %v809 = vpop.f32.mrf.mxu0
    %v810 = vadd.f32 %v593, %v809
    %811 = vmatmul.bf16.gmra.mxu0 %v341
    %v812 = vpop.f32.mrf.mxu0
    %v813 = vadd.f32 %v596, %v812
    %v814 = vpop.f32.mrf.mxu0
    %v815 = vadd.f32 %v598, %v814
    %816 = vmatmul.bf16.gmra.mxu0 %v342
    %v817 = vpop.f32.mrf.mxu0
    %v818 = vadd.f32 %v601, %v817
    %v819 = vpop.f32.mrf.mxu0
    %v820 = vadd.f32 %v603, %v819
    %821 = vmatmul.bf16.gmra.mxu0 %v343
    %v822 = vpop.f32.mrf.mxu0
    %v823 = vadd.f32 %v606, %v822
    %v824 = vpop.f32.mrf.mxu0
    %v825 = vadd.f32 %v608, %v824
    %826 = vdwg.mxu0
    %v827 = vrot.slane %v101, 1
    %v828 = vrot.slane %v102, 1
    %v829 = vrot.slane %v103, 1
    %v830 = vrot.slane %v104, 1
    %v831 = vrot.slane %v105, 1
    %v832 = vrot.slane %v106, 1
    %v833 = vrot.slane %v107, 1
    %v834 = vrot.slane %v108, 1
    %v835 = vrot.slane %v109, 1
    %v836 = vrot.slane %v110, 1
    %v837 = vrot.slane %v111, 1
    %v838 = vrot.slane %v112, 1
    %v839 = vrot.slane %v113, 1
    %v840 = vrot.slane %v114, 1
    %v841 = vrot.slane %v115, 1
    %v842 = vrot.slane %v116, 1
    %v843 = vrot.slane %v117, 1
    %v844 = vrot.slane %v118, 1
    %v845 = vrot.slane %v119, 1
    %v846 = vrot.slane %v120, 1
    %v847 = vrot.slane %v121, 1
    %v848 = vrot.slane %v122, 1
    %v849 = vrot.slane %v123, 1
    %v850 = vrot.slane %v124, 1
    %v851 = vrot.slane %v125, 1
    %v852 = vrot.slane %v126, 1
    %v853 = vrot.slane %v127, 1
    %v854 = vrot.slane %v128, 1
    %v855 = vrot.slane %v129, 1
    %v856 = vrot.slane %v130, 1
    %v857 = vrot.slane %v131, 1
    %v858 = vrot.slane %v132, 1
    %v859 = vrot.slane %v133, 1
    %v860 = vrot.slane %v134, 1
    %v861 = vrot.slane %v135, 1
    %v862 = vrot.slane %v136, 1
    %v863 = vrot.slane %v137, 1
    %v864 = vrot.slane %v138, 1
    %v865 = vrot.slane %v139, 1
    %v866 = vrot.slane %v140, 1
    %v867 = vrot.slane %v141, 1
    %v868 = vrot.slane %v142, 1
    %v869 = vrot.slane %v143, 1
    %v870 = vrot.slane %v144, 1
    %v871 = vrot.slane %v145, 1
    %v872 = vrot.slane %v146, 1
    %v873 = vrot.slane %v147, 1
    %v874 = vrot.slane %v148, 1
    %v875 = vrot.slane %v149, 1
    %v876 = vrot.slane %v150, 1
    %v877 = vrot.slane %v151, 1
    %v878 = vrot.slane %v152, 1
    %v879 = vrot.slane %v153, 1
    %v880 = vrot.slane %v154, 1
    %v881 = vrot.slane %v155, 1
    %v882 = vrot.slane %v156, 1
    %v883 = vrot.slane %v157, 1
    %v884 = vrot.slane %v158, 1
    %v885 = vrot.slane %v159, 1
    %v886 = vrot.slane %v160, 1
    %v887 = vrot.slane %v161, 1
    %v888 = vrot.slane %v162, 1
    %v889 = vrot.slane %v163, 1
    %v890 = vrot.slane %v164, 1
    %vm891 = vcmp.lt.s32.totalorder %v230, 7
    %v892 = vsel %vm891, %v889, %v890
    %v893 = vsel %vm891, %v888, %v889
    %v894 = vsel %vm891, %v887, %v888
    %v895 = vsel %vm891, %v886, %v887
    %v896 = vsel %vm891, %v885, %v886
    %v897 = vsel %vm891, %v884, %v885
    %v898 = vsel %vm891, %v883, %v884
    %v899 = vsel %vm891, %v882, %v883
    %v900 = vsel %vm891, %v881, %v882
    %v901 = vsel %vm891, %v880, %v881
    %v902 = vsel %vm891, %v879, %v880
    %v903 = vsel %vm891, %v878, %v879
    %v904 = vsel %vm891, %v877, %v878
    %v905 = vsel %vm891, %v876, %v877
    %v906 = vsel %vm891, %v875, %v876
    %v907 = vsel %vm891, %v874, %v875
    %v908 = vsel %vm891, %v873, %v874
    %v909 = vsel %vm891, %v872, %v873
    %v910 = vsel %vm891, %v871, %v872
    %v911 = vsel %vm891, %v870, %v871
    %v912 = vsel %vm891, %v869, %v870
    %v913 = vsel %vm891, %v868, %v869
    %v914 = vsel %vm891, %v867, %v868
    %v915 = vsel %vm891, %v866, %v867
    %v916 = vsel %vm891, %v865, %v866
    %v917 = vsel %vm891, %v864, %v865
    %v918 = vsel %vm891, %v863, %v864
    %v919 = vsel %vm891, %v862, %v863
    %v920 = vsel %vm891, %v861, %v862
    %v921 = vsel %vm891, %v860, %v861
    %v922 = vsel %vm891, %v859, %v860
    %v923 = vsel %vm891, %v858, %v859
    %v924 = vsel %vm891, %v857, %v858
    %v925 = vsel %vm891, %v856, %v857
    %v926 = vsel %vm891, %v855, %v856
    %v927 = vsel %vm891, %v854, %v855
    %v928 = vsel %vm891, %v853, %v854
    %v929 = vsel %vm891, %v852, %v853
    %v930 = vsel %vm891, %v851, %v852
    %v931 = vsel %vm891, %v850, %v851
    %v932 = vsel %vm891, %v849, %v850
    %v933 = vsel %vm891, %v848, %v849
    %v934 = vsel %vm891, %v847, %v848
    %v935 = vsel %vm891, %v846, %v847
    %v936 = vsel %vm891, %v845, %v846
    %v937 = vsel %vm891, %v844, %v845
    %v938 = vsel %vm891, %v843, %v844
    %v939 = vsel %vm891, %v842, %v843
    %v940 = vsel %vm891, %v841, %v842
    %v941 = vsel %vm891, %v840, %v841
    %v942 = vsel %vm891, %v839, %v840
    %v943 = vsel %vm891, %v838, %v839
    %v944 = vsel %vm891, %v837, %v838
    %v945 = vsel %vm891, %v836, %v837
    %v946 = vsel %vm891, %v835, %v836
    %v947 = vsel %vm891, %v834, %v835
    %v948 = vsel %vm891, %v833, %v834
    %v949 = vsel %vm891, %v832, %v833
    %v950 = vsel %vm891, %v831, %v832
    %v951 = vsel %vm891, %v830, %v831
    %v952 = vsel %vm891, %v829, %v830
    %v953 = vsel %vm891, %v828, %v829
    %v954 = vsel %vm891, %v827, %v828
    %v955 = vsel %vm891, %v890, %v827
    %s956 = scalar_lea.vmem [#allocation2], 128
    %v957 = vld [vmem:[%s956] sm:$0xf]
    %v958 = vld [vmem:[%s956 + $0x4] sm:$0xf]
    %v959 = vld [vmem:[%s956 + $0x8] sm:$0xf]
    %v960 = vld [vmem:[%s956 + $0xc] sm:$0xf]
    %v961 = vld [vmem:[%s956 + $0x10] sm:$0xf]
    %v962 = vld [vmem:[%s956 + $0x14] sm:$0xf]
    %v963 = vld [vmem:[%s956 + $0x18] sm:$0xf]
    %v964 = vld [vmem:[%s956 + $0x1c] sm:$0xf]
    %v965 = vld [vmem:[%s956 + $0x20] sm:$0xf]
    %v966 = vld [vmem:[%s956 + $0x24] sm:$0xf]
    %v967 = vld [vmem:[%s956 + $0x28] sm:$0xf]
    %v968 = vld [vmem:[%s956 + $0x2c] sm:$0xf]
    %v969 = vld [vmem:[%s956 + $0x30] sm:$0xf]
    %v970 = vld [vmem:[%s956 + $0x34] sm:$0xf]
    %v971 = vld [vmem:[%s956 + $0x38] sm:$0xf]
    %v972 = vld [vmem:[%s956 + $0x3c] sm:$0xf]
    %v973 = vpack.c.bf16 %v955, %v892
    %v974 = vpack.c.bf16 %v953, %v954
    %v975 = vpack.c.bf16 %v951, %v952
    %v976 = vpack.c.bf16 %v949, %v950
    %v977 = vpack.c.bf16 %v947, %v948
    %v978 = vpack.c.bf16 %v945, %v946
    %v979 = vpack.c.bf16 %v943, %v944
    %v980 = vpack.c.bf16 %v941, %v942
    %v981 = vpack.c.bf16 %v939, %v940
    %v982 = vpack.c.bf16 %v937, %v938
    %v983 = vpack.c.bf16 %v935, %v936
    %v984 = vpack.c.bf16 %v933, %v934
    %v985 = vpack.c.bf16 %v931, %v932
    %v986 = vpack.c.bf16 %v929, %v930
    %v987 = vpack.c.bf16 %v927, %v928
    %v988 = vpack.c.bf16 %v925, %v926
    %v989 = vpack.c.bf16 %v923, %v924
    %v990 = vpack.c.bf16 %v921, %v922
    %v991 = vpack.c.bf16 %v919, %v920
    %v992 = vpack.c.bf16 %v917, %v918
    %v993 = vpack.c.bf16 %v915, %v916
    %v994 = vpack.c.bf16 %v913, %v914
    %v995 = vpack.c.bf16 %v911, %v912
    %v996 = vpack.c.bf16 %v909, %v910
    %v997 = vpack.c.bf16 %v907, %v908
    %v998 = vpack.c.bf16 %v905, %v906
    %v999 = vpack.c.bf16 %v903, %v904
    %v1000 = vpack.c.bf16 %v901, %v902
    %v1001 = vpack.c.bf16 %v899, %v900
    %v1002 = vpack.c.bf16 %v897, %v898
    %v1003 = vpack.c.bf16 %v895, %v896
    %v1004 = vpack.c.bf16 %v893, %v894
    %v1021 = vunpack.c.l.b16 %v957
    %v1022 = vunpack.c.l.b16 %v958
    %v1023 = vunpack.c.l.b16 %v959
    %v1024 = vunpack.c.l.b16 %v960
    %v1025 = vunpack.c.l.b16 %v961
    %v1026 = vunpack.c.l.b16 %v962
    %v1027 = vunpack.c.l.b16 %v963
    %v1028 = vunpack.c.l.b16 %v964
    %v1029 = vunpack.c.l.b16 %v965
    %v1030 = vunpack.c.l.b16 %v966
    %v1031 = vunpack.c.l.b16 %v967
    %v1032 = vunpack.c.l.b16 %v968
    %v1033 = vunpack.c.l.b16 %v969
    %v1034 = vunpack.c.l.b16 %v970
    %v1035 = vunpack.c.l.b16 %v971
    %v1036 = vunpack.c.l.b16 %v972
    %v1037 = vpack.c.b16 %v1022, %v1021
    %v1038 = vpack.c.b16 %v1024, %v1023
    %v1039 = vpack.c.b16 %v1026, %v1025
    %v1040 = vpack.c.b16 %v1028, %v1027
    %v1041 = vpack.c.b16 %v1030, %v1029
    %v1042 = vpack.c.b16 %v1032, %v1031
    %v1043 = vpack.c.b16 %v1034, %v1033
    %v1044 = vpack.c.b16 %v1036, %v1035
    %1053 = vmatpush.bf16.msra.mxu0 %v1044
    %1054 = vmatpush.bf16.msra.mxu0 %v1043
    %1055 = vmatpush.bf16.msra.mxu0 %v1042
    %1056 = vmatpush.bf16.msra.mxu0 %v1041
    %1057 = vmatpush.bf16.msra.mxu0 %v1040
    %1058 = vmatpush.bf16.msra.mxu0 %v1039
    %1059 = vmatpush.bf16.msra.mxu0 %v1038
    %1060 = vmatpush.bf16.msra.mxu0 %v1037
    %1061 = vmatmul.bf16.gmra.mxu0 %v973
    %v1062 = vpop.f32.mrf.mxu0
    %v1063 = vadd.f32 0.0, %v1062
    %v1064 = vpop.f32.mrf.mxu0
    %v1065 = vadd.f32 0.0, %v1064
    %1066 = vmatmul.bf16.gmra.mxu0 %v974
    %v1067 = vpop.f32.mrf.mxu0
    %v1068 = vadd.f32 0.0, %v1067
    %v1069 = vpop.f32.mrf.mxu0
    %v1070 = vadd.f32 0.0, %v1069
    %1071 = vmatmul.bf16.gmra.mxu0 %v975
    %v1072 = vpop.f32.mrf.mxu0
    %v1073 = vadd.f32 0.0, %v1072
    %v1074 = vpop.f32.mrf.mxu0
    %v1075 = vadd.f32 0.0, %v1074
    %1076 = vmatmul.bf16.gmra.mxu0 %v976
    %v1077 = vpop.f32.mrf.mxu0
    %v1078 = vadd.f32 0.0, %v1077
    %v1079 = vpop.f32.mrf.mxu0
    %v1080 = vadd.f32 0.0, %v1079
    %1081 = vmatmul.bf16.gmra.mxu0 %v977
    %v1082 = vpop.f32.mrf.mxu0
    %v1083 = vadd.f32 0.0, %v1082
    %v1084 = vpop.f32.mrf.mxu0
    %v1085 = vadd.f32 0.0, %v1084
    %1086 = vmatmul.bf16.gmra.mxu0 %v978
    %v1087 = vpop.f32.mrf.mxu0
    %v1088 = vadd.f32 0.0, %v1087
    %v1089 = vpop.f32.mrf.mxu0
    %v1090 = vadd.f32 0.0, %v1089
    %1091 = vmatmul.bf16.gmra.mxu0 %v979
    %v1092 = vpop.f32.mrf.mxu0
    %v1093 = vadd.f32 0.0, %v1092
    %v1094 = vpop.f32.mrf.mxu0
    %v1095 = vadd.f32 0.0, %v1094
    %1096 = vmatmul.bf16.gmra.mxu0 %v980
    %v1097 = vpop.f32.mrf.mxu0
    %v1098 = vadd.f32 0.0, %v1097
    %v1099 = vpop.f32.mrf.mxu0
    %v1100 = vadd.f32 0.0, %v1099
    %1101 = vmatmul.bf16.gmra.mxu0 %v981
    %v1102 = vpop.f32.mrf.mxu0
    %v1103 = vadd.f32 0.0, %v1102
    %v1104 = vpop.f32.mrf.mxu0
    %v1105 = vadd.f32 0.0, %v1104
    %1106 = vmatmul.bf16.gmra.mxu0 %v982
    %v1107 = vpop.f32.mrf.mxu0
    %v1108 = vadd.f32 0.0, %v1107
    %v1109 = vpop.f32.mrf.mxu0
    %v1110 = vadd.f32 0.0, %v1109
    %1111 = vmatmul.bf16.gmra.mxu0 %v983
    %v1112 = vpop.f32.mrf.mxu0
    %v1113 = vadd.f32 0.0, %v1112
    %v1114 = vpop.f32.mrf.mxu0
    %v1115 = vadd.f32 0.0, %v1114
    %1116 = vmatmul.bf16.gmra.mxu0 %v984
    %v1117 = vpop.f32.mrf.mxu0
    %v1118 = vadd.f32 0.0, %v1117
    %v1119 = vpop.f32.mrf.mxu0
    %v1120 = vadd.f32 0.0, %v1119
    %1121 = vmatmul.bf16.gmra.mxu0 %v985
    %v1122 = vpop.f32.mrf.mxu0
    %v1123 = vadd.f32 0.0, %v1122
    %v1124 = vpop.f32.mrf.mxu0
    %v1125 = vadd.f32 0.0, %v1124
    %1126 = vmatmul.bf16.gmra.mxu0 %v986
    %v1127 = vpop.f32.mrf.mxu0
    %v1128 = vadd.f32 0.0, %v1127
    %v1129 = vpop.f32.mrf.mxu0
    %v1130 = vadd.f32 0.0, %v1129
    %1131 = vmatmul.bf16.gmra.mxu0 %v987
    %v1132 = vpop.f32.mrf.mxu0
    %v1133 = vadd.f32 0.0, %v1132
    %v1134 = vpop.f32.mrf.mxu0
    %v1135 = vadd.f32 0.0, %v1134
    %1136 = vmatmul.bf16.gmra.mxu0 %v988
    %v1137 = vpop.f32.mrf.mxu0
    %v1138 = vadd.f32 0.0, %v1137
    %v1139 = vpop.f32.mrf.mxu0
    %v1140 = vadd.f32 0.0, %v1139
    %1141 = vmatmul.bf16.gmra.mxu0 %v989
    %v1142 = vpop.f32.mrf.mxu0
    %v1143 = vadd.f32 0.0, %v1142
    %v1144 = vpop.f32.mrf.mxu0
    %v1145 = vadd.f32 0.0, %v1144
    %1146 = vmatmul.bf16.gmra.mxu0 %v990
    %v1147 = vpop.f32.mrf.mxu0
    %v1148 = vadd.f32 0.0, %v1147
    %v1149 = vpop.f32.mrf.mxu0
    %v1150 = vadd.f32 0.0, %v1149
    %1151 = vmatmul.bf16.gmra.mxu0 %v991
    %v1152 = vpop.f32.mrf.mxu0
    %v1153 = vadd.f32 0.0, %v1152
    %v1154 = vpop.f32.mrf.mxu0
    %v1155 = vadd.f32 0.0, %v1154
    %1156 = vmatmul.bf16.gmra.mxu0 %v992
    %v1157 = vpop.f32.mrf.mxu0
    %v1158 = vadd.f32 0.0, %v1157
    %v1159 = vpop.f32.mrf.mxu0
    %v1160 = vadd.f32 0.0, %v1159
    %1161 = vmatmul.bf16.gmra.mxu0 %v993
    %v1162 = vpop.f32.mrf.mxu0
    %v1163 = vadd.f32 0.0, %v1162
    %v1164 = vpop.f32.mrf.mxu0
    %v1165 = vadd.f32 0.0, %v1164
    %1166 = vmatmul.bf16.gmra.mxu0 %v994
    %v1167 = vpop.f32.mrf.mxu0
    %v1168 = vadd.f32 0.0, %v1167
    %v1169 = vpop.f32.mrf.mxu0
    %v1170 = vadd.f32 0.0, %v1169
    %1171 = vmatmul.bf16.gmra.mxu0 %v995
    %v1172 = vpop.f32.mrf.mxu0
    %v1173 = vadd.f32 0.0, %v1172
    %v1174 = vpop.f32.mrf.mxu0
    %v1175 = vadd.f32 0.0, %v1174
    %1176 = vmatmul.bf16.gmra.mxu0 %v996
    %v1177 = vpop.f32.mrf.mxu0
    %v1178 = vadd.f32 0.0, %v1177
    %v1179 = vpop.f32.mrf.mxu0
    %v1180 = vadd.f32 0.0, %v1179
    %1181 = vmatmul.bf16.gmra.mxu0 %v997
    %v1182 = vpop.f32.mrf.mxu0
    %v1183 = vadd.f32 0.0, %v1182
    %v1184 = vpop.f32.mrf.mxu0
    %v1185 = vadd.f32 0.0, %v1184
    %1186 = vmatmul.bf16.gmra.mxu0 %v998
    %v1187 = vpop.f32.mrf.mxu0
    %v1188 = vadd.f32 0.0, %v1187
    %v1189 = vpop.f32.mrf.mxu0
    %v1190 = vadd.f32 0.0, %v1189
    %1191 = vmatmul.bf16.gmra.mxu0 %v999
    %v1192 = vpop.f32.mrf.mxu0
    %v1193 = vadd.f32 0.0, %v1192
    %v1194 = vpop.f32.mrf.mxu0
    %v1195 = vadd.f32 0.0, %v1194
    %1196 = vmatmul.bf16.gmra.mxu0 %v1000
    %v1197 = vpop.f32.mrf.mxu0
    %v1198 = vadd.f32 0.0, %v1197
    %v1199 = vpop.f32.mrf.mxu0
    %v1200 = vadd.f32 0.0, %v1199
    %1201 = vmatmul.bf16.gmra.mxu0 %v1001
    %v1202 = vpop.f32.mrf.mxu0
    %v1203 = vadd.f32 0.0, %v1202
    %v1204 = vpop.f32.mrf.mxu0
    %v1205 = vadd.f32 0.0, %v1204
    %1206 = vmatmul.bf16.gmra.mxu0 %v1002
    %v1207 = vpop.f32.mrf.mxu0
    %v1208 = vadd.f32 0.0, %v1207
    %v1209 = vpop.f32.mrf.mxu0
    %v1210 = vadd.f32 0.0, %v1209
    %1211 = vmatmul.bf16.gmra.mxu0 %v1003
    %v1212 = vpop.f32.mrf.mxu0
    %v1213 = vadd.f32 0.0, %v1212
    %v1214 = vpop.f32.mrf.mxu0
    %v1215 = vadd.f32 0.0, %v1214
    %1216 = vmatmul.bf16.gmra.mxu0 %v1004
    %v1217 = vpop.f32.mrf.mxu0
    %v1218 = vadd.f32 0.0, %v1217
    %v1219 = vpop.f32.mrf.mxu0
    %v1220 = vadd.f32 0.0, %v1219
    %1221 = vdwg.mxu0
    %v1222 = vadd.f32 %v668, %v1063
    %v1223 = vadd.f32 %v670, %v1065
    %v1224 = vadd.f32 %v673, %v1068
    %v1225 = vadd.f32 %v675, %v1070
    %v1226 = vadd.f32 %v678, %v1073
    %v1227 = vadd.f32 %v680, %v1075
    %v1228 = vadd.f32 %v683, %v1078
    %v1229 = vadd.f32 %v685, %v1080
    %v1230 = vadd.f32 %v688, %v1083
    %v1231 = vadd.f32 %v690, %v1085
    %v1232 = vadd.f32 %v693, %v1088
    %v1233 = vadd.f32 %v695, %v1090
    %v1234 = vadd.f32 %v698, %v1093
    %v1235 = vadd.f32 %v700, %v1095
    %v1236 = vadd.f32 %v703, %v1098
    %v1237 = vadd.f32 %v705, %v1100
    %v1238 = vadd.f32 %v708, %v1103
    %v1239 = vadd.f32 %v710, %v1105
    %v1240 = vadd.f32 %v713, %v1108
    %v1241 = vadd.f32 %v715, %v1110
    %v1242 = vadd.f32 %v718, %v1113
    %v1243 = vadd.f32 %v720, %v1115
    %v1244 = vadd.f32 %v723, %v1118
    %v1245 = vadd.f32 %v725, %v1120
    %v1246 = vadd.f32 %v728, %v1123
    %v1247 = vadd.f32 %v730, %v1125
    %v1248 = vadd.f32 %v733, %v1128
    %v1249 = vadd.f32 %v735, %v1130
    %v1250 = vadd.f32 %v738, %v1133
    %v1251 = vadd.f32 %v740, %v1135
    %v1252 = vadd.f32 %v743, %v1138
    %v1253 = vadd.f32 %v745, %v1140
    %v1254 = vadd.f32 %v748, %v1143
    %v1255 = vadd.f32 %v750, %v1145
    %v1256 = vadd.f32 %v753, %v1148
    %v1257 = vadd.f32 %v755, %v1150
    %v1258 = vadd.f32 %v758, %v1153
    %v1259 = vadd.f32 %v760, %v1155
    %v1260 = vadd.f32 %v763, %v1158
    %v1261 = vadd.f32 %v765, %v1160
    %v1262 = vadd.f32 %v768, %v1163
    %v1263 = vadd.f32 %v770, %v1165
    %v1264 = vadd.f32 %v773, %v1168
    %v1265 = vadd.f32 %v775, %v1170
    %v1266 = vadd.f32 %v778, %v1173
    %v1267 = vadd.f32 %v780, %v1175
    %v1268 = vadd.f32 %v783, %v1178
    %v1269 = vadd.f32 %v785, %v1180
    %v1270 = vadd.f32 %v788, %v1183
    %v1271 = vadd.f32 %v790, %v1185
    %v1272 = vadd.f32 %v793, %v1188
    %v1273 = vadd.f32 %v795, %v1190
    %v1274 = vadd.f32 %v798, %v1193
    %v1275 = vadd.f32 %v800, %v1195
    %v1276 = vadd.f32 %v803, %v1198
    %v1277 = vadd.f32 %v805, %v1200
    %v1278 = vadd.f32 %v808, %v1203
    %v1279 = vadd.f32 %v810, %v1205
    %v1280 = vadd.f32 %v813, %v1208
    %v1281 = vadd.f32 %v815, %v1210
    %v1282 = vadd.f32 %v818, %v1213
    %v1283 = vadd.f32 %v820, %v1215
    %v1284 = vadd.f32 %v823, %v1218
    %v1285 = vadd.f32 %v825, %v1220
    %s1286 = scalar_lea.vmem [#allocation2], 192
    %v1287 = vld [vmem:[%s1286] sm:$0xf]
    %v1288 = vld [vmem:[%s1286 + $0x4] sm:$0xf]
    %v1289 = vld [vmem:[%s1286 + $0x8] sm:$0xf]
    %v1290 = vld [vmem:[%s1286 + $0xc] sm:$0xf]
    %v1291 = vld [vmem:[%s1286 + $0x10] sm:$0xf]
    %v1292 = vld [vmem:[%s1286 + $0x14] sm:$0xf]
    %v1293 = vld [vmem:[%s1286 + $0x18] sm:$0xf]
    %v1294 = vld [vmem:[%s1286 + $0x1c] sm:$0xf]
    %v1295 = vld [vmem:[%s1286 + $0x20] sm:$0xf]
    %v1296 = vld [vmem:[%s1286 + $0x24] sm:$0xf]
    %v1297 = vld [vmem:[%s1286 + $0x28] sm:$0xf]
    %v1298 = vld [vmem:[%s1286 + $0x2c] sm:$0xf]
    %v1299 = vld [vmem:[%s1286 + $0x30] sm:$0xf]
    %v1300 = vld [vmem:[%s1286 + $0x34] sm:$0xf]
    %v1301 = vld [vmem:[%s1286 + $0x38] sm:$0xf]
    %v1302 = vld [vmem:[%s1286 + $0x3c] sm:$0xf]
    %v1319 = vunpack.c.l.b16 %v1287
    %v1320 = vunpack.c.l.b16 %v1288
    %v1321 = vunpack.c.l.b16 %v1289
    %v1322 = vunpack.c.l.b16 %v1290
    %v1323 = vunpack.c.l.b16 %v1291
    %v1324 = vunpack.c.l.b16 %v1292
    %v1325 = vunpack.c.l.b16 %v1293
    %v1326 = vunpack.c.l.b16 %v1294
    %v1327 = vunpack.c.l.b16 %v1295
    %v1328 = vunpack.c.l.b16 %v1296
    %v1329 = vunpack.c.l.b16 %v1297
    %v1330 = vunpack.c.l.b16 %v1298
    %v1331 = vunpack.c.l.b16 %v1299
    %v1332 = vunpack.c.l.b16 %v1300
    %v1333 = vunpack.c.l.b16 %v1301
    %v1334 = vunpack.c.l.b16 %v1302
    %v1335 = vpack.c.b16 %v1320, %v1319
    %v1336 = vpack.c.b16 %v1322, %v1321
    %v1337 = vpack.c.b16 %v1324, %v1323
    %v1338 = vpack.c.b16 %v1326, %v1325
    %v1339 = vpack.c.b16 %v1328, %v1327
    %v1340 = vpack.c.b16 %v1330, %v1329
    %v1341 = vpack.c.b16 %v1332, %v1331
    %v1342 = vpack.c.b16 %v1334, %v1333
    %1351 = vmatpush.bf16.msra.mxu0 %v1342
    %1352 = vmatpush.bf16.msra.mxu0 %v1341
    %1353 = vmatpush.bf16.msra.mxu0 %v1340
    %1354 = vmatpush.bf16.msra.mxu0 %v1339
    %1355 = vmatpush.bf16.msra.mxu0 %v1338
    %1356 = vmatpush.bf16.msra.mxu0 %v1337
    %1357 = vmatpush.bf16.msra.mxu0 %v1336
    %1358 = vmatpush.bf16.msra.mxu0 %v1335
    %1359 = vmatmul.bf16.gmra.mxu0 %v313
    %v1360 = vpop.f32.mrf.mxu0
    %v1361 = vadd.f32 0.0, %v1360
    %v1362 = vpop.f32.mrf.mxu0
    %v1363 = vadd.f32 0.0, %v1362
    %1364 = vmatmul.bf16.gmra.mxu0 %v314
    %v1365 = vpop.f32.mrf.mxu0
    %v1366 = vadd.f32 0.0, %v1365
    %v1367 = vpop.f32.mrf.mxu0
    %v1368 = vadd.f32 0.0, %v1367
    %1369 = vmatmul.bf16.gmra.mxu0 %v315
    %v1370 = vpop.f32.mrf.mxu0
    %v1371 = vadd.f32 0.0, %v1370
    %v1372 = vpop.f32.mrf.mxu0
    %v1373 = vadd.f32 0.0, %v1372
    %1374 = vmatmul.bf16.gmra.mxu0 %v316
    %v1375 = vpop.f32.mrf.mxu0
    %v1376 = vadd.f32 0.0, %v1375
    %v1377 = vpop.f32.mrf.mxu0
    %v1378 = vadd.f32 0.0, %v1377
    %1379 = vmatmul.bf16.gmra.mxu0 %v317
    %v1380 = vpop.f32.mrf.mxu0
    %v1381 = vadd.f32 0.0, %v1380
    %v1382 = vpop.f32.mrf.mxu0
    %v1383 = vadd.f32 0.0, %v1382
    %1384 = vmatmul.bf16.gmra.mxu0 %v318
    %v1385 = vpop.f32.mrf.mxu0
    %v1386 = vadd.f32 0.0, %v1385
    %v1387 = vpop.f32.mrf.mxu0
    %v1388 = vadd.f32 0.0, %v1387
    %1389 = vmatmul.bf16.gmra.mxu0 %v319
    %v1390 = vpop.f32.mrf.mxu0
    %v1391 = vadd.f32 0.0, %v1390
    %v1392 = vpop.f32.mrf.mxu0
    %v1393 = vadd.f32 0.0, %v1392
    %1394 = vmatmul.bf16.gmra.mxu0 %v320
    %v1395 = vpop.f32.mrf.mxu0
    %v1396 = vadd.f32 0.0, %v1395
    %v1397 = vpop.f32.mrf.mxu0
    %v1398 = vadd.f32 0.0, %v1397
    %1399 = vmatmul.bf16.gmra.mxu0 %v321
    %v1400 = vpop.f32.mrf.mxu0
    %v1401 = vadd.f32 0.0, %v1400
    %v1402 = vpop.f32.mrf.mxu0
    %v1403 = vadd.f32 0.0, %v1402
    %1404 = vmatmul.bf16.gmra.mxu0 %v322
    %v1405 = vpop.f32.mrf.mxu0
    %v1406 = vadd.f32 0.0, %v1405
    %v1407 = vpop.f32.mrf.mxu0
    %v1408 = vadd.f32 0.0, %v1407
    %1409 = vmatmul.bf16.gmra.mxu0 %v323
    %v1410 = vpop.f32.mrf.mxu0
    %v1411 = vadd.f32 0.0, %v1410
    %v1412 = vpop.f32.mrf.mxu0
    %v1413 = vadd.f32 0.0, %v1412
    %1414 = vmatmul.bf16.gmra.mxu0 %v324
    %v1415 = vpop.f32.mrf.mxu0
    %v1416 = vadd.f32 0.0, %v1415
    %v1417 = vpop.f32.mrf.mxu0
    %v1418 = vadd.f32 0.0, %v1417
    %1419 = vmatmul.bf16.gmra.mxu0 %v325
    %v1420 = vpop.f32.mrf.mxu0
    %v1421 = vadd.f32 0.0, %v1420
    %v1422 = vpop.f32.mrf.mxu0
    %v1423 = vadd.f32 0.0, %v1422
    %1424 = vmatmul.bf16.gmra.mxu0 %v326
    %v1425 = vpop.f32.mrf.mxu0
    %v1426 = vadd.f32 0.0, %v1425
    %v1427 = vpop.f32.mrf.mxu0
    %v1428 = vadd.f32 0.0, %v1427
    %1429 = vmatmul.bf16.gmra.mxu0 %v327
    %v1430 = vpop.f32.mrf.mxu0
    %v1431 = vadd.f32 0.0, %v1430
    %v1432 = vpop.f32.mrf.mxu0
    %v1433 = vadd.f32 0.0, %v1432
    %1434 = vmatmul.bf16.gmra.mxu0 %v328
    %v1435 = vpop.f32.mrf.mxu0
    %v1436 = vadd.f32 0.0, %v1435
    %v1437 = vpop.f32.mrf.mxu0
    %v1438 = vadd.f32 0.0, %v1437
    %1439 = vmatmul.bf16.gmra.mxu0 %v329
    %v1440 = vpop.f32.mrf.mxu0
    %v1441 = vadd.f32 0.0, %v1440
    %v1442 = vpop.f32.mrf.mxu0
    %v1443 = vadd.f32 0.0, %v1442
    %1444 = vmatmul.bf16.gmra.mxu0 %v330
    %v1445 = vpop.f32.mrf.mxu0
    %v1446 = vadd.f32 0.0, %v1445
    %v1447 = vpop.f32.mrf.mxu0
    %v1448 = vadd.f32 0.0, %v1447
    %1449 = vmatmul.bf16.gmra.mxu0 %v331
    %v1450 = vpop.f32.mrf.mxu0
    %v1451 = vadd.f32 0.0, %v1450
    %v1452 = vpop.f32.mrf.mxu0
    %v1453 = vadd.f32 0.0, %v1452
    %1454 = vmatmul.bf16.gmra.mxu0 %v332
    %v1455 = vpop.f32.mrf.mxu0
    %v1456 = vadd.f32 0.0, %v1455
    %v1457 = vpop.f32.mrf.mxu0
    %v1458 = vadd.f32 0.0, %v1457
    %1459 = vmatmul.bf16.gmra.mxu0 %v333
    %v1460 = vpop.f32.mrf.mxu0
    %v1461 = vadd.f32 0.0, %v1460
    %v1462 = vpop.f32.mrf.mxu0
    %v1463 = vadd.f32 0.0, %v1462
    %1464 = vmatmul.bf16.gmra.mxu0 %v334
    %v1465 = vpop.f32.mrf.mxu0
    %v1466 = vadd.f32 0.0, %v1465
    %v1467 = vpop.f32.mrf.mxu0
    %v1468 = vadd.f32 0.0, %v1467
    %1469 = vmatmul.bf16.gmra.mxu0 %v335
    %v1470 = vpop.f32.mrf.mxu0
    %v1471 = vadd.f32 0.0, %v1470
    %v1472 = vpop.f32.mrf.mxu0
    %v1473 = vadd.f32 0.0, %v1472
    %1474 = vmatmul.bf16.gmra.mxu0 %v336
    %v1475 = vpop.f32.mrf.mxu0
    %v1476 = vadd.f32 0.0, %v1475
    %v1477 = vpop.f32.mrf.mxu0
    %v1478 = vadd.f32 0.0, %v1477
    %1479 = vmatmul.bf16.gmra.mxu0 %v337
    %v1480 = vpop.f32.mrf.mxu0
    %v1481 = vadd.f32 0.0, %v1480
    %v1482 = vpop.f32.mrf.mxu0
    %v1483 = vadd.f32 0.0, %v1482
    %1484 = vmatmul.bf16.gmra.mxu0 %v338
    %v1485 = vpop.f32.mrf.mxu0
    %v1486 = vadd.f32 0.0, %v1485
    %v1487 = vpop.f32.mrf.mxu0
    %v1488 = vadd.f32 0.0, %v1487
    %1489 = vmatmul.bf16.gmra.mxu0 %v339
    %v1490 = vpop.f32.mrf.mxu0
    %v1491 = vadd.f32 0.0, %v1490
    %v1492 = vpop.f32.mrf.mxu0
    %v1493 = vadd.f32 0.0, %v1492
    %1494 = vmatmul.bf16.gmra.mxu0 %v340
    %v1495 = vpop.f32.mrf.mxu0
    %v1496 = vadd.f32 0.0, %v1495
    %v1497 = vpop.f32.mrf.mxu0
    %v1498 = vadd.f32 0.0, %v1497
    %1499 = vmatmul.bf16.gmra.mxu0 %v341
    %v1500 = vpop.f32.mrf.mxu0
    %v1501 = vadd.f32 0.0, %v1500
    %v1502 = vpop.f32.mrf.mxu0
    %v1503 = vadd.f32 0.0, %v1502
    %1504 = vmatmul.bf16.gmra.mxu0 %v342
    %v1505 = vpop.f32.mrf.mxu0
    %v1506 = vadd.f32 0.0, %v1505
    %v1507 = vpop.f32.mrf.mxu0
    %v1508 = vadd.f32 0.0, %v1507
    %1509 = vmatmul.bf16.gmra.mxu0 %v343
    %v1510 = vpop.f32.mrf.mxu0
    %v1511 = vadd.f32 0.0, %v1510
    %v1512 = vpop.f32.mrf.mxu0
    %v1513 = vadd.f32 0.0, %v1512
    %1514 = vmatmul.bf16.gmra.mxu0 %v312
    %v1515 = vpop.f32.mrf.mxu0
    %v1516 = vadd.f32 0.0, %v1515
    %v1517 = vpop.f32.mrf.mxu0
    %v1518 = vadd.f32 0.0, %v1517
    %1519 = vdwg.mxu0
    %v1520 = vadd.f32 %v1222, %v1361
    %v1521 = vadd.f32 %v1223, %v1363
    %v1522 = vadd.f32 %v1224, %v1366
    %v1523 = vadd.f32 %v1225, %v1368
    %v1524 = vadd.f32 %v1226, %v1371
    %v1525 = vadd.f32 %v1227, %v1373
    %v1526 = vadd.f32 %v1228, %v1376
    %v1527 = vadd.f32 %v1229, %v1378
    %v1528 = vadd.f32 %v1230, %v1381
    %v1529 = vadd.f32 %v1231, %v1383
    %v1530 = vadd.f32 %v1232, %v1386
    %v1531 = vadd.f32 %v1233, %v1388
    %v1532 = vadd.f32 %v1234, %v1391
    %v1533 = vadd.f32 %v1235, %v1393
    %v1534 = vadd.f32 %v1236, %v1396
    %v1535 = vadd.f32 %v1237, %v1398
    %v1536 = vadd.f32 %v1238, %v1401
    %v1537 = vadd.f32 %v1239, %v1403
    %v1538 = vadd.f32 %v1240, %v1406
    %v1539 = vadd.f32 %v1241, %v1408
    %v1540 = vadd.f32 %v1242, %v1411
    %v1541 = vadd.f32 %v1243, %v1413
    %v1542 = vadd.f32 %v1244, %v1416
    %v1543 = vadd.f32 %v1245, %v1418
    %v1544 = vadd.f32 %v1246, %v1421
    %v1545 = vadd.f32 %v1247, %v1423
    %v1546 = vadd.f32 %v1248, %v1426
    %v1547 = vadd.f32 %v1249, %v1428
    %v1548 = vadd.f32 %v1250, %v1431
    %v1549 = vadd.f32 %v1251, %v1433
    %v1550 = vadd.f32 %v1252, %v1436
    %v1551 = vadd.f32 %v1253, %v1438
    %v1552 = vadd.f32 %v1254, %v1441
    %v1553 = vadd.f32 %v1255, %v1443
    %v1554 = vadd.f32 %v1256, %v1446
    %v1555 = vadd.f32 %v1257, %v1448
    %v1556 = vadd.f32 %v1258, %v1451
    %v1557 = vadd.f32 %v1259, %v1453
    %v1558 = vadd.f32 %v1260, %v1456
    %v1559 = vadd.f32 %v1261, %v1458
    %v1560 = vadd.f32 %v1262, %v1461
    %v1561 = vadd.f32 %v1263, %v1463
    %v1562 = vadd.f32 %v1264, %v1466
    %v1563 = vadd.f32 %v1265, %v1468
    %v1564 = vadd.f32 %v1266, %v1471
    %v1565 = vadd.f32 %v1267, %v1473
    %v1566 = vadd.f32 %v1268, %v1476
    %v1567 = vadd.f32 %v1269, %v1478
    %v1568 = vadd.f32 %v1270, %v1481
    %v1569 = vadd.f32 %v1271, %v1483
    %v1570 = vadd.f32 %v1272, %v1486
    %v1571 = vadd.f32 %v1273, %v1488
    %v1572 = vadd.f32 %v1274, %v1491
    %v1573 = vadd.f32 %v1275, %v1493
    %v1574 = vadd.f32 %v1276, %v1496
    %v1575 = vadd.f32 %v1277, %v1498
    %v1576 = vadd.f32 %v1278, %v1501
    %v1577 = vadd.f32 %v1279, %v1503
    %v1578 = vadd.f32 %v1280, %v1506
    %v1579 = vadd.f32 %v1281, %v1508
    %v1580 = vadd.f32 %v1282, %v1511
    %v1581 = vadd.f32 %v1283, %v1513
    %v1582 = vadd.f32 %v1284, %v1516
    %v1583 = vadd.f32 %v1285, %v1518
    %s1584 = scalar_lea.vmem [#allocation2], 256
    %v1585 = vld [vmem:[%s1584] sm:$0xf]
    %v1586 = vld [vmem:[%s1584 + $0x4] sm:$0xf]
    %v1587 = vld [vmem:[%s1584 + $0x8] sm:$0xf]
    %v1588 = vld [vmem:[%s1584 + $0xc] sm:$0xf]
    %v1589 = vld [vmem:[%s1584 + $0x10] sm:$0xf]
    %v1590 = vld [vmem:[%s1584 + $0x14] sm:$0xf]
    %v1591 = vld [vmem:[%s1584 + $0x18] sm:$0xf]
    %v1592 = vld [vmem:[%s1584 + $0x1c] sm:$0xf]
    %v1593 = vld [vmem:[%s1584 + $0x20] sm:$0xf]
    %v1594 = vld [vmem:[%s1584 + $0x24] sm:$0xf]
    %v1595 = vld [vmem:[%s1584 + $0x28] sm:$0xf]
    %v1596 = vld [vmem:[%s1584 + $0x2c] sm:$0xf]
    %v1597 = vld [vmem:[%s1584 + $0x30] sm:$0xf]
    %v1598 = vld [vmem:[%s1584 + $0x34] sm:$0xf]
    %v1599 = vld [vmem:[%s1584 + $0x38] sm:$0xf]
    %v1600 = vld [vmem:[%s1584 + $0x3c] sm:$0xf]
    %v1617 = vunpack.c.l.b16 %v1585
    %v1618 = vunpack.c.l.b16 %v1586
    %v1619 = vunpack.c.l.b16 %v1587
    %v1620 = vunpack.c.l.b16 %v1588
    %v1621 = vunpack.c.l.b16 %v1589
    %v1622 = vunpack.c.l.b16 %v1590
    %v1623 = vunpack.c.l.b16 %v1591
    %v1624 = vunpack.c.l.b16 %v1592
    %v1625 = vunpack.c.l.b16 %v1593
    %v1626 = vunpack.c.l.b16 %v1594
    %v1627 = vunpack.c.l.b16 %v1595
    %v1628 = vunpack.c.l.b16 %v1596
    %v1629 = vunpack.c.l.b16 %v1597
    %v1630 = vunpack.c.l.b16 %v1598
    %v1631 = vunpack.c.l.b16 %v1599
    %v1632 = vunpack.c.l.b16 %v1600
    %v1633 = vpack.c.b16 %v1618, %v1617
    %v1634 = vpack.c.b16 %v1620, %v1619
    %v1635 = vpack.c.b16 %v1622, %v1621
    %v1636 = vpack.c.b16 %v1624, %v1623
    %v1637 = vpack.c.b16 %v1626, %v1625
    %v1638 = vpack.c.b16 %v1628, %v1627
    %v1639 = vpack.c.b16 %v1630, %v1629
    %v1640 = vpack.c.b16 %v1632, %v1631
    %1649 = vmatpush.bf16.msra.mxu0 %v1640
    %1650 = vmatpush.bf16.msra.mxu0 %v1639
    %1651 = vmatpush.bf16.msra.mxu0 %v1638
    %1652 = vmatpush.bf16.msra.mxu0 %v1637
    %1653 = vmatpush.bf16.msra.mxu0 %v1636
    %1654 = vmatpush.bf16.msra.mxu0 %v1635
    %1655 = vmatpush.bf16.msra.mxu0 %v1634
    %1656 = vmatpush.bf16.msra.mxu0 %v1633
    %1657 = vmatmul.bf16.gmra.mxu0 %v362
    %v1658 = vpop.f32.mrf.mxu0
    %v1659 = vadd.f32 0.0, %v1658
    %v1660 = vpop.f32.mrf.mxu0
    %v1661 = vadd.f32 0.0, %v1660
    %1662 = vmatmul.bf16.gmra.mxu0 %v363
    %v1663 = vpop.f32.mrf.mxu0
    %v1664 = vadd.f32 0.0, %v1663
    %v1665 = vpop.f32.mrf.mxu0
    %v1666 = vadd.f32 0.0, %v1665
    %1667 = vmatmul.bf16.gmra.mxu0 %v364
    %v1668 = vpop.f32.mrf.mxu0
    %v1669 = vadd.f32 0.0, %v1668
    %v1670 = vpop.f32.mrf.mxu0
    %v1671 = vadd.f32 0.0, %v1670
    %1672 = vmatmul.bf16.gmra.mxu0 %v365
    %v1673 = vpop.f32.mrf.mxu0
    %v1674 = vadd.f32 0.0, %v1673
    %v1675 = vpop.f32.mrf.mxu0
    %v1676 = vadd.f32 0.0, %v1675
    %1677 = vmatmul.bf16.gmra.mxu0 %v366
    %v1678 = vpop.f32.mrf.mxu0
    %v1679 = vadd.f32 0.0, %v1678
    %v1680 = vpop.f32.mrf.mxu0
    %v1681 = vadd.f32 0.0, %v1680
    %1682 = vmatmul.bf16.gmra.mxu0 %v367
    %v1683 = vpop.f32.mrf.mxu0
    %v1684 = vadd.f32 0.0, %v1683
    %v1685 = vpop.f32.mrf.mxu0
    %v1686 = vadd.f32 0.0, %v1685
    %1687 = vmatmul.bf16.gmra.mxu0 %v368
    %v1688 = vpop.f32.mrf.mxu0
    %v1689 = vadd.f32 0.0, %v1688
    %v1690 = vpop.f32.mrf.mxu0
    %v1691 = vadd.f32 0.0, %v1690
    %1692 = vmatmul.bf16.gmra.mxu0 %v369
    %v1693 = vpop.f32.mrf.mxu0
    %v1694 = vadd.f32 0.0, %v1693
    %v1695 = vpop.f32.mrf.mxu0
    %v1696 = vadd.f32 0.0, %v1695
    %1697 = vmatmul.bf16.gmra.mxu0 %v370
    %v1698 = vpop.f32.mrf.mxu0
    %v1699 = vadd.f32 0.0, %v1698
    %v1700 = vpop.f32.mrf.mxu0
    %v1701 = vadd.f32 0.0, %v1700
    %1702 = vmatmul.bf16.gmra.mxu0 %v371
    %v1703 = vpop.f32.mrf.mxu0
    %v1704 = vadd.f32 0.0, %v1703
    %v1705 = vpop.f32.mrf.mxu0
    %v1706 = vadd.f32 0.0, %v1705
    %1707 = vmatmul.bf16.gmra.mxu0 %v372
    %v1708 = vpop.f32.mrf.mxu0
    %v1709 = vadd.f32 0.0, %v1708
    %v1710 = vpop.f32.mrf.mxu0
    %v1711 = vadd.f32 0.0, %v1710
    %1712 = vmatmul.bf16.gmra.mxu0 %v373
    %v1713 = vpop.f32.mrf.mxu0
    %v1714 = vadd.f32 0.0, %v1713
    %v1715 = vpop.f32.mrf.mxu0
    %v1716 = vadd.f32 0.0, %v1715
    %1717 = vmatmul.bf16.gmra.mxu0 %v374
    %v1718 = vpop.f32.mrf.mxu0
    %v1719 = vadd.f32 0.0, %v1718
    %v1720 = vpop.f32.mrf.mxu0
    %v1721 = vadd.f32 0.0, %v1720
    %1722 = vmatmul.bf16.gmra.mxu0 %v375
    %v1723 = vpop.f32.mrf.mxu0
    %v1724 = vadd.f32 0.0, %v1723
    %v1725 = vpop.f32.mrf.mxu0
    %v1726 = vadd.f32 0.0, %v1725
    %1727 = vmatmul.bf16.gmra.mxu0 %v376
    %v1728 = vpop.f32.mrf.mxu0
    %v1729 = vadd.f32 0.0, %v1728
    %v1730 = vpop.f32.mrf.mxu0
    %v1731 = vadd.f32 0.0, %v1730
    %1732 = vmatmul.bf16.gmra.mxu0 %v377
    %v1733 = vpop.f32.mrf.mxu0
    %v1734 = vadd.f32 0.0, %v1733
    %v1735 = vpop.f32.mrf.mxu0
    %v1736 = vadd.f32 0.0, %v1735
    %1737 = vmatmul.bf16.gmra.mxu0 %v378
    %v1738 = vpop.f32.mrf.mxu0
    %v1739 = vadd.f32 0.0, %v1738
    %v1740 = vpop.f32.mrf.mxu0
    %v1741 = vadd.f32 0.0, %v1740
    %1742 = vmatmul.bf16.gmra.mxu0 %v379
    %v1743 = vpop.f32.mrf.mxu0
    %v1744 = vadd.f32 0.0, %v1743
    %v1745 = vpop.f32.mrf.mxu0
    %v1746 = vadd.f32 0.0, %v1745
    %1747 = vmatmul.bf16.gmra.mxu0 %v380
    %v1748 = vpop.f32.mrf.mxu0
    %v1749 = vadd.f32 0.0, %v1748
    %v1750 = vpop.f32.mrf.mxu0
    %v1751 = vadd.f32 0.0, %v1750
    %1752 = vmatmul.bf16.gmra.mxu0 %v381
    %v1753 = vpop.f32.mrf.mxu0
    %v1754 = vadd.f32 0.0, %v1753
    %v1755 = vpop.f32.mrf.mxu0
    %v1756 = vadd.f32 0.0, %v1755
    %1757 = vmatmul.bf16.gmra.mxu0 %v382
    %v1758 = vpop.f32.mrf.mxu0
    %v1759 = vadd.f32 0.0, %v1758
    %v1760 = vpop.f32.mrf.mxu0
    %v1761 = vadd.f32 0.0, %v1760
    %1762 = vmatmul.bf16.gmra.mxu0 %v383
    %v1763 = vpop.f32.mrf.mxu0
    %v1764 = vadd.f32 0.0, %v1763
    %v1765 = vpop.f32.mrf.mxu0
    %v1766 = vadd.f32 0.0, %v1765
    %1767 = vmatmul.bf16.gmra.mxu0 %v384
    %v1768 = vpop.f32.mrf.mxu0
    %v1769 = vadd.f32 0.0, %v1768
    %v1770 = vpop.f32.mrf.mxu0
    %v1771 = vadd.f32 0.0, %v1770
    %1772 = vmatmul.bf16.gmra.mxu0 %v385
    %v1773 = vpop.f32.mrf.mxu0
    %v1774 = vadd.f32 0.0, %v1773
    %v1775 = vpop.f32.mrf.mxu0
    %v1776 = vadd.f32 0.0, %v1775
    %1777 = vmatmul.bf16.gmra.mxu0 %v386
    %v1778 = vpop.f32.mrf.mxu0
    %v1779 = vadd.f32 0.0, %v1778
    %v1780 = vpop.f32.mrf.mxu0
    %v1781 = vadd.f32 0.0, %v1780
    %1782 = vmatmul.bf16.gmra.mxu0 %v387
    %v1783 = vpop.f32.mrf.mxu0
    %v1784 = vadd.f32 0.0, %v1783
    %v1785 = vpop.f32.mrf.mxu0
    %v1786 = vadd.f32 0.0, %v1785
    %1787 = vmatmul.bf16.gmra.mxu0 %v388
    %v1788 = vpop.f32.mrf.mxu0
    %v1789 = vadd.f32 0.0, %v1788
    %v1790 = vpop.f32.mrf.mxu0
    %v1791 = vadd.f32 0.0, %v1790
    %1792 = vmatmul.bf16.gmra.mxu0 %v389
    %v1793 = vpop.f32.mrf.mxu0
    %v1794 = vadd.f32 0.0, %v1793
    %v1795 = vpop.f32.mrf.mxu0
    %v1796 = vadd.f32 0.0, %v1795
    %1797 = vmatmul.bf16.gmra.mxu0 %v390
    %v1798 = vpop.f32.mrf.mxu0
    %v1799 = vadd.f32 0.0, %v1798
    %v1800 = vpop.f32.mrf.mxu0
    %v1801 = vadd.f32 0.0, %v1800
    %1802 = vmatmul.bf16.gmra.mxu0 %v391
    %v1803 = vpop.f32.mrf.mxu0
    %v1804 = vadd.f32 0.0, %v1803
    %v1805 = vpop.f32.mrf.mxu0
    %v1806 = vadd.f32 0.0, %v1805
    %1807 = vmatmul.bf16.gmra.mxu0 %v392
    %v1808 = vpop.f32.mrf.mxu0
    %v1809 = vadd.f32 0.0, %v1808
    %v1810 = vpop.f32.mrf.mxu0
    %v1811 = vadd.f32 0.0, %v1810
    %1812 = vmatmul.bf16.gmra.mxu0 %v361
    %v1813 = vpop.f32.mrf.mxu0
    %v1814 = vadd.f32 0.0, %v1813
    %v1815 = vpop.f32.mrf.mxu0
    %v1816 = vadd.f32 0.0, %v1815
    %1817 = vdwg.mxu0
    %v1818 = vadd.f32 %v1520, %v1659
    %v1819 = vadd.f32 %v1521, %v1661
    %v1820 = vadd.f32 %v1522, %v1664
    %v1821 = vadd.f32 %v1523, %v1666
    %v1822 = vadd.f32 %v1524, %v1669
    %v1823 = vadd.f32 %v1525, %v1671
    %v1824 = vadd.f32 %v1526, %v1674
    %v1825 = vadd.f32 %v1527, %v1676
    %v1826 = vadd.f32 %v1528, %v1679
    %v1827 = vadd.f32 %v1529, %v1681
    %v1828 = vadd.f32 %v1530, %v1684
    %v1829 = vadd.f32 %v1531, %v1686
    %v1830 = vadd.f32 %v1532, %v1689
    %v1831 = vadd.f32 %v1533, %v1691
    %v1832 = vadd.f32 %v1534, %v1694
    %v1833 = vadd.f32 %v1535, %v1696
    %v1834 = vadd.f32 %v1536, %v1699
    %v1835 = vadd.f32 %v1537, %v1701
    %v1836 = vadd.f32 %v1538, %v1704
    %v1837 = vadd.f32 %v1539, %v1706
    %v1838 = vadd.f32 %v1540, %v1709
    %v1839 = vadd.f32 %v1541, %v1711
    %v1840 = vadd.f32 %v1542, %v1714
    %v1841 = vadd.f32 %v1543, %v1716
    %v1842 = vadd.f32 %v1544, %v1719
    %v1843 = vadd.f32 %v1545, %v1721
    %v1844 = vadd.f32 %v1546, %v1724
    %v1845 = vadd.f32 %v1547, %v1726
    %v1846 = vadd.f32 %v1548, %v1729
    %v1847 = vadd.f32 %v1549, %v1731
    %v1848 = vadd.f32 %v1550, %v1734
    %v1849 = vadd.f32 %v1551, %v1736
    %v1850 = vadd.f32 %v1552, %v1739
    %v1851 = vadd.f32 %v1553, %v1741
    %v1852 = vadd.f32 %v1554, %v1744
    %v1853 = vadd.f32 %v1555, %v1746
    %v1854 = vadd.f32 %v1556, %v1749
    %v1855 = vadd.f32 %v1557, %v1751
    %v1856 = vadd.f32 %v1558, %v1754
    %v1857 = vadd.f32 %v1559, %v1756
    %v1858 = vadd.f32 %v1560, %v1759
    %v1859 = vadd.f32 %v1561, %v1761
    %v1860 = vadd.f32 %v1562, %v1764
    %v1861 = vadd.f32 %v1563, %v1766
    %v1862 = vadd.f32 %v1564, %v1769
    %v1863 = vadd.f32 %v1565, %v1771
    %v1864 = vadd.f32 %v1566, %v1774
    %v1865 = vadd.f32 %v1567, %v1776
    %v1866 = vadd.f32 %v1568, %v1779
    %v1867 = vadd.f32 %v1569, %v1781
    %v1868 = vadd.f32 %v1570, %v1784
    %v1869 = vadd.f32 %v1571, %v1786
    %v1870 = vadd.f32 %v1572, %v1789
    %v1871 = vadd.f32 %v1573, %v1791
    %v1872 = vadd.f32 %v1574, %v1794
    %v1873 = vadd.f32 %v1575, %v1796
    %v1874 = vadd.f32 %v1576, %v1799
    %v1875 = vadd.f32 %v1577, %v1801
    %v1876 = vadd.f32 %v1578, %v1804
    %v1877 = vadd.f32 %v1579, %v1806
    %v1878 = vadd.f32 %v1580, %v1809
    %v1879 = vadd.f32 %v1581, %v1811
    %v1880 = vadd.f32 %v1582, %v1814
    %v1881 = vadd.f32 %v1583, %v1816
    %s1882 = scalar_lea.vmem [#allocation2], 320
    %v1883 = vld [vmem:[%s1882] sm:$0xf]
    %v1884 = vld [vmem:[%s1882 + $0x4] sm:$0xf]
    %v1885 = vld [vmem:[%s1882 + $0x8] sm:$0xf]
    %v1886 = vld [vmem:[%s1882 + $0xc] sm:$0xf]
    %v1887 = vld [vmem:[%s1882 + $0x10] sm:$0xf]
    %v1888 = vld [vmem:[%s1882 + $0x14] sm:$0xf]
    %v1889 = vld [vmem:[%s1882 + $0x18] sm:$0xf]
    %v1890 = vld [vmem:[%s1882 + $0x1c] sm:$0xf]
    %v1891 = vld [vmem:[%s1882 + $0x20] sm:$0xf]
    %v1892 = vld [vmem:[%s1882 + $0x24] sm:$0xf]
    %v1893 = vld [vmem:[%s1882 + $0x28] sm:$0xf]
    %v1894 = vld [vmem:[%s1882 + $0x2c] sm:$0xf]
    %v1895 = vld [vmem:[%s1882 + $0x30] sm:$0xf]
    %v1896 = vld [vmem:[%s1882 + $0x34] sm:$0xf]
    %v1897 = vld [vmem:[%s1882 + $0x38] sm:$0xf]
    %v1898 = vld [vmem:[%s1882 + $0x3c] sm:$0xf]
    %v1915 = vunpack.c.l.b16 %v1883
    %v1916 = vunpack.c.l.b16 %v1884
    %v1917 = vunpack.c.l.b16 %v1885
    %v1918 = vunpack.c.l.b16 %v1886
    %v1919 = vunpack.c.l.b16 %v1887
    %v1920 = vunpack.c.l.b16 %v1888
    %v1921 = vunpack.c.l.b16 %v1889
    %v1922 = vunpack.c.l.b16 %v1890
    %v1923 = vunpack.c.l.b16 %v1891
    %v1924 = vunpack.c.l.b16 %v1892
    %v1925 = vunpack.c.l.b16 %v1893
    %v1926 = vunpack.c.l.b16 %v1894
    %v1927 = vunpack.c.l.b16 %v1895
    %v1928 = vunpack.c.l.b16 %v1896
    %v1929 = vunpack.c.l.b16 %v1897
    %v1930 = vunpack.c.l.b16 %v1898
    %v1931 = vpack.c.b16 %v1916, %v1915
    %v1932 = vpack.c.b16 %v1918, %v1917
    %v1933 = vpack.c.b16 %v1920, %v1919
    %v1934 = vpack.c.b16 %v1922, %v1921
    %v1935 = vpack.c.b16 %v1924, %v1923
    %v1936 = vpack.c.b16 %v1926, %v1925
    %v1937 = vpack.c.b16 %v1928, %v1927
    %v1938 = vpack.c.b16 %v1930, %v1929
    %1947 = vmatpush.bf16.msra.mxu0 %v1938
    %1948 = vmatpush.bf16.msra.mxu0 %v1937
    %1949 = vmatpush.bf16.msra.mxu0 %v1936
    %1950 = vmatpush.bf16.msra.mxu0 %v1935
    %1951 = vmatpush.bf16.msra.mxu0 %v1934
    %1952 = vmatpush.bf16.msra.mxu0 %v1933
    %1953 = vmatpush.bf16.msra.mxu0 %v1932
    %1954 = vmatpush.bf16.msra.mxu0 %v1931
    %1955 = vmatmul.bf16.gmra.mxu0 %v974
    %v1956 = vpop.f32.mrf.mxu0
    %v1957 = vadd.f32 0.0, %v1956
    %v1958 = vpop.f32.mrf.mxu0
    %v1959 = vadd.f32 0.0, %v1958
    %1960 = vmatmul.bf16.gmra.mxu0 %v975
    %v1961 = vpop.f32.mrf.mxu0
    %v1962 = vadd.f32 0.0, %v1961
    %v1963 = vpop.f32.mrf.mxu0
    %v1964 = vadd.f32 0.0, %v1963
    %1965 = vmatmul.bf16.gmra.mxu0 %v976
    %v1966 = vpop.f32.mrf.mxu0
    %v1967 = vadd.f32 0.0, %v1966
    %v1968 = vpop.f32.mrf.mxu0
    %v1969 = vadd.f32 0.0, %v1968
    %1970 = vmatmul.bf16.gmra.mxu0 %v977
    %v1971 = vpop.f32.mrf.mxu0
    %v1972 = vadd.f32 0.0, %v1971
    %v1973 = vpop.f32.mrf.mxu0
    %v1974 = vadd.f32 0.0, %v1973
    %1975 = vmatmul.bf16.gmra.mxu0 %v978
    %v1976 = vpop.f32.mrf.mxu0
    %v1977 = vadd.f32 0.0, %v1976
    %v1978 = vpop.f32.mrf.mxu0
    %v1979 = vadd.f32 0.0, %v1978
    %1980 = vmatmul.bf16.gmra.mxu0 %v979
    %v1981 = vpop.f32.mrf.mxu0
    %v1982 = vadd.f32 0.0, %v1981
    %v1983 = vpop.f32.mrf.mxu0
    %v1984 = vadd.f32 0.0, %v1983
    %1985 = vmatmul.bf16.gmra.mxu0 %v980
    %v1986 = vpop.f32.mrf.mxu0
    %v1987 = vadd.f32 0.0, %v1986
    %v1988 = vpop.f32.mrf.mxu0
    %v1989 = vadd.f32 0.0, %v1988
    %1990 = vmatmul.bf16.gmra.mxu0 %v981
    %v1991 = vpop.f32.mrf.mxu0
    %v1992 = vadd.f32 0.0, %v1991
    %v1993 = vpop.f32.mrf.mxu0
    %v1994 = vadd.f32 0.0, %v1993
    %1995 = vmatmul.bf16.gmra.mxu0 %v982
    %v1996 = vpop.f32.mrf.mxu0
    %v1997 = vadd.f32 0.0, %v1996
    %v1998 = vpop.f32.mrf.mxu0
    %v1999 = vadd.f32 0.0, %v1998
    %2000 = vmatmul.bf16.gmra.mxu0 %v983
    %v2001 = vpop.f32.mrf.mxu0
    %v2002 = vadd.f32 0.0, %v2001
    %v2003 = vpop.f32.mrf.mxu0
    %v2004 = vadd.f32 0.0, %v2003
    %2005 = vmatmul.bf16.gmra.mxu0 %v984
    %v2006 = vpop.f32.mrf.mxu0
    %v2007 = vadd.f32 0.0, %v2006
    %v2008 = vpop.f32.mrf.mxu0
    %v2009 = vadd.f32 0.0, %v2008
    %2010 = vmatmul.bf16.gmra.mxu0 %v985
    %v2011 = vpop.f32.mrf.mxu0
    %v2012 = vadd.f32 0.0, %v2011
    %v2013 = vpop.f32.mrf.mxu0
    %v2014 = vadd.f32 0.0, %v2013
    %2015 = vmatmul.bf16.gmra.mxu0 %v986
    %v2016 = vpop.f32.mrf.mxu0
    %v2017 = vadd.f32 0.0, %v2016
    %v2018 = vpop.f32.mrf.mxu0
    %v2019 = vadd.f32 0.0, %v2018
    %2020 = vmatmul.bf16.gmra.mxu0 %v987
    %v2021 = vpop.f32.mrf.mxu0
    %v2022 = vadd.f32 0.0, %v2021
    %v2023 = vpop.f32.mrf.mxu0
    %v2024 = vadd.f32 0.0, %v2023
    %2025 = vmatmul.bf16.gmra.mxu0 %v988
    %v2026 = vpop.f32.mrf.mxu0
    %v2027 = vadd.f32 0.0, %v2026
    %v2028 = vpop.f32.mrf.mxu0
    %v2029 = vadd.f32 0.0, %v2028
    %2030 = vmatmul.bf16.gmra.mxu0 %v989
    %v2031 = vpop.f32.mrf.mxu0
    %v2032 = vadd.f32 0.0, %v2031
    %v2033 = vpop.f32.mrf.mxu0
    %v2034 = vadd.f32 0.0, %v2033
    %2035 = vmatmul.bf16.gmra.mxu0 %v990
    %v2036 = vpop.f32.mrf.mxu0
    %v2037 = vadd.f32 0.0, %v2036
    %v2038 = vpop.f32.mrf.mxu0
    %v2039 = vadd.f32 0.0, %v2038
    %2040 = vmatmul.bf16.gmra.mxu0 %v991
    %v2041 = vpop.f32.mrf.mxu0
    %v2042 = vadd.f32 0.0, %v2041
    %v2043 = vpop.f32.mrf.mxu0
    %v2044 = vadd.f32 0.0, %v2043
    %2045 = vmatmul.bf16.gmra.mxu0 %v992
    %v2046 = vpop.f32.mrf.mxu0
    %v2047 = vadd.f32 0.0, %v2046
    %v2048 = vpop.f32.mrf.mxu0
    %v2049 = vadd.f32 0.0, %v2048
    %2050 = vmatmul.bf16.gmra.mxu0 %v993
    %v2051 = vpop.f32.mrf.mxu0
    %v2052 = vadd.f32 0.0, %v2051
    %v2053 = vpop.f32.mrf.mxu0
    %v2054 = vadd.f32 0.0, %v2053
    %2055 = vmatmul.bf16.gmra.mxu0 %v994
    %v2056 = vpop.f32.mrf.mxu0
    %v2057 = vadd.f32 0.0, %v2056
    %v2058 = vpop.f32.mrf.mxu0
    %v2059 = vadd.f32 0.0, %v2058
    %2060 = vmatmul.bf16.gmra.mxu0 %v995
    %v2061 = vpop.f32.mrf.mxu0
    %v2062 = vadd.f32 0.0, %v2061
    %v2063 = vpop.f32.mrf.mxu0
    %v2064 = vadd.f32 0.0, %v2063
    %2065 = vmatmul.bf16.gmra.mxu0 %v996
    %v2066 = vpop.f32.mrf.mxu0
    %v2067 = vadd.f32 0.0, %v2066
    %v2068 = vpop.f32.mrf.mxu0
    %v2069 = vadd.f32 0.0, %v2068
    %2070 = vmatmul.bf16.gmra.mxu0 %v997
    %v2071 = vpop.f32.mrf.mxu0
    %v2072 = vadd.f32 0.0, %v2071
    %v2073 = vpop.f32.mrf.mxu0
    %v2074 = vadd.f32 0.0, %v2073
    %2075 = vmatmul.bf16.gmra.mxu0 %v998
    %v2076 = vpop.f32.mrf.mxu0
    %v2077 = vadd.f32 0.0, %v2076
    %v2078 = vpop.f32.mrf.mxu0
    %v2079 = vadd.f32 0.0, %v2078
    %2080 = vmatmul.bf16.gmra.mxu0 %v999
    %v2081 = vpop.f32.mrf.mxu0
    %v2082 = vadd.f32 0.0, %v2081
    %v2083 = vpop.f32.mrf.mxu0
    %v2084 = vadd.f32 0.0, %v2083
    %2085 = vmatmul.bf16.gmra.mxu0 %v1000
    %v2086 = vpop.f32.mrf.mxu0
    %v2087 = vadd.f32 0.0, %v2086
    %v2088 = vpop.f32.mrf.mxu0
    %v2089 = vadd.f32 0.0, %v2088
    %2090 = vmatmul.bf16.gmra.mxu0 %v1001
    %v2091 = vpop.f32.mrf.mxu0
    %v2092 = vadd.f32 0.0, %v2091
    %v2093 = vpop.f32.mrf.mxu0
    %v2094 = vadd.f32 0.0, %v2093
    %2095 = vmatmul.bf16.gmra.mxu0 %v1002
    %v2096 = vpop.f32.mrf.mxu0
    %v2097 = vadd.f32 0.0, %v2096
    %v2098 = vpop.f32.mrf.mxu0
    %v2099 = vadd.f32 0.0, %v2098
    %2100 = vmatmul.bf16.gmra.mxu0 %v1003
    %v2101 = vpop.f32.mrf.mxu0
    %v2102 = vadd.f32 0.0, %v2101
    %v2103 = vpop.f32.mrf.mxu0
    %v2104 = vadd.f32 0.0, %v2103
    %2105 = vmatmul.bf16.gmra.mxu0 %v1004
    %v2106 = vpop.f32.mrf.mxu0
    %v2107 = vadd.f32 0.0, %v2106
    %v2108 = vpop.f32.mrf.mxu0
    %v2109 = vadd.f32 0.0, %v2108
    %2110 = vmatmul.bf16.gmra.mxu0 %v973
    %v2111 = vpop.f32.mrf.mxu0
    %v2112 = vadd.f32 0.0, %v2111
    %v2113 = vpop.f32.mrf.mxu0
    %v2114 = vadd.f32 0.0, %v2113
    %2115 = vdwg.mxu0
    %v2116 = vadd.f32 %v1818, %v1957
    %v2117 = vadd.f32 %v1819, %v1959
    %v2118 = vadd.f32 %v1820, %v1962
    %v2119 = vadd.f32 %v1821, %v1964
    %v2120 = vadd.f32 %v1822, %v1967
    %v2121 = vadd.f32 %v1823, %v1969
    %v2122 = vadd.f32 %v1824, %v1972
    %v2123 = vadd.f32 %v1825, %v1974
    %v2124 = vadd.f32 %v1826, %v1977
    %v2125 = vadd.f32 %v1827, %v1979
    %v2126 = vadd.f32 %v1828, %v1982
    %v2127 = vadd.f32 %v1829, %v1984
    %v2128 = vadd.f32 %v1830, %v1987
    %v2129 = vadd.f32 %v1831, %v1989
    %v2130 = vadd.f32 %v1832, %v1992
    %v2131 = vadd.f32 %v1833, %v1994
    %v2132 = vadd.f32 %v1834, %v1997
    %v2133 = vadd.f32 %v1835, %v1999
    %v2134 = vadd.f32 %v1836, %v2002
    %v2135 = vadd.f32 %v1837, %v2004
    %v2136 = vadd.f32 %v1838, %v2007
    %v2137 = vadd.f32 %v1839, %v2009
    %v2138 = vadd.f32 %v1840, %v2012
    %v2139 = vadd.f32 %v1841, %v2014
    %v2140 = vadd.f32 %v1842, %v2017
    %v2141 = vadd.f32 %v1843, %v2019
    %v2142 = vadd.f32 %v1844, %v2022
    %v2143 = vadd.f32 %v1845, %v2024
    %v2144 = vadd.f32 %v1846, %v2027
    %v2145 = vadd.f32 %v1847, %v2029
    %v2146 = vadd.f32 %v1848, %v2032
    %v2147 = vadd.f32 %v1849, %v2034
    %v2148 = vadd.f32 %v1850, %v2037
    %v2149 = vadd.f32 %v1851, %v2039
    %v2150 = vadd.f32 %v1852, %v2042
    %v2151 = vadd.f32 %v1853, %v2044
    %v2152 = vadd.f32 %v1854, %v2047
    %v2153 = vadd.f32 %v1855, %v2049
    %v2154 = vadd.f32 %v1856, %v2052
    %v2155 = vadd.f32 %v1857, %v2054
    %v2156 = vadd.f32 %v1858, %v2057
    %v2157 = vadd.f32 %v1859, %v2059
    %v2158 = vadd.f32 %v1860, %v2062
    %v2159 = vadd.f32 %v1861, %v2064
    %v2160 = vadd.f32 %v1862, %v2067
    %v2161 = vadd.f32 %v1863, %v2069
    %v2162 = vadd.f32 %v1864, %v2072
    %v2163 = vadd.f32 %v1865, %v2074
    %v2164 = vadd.f32 %v1866, %v2077
    %v2165 = vadd.f32 %v1867, %v2079
    %v2166 = vadd.f32 %v1868, %v2082
    %v2167 = vadd.f32 %v1869, %v2084
    %v2168 = vadd.f32 %v1870, %v2087
    %v2169 = vadd.f32 %v1871, %v2089
    %v2170 = vadd.f32 %v1872, %v2092
    %v2171 = vadd.f32 %v1873, %v2094
    %v2172 = vadd.f32 %v1874, %v2097
    %v2173 = vadd.f32 %v1875, %v2099
    %v2174 = vadd.f32 %v1876, %v2102
    %v2175 = vadd.f32 %v1877, %v2104
    %v2176 = vadd.f32 %v1878, %v2107
    %v2177 = vadd.f32 %v1879, %v2109
    %v2178 = vadd.f32 %v1880, %v2112
    %v2179 = vadd.f32 %v1881, %v2114
    %s2180 = scalar_lea.vmem [#allocation2], 384
    %v2181 = vld [vmem:[%s2180] sm:$0xf]
    %v2182 = vld [vmem:[%s2180 + $0x4] sm:$0xf]
    %v2183 = vld [vmem:[%s2180 + $0x8] sm:$0xf]
    %v2184 = vld [vmem:[%s2180 + $0xc] sm:$0xf]
    %v2185 = vld [vmem:[%s2180 + $0x10] sm:$0xf]
    %v2186 = vld [vmem:[%s2180 + $0x14] sm:$0xf]
    %v2187 = vld [vmem:[%s2180 + $0x18] sm:$0xf]
    %v2188 = vld [vmem:[%s2180 + $0x1c] sm:$0xf]
    %v2189 = vld [vmem:[%s2180 + $0x20] sm:$0xf]
    %v2190 = vld [vmem:[%s2180 + $0x24] sm:$0xf]
    %v2191 = vld [vmem:[%s2180 + $0x28] sm:$0xf]
    %v2192 = vld [vmem:[%s2180 + $0x2c] sm:$0xf]
    %v2193 = vld [vmem:[%s2180 + $0x30] sm:$0xf]
    %v2194 = vld [vmem:[%s2180 + $0x34] sm:$0xf]
    %v2195 = vld [vmem:[%s2180 + $0x38] sm:$0xf]
    %v2196 = vld [vmem:[%s2180 + $0x3c] sm:$0xf]
    %v2213 = vunpack.c.l.b16 %v2181
    %v2214 = vunpack.c.l.b16 %v2182
    %v2215 = vunpack.c.l.b16 %v2183
    %v2216 = vunpack.c.l.b16 %v2184
    %v2217 = vunpack.c.l.b16 %v2185
    %v2218 = vunpack.c.l.b16 %v2186
    %v2219 = vunpack.c.l.b16 %v2187
    %v2220 = vunpack.c.l.b16 %v2188
    %v2221 = vunpack.c.l.b16 %v2189
    %v2222 = vunpack.c.l.b16 %v2190
    %v2223 = vunpack.c.l.b16 %v2191
    %v2224 = vunpack.c.l.b16 %v2192
    %v2225 = vunpack.c.l.b16 %v2193
    %v2226 = vunpack.c.l.b16 %v2194
    %v2227 = vunpack.c.l.b16 %v2195
    %v2228 = vunpack.c.l.b16 %v2196
    %v2229 = vpack.c.b16 %v2214, %v2213
    %v2230 = vpack.c.b16 %v2216, %v2215
    %v2231 = vpack.c.b16 %v2218, %v2217
    %v2232 = vpack.c.b16 %v2220, %v2219
    %v2233 = vpack.c.b16 %v2222, %v2221
    %v2234 = vpack.c.b16 %v2224, %v2223
    %v2235 = vpack.c.b16 %v2226, %v2225
    %v2236 = vpack.c.b16 %v2228, %v2227
    %2245 = vmatpush.bf16.msra.mxu0 %v2236
    %2246 = vmatpush.bf16.msra.mxu0 %v2235
    %2247 = vmatpush.bf16.msra.mxu0 %v2234
    %2248 = vmatpush.bf16.msra.mxu0 %v2233
    %2249 = vmatpush.bf16.msra.mxu0 %v2232
    %2250 = vmatpush.bf16.msra.mxu0 %v2231
    %2251 = vmatpush.bf16.msra.mxu0 %v2230
    %2252 = vmatpush.bf16.msra.mxu0 %v2229
    %2253 = vmatmul.bf16.gmra.mxu0 %v314
    %v2254 = vpop.f32.mrf.mxu0
    %v2255 = vadd.f32 0.0, %v2254
    %v2256 = vpop.f32.mrf.mxu0
    %v2257 = vadd.f32 0.0, %v2256
    %2258 = vmatmul.bf16.gmra.mxu0 %v315
    %v2259 = vpop.f32.mrf.mxu0
    %v2260 = vadd.f32 0.0, %v2259
    %v2261 = vpop.f32.mrf.mxu0
    %v2262 = vadd.f32 0.0, %v2261
    %2263 = vmatmul.bf16.gmra.mxu0 %v316
    %v2264 = vpop.f32.mrf.mxu0
    %v2265 = vadd.f32 0.0, %v2264
    %v2266 = vpop.f32.mrf.mxu0
    %v2267 = vadd.f32 0.0, %v2266
    %2268 = vmatmul.bf16.gmra.mxu0 %v317
    %v2269 = vpop.f32.mrf.mxu0
    %v2270 = vadd.f32 0.0, %v2269
    %v2271 = vpop.f32.mrf.mxu0
    %v2272 = vadd.f32 0.0, %v2271
    %2273 = vmatmul.bf16.gmra.mxu0 %v318
    %v2274 = vpop.f32.mrf.mxu0
    %v2275 = vadd.f32 0.0, %v2274
    %v2276 = vpop.f32.mrf.mxu0
    %v2277 = vadd.f32 0.0, %v2276
    %2278 = vmatmul.bf16.gmra.mxu0 %v319
    %v2279 = vpop.f32.mrf.mxu0
    %v2280 = vadd.f32 0.0, %v2279
    %v2281 = vpop.f32.mrf.mxu0
    %v2282 = vadd.f32 0.0, %v2281
    %2283 = vmatmul.bf16.gmra.mxu0 %v320
    %v2284 = vpop.f32.mrf.mxu0
    %v2285 = vadd.f32 0.0, %v2284
    %v2286 = vpop.f32.mrf.mxu0
    %v2287 = vadd.f32 0.0, %v2286
    %2288 = vmatmul.bf16.gmra.mxu0 %v321
    %v2289 = vpop.f32.mrf.mxu0
    %v2290 = vadd.f32 0.0, %v2289
    %v2291 = vpop.f32.mrf.mxu0
    %v2292 = vadd.f32 0.0, %v2291
    %2293 = vmatmul.bf16.gmra.mxu0 %v322
    %v2294 = vpop.f32.mrf.mxu0
    %v2295 = vadd.f32 0.0, %v2294
    %v2296 = vpop.f32.mrf.mxu0
    %v2297 = vadd.f32 0.0, %v2296
    %2298 = vmatmul.bf16.gmra.mxu0 %v323
    %v2299 = vpop.f32.mrf.mxu0
    %v2300 = vadd.f32 0.0, %v2299
    %v2301 = vpop.f32.mrf.mxu0
    %v2302 = vadd.f32 0.0, %v2301
    %2303 = vmatmul.bf16.gmra.mxu0 %v324
    %v2304 = vpop.f32.mrf.mxu0
    %v2305 = vadd.f32 0.0, %v2304
    %v2306 = vpop.f32.mrf.mxu0
    %v2307 = vadd.f32 0.0, %v2306
    %2308 = vmatmul.bf16.gmra.mxu0 %v325
    %v2309 = vpop.f32.mrf.mxu0
    %v2310 = vadd.f32 0.0, %v2309
    %v2311 = vpop.f32.mrf.mxu0
    %v2312 = vadd.f32 0.0, %v2311
    %2313 = vmatmul.bf16.gmra.mxu0 %v326
    %v2314 = vpop.f32.mrf.mxu0
    %v2315 = vadd.f32 0.0, %v2314
    %v2316 = vpop.f32.mrf.mxu0
    %v2317 = vadd.f32 0.0, %v2316
    %2318 = vmatmul.bf16.gmra.mxu0 %v327
    %v2319 = vpop.f32.mrf.mxu0
    %v2320 = vadd.f32 0.0, %v2319
    %v2321 = vpop.f32.mrf.mxu0
    %v2322 = vadd.f32 0.0, %v2321
    %2323 = vmatmul.bf16.gmra.mxu0 %v328
    %v2324 = vpop.f32.mrf.mxu0
    %v2325 = vadd.f32 0.0, %v2324
    %v2326 = vpop.f32.mrf.mxu0
    %v2327 = vadd.f32 0.0, %v2326
    %2328 = vmatmul.bf16.gmra.mxu0 %v329
    %v2329 = vpop.f32.mrf.mxu0
    %v2330 = vadd.f32 0.0, %v2329
    %v2331 = vpop.f32.mrf.mxu0
    %v2332 = vadd.f32 0.0, %v2331
    %2333 = vmatmul.bf16.gmra.mxu0 %v330
    %v2334 = vpop.f32.mrf.mxu0
    %v2335 = vadd.f32 0.0, %v2334
    %v2336 = vpop.f32.mrf.mxu0
    %v2337 = vadd.f32 0.0, %v2336
    %2338 = vmatmul.bf16.gmra.mxu0 %v331
    %v2339 = vpop.f32.mrf.mxu0
    %v2340 = vadd.f32 0.0, %v2339
    %v2341 = vpop.f32.mrf.mxu0
    %v2342 = vadd.f32 0.0, %v2341
    %2343 = vmatmul.bf16.gmra.mxu0 %v332
    %v2344 = vpop.f32.mrf.mxu0
    %v2345 = vadd.f32 0.0, %v2344
    %v2346 = vpop.f32.mrf.mxu0
    %v2347 = vadd.f32 0.0, %v2346
    %2348 = vmatmul.bf16.gmra.mxu0 %v333
    %v2349 = vpop.f32.mrf.mxu0
    %v2350 = vadd.f32 0.0, %v2349
    %v2351 = vpop.f32.mrf.mxu0
    %v2352 = vadd.f32 0.0, %v2351
    %2353 = vmatmul.bf16.gmra.mxu0 %v334
    %v2354 = vpop.f32.mrf.mxu0
    %v2355 = vadd.f32 0.0, %v2354
    %v2356 = vpop.f32.mrf.mxu0
    %v2357 = vadd.f32 0.0, %v2356
    %2358 = vmatmul.bf16.gmra.mxu0 %v335
    %v2359 = vpop.f32.mrf.mxu0
    %v2360 = vadd.f32 0.0, %v2359
    %v2361 = vpop.f32.mrf.mxu0
    %v2362 = vadd.f32 0.0, %v2361
    %2363 = vmatmul.bf16.gmra.mxu0 %v336
    %v2364 = vpop.f32.mrf.mxu0
    %v2365 = vadd.f32 0.0, %v2364
    %v2366 = vpop.f32.mrf.mxu0
    %v2367 = vadd.f32 0.0, %v2366
    %2368 = vmatmul.bf16.gmra.mxu0 %v337
    %v2369 = vpop.f32.mrf.mxu0
    %v2370 = vadd.f32 0.0, %v2369
    %v2371 = vpop.f32.mrf.mxu0
    %v2372 = vadd.f32 0.0, %v2371
    %2373 = vmatmul.bf16.gmra.mxu0 %v338
    %v2374 = vpop.f32.mrf.mxu0
    %v2375 = vadd.f32 0.0, %v2374
    %v2376 = vpop.f32.mrf.mxu0
    %v2377 = vadd.f32 0.0, %v2376
    %2378 = vmatmul.bf16.gmra.mxu0 %v339
    %v2379 = vpop.f32.mrf.mxu0
    %v2380 = vadd.f32 0.0, %v2379
    %v2381 = vpop.f32.mrf.mxu0
    %v2382 = vadd.f32 0.0, %v2381
    %2383 = vmatmul.bf16.gmra.mxu0 %v340
    %v2384 = vpop.f32.mrf.mxu0
    %v2385 = vadd.f32 0.0, %v2384
    %v2386 = vpop.f32.mrf.mxu0
    %v2387 = vadd.f32 0.0, %v2386
    %2388 = vmatmul.bf16.gmra.mxu0 %v341
    %v2389 = vpop.f32.mrf.mxu0
    %v2390 = vadd.f32 0.0, %v2389
    %v2391 = vpop.f32.mrf.mxu0
    %v2392 = vadd.f32 0.0, %v2391
    %2393 = vmatmul.bf16.gmra.mxu0 %v342
    %v2394 = vpop.f32.mrf.mxu0
    %v2395 = vadd.f32 0.0, %v2394
    %v2396 = vpop.f32.mrf.mxu0
    %v2397 = vadd.f32 0.0, %v2396
    %2398 = vmatmul.bf16.gmra.mxu0 %v343
    %v2399 = vpop.f32.mrf.mxu0
    %v2400 = vadd.f32 0.0, %v2399
    %v2401 = vpop.f32.mrf.mxu0
    %v2402 = vadd.f32 0.0, %v2401
    %2403 = vmatmul.bf16.gmra.mxu0 %v312
    %v2404 = vpop.f32.mrf.mxu0
    %v2405 = vadd.f32 0.0, %v2404
    %v2406 = vpop.f32.mrf.mxu0
    %v2407 = vadd.f32 0.0, %v2406
    %2408 = vmatmul.bf16.gmra.mxu0 %v313
    %v2409 = vpop.f32.mrf.mxu0
    %v2410 = vadd.f32 0.0, %v2409
    %v2411 = vpop.f32.mrf.mxu0
    %v2412 = vadd.f32 0.0, %v2411
    %2413 = vdwg.mxu0
    %v2414 = vadd.f32 %v2116, %v2255
    %v2415 = vadd.f32 %v2117, %v2257
    %v2416 = vadd.f32 %v2118, %v2260
    %v2417 = vadd.f32 %v2119, %v2262
    %v2418 = vadd.f32 %v2120, %v2265
    %v2419 = vadd.f32 %v2121, %v2267
    %v2420 = vadd.f32 %v2122, %v2270
    %v2421 = vadd.f32 %v2123, %v2272
    %v2422 = vadd.f32 %v2124, %v2275
    %v2423 = vadd.f32 %v2125, %v2277
    %v2424 = vadd.f32 %v2126, %v2280
    %v2425 = vadd.f32 %v2127, %v2282
    %v2426 = vadd.f32 %v2128, %v2285
    %v2427 = vadd.f32 %v2129, %v2287
    %v2428 = vadd.f32 %v2130, %v2290
    %v2429 = vadd.f32 %v2131, %v2292
    %v2430 = vadd.f32 %v2132, %v2295
    %v2431 = vadd.f32 %v2133, %v2297
    %v2432 = vadd.f32 %v2134, %v2300
    %v2433 = vadd.f32 %v2135, %v2302
    %v2434 = vadd.f32 %v2136, %v2305
    %v2435 = vadd.f32 %v2137, %v2307
    %v2436 = vadd.f32 %v2138, %v2310
    %v2437 = vadd.f32 %v2139, %v2312
    %v2438 = vadd.f32 %v2140, %v2315
    %v2439 = vadd.f32 %v2141, %v2317
    %v2440 = vadd.f32 %v2142, %v2320
    %v2441 = vadd.f32 %v2143, %v2322
    %v2442 = vadd.f32 %v2144, %v2325
    %v2443 = vadd.f32 %v2145, %v2327
    %v2444 = vadd.f32 %v2146, %v2330
    %v2445 = vadd.f32 %v2147, %v2332
    %v2446 = vadd.f32 %v2148, %v2335
    %v2447 = vadd.f32 %v2149, %v2337
    %v2448 = vadd.f32 %v2150, %v2340
    %v2449 = vadd.f32 %v2151, %v2342
    %v2450 = vadd.f32 %v2152, %v2345
    %v2451 = vadd.f32 %v2153, %v2347
    %v2452 = vadd.f32 %v2154, %v2350
    %v2453 = vadd.f32 %v2155, %v2352
    %v2454 = vadd.f32 %v2156, %v2355
    %v2455 = vadd.f32 %v2157, %v2357
    %v2456 = vadd.f32 %v2158, %v2360
    %v2457 = vadd.f32 %v2159, %v2362
    %v2458 = vadd.f32 %v2160, %v2365
    %v2459 = vadd.f32 %v2161, %v2367
    %v2460 = vadd.f32 %v2162, %v2370
    %v2461 = vadd.f32 %v2163, %v2372
    %v2462 = vadd.f32 %v2164, %v2375
    %v2463 = vadd.f32 %v2165, %v2377
    %v2464 = vadd.f32 %v2166, %v2380
    %v2465 = vadd.f32 %v2167, %v2382
    %v2466 = vadd.f32 %v2168, %v2385
    %v2467 = vadd.f32 %v2169, %v2387
    %v2468 = vadd.f32 %v2170, %v2390
    %v2469 = vadd.f32 %v2171, %v2392
    %v2470 = vadd.f32 %v2172, %v2395
    %v2471 = vadd.f32 %v2173, %v2397
    %v2472 = vadd.f32 %v2174, %v2400
    %v2473 = vadd.f32 %v2175, %v2402
    %v2474 = vadd.f32 %v2176, %v2405
    %v2475 = vadd.f32 %v2177, %v2407
    %v2476 = vadd.f32 %v2178, %v2410
    %v2477 = vadd.f32 %v2179, %v2412
    %s2478 = scalar_lea.vmem [#allocation2], 448
    %v2479 = vld [vmem:[%s2478] sm:$0xf]
    %v2480 = vld [vmem:[%s2478 + $0x4] sm:$0xf]
    %v2481 = vld [vmem:[%s2478 + $0x8] sm:$0xf]
    %v2482 = vld [vmem:[%s2478 + $0xc] sm:$0xf]
    %v2483 = vld [vmem:[%s2478 + $0x10] sm:$0xf]
    %v2484 = vld [vmem:[%s2478 + $0x14] sm:$0xf]
    %v2485 = vld [vmem:[%s2478 + $0x18] sm:$0xf]
    %v2486 = vld [vmem:[%s2478 + $0x1c] sm:$0xf]
    %v2487 = vld [vmem:[%s2478 + $0x20] sm:$0xf]
    %v2488 = vld [vmem:[%s2478 + $0x24] sm:$0xf]
    %v2489 = vld [vmem:[%s2478 + $0x28] sm:$0xf]
    %v2490 = vld [vmem:[%s2478 + $0x2c] sm:$0xf]
    %v2491 = vld [vmem:[%s2478 + $0x30] sm:$0xf]
    %v2492 = vld [vmem:[%s2478 + $0x34] sm:$0xf]
    %v2493 = vld [vmem:[%s2478 + $0x38] sm:$0xf]
    %v2494 = vld [vmem:[%s2478 + $0x3c] sm:$0xf]
    %v2511 = vunpack.c.l.b16 %v2479
    %v2512 = vunpack.c.l.b16 %v2480
    %v2513 = vunpack.c.l.b16 %v2481
    %v2514 = vunpack.c.l.b16 %v2482
    %v2515 = vunpack.c.l.b16 %v2483
    %v2516 = vunpack.c.l.b16 %v2484
    %v2517 = vunpack.c.l.b16 %v2485
    %v2518 = vunpack.c.l.b16 %v2486
    %v2519 = vunpack.c.l.b16 %v2487
    %v2520 = vunpack.c.l.b16 %v2488
    %v2521 = vunpack.c.l.b16 %v2489
    %v2522 = vunpack.c.l.b16 %v2490
    %v2523 = vunpack.c.l.b16 %v2491
    %v2524 = vunpack.c.l.b16 %v2492
    %v2525 = vunpack.c.l.b16 %v2493
    %v2526 = vunpack.c.l.b16 %v2494
    %v2527 = vpack.c.b16 %v2512, %v2511
    %v2528 = vpack.c.b16 %v2514, %v2513
    %v2529 = vpack.c.b16 %v2516, %v2515
    %v2530 = vpack.c.b16 %v2518, %v2517
    %v2531 = vpack.c.b16 %v2520, %v2519
    %v2532 = vpack.c.b16 %v2522, %v2521
    %v2533 = vpack.c.b16 %v2524, %v2523
    %v2534 = vpack.c.b16 %v2526, %v2525
    %2543 = vmatpush.bf16.msra.mxu0 %v2534
    %2544 = vmatpush.bf16.msra.mxu0 %v2533
    %2545 = vmatpush.bf16.msra.mxu0 %v2532
    %2546 = vmatpush.bf16.msra.mxu0 %v2531
    %2547 = vmatpush.bf16.msra.mxu0 %v2530
    %2548 = vmatpush.bf16.msra.mxu0 %v2529
    %2549 = vmatpush.bf16.msra.mxu0 %v2528
    %2550 = vmatpush.bf16.msra.mxu0 %v2527
    %2551 = vmatmul.bf16.gmra.mxu0 %v363
    %v2552 = vpop.f32.mrf.mxu0
    %v2553 = vadd.f32 0.0, %v2552
    %v2554 = vpop.f32.mrf.mxu0
    %v2555 = vadd.f32 0.0, %v2554
    %2556 = vmatmul.bf16.gmra.mxu0 %v364
    %v2557 = vpop.f32.mrf.mxu0
    %v2558 = vadd.f32 0.0, %v2557
    %v2559 = vpop.f32.mrf.mxu0
    %v2560 = vadd.f32 0.0, %v2559
    %2561 = vmatmul.bf16.gmra.mxu0 %v365
    %v2562 = vpop.f32.mrf.mxu0
    %v2563 = vadd.f32 0.0, %v2562
    %v2564 = vpop.f32.mrf.mxu0
    %v2565 = vadd.f32 0.0, %v2564
    %2566 = vmatmul.bf16.gmra.mxu0 %v366
    %v2567 = vpop.f32.mrf.mxu0
    %v2568 = vadd.f32 0.0, %v2567
    %v2569 = vpop.f32.mrf.mxu0
    %v2570 = vadd.f32 0.0, %v2569
    %2571 = vmatmul.bf16.gmra.mxu0 %v367
    %v2572 = vpop.f32.mrf.mxu0
    %v2573 = vadd.f32 0.0, %v2572
    %v2574 = vpop.f32.mrf.mxu0
    %v2575 = vadd.f32 0.0, %v2574
    %2576 = vmatmul.bf16.gmra.mxu0 %v368
    %v2577 = vpop.f32.mrf.mxu0
    %v2578 = vadd.f32 0.0, %v2577
    %v2579 = vpop.f32.mrf.mxu0
    %v2580 = vadd.f32 0.0, %v2579
    %2581 = vmatmul.bf16.gmra.mxu0 %v369
    %v2582 = vpop.f32.mrf.mxu0
    %v2583 = vadd.f32 0.0, %v2582
    %v2584 = vpop.f32.mrf.mxu0
    %v2585 = vadd.f32 0.0, %v2584
    %2586 = vmatmul.bf16.gmra.mxu0 %v370
    %v2587 = vpop.f32.mrf.mxu0
    %v2588 = vadd.f32 0.0, %v2587
    %v2589 = vpop.f32.mrf.mxu0
    %v2590 = vadd.f32 0.0, %v2589
    %2591 = vmatmul.bf16.gmra.mxu0 %v371
    %v2592 = vpop.f32.mrf.mxu0
    %v2593 = vadd.f32 0.0, %v2592
    %v2594 = vpop.f32.mrf.mxu0
    %v2595 = vadd.f32 0.0, %v2594
    %2596 = vmatmul.bf16.gmra.mxu0 %v372
    %v2597 = vpop.f32.mrf.mxu0
    %v2598 = vadd.f32 0.0, %v2597
    %v2599 = vpop.f32.mrf.mxu0
    %v2600 = vadd.f32 0.0, %v2599
    %2601 = vmatmul.bf16.gmra.mxu0 %v373
    %v2602 = vpop.f32.mrf.mxu0
    %v2603 = vadd.f32 0.0, %v2602
    %v2604 = vpop.f32.mrf.mxu0
    %v2605 = vadd.f32 0.0, %v2604
    %2606 = vmatmul.bf16.gmra.mxu0 %v374
    %v2607 = vpop.f32.mrf.mxu0
    %v2608 = vadd.f32 0.0, %v2607
    %v2609 = vpop.f32.mrf.mxu0
    %v2610 = vadd.f32 0.0, %v2609
    %2611 = vmatmul.bf16.gmra.mxu0 %v375
    %v2612 = vpop.f32.mrf.mxu0
    %v2613 = vadd.f32 0.0, %v2612
    %v2614 = vpop.f32.mrf.mxu0
    %v2615 = vadd.f32 0.0, %v2614
    %2616 = vmatmul.bf16.gmra.mxu0 %v376
    %v2617 = vpop.f32.mrf.mxu0
    %v2618 = vadd.f32 0.0, %v2617
    %v2619 = vpop.f32.mrf.mxu0
    %v2620 = vadd.f32 0.0, %v2619
    %2621 = vmatmul.bf16.gmra.mxu0 %v377
    %v2622 = vpop.f32.mrf.mxu0
    %v2623 = vadd.f32 0.0, %v2622
    %v2624 = vpop.f32.mrf.mxu0
    %v2625 = vadd.f32 0.0, %v2624
    %2626 = vmatmul.bf16.gmra.mxu0 %v378
    %v2627 = vpop.f32.mrf.mxu0
    %v2628 = vadd.f32 0.0, %v2627
    %v2629 = vpop.f32.mrf.mxu0
    %v2630 = vadd.f32 0.0, %v2629
    %2631 = vmatmul.bf16.gmra.mxu0 %v379
    %v2632 = vpop.f32.mrf.mxu0
    %v2633 = vadd.f32 0.0, %v2632
    %v2634 = vpop.f32.mrf.mxu0
    %v2635 = vadd.f32 0.0, %v2634
    %2636 = vmatmul.bf16.gmra.mxu0 %v380
    %v2637 = vpop.f32.mrf.mxu0
    %v2638 = vadd.f32 0.0, %v2637
    %v2639 = vpop.f32.mrf.mxu0
    %v2640 = vadd.f32 0.0, %v2639
    %2641 = vmatmul.bf16.gmra.mxu0 %v381
    %v2642 = vpop.f32.mrf.mxu0
    %v2643 = vadd.f32 0.0, %v2642
    %v2644 = vpop.f32.mrf.mxu0
    %v2645 = vadd.f32 0.0, %v2644
    %2646 = vmatmul.bf16.gmra.mxu0 %v382
    %v2647 = vpop.f32.mrf.mxu0
    %v2648 = vadd.f32 0.0, %v2647
    %v2649 = vpop.f32.mrf.mxu0
    %v2650 = vadd.f32 0.0, %v2649
    %2651 = vmatmul.bf16.gmra.mxu0 %v383
    %v2652 = vpop.f32.mrf.mxu0
    %v2653 = vadd.f32 0.0, %v2652
    %v2654 = vpop.f32.mrf.mxu0
    %v2655 = vadd.f32 0.0, %v2654
    %2656 = vmatmul.bf16.gmra.mxu0 %v384
    %v2657 = vpop.f32.mrf.mxu0
    %v2658 = vadd.f32 0.0, %v2657
    %v2659 = vpop.f32.mrf.mxu0
    %v2660 = vadd.f32 0.0, %v2659
    %2661 = vmatmul.bf16.gmra.mxu0 %v385
    %v2662 = vpop.f32.mrf.mxu0
    %v2663 = vadd.f32 0.0, %v2662
    %v2664 = vpop.f32.mrf.mxu0
    %v2665 = vadd.f32 0.0, %v2664
    %2666 = vmatmul.bf16.gmra.mxu0 %v386
    %v2667 = vpop.f32.mrf.mxu0
    %v2668 = vadd.f32 0.0, %v2667
    %v2669 = vpop.f32.mrf.mxu0
    %v2670 = vadd.f32 0.0, %v2669
    %2671 = vmatmul.bf16.gmra.mxu0 %v387
    %v2672 = vpop.f32.mrf.mxu0
    %v2673 = vadd.f32 0.0, %v2672
    %v2674 = vpop.f32.mrf.mxu0
    %v2675 = vadd.f32 0.0, %v2674
    %2676 = vmatmul.bf16.gmra.mxu0 %v388
    %v2677 = vpop.f32.mrf.mxu0
    %v2678 = vadd.f32 0.0, %v2677
    %v2679 = vpop.f32.mrf.mxu0
    %v2680 = vadd.f32 0.0, %v2679
    %2681 = vmatmul.bf16.gmra.mxu0 %v389
    %v2682 = vpop.f32.mrf.mxu0
    %v2683 = vadd.f32 0.0, %v2682
    %v2684 = vpop.f32.mrf.mxu0
    %v2685 = vadd.f32 0.0, %v2684
    %2686 = vmatmul.bf16.gmra.mxu0 %v390
    %v2687 = vpop.f32.mrf.mxu0
    %v2688 = vadd.f32 0.0, %v2687
    %v2689 = vpop.f32.mrf.mxu0
    %v2690 = vadd.f32 0.0, %v2689
    %2691 = vmatmul.bf16.gmra.mxu0 %v391
    %v2692 = vpop.f32.mrf.mxu0
    %v2693 = vadd.f32 0.0, %v2692
    %v2694 = vpop.f32.mrf.mxu0
    %v2695 = vadd.f32 0.0, %v2694
    %2696 = vmatmul.bf16.gmra.mxu0 %v392
    %v2697 = vpop.f32.mrf.mxu0
    %v2698 = vadd.f32 0.0, %v2697
    %v2699 = vpop.f32.mrf.mxu0
    %v2700 = vadd.f32 0.0, %v2699
    %2701 = vmatmul.bf16.gmra.mxu0 %v361
    %v2702 = vpop.f32.mrf.mxu0
    %v2703 = vadd.f32 0.0, %v2702
    %v2704 = vpop.f32.mrf.mxu0
    %v2705 = vadd.f32 0.0, %v2704
    %2706 = vmatmul.bf16.gmra.mxu0 %v362
    %v2707 = vpop.f32.mrf.mxu0
    %v2708 = vadd.f32 0.0, %v2707
    %v2709 = vpop.f32.mrf.mxu0
    %v2710 = vadd.f32 0.0, %v2709
    %2711 = vdwg.mxu0
    %v2712 = vadd.f32 %v2414, %v2553
    %v2713 = vadd.f32 %v2415, %v2555
    %v2714 = vadd.f32 %v2416, %v2558
    %v2715 = vadd.f32 %v2417, %v2560
    %v2716 = vadd.f32 %v2418, %v2563
    %v2717 = vadd.f32 %v2419, %v2565
    %v2718 = vadd.f32 %v2420, %v2568
    %v2719 = vadd.f32 %v2421, %v2570
    %v2720 = vadd.f32 %v2422, %v2573
    %v2721 = vadd.f32 %v2423, %v2575
    %v2722 = vadd.f32 %v2424, %v2578
    %v2723 = vadd.f32 %v2425, %v2580
    %v2724 = vadd.f32 %v2426, %v2583
    %v2725 = vadd.f32 %v2427, %v2585
    %v2726 = vadd.f32 %v2428, %v2588
    %v2727 = vadd.f32 %v2429, %v2590
    %v2728 = vadd.f32 %v2430, %v2593
    %v2729 = vadd.f32 %v2431, %v2595
    %v2730 = vadd.f32 %v2432, %v2598
    %v2731 = vadd.f32 %v2433, %v2600
    %v2732 = vadd.f32 %v2434, %v2603
    %v2733 = vadd.f32 %v2435, %v2605
    %v2734 = vadd.f32 %v2436, %v2608
    %v2735 = vadd.f32 %v2437, %v2610
    %v2736 = vadd.f32 %v2438, %v2613
    %v2737 = vadd.f32 %v2439, %v2615
    %v2738 = vadd.f32 %v2440, %v2618
    %v2739 = vadd.f32 %v2441, %v2620
    %v2740 = vadd.f32 %v2442, %v2623
    %v2741 = vadd.f32 %v2443, %v2625
    %v2742 = vadd.f32 %v2444, %v2628
    %v2743 = vadd.f32 %v2445, %v2630
    %v2744 = vadd.f32 %v2446, %v2633
    %v2745 = vadd.f32 %v2447, %v2635
    %v2746 = vadd.f32 %v2448, %v2638
    %v2747 = vadd.f32 %v2449, %v2640
    %v2748 = vadd.f32 %v2450, %v2643
    %v2749 = vadd.f32 %v2451, %v2645
    %v2750 = vadd.f32 %v2452, %v2648
    %v2751 = vadd.f32 %v2453, %v2650
    %v2752 = vadd.f32 %v2454, %v2653
    %v2753 = vadd.f32 %v2455, %v2655
    %v2754 = vadd.f32 %v2456, %v2658
    %v2755 = vadd.f32 %v2457, %v2660
    %v2756 = vadd.f32 %v2458, %v2663
    %v2757 = vadd.f32 %v2459, %v2665
    %v2758 = vadd.f32 %v2460, %v2668
    %v2759 = vadd.f32 %v2461, %v2670
    %v2760 = vadd.f32 %v2462, %v2673
    %v2761 = vadd.f32 %v2463, %v2675
    %v2762 = vadd.f32 %v2464, %v2678
    %v2763 = vadd.f32 %v2465, %v2680
    %v2764 = vadd.f32 %v2466, %v2683
    %v2765 = vadd.f32 %v2467, %v2685
    %v2766 = vadd.f32 %v2468, %v2688
    %v2767 = vadd.f32 %v2469, %v2690
    %v2768 = vadd.f32 %v2470, %v2693
    %v2769 = vadd.f32 %v2471, %v2695
    %v2770 = vadd.f32 %v2472, %v2698
    %v2771 = vadd.f32 %v2473, %v2700
    %v2772 = vadd.f32 %v2474, %v2703
    %v2773 = vadd.f32 %v2475, %v2705
    %v2774 = vadd.f32 %v2476, %v2708
    %v2775 = vadd.f32 %v2477, %v2710
    %s2776 = scalar_lea.vmem [#allocation2], 512
    %v2777 = vld [vmem:[%s2776] sm:$0xf]
    %v2778 = vld [vmem:[%s2776 + $0x4] sm:$0xf]
    %v2779 = vld [vmem:[%s2776 + $0x8] sm:$0xf]
    %v2780 = vld [vmem:[%s2776 + $0xc] sm:$0xf]
    %v2781 = vld [vmem:[%s2776 + $0x10] sm:$0xf]
    %v2782 = vld [vmem:[%s2776 + $0x14] sm:$0xf]
    %v2783 = vld [vmem:[%s2776 + $0x18] sm:$0xf]
    %v2784 = vld [vmem:[%s2776 + $0x1c] sm:$0xf]
    %v2785 = vld [vmem:[%s2776 + $0x20] sm:$0xf]
    %v2786 = vld [vmem:[%s2776 + $0x24] sm:$0xf]
    %v2787 = vld [vmem:[%s2776 + $0x28] sm:$0xf]
    %v2788 = vld [vmem:[%s2776 + $0x2c] sm:$0xf]
    %v2789 = vld [vmem:[%s2776 + $0x30] sm:$0xf]
    %v2790 = vld [vmem:[%s2776 + $0x34] sm:$0xf]
    %v2791 = vld [vmem:[%s2776 + $0x38] sm:$0xf]
    %v2792 = vld [vmem:[%s2776 + $0x3c] sm:$0xf]
    %v2809 = vunpack.c.l.b16 %v2777
    %v2810 = vunpack.c.l.b16 %v2778
    %v2811 = vunpack.c.l.b16 %v2779
    %v2812 = vunpack.c.l.b16 %v2780
    %v2813 = vunpack.c.l.b16 %v2781
    %v2814 = vunpack.c.l.b16 %v2782
    %v2815 = vunpack.c.l.b16 %v2783
    %v2816 = vunpack.c.l.b16 %v2784
    %v2817 = vunpack.c.l.b16 %v2785
    %v2818 = vunpack.c.l.b16 %v2786
    %v2819 = vunpack.c.l.b16 %v2787
    %v2820 = vunpack.c.l.b16 %v2788
    %v2821 = vunpack.c.l.b16 %v2789
    %v2822 = vunpack.c.l.b16 %v2790
    %v2823 = vunpack.c.l.b16 %v2791
    %v2824 = vunpack.c.l.b16 %v2792
    %v2825 = vpack.c.b16 %v2810, %v2809
    %v2826 = vpack.c.b16 %v2812, %v2811
    %v2827 = vpack.c.b16 %v2814, %v2813
    %v2828 = vpack.c.b16 %v2816, %v2815
    %v2829 = vpack.c.b16 %v2818, %v2817
    %v2830 = vpack.c.b16 %v2820, %v2819
    %v2831 = vpack.c.b16 %v2822, %v2821
    %v2832 = vpack.c.b16 %v2824, %v2823
    %2841 = vmatpush.bf16.msra.mxu0 %v2832
    %2842 = vmatpush.bf16.msra.mxu0 %v2831
    %2843 = vmatpush.bf16.msra.mxu0 %v2830
    %2844 = vmatpush.bf16.msra.mxu0 %v2829
    %2845 = vmatpush.bf16.msra.mxu0 %v2828
    %2846 = vmatpush.bf16.msra.mxu0 %v2827
    %2847 = vmatpush.bf16.msra.mxu0 %v2826
    %2848 = vmatpush.bf16.msra.mxu0 %v2825
    %2849 = vmatmul.bf16.gmra.mxu0 %v975
    %v2850 = vpop.f32.mrf.mxu0
    %v2851 = vadd.f32 0.0, %v2850
    %v2852 = vpop.f32.mrf.mxu0
    %v2853 = vadd.f32 0.0, %v2852
    %2854 = vmatmul.bf16.gmra.mxu0 %v976
    %v2855 = vpop.f32.mrf.mxu0
    %v2856 = vadd.f32 0.0, %v2855
    %v2857 = vpop.f32.mrf.mxu0
    %v2858 = vadd.f32 0.0, %v2857
    %2859 = vmatmul.bf16.gmra.mxu0 %v977
    %v2860 = vpop.f32.mrf.mxu0
    %v2861 = vadd.f32 0.0, %v2860
    %v2862 = vpop.f32.mrf.mxu0
    %v2863 = vadd.f32 0.0, %v2862
    %2864 = vmatmul.bf16.gmra.mxu0 %v978
    %v2865 = vpop.f32.mrf.mxu0
    %v2866 = vadd.f32 0.0, %v2865
    %v2867 = vpop.f32.mrf.mxu0
    %v2868 = vadd.f32 0.0, %v2867
    %2869 = vmatmul.bf16.gmra.mxu0 %v979
    %v2870 = vpop.f32.mrf.mxu0
    %v2871 = vadd.f32 0.0, %v2870
    %v2872 = vpop.f32.mrf.mxu0
    %v2873 = vadd.f32 0.0, %v2872
    %2874 = vmatmul.bf16.gmra.mxu0 %v980
    %v2875 = vpop.f32.mrf.mxu0
    %v2876 = vadd.f32 0.0, %v2875
    %v2877 = vpop.f32.mrf.mxu0
    %v2878 = vadd.f32 0.0, %v2877
    %2879 = vmatmul.bf16.gmra.mxu0 %v981
    %v2880 = vpop.f32.mrf.mxu0
    %v2881 = vadd.f32 0.0, %v2880
    %v2882 = vpop.f32.mrf.mxu0
    %v2883 = vadd.f32 0.0, %v2882
    %2884 = vmatmul.bf16.gmra.mxu0 %v982
    %v2885 = vpop.f32.mrf.mxu0
    %v2886 = vadd.f32 0.0, %v2885
    %v2887 = vpop.f32.mrf.mxu0
    %v2888 = vadd.f32 0.0, %v2887
    %2889 = vmatmul.bf16.gmra.mxu0 %v983
    %v2890 = vpop.f32.mrf.mxu0
    %v2891 = vadd.f32 0.0, %v2890
    %v2892 = vpop.f32.mrf.mxu0
    %v2893 = vadd.f32 0.0, %v2892
    %2894 = vmatmul.bf16.gmra.mxu0 %v984
    %v2895 = vpop.f32.mrf.mxu0
    %v2896 = vadd.f32 0.0, %v2895
    %v2897 = vpop.f32.mrf.mxu0
    %v2898 = vadd.f32 0.0, %v2897
    %2899 = vmatmul.bf16.gmra.mxu0 %v985
    %v2900 = vpop.f32.mrf.mxu0
    %v2901 = vadd.f32 0.0, %v2900
    %v2902 = vpop.f32.mrf.mxu0
    %v2903 = vadd.f32 0.0, %v2902
    %2904 = vmatmul.bf16.gmra.mxu0 %v986
    %v2905 = vpop.f32.mrf.mxu0
    %v2906 = vadd.f32 0.0, %v2905
    %v2907 = vpop.f32.mrf.mxu0
    %v2908 = vadd.f32 0.0, %v2907
    %2909 = vmatmul.bf16.gmra.mxu0 %v987
    %v2910 = vpop.f32.mrf.mxu0
    %v2911 = vadd.f32 0.0, %v2910
    %v2912 = vpop.f32.mrf.mxu0
    %v2913 = vadd.f32 0.0, %v2912
    %2914 = vmatmul.bf16.gmra.mxu0 %v988
    %v2915 = vpop.f32.mrf.mxu0
    %v2916 = vadd.f32 0.0, %v2915
    %v2917 = vpop.f32.mrf.mxu0
    %v2918 = vadd.f32 0.0, %v2917
    %2919 = vmatmul.bf16.gmra.mxu0 %v989
    %v2920 = vpop.f32.mrf.mxu0
    %v2921 = vadd.f32 0.0, %v2920
    %v2922 = vpop.f32.mrf.mxu0
    %v2923 = vadd.f32 0.0, %v2922
    %2924 = vmatmul.bf16.gmra.mxu0 %v990
    %v2925 = vpop.f32.mrf.mxu0
    %v2926 = vadd.f32 0.0, %v2925
    %v2927 = vpop.f32.mrf.mxu0
    %v2928 = vadd.f32 0.0, %v2927
    %2929 = vmatmul.bf16.gmra.mxu0 %v991
    %v2930 = vpop.f32.mrf.mxu0
    %v2931 = vadd.f32 0.0, %v2930
    %v2932 = vpop.f32.mrf.mxu0
    %v2933 = vadd.f32 0.0, %v2932
    %2934 = vmatmul.bf16.gmra.mxu0 %v992
    %v2935 = vpop.f32.mrf.mxu0
    %v2936 = vadd.f32 0.0, %v2935
    %v2937 = vpop.f32.mrf.mxu0
    %v2938 = vadd.f32 0.0, %v2937
    %2939 = vmatmul.bf16.gmra.mxu0 %v993
    %v2940 = vpop.f32.mrf.mxu0
    %v2941 = vadd.f32 0.0, %v2940
    %v2942 = vpop.f32.mrf.mxu0
    %v2943 = vadd.f32 0.0, %v2942
    %2944 = vmatmul.bf16.gmra.mxu0 %v994
    %v2945 = vpop.f32.mrf.mxu0
    %v2946 = vadd.f32 0.0, %v2945
    %v2947 = vpop.f32.mrf.mxu0
    %v2948 = vadd.f32 0.0, %v2947
    %2949 = vmatmul.bf16.gmra.mxu0 %v995
    %v2950 = vpop.f32.mrf.mxu0
    %v2951 = vadd.f32 0.0, %v2950
    %v2952 = vpop.f32.mrf.mxu0
    %v2953 = vadd.f32 0.0, %v2952
    %2954 = vmatmul.bf16.gmra.mxu0 %v996
    %v2955 = vpop.f32.mrf.mxu0
    %v2956 = vadd.f32 0.0, %v2955
    %v2957 = vpop.f32.mrf.mxu0
    %v2958 = vadd.f32 0.0, %v2957
    %2959 = vmatmul.bf16.gmra.mxu0 %v997
    %v2960 = vpop.f32.mrf.mxu0
    %v2961 = vadd.f32 0.0, %v2960
    %v2962 = vpop.f32.mrf.mxu0
    %v2963 = vadd.f32 0.0, %v2962
    %2964 = vmatmul.bf16.gmra.mxu0 %v998
    %v2965 = vpop.f32.mrf.mxu0
    %v2966 = vadd.f32 0.0, %v2965
    %v2967 = vpop.f32.mrf.mxu0
    %v2968 = vadd.f32 0.0, %v2967
    %2969 = vmatmul.bf16.gmra.mxu0 %v999
    %v2970 = vpop.f32.mrf.mxu0
    %v2971 = vadd.f32 0.0, %v2970
    %v2972 = vpop.f32.mrf.mxu0
    %v2973 = vadd.f32 0.0, %v2972
    %2974 = vmatmul.bf16.gmra.mxu0 %v1000
    %v2975 = vpop.f32.mrf.mxu0
    %v2976 = vadd.f32 0.0, %v2975
    %v2977 = vpop.f32.mrf.mxu0
    %v2978 = vadd.f32 0.0, %v2977
    %2979 = vmatmul.bf16.gmra.mxu0 %v1001
    %v2980 = vpop.f32.mrf.mxu0
    %v2981 = vadd.f32 0.0, %v2980
    %v2982 = vpop.f32.mrf.mxu0
    %v2983 = vadd.f32 0.0, %v2982
    %2984 = vmatmul.bf16.gmra.mxu0 %v1002
    %v2985 = vpop.f32.mrf.mxu0
    %v2986 = vadd.f32 0.0, %v2985
    %v2987 = vpop.f32.mrf.mxu0
    %v2988 = vadd.f32 0.0, %v2987
    %2989 = vmatmul.bf16.gmra.mxu0 %v1003
    %v2990 = vpop.f32.mrf.mxu0
    %v2991 = vadd.f32 0.0, %v2990
    %v2992 = vpop.f32.mrf.mxu0
    %v2993 = vadd.f32 0.0, %v2992
    %2994 = vmatmul.bf16.gmra.mxu0 %v1004
    %v2995 = vpop.f32.mrf.mxu0
    %v2996 = vadd.f32 0.0, %v2995
    %v2997 = vpop.f32.mrf.mxu0
    %v2998 = vadd.f32 0.0, %v2997
    %2999 = vmatmul.bf16.gmra.mxu0 %v973
    %v3000 = vpop.f32.mrf.mxu0
    %v3001 = vadd.f32 0.0, %v3000
    %v3002 = vpop.f32.mrf.mxu0
    %v3003 = vadd.f32 0.0, %v3002
    %3004 = vmatmul.bf16.gmra.mxu0 %v974
    %v3005 = vpop.f32.mrf.mxu0
    %v3006 = vadd.f32 0.0, %v3005
    %v3007 = vpop.f32.mrf.mxu0
    %v3008 = vadd.f32 0.0, %v3007
    %3009 = vdwg.mxu0
    %v3010 = vadd.f32 %v2712, %v2851
    %v3011 = vadd.f32 %v2713, %v2853
    %v3012 = vadd.f32 %v2714, %v2856
    %v3013 = vadd.f32 %v2715, %v2858
    %v3014 = vadd.f32 %v2716, %v2861
    %v3015 = vadd.f32 %v2717, %v2863
    %v3016 = vadd.f32 %v2718, %v2866
    %v3017 = vadd.f32 %v2719, %v2868
    %v3018 = vadd.f32 %v2720, %v2871
    %v3019 = vadd.f32 %v2721, %v2873
    %v3020 = vadd.f32 %v2722, %v2876
    %v3021 = vadd.f32 %v2723, %v2878
    %v3022 = vadd.f32 %v2724, %v2881
    %v3023 = vadd.f32 %v2725, %v2883
    %v3024 = vadd.f32 %v2726, %v2886
    %v3025 = vadd.f32 %v2727, %v2888
    %v3026 = vadd.f32 %v2728, %v2891
    %v3027 = vadd.f32 %v2729, %v2893
    %v3028 = vadd.f32 %v2730, %v2896
    %v3029 = vadd.f32 %v2731, %v2898
    %v3030 = vadd.f32 %v2732, %v2901
    %v3031 = vadd.f32 %v2733, %v2903
    %v3032 = vadd.f32 %v2734, %v2906
    %v3033 = vadd.f32 %v2735, %v2908
    %v3034 = vadd.f32 %v2736, %v2911
    %v3035 = vadd.f32 %v2737, %v2913
    %v3036 = vadd.f32 %v2738, %v2916
    %v3037 = vadd.f32 %v2739, %v2918
    %v3038 = vadd.f32 %v2740, %v2921
    %v3039 = vadd.f32 %v2741, %v2923
    %v3040 = vadd.f32 %v2742, %v2926
    %v3041 = vadd.f32 %v2743, %v2928
    %v3042 = vadd.f32 %v2744, %v2931
    %v3043 = vadd.f32 %v2745, %v2933
    %v3044 = vadd.f32 %v2746, %v2936
    %v3045 = vadd.f32 %v2747, %v2938
    %v3046 = vadd.f32 %v2748, %v2941
    %v3047 = vadd.f32 %v2749, %v2943
    %v3048 = vadd.f32 %v2750, %v2946
    %v3049 = vadd.f32 %v2751, %v2948
    %v3050 = vadd.f32 %v2752, %v2951
    %v3051 = vadd.f32 %v2753, %v2953
    %v3052 = vadd.f32 %v2754, %v2956
    %v3053 = vadd.f32 %v2755, %v2958
    %v3054 = vadd.f32 %v2756, %v2961
    %v3055 = vadd.f32 %v2757, %v2963
    %v3056 = vadd.f32 %v2758, %v2966
    %v3057 = vadd.f32 %v2759, %v2968
    %v3058 = vadd.f32 %v2760, %v2971
    %v3059 = vadd.f32 %v2761, %v2973
    %v3060 = vadd.f32 %v2762, %v2976
    %v3061 = vadd.f32 %v2763, %v2978
    %v3062 = vadd.f32 %v2764, %v2981
    %v3063 = vadd.f32 %v2765, %v2983
    %v3064 = vadd.f32 %v2766, %v2986
    %v3065 = vadd.f32 %v2767, %v2988
    %v3066 = vadd.f32 %v2768, %v2991
    %v3067 = vadd.f32 %v2769, %v2993
    %v3068 = vadd.f32 %v2770, %v2996
    %v3069 = vadd.f32 %v2771, %v2998
    %v3070 = vadd.f32 %v2772, %v3001
    %v3071 = vadd.f32 %v2773, %v3003
    %v3072 = vadd.f32 %v2774, %v3006
    %v3073 = vadd.f32 %v2775, %v3008
    %v3074 = vld [vmem:[%s3] sm:$0x1]
    %s3075 = scalar_lea.vmem %s3, 1
    %v3076 = vld [vmem:[%s3075] sm:$0x1]
    %3077 = vxpose.xlu0.b32.start [1/16] %v37, 128
    %3078 = vxpose.xlu0.b32.cont [2/16] %v38, 128
    %3079 = vxpose.xlu0.b32.cont [3/16] %v39, 128
    %3080 = vxpose.xlu0.b32.cont [4/16] %v40, 128
    %3081 = vxpose.xlu0.b32.cont [5/16] %v41, 128
    %3082 = vxpose.xlu0.b32.cont [6/16] %v42, 128
    %3083 = vxpose.xlu0.b32.cont [7/16] %v43, 128
    %3084 = vxpose.xlu0.b32.cont [8/16] %v44, 128
    %3085 = vxpose.xlu0.b32.cont [9/16] %v45, 128
    %3086 = vxpose.xlu0.b32.cont [10/16] %v46, 128
    %3087 = vxpose.xlu0.b32.cont [11/16] %v47, 128
    %3088 = vxpose.xlu0.b32.cont [12/16] %v48, 128
    %3089 = vxpose.xlu0.b32.cont [13/16] %v49, 128
    %3090 = vxpose.xlu0.b32.cont [14/16] %v50, 128
    %3091 = vxpose.xlu0.b32.cont [15/16] %v51, 128
    %3092 = vxpose.xlu0.b32.end [16/16] %v52, 128
    %v3093 = vpop.trf.xlu0
    %v3094 = vpop.trf.xlu0
    %v3095 = vpop.trf.xlu0
    %v3096 = vpop.trf.xlu0
    %v3097 = vpop.trf.xlu0
    %v3098 = vpop.trf.xlu0
    %v3099 = vpop.trf.xlu0
    %v3100 = vpop.trf.xlu0
    %v3101 = vpop.trf.xlu0
    %v3102 = vpop.trf.xlu0
    %v3103 = vpop.trf.xlu0
    %v3104 = vpop.trf.xlu0
    %v3105 = vpop.trf.xlu0
    %v3106 = vpop.trf.xlu0
    %v3107 = vpop.trf.xlu0
    %v3108 = vpop.trf.xlu0
    %3109 = vxpose.xlu0.b32.start [1/16] %v53, 128
    %3110 = vxpose.xlu0.b32.cont [2/16] %v54, 128
    %3111 = vxpose.xlu0.b32.cont [3/16] %v55, 128
    %3112 = vxpose.xlu0.b32.cont [4/16] %v56, 128
    %3113 = vxpose.xlu0.b32.cont [5/16] %v57, 128
    %3114 = vxpose.xlu0.b32.cont [6/16] %v58, 128
    %3115 = vxpose.xlu0.b32.cont [7/16] %v59, 128
    %3116 = vxpose.xlu0.b32.cont [8/16] %v60, 128
    %3117 = vxpose.xlu0.b32.cont [9/16] %v61, 128
    %3118 = vxpose.xlu0.b32.cont [10/16] %v62, 128
    %3119 = vxpose.xlu0.b32.cont [11/16] %v63, 128
    %3120 = vxpose.xlu0.b32.cont [12/16] %v64, 128
    %3121 = vxpose.xlu0.b32.cont [13/16] %v65, 128
    %3122 = vxpose.xlu0.b32.cont [14/16] %v66, 128
    %3123 = vxpose.xlu0.b32.cont [15/16] %v67, 128
    %3124 = vxpose.xlu0.b32.end [16/16] %v68, 128
    %v3125 = vpop.trf.xlu0
    %v3126 = vpop.trf.xlu0
    %v3127 = vpop.trf.xlu0
    %v3128 = vpop.trf.xlu0
    %v3129 = vpop.trf.xlu0
    %v3130 = vpop.trf.xlu0
    %v3131 = vpop.trf.xlu0
    %v3132 = vpop.trf.xlu0
    %v3133 = vpop.trf.xlu0
    %v3134 = vpop.trf.xlu0
    %v3135 = vpop.trf.xlu0
    %v3136 = vpop.trf.xlu0
    %v3137 = vpop.trf.xlu0
    %v3138 = vpop.trf.xlu0
    %v3139 = vpop.trf.xlu0
    %v3140 = vpop.trf.xlu0
    %3141 = vxpose.xlu0.b32.start [1/16] %v69, 128
    %3142 = vxpose.xlu0.b32.cont [2/16] %v70, 128
    %3143 = vxpose.xlu0.b32.cont [3/16] %v71, 128
    %3144 = vxpose.xlu0.b32.cont [4/16] %v72, 128
    %3145 = vxpose.xlu0.b32.cont [5/16] %v73, 128
    %3146 = vxpose.xlu0.b32.cont [6/16] %v74, 128
    %3147 = vxpose.xlu0.b32.cont [7/16] %v75, 128
    %3148 = vxpose.xlu0.b32.cont [8/16] %v76, 128
    %3149 = vxpose.xlu0.b32.cont [9/16] %v77, 128
    %3150 = vxpose.xlu0.b32.cont [10/16] %v78, 128
    %3151 = vxpose.xlu0.b32.cont [11/16] %v79, 128
    %3152 = vxpose.xlu0.b32.cont [12/16] %v80, 128
    %3153 = vxpose.xlu0.b32.cont [13/16] %v81, 128
    %3154 = vxpose.xlu0.b32.cont [14/16] %v82, 128
    %3155 = vxpose.xlu0.b32.cont [15/16] %v83, 128
    %3156 = vxpose.xlu0.b32.end [16/16] %v84, 128
    %v3157 = vpop.trf.xlu0
    %v3158 = vpop.trf.xlu0
    %v3159 = vpop.trf.xlu0
    %v3160 = vpop.trf.xlu0
    %v3161 = vpop.trf.xlu0
    %v3162 = vpop.trf.xlu0
    %v3163 = vpop.trf.xlu0
    %v3164 = vpop.trf.xlu0
    %v3165 = vpop.trf.xlu0
    %v3166 = vpop.trf.xlu0
    %v3167 = vpop.trf.xlu0
    %v3168 = vpop.trf.xlu0
    %v3169 = vpop.trf.xlu0
    %v3170 = vpop.trf.xlu0
    %v3171 = vpop.trf.xlu0
    %v3172 = vpop.trf.xlu0
    %3173 = vxpose.xlu0.b32.start [1/16] %v85, 128
    %3174 = vxpose.xlu0.b32.cont [2/16] %v86, 128
    %3175 = vxpose.xlu0.b32.cont [3/16] %v87, 128
    %3176 = vxpose.xlu0.b32.cont [4/16] %v88, 128
    %3177 = vxpose.xlu0.b32.cont [5/16] %v89, 128
    %3178 = vxpose.xlu0.b32.cont [6/16] %v90, 128
    %3179 = vxpose.xlu0.b32.cont [7/16] %v91, 128
    %3180 = vxpose.xlu0.b32.cont [8/16] %v92, 128
    %3181 = vxpose.xlu0.b32.cont [9/16] %v93, 128
    %3182 = vxpose.xlu0.b32.cont [10/16] %v94, 128
    %3183 = vxpose.xlu0.b32.cont [11/16] %v95, 128
    %3184 = vxpose.xlu0.b32.cont [12/16] %v96, 128
    %3185 = vxpose.xlu0.b32.cont [13/16] %v97, 128
    %3186 = vxpose.xlu0.b32.cont [14/16] %v98, 128
    %3187 = vxpose.xlu0.b32.cont [15/16] %v99, 128
    %3188 = vxpose.xlu0.b32.end [16/16] %v100, 128
    %v3189 = vpop.trf.xlu0
    %v3190 = vpop.trf.xlu0
    %v3191 = vpop.trf.xlu0
    %v3192 = vpop.trf.xlu0
    %v3193 = vpop.trf.xlu0
    %v3194 = vpop.trf.xlu0
    %v3195 = vpop.trf.xlu0
    %v3196 = vpop.trf.xlu0
    %v3197 = vpop.trf.xlu0
    %v3198 = vpop.trf.xlu0
    %v3199 = vpop.trf.xlu0
    %v3200 = vpop.trf.xlu0
    %v3201 = vpop.trf.xlu0
    %v3202 = vpop.trf.xlu0
    %v3203 = vpop.trf.xlu0
    %v3204 = vpop.trf.xlu0
    %3205 = vmatpush.msra.mxu0 %v3025
    %3206 = vmatpush.msra.mxu0 %v3024
    %3207 = vmatpush.msra.mxu0 %v3023
    %3208 = vmatpush.msra.mxu0 %v3022
    %3209 = vmatpush.msra.mxu0 %v3021
    %3210 = vmatpush.msra.mxu0 %v3020
    %3211 = vmatpush.msra.mxu0 %v3019
    %3212 = vmatpush.msra.mxu0 %v3018
    %3213 = vmatpush.msra.mxu0 %v3017
    %3214 = vmatpush.msra.mxu0 %v3016
    %3215 = vmatpush.msra.mxu0 %v3015
    %3216 = vmatpush.msra.mxu0 %v3014
    %3217 = vmatpush.msra.mxu0 %v3013
    %3218 = vmatpush.msra.mxu0 %v3012
    %3219 = vmatpush.msra.mxu0 %v3011
    %3220 = vmatpush.msra.mxu0 %v3010
    %3221 = vmatmul.f32.gmra.mxu0 %v3093
    %v3222 = vpop.f32.mrf.mxu0
    %v3223 = vadd.f32 0.0, %v3222
    %3224 = vdwg.mxu0
    %3225 = vmatpush.msra.mxu0 %v3041
    %3226 = vmatpush.msra.mxu0 %v3040
    %3227 = vmatpush.msra.mxu0 %v3039
    %3228 = vmatpush.msra.mxu0 %v3038
    %3229 = vmatpush.msra.mxu0 %v3037
    %3230 = vmatpush.msra.mxu0 %v3036
    %3231 = vmatpush.msra.mxu0 %v3035
    %3232 = vmatpush.msra.mxu0 %v3034
    %3233 = vmatpush.msra.mxu0 %v3033
    %3234 = vmatpush.msra.mxu0 %v3032
    %3235 = vmatpush.msra.mxu0 %v3031
    %3236 = vmatpush.msra.mxu0 %v3030
    %3237 = vmatpush.msra.mxu0 %v3029
    %3238 = vmatpush.msra.mxu0 %v3028
    %3239 = vmatpush.msra.mxu0 %v3027
    %3240 = vmatpush.msra.mxu0 %v3026
    %3241 = vmatmul.f32.gmra.mxu0 %v3125
    %v3242 = vpop.f32.mrf.mxu0
    %v3243 = vadd.f32 %v3223, %v3242
    %3244 = vdwg.mxu0
    %3245 = vmatpush.msra.mxu0 %v3057
    %3246 = vmatpush.msra.mxu0 %v3056
    %3247 = vmatpush.msra.mxu0 %v3055
    %3248 = vmatpush.msra.mxu0 %v3054
    %3249 = vmatpush.msra.mxu0 %v3053
    %3250 = vmatpush.msra.mxu0 %v3052
    %3251 = vmatpush.msra.mxu0 %v3051
    %3252 = vmatpush.msra.mxu0 %v3050
    %3253 = vmatpush.msra.mxu0 %v3049
    %3254 = vmatpush.msra.mxu0 %v3048
    %3255 = vmatpush.msra.mxu0 %v3047
    %3256 = vmatpush.msra.mxu0 %v3046
    %3257 = vmatpush.msra.mxu0 %v3045
    %3258 = vmatpush.msra.mxu0 %v3044
    %3259 = vmatpush.msra.mxu0 %v3043
    %3260 = vmatpush.msra.mxu0 %v3042
    %3261 = vmatmul.f32.gmra.mxu0 %v3157
    %v3262 = vpop.f32.mrf.mxu0
    %v3263 = vadd.f32 %v3243, %v3262
    %3264 = vdwg.mxu0
    %3265 = vmatpush.msra.mxu0 %v3073
    %3266 = vmatpush.msra.mxu0 %v3072
    %3267 = vmatpush.msra.mxu0 %v3071
    %3268 = vmatpush.msra.mxu0 %v3070
    %3269 = vmatpush.msra.mxu0 %v3069
    %3270 = vmatpush.msra.mxu0 %v3068
    %3271 = vmatpush.msra.mxu0 %v3067
    %3272 = vmatpush.msra.mxu0 %v3066
    %3273 = vmatpush.msra.mxu0 %v3065
    %3274 = vmatpush.msra.mxu0 %v3064
    %3275 = vmatpush.msra.mxu0 %v3063
    %3276 = vmatpush.msra.mxu0 %v3062
    %3277 = vmatpush.msra.mxu0 %v3061
    %3278 = vmatpush.msra.mxu0 %v3060
    %3279 = vmatpush.msra.mxu0 %v3059
    %3280 = vmatpush.msra.mxu0 %v3058
    %3281 = vmatmul.f32.gmra.mxu0 %v3189
    %v3282 = vpop.f32.mrf.mxu0
    %v3283 = vadd.f32 %v3263, %v3282
    %3284 = vdwg.mxu0
    %v3285 = vmul.f32 %v3283, 0.0025510204
    %v3286 = vperm.slane %v3285, 0
    %v3287 = vsub.f32 %v3010, %v3286
    %v3288 = vsub.f32 %v3011, %v3286
    %v3289 = vsub.f32 %v3012, %v3286
    %v3290 = vsub.f32 %v3013, %v3286
    %v3291 = vsub.f32 %v3014, %v3286
    %v3292 = vsub.f32 %v3015, %v3286
    %v3293 = vsub.f32 %v3016, %v3286
    %v3294 = vsub.f32 %v3017, %v3286
    %v3295 = vsub.f32 %v3018, %v3286
    %v3296 = vsub.f32 %v3019, %v3286
    %v3297 = vsub.f32 %v3020, %v3286
    %v3298 = vsub.f32 %v3021, %v3286
    %v3299 = vsub.f32 %v3022, %v3286
    %v3300 = vsub.f32 %v3023, %v3286
    %v3301 = vsub.f32 %v3024, %v3286
    %v3302 = vsub.f32 %v3025, %v3286
    %v3303 = vsub.f32 %v3026, %v3286
    %v3304 = vsub.f32 %v3027, %v3286
    %v3305 = vsub.f32 %v3028, %v3286
    %v3306 = vsub.f32 %v3029, %v3286
    %v3307 = vsub.f32 %v3030, %v3286
    %v3308 = vsub.f32 %v3031, %v3286
    %v3309 = vsub.f32 %v3032, %v3286
    %v3310 = vsub.f32 %v3033, %v3286
    %v3311 = vsub.f32 %v3034, %v3286
    %v3312 = vsub.f32 %v3035, %v3286
    %v3313 = vsub.f32 %v3036, %v3286
    %v3314 = vsub.f32 %v3037, %v3286
    %v3315 = vsub.f32 %v3038, %v3286
    %v3316 = vsub.f32 %v3039, %v3286
    %v3317 = vsub.f32 %v3040, %v3286
    %v3318 = vsub.f32 %v3041, %v3286
    %v3319 = vsub.f32 %v3042, %v3286
    %v3320 = vsub.f32 %v3043, %v3286
    %v3321 = vsub.f32 %v3044, %v3286
    %v3322 = vsub.f32 %v3045, %v3286
    %v3323 = vsub.f32 %v3046, %v3286
    %v3324 = vsub.f32 %v3047, %v3286
    %v3325 = vsub.f32 %v3048, %v3286
    %v3326 = vsub.f32 %v3049, %v3286
    %v3327 = vsub.f32 %v3050, %v3286
    %v3328 = vsub.f32 %v3051, %v3286
    %v3329 = vsub.f32 %v3052, %v3286
    %v3330 = vsub.f32 %v3053, %v3286
    %v3331 = vsub.f32 %v3054, %v3286
    %v3332 = vsub.f32 %v3055, %v3286
    %v3333 = vsub.f32 %v3056, %v3286
    %v3334 = vsub.f32 %v3057, %v3286
    %v3335 = vsub.f32 %v3058, %v3286
    %v3336 = vsub.f32 %v3059, %v3286
    %v3337 = vsub.f32 %v3060, %v3286
    %v3338 = vsub.f32 %v3061, %v3286
    %v3339 = vsub.f32 %v3062, %v3286
    %v3340 = vsub.f32 %v3063, %v3286
    %v3341 = vsub.f32 %v3064, %v3286
    %v3342 = vsub.f32 %v3065, %v3286
    %v3343 = vsub.f32 %v3066, %v3286
    %v3344 = vsub.f32 %v3067, %v3286
    %v3345 = vsub.f32 %v3068, %v3286
    %v3346 = vsub.f32 %v3069, %v3286
    %v3347 = vsub.f32 %v3070, %v3286
    %v3348 = vsub.f32 %v3071, %v3286
    %v3349 = vsub.f32 %v3072, %v3286
    %v3350 = vsub.f32 %v3073, %v3286
    %3352 = vset.pattern.permute.xlu0 0
    %3353 = vperm.xlu0 %3352, %v37
    %v3354 = vpop.permute.xlu0 %3353
    %3357 = vset.pattern.permute.xlu0 0
    %3358 = vperm.xlu0 %3357, %v38
    %v3359 = vpop.permute.xlu0 %3358
    %3362 = vset.pattern.permute.xlu0 0
    %3363 = vperm.xlu0 %3362, %v39
    %v3364 = vpop.permute.xlu0 %3363
    %3367 = vset.pattern.permute.xlu0 0
    %3368 = vperm.xlu0 %3367, %v40
    %v3369 = vpop.permute.xlu0 %3368
    %3372 = vset.pattern.permute.xlu0 0
    %3373 = vperm.xlu0 %3372, %v41
    %v3374 = vpop.permute.xlu0 %3373
    %3377 = vset.pattern.permute.xlu0 0
    %3378 = vperm.xlu0 %3377, %v42
    %v3379 = vpop.permute.xlu0 %3378
    %3382 = vset.pattern.permute.xlu0 0
    %3383 = vperm.xlu0 %3382, %v43
    %v3384 = vpop.permute.xlu0 %3383
    %3387 = vset.pattern.permute.xlu0 0
    %3388 = vperm.xlu0 %3387, %v44
    %v3389 = vpop.permute.xlu0 %3388
    %3392 = vset.pattern.permute.xlu0 0
    %3393 = vperm.xlu0 %3392, %v45
    %v3394 = vpop.permute.xlu0 %3393
    %3397 = vset.pattern.permute.xlu0 0
    %3398 = vperm.xlu0 %3397, %v46
    %v3399 = vpop.permute.xlu0 %3398
    %3402 = vset.pattern.permute.xlu0 0
    %3403 = vperm.xlu0 %3402, %v47
    %v3404 = vpop.permute.xlu0 %3403
    %3407 = vset.pattern.permute.xlu0 0
    %3408 = vperm.xlu0 %3407, %v48
    %v3409 = vpop.permute.xlu0 %3408
    %3412 = vset.pattern.permute.xlu0 0
    %3413 = vperm.xlu0 %3412, %v49
    %v3414 = vpop.permute.xlu0 %3413
    %3417 = vset.pattern.permute.xlu0 0
    %3418 = vperm.xlu0 %3417, %v50
    %v3419 = vpop.permute.xlu0 %3418
    %3422 = vset.pattern.permute.xlu0 0
    %3423 = vperm.xlu0 %3422, %v51
    %v3424 = vpop.permute.xlu0 %3423
    %3427 = vset.pattern.permute.xlu0 0
    %3428 = vperm.xlu0 %3427, %v52
    %v3429 = vpop.permute.xlu0 %3428
    %3432 = vset.pattern.permute.xlu0 0
    %3433 = vperm.xlu0 %3432, %v53
    %v3434 = vpop.permute.xlu0 %3433
    %3437 = vset.pattern.permute.xlu0 0
    %3438 = vperm.xlu0 %3437, %v54
    %v3439 = vpop.permute.xlu0 %3438
    %3442 = vset.pattern.permute.xlu0 0
    %3443 = vperm.xlu0 %3442, %v55
    %v3444 = vpop.permute.xlu0 %3443
    %3447 = vset.pattern.permute.xlu0 0
    %3448 = vperm.xlu0 %3447, %v56
    %v3449 = vpop.permute.xlu0 %3448
    %3452 = vset.pattern.permute.xlu0 0
    %3453 = vperm.xlu0 %3452, %v57
    %v3454 = vpop.permute.xlu0 %3453
    %3457 = vset.pattern.permute.xlu0 0
    %3458 = vperm.xlu0 %3457, %v58
    %v3459 = vpop.permute.xlu0 %3458
    %3462 = vset.pattern.permute.xlu0 0
    %3463 = vperm.xlu0 %3462, %v59
    %v3464 = vpop.permute.xlu0 %3463
    %3467 = vset.pattern.permute.xlu0 0
    %3468 = vperm.xlu0 %3467, %v60
    %v3469 = vpop.permute.xlu0 %3468
    %3472 = vset.pattern.permute.xlu0 0
    %3473 = vperm.xlu0 %3472, %v61
    %v3474 = vpop.permute.xlu0 %3473
    %3477 = vset.pattern.permute.xlu0 0
    %3478 = vperm.xlu0 %3477, %v62
    %v3479 = vpop.permute.xlu0 %3478
    %3482 = vset.pattern.permute.xlu0 0
    %3483 = vperm.xlu0 %3482, %v63
    %v3484 = vpop.permute.xlu0 %3483
    %3487 = vset.pattern.permute.xlu0 0
    %3488 = vperm.xlu0 %3487, %v64
    %v3489 = vpop.permute.xlu0 %3488
    %3492 = vset.pattern.permute.xlu0 0
    %3493 = vperm.xlu0 %3492, %v65
    %v3494 = vpop.permute.xlu0 %3493
    %3497 = vset.pattern.permute.xlu0 0
    %3498 = vperm.xlu0 %3497, %v66
    %v3499 = vpop.permute.xlu0 %3498
    %3502 = vset.pattern.permute.xlu0 0
    %3503 = vperm.xlu0 %3502, %v67
    %v3504 = vpop.permute.xlu0 %3503
    %3507 = vset.pattern.permute.xlu0 0
    %3508 = vperm.xlu0 %3507, %v68
    %v3509 = vpop.permute.xlu0 %3508
    %3512 = vset.pattern.permute.xlu0 0
    %3513 = vperm.xlu0 %3512, %v69
    %v3514 = vpop.permute.xlu0 %3513
    %3517 = vset.pattern.permute.xlu0 0
    %3518 = vperm.xlu0 %3517, %v70
    %v3519 = vpop.permute.xlu0 %3518
    %3522 = vset.pattern.permute.xlu0 0
    %3523 = vperm.xlu0 %3522, %v71
    %v3524 = vpop.permute.xlu0 %3523
    %3527 = vset.pattern.permute.xlu0 0
    %3528 = vperm.xlu0 %3527, %v72
    %v3529 = vpop.permute.xlu0 %3528
    %3532 = vset.pattern.permute.xlu0 0
    %3533 = vperm.xlu0 %3532, %v73
    %v3534 = vpop.permute.xlu0 %3533
    %3537 = vset.pattern.permute.xlu0 0
    %3538 = vperm.xlu0 %3537, %v74
    %v3539 = vpop.permute.xlu0 %3538
    %3542 = vset.pattern.permute.xlu0 0
    %3543 = vperm.xlu0 %3542, %v75
    %v3544 = vpop.permute.xlu0 %3543
    %3547 = vset.pattern.permute.xlu0 0
    %3548 = vperm.xlu0 %3547, %v76
    %v3549 = vpop.permute.xlu0 %3548
    %3552 = vset.pattern.permute.xlu0 0
    %3553 = vperm.xlu0 %3552, %v77
    %v3554 = vpop.permute.xlu0 %3553
    %3557 = vset.pattern.permute.xlu0 0
    %3558 = vperm.xlu0 %3557, %v78
    %v3559 = vpop.permute.xlu0 %3558
    %3562 = vset.pattern.permute.xlu0 0
    %3563 = vperm.xlu0 %3562, %v79
    %v3564 = vpop.permute.xlu0 %3563
    %3567 = vset.pattern.permute.xlu0 0
    %3568 = vperm.xlu0 %3567, %v80
    %v3569 = vpop.permute.xlu0 %3568
    %3572 = vset.pattern.permute.xlu0 0
    %3573 = vperm.xlu0 %3572, %v81
    %v3574 = vpop.permute.xlu0 %3573
    %3577 = vset.pattern.permute.xlu0 0
    %3578 = vperm.xlu0 %3577, %v82
    %v3579 = vpop.permute.xlu0 %3578
    %3582 = vset.pattern.permute.xlu0 0
    %3583 = vperm.xlu0 %3582, %v83
    %v3584 = vpop.permute.xlu0 %3583
    %3587 = vset.pattern.permute.xlu0 0
    %3588 = vperm.xlu0 %3587, %v84
    %v3589 = vpop.permute.xlu0 %3588
    %3592 = vset.pattern.permute.xlu0 0
    %3593 = vperm.xlu0 %3592, %v85
    %v3594 = vpop.permute.xlu0 %3593
    %3597 = vset.pattern.permute.xlu0 0
    %3598 = vperm.xlu0 %3597, %v86
    %v3599 = vpop.permute.xlu0 %3598
    %3602 = vset.pattern.permute.xlu0 0
    %3603 = vperm.xlu0 %3602, %v87
    %v3604 = vpop.permute.xlu0 %3603
    %3607 = vset.pattern.permute.xlu0 0
    %3608 = vperm.xlu0 %3607, %v88
    %v3609 = vpop.permute.xlu0 %3608
    %3612 = vset.pattern.permute.xlu0 0
    %3613 = vperm.xlu0 %3612, %v89
    %v3614 = vpop.permute.xlu0 %3613
    %3617 = vset.pattern.permute.xlu0 0
    %3618 = vperm.xlu0 %3617, %v90
    %v3619 = vpop.permute.xlu0 %3618
    %3622 = vset.pattern.permute.xlu0 0
    %3623 = vperm.xlu0 %3622, %v91
    %v3624 = vpop.permute.xlu0 %3623
    %3627 = vset.pattern.permute.xlu0 0
    %3628 = vperm.xlu0 %3627, %v92
    %v3629 = vpop.permute.xlu0 %3628
    %3632 = vset.pattern.permute.xlu0 0
    %3633 = vperm.xlu0 %3632, %v93
    %v3634 = vpop.permute.xlu0 %3633
    %3637 = vset.pattern.permute.xlu0 0
    %3638 = vperm.xlu0 %3637, %v94
    %v3639 = vpop.permute.xlu0 %3638
    %3642 = vset.pattern.permute.xlu0 0
    %3643 = vperm.xlu0 %3642, %v95
    %v3644 = vpop.permute.xlu0 %3643
    %3647 = vset.pattern.permute.xlu0 0
    %3648 = vperm.xlu0 %3647, %v96
    %v3649 = vpop.permute.xlu0 %3648
    %3652 = vset.pattern.permute.xlu0 0
    %3653 = vperm.xlu0 %3652, %v97
    %v3654 = vpop.permute.xlu0 %3653
    %3657 = vset.pattern.permute.xlu0 0
    %3658 = vperm.xlu0 %3657, %v98
    %v3659 = vpop.permute.xlu0 %3658
    %3662 = vset.pattern.permute.xlu0 0
    %3663 = vperm.xlu0 %3662, %v99
    %v3664 = vpop.permute.xlu0 %3663
    %3667 = vset.pattern.permute.xlu0 0
    %3668 = vperm.xlu0 %3667, %v100
    %v3669 = vpop.permute.xlu0 %3668
    %v3671 = vmul.f32 %v3287, %v3354
    %v3672 = vmul.f32 %v3288, %v3359
    %v3673 = vmul.f32 %v3289, %v3364
    %v3674 = vmul.f32 %v3290, %v3369
    %v3675 = vmul.f32 %v3291, %v3374
    %v3676 = vmul.f32 %v3292, %v3379
    %v3677 = vmul.f32 %v3293, %v3384
    %v3678 = vmul.f32 %v3294, %v3389
    %v3679 = vmul.f32 %v3295, %v3394
    %v3680 = vmul.f32 %v3296, %v3399
    %v3681 = vmul.f32 %v3297, %v3404
    %v3682 = vmul.f32 %v3298, %v3409
    %v3683 = vmul.f32 %v3299, %v3414
    %v3684 = vmul.f32 %v3300, %v3419
    %v3685 = vmul.f32 %v3301, %v3424
    %v3686 = vmul.f32 %v3302, %v3429
    %v3687 = vmul.f32 %v3303, %v3434
    %v3688 = vmul.f32 %v3304, %v3439
    %v3689 = vmul.f32 %v3305, %v3444
    %v3690 = vmul.f32 %v3306, %v3449
    %v3691 = vmul.f32 %v3307, %v3454
    %v3692 = vmul.f32 %v3308, %v3459
    %v3693 = vmul.f32 %v3309, %v3464
    %v3694 = vmul.f32 %v3310, %v3469
    %v3695 = vmul.f32 %v3311, %v3474
    %v3696 = vmul.f32 %v3312, %v3479
    %v3697 = vmul.f32 %v3313, %v3484
    %v3698 = vmul.f32 %v3314, %v3489
    %v3699 = vmul.f32 %v3315, %v3494
    %v3700 = vmul.f32 %v3316, %v3499
    %v3701 = vmul.f32 %v3317, %v3504
    %v3702 = vmul.f32 %v3318, %v3509
    %v3703 = vmul.f32 %v3319, %v3514
    %v3704 = vmul.f32 %v3320, %v3519
    %v3705 = vmul.f32 %v3321, %v3524
    %v3706 = vmul.f32 %v3322, %v3529
    %v3707 = vmul.f32 %v3323, %v3534
    %v3708 = vmul.f32 %v3324, %v3539
    %v3709 = vmul.f32 %v3325, %v3544
    %v3710 = vmul.f32 %v3326, %v3549
    %v3711 = vmul.f32 %v3327, %v3554
    %v3712 = vmul.f32 %v3328, %v3559
    %v3713 = vmul.f32 %v3329, %v3564
    %v3714 = vmul.f32 %v3330, %v3569
    %v3715 = vmul.f32 %v3331, %v3574
    %v3716 = vmul.f32 %v3332, %v3579
    %v3717 = vmul.f32 %v3333, %v3584
    %v3718 = vmul.f32 %v3334, %v3589
    %v3719 = vmul.f32 %v3335, %v3594
    %v3720 = vmul.f32 %v3336, %v3599
    %v3721 = vmul.f32 %v3337, %v3604
    %v3722 = vmul.f32 %v3338, %v3609
    %v3723 = vmul.f32 %v3339, %v3614
    %v3724 = vmul.f32 %v3340, %v3619
    %v3725 = vmul.f32 %v3341, %v3624
    %v3726 = vmul.f32 %v3342, %v3629
    %v3727 = vmul.f32 %v3343, %v3634
    %v3728 = vmul.f32 %v3344, %v3639
    %v3729 = vmul.f32 %v3345, %v3644
    %v3730 = vmul.f32 %v3346, %v3649
    %v3731 = vmul.f32 %v3347, %v3654
    %v3732 = vmul.f32 %v3348, %v3659
    %v3733 = vmul.f32 %v3349, %v3664
    %v3734 = vmul.f32 %v3350, %v3669
    %v3735 = vmul.f32 %v3671, %v3671
    %v3736 = vmul.f32 %v3672, %v3672
    %v3737 = vmul.f32 %v3673, %v3673
    %v3738 = vmul.f32 %v3674, %v3674
    %v3739 = vmul.f32 %v3675, %v3675
    %v3740 = vmul.f32 %v3676, %v3676
    %v3741 = vmul.f32 %v3677, %v3677
    %v3742 = vmul.f32 %v3678, %v3678
    %v3743 = vmul.f32 %v3679, %v3679
    %v3744 = vmul.f32 %v3680, %v3680
    %v3745 = vmul.f32 %v3681, %v3681
    %v3746 = vmul.f32 %v3682, %v3682
    %v3747 = vmul.f32 %v3683, %v3683
    %v3748 = vmul.f32 %v3684, %v3684
    %v3749 = vmul.f32 %v3685, %v3685
    %v3750 = vmul.f32 %v3686, %v3686
    %v3751 = vmul.f32 %v3687, %v3687
    %v3752 = vmul.f32 %v3688, %v3688
    %v3753 = vmul.f32 %v3689, %v3689
    %v3754 = vmul.f32 %v3690, %v3690
    %v3755 = vmul.f32 %v3691, %v3691
    %v3756 = vmul.f32 %v3692, %v3692
    %v3757 = vmul.f32 %v3693, %v3693
    %v3758 = vmul.f32 %v3694, %v3694
    %v3759 = vmul.f32 %v3695, %v3695
    %v3760 = vmul.f32 %v3696, %v3696
    %v3761 = vmul.f32 %v3697, %v3697
    %v3762 = vmul.f32 %v3698, %v3698
    %v3763 = vmul.f32 %v3699, %v3699
    %v3764 = vmul.f32 %v3700, %v3700
    %v3765 = vmul.f32 %v3701, %v3701
    %v3766 = vmul.f32 %v3702, %v3702
    %v3767 = vmul.f32 %v3703, %v3703
    %v3768 = vmul.f32 %v3704, %v3704
    %v3769 = vmul.f32 %v3705, %v3705
    %v3770 = vmul.f32 %v3706, %v3706
    %v3771 = vmul.f32 %v3707, %v3707
    %v3772 = vmul.f32 %v3708, %v3708
    %v3773 = vmul.f32 %v3709, %v3709
    %v3774 = vmul.f32 %v3710, %v3710
    %v3775 = vmul.f32 %v3711, %v3711
    %v3776 = vmul.f32 %v3712, %v3712
    %v3777 = vmul.f32 %v3713, %v3713
    %v3778 = vmul.f32 %v3714, %v3714
    %v3779 = vmul.f32 %v3715, %v3715
    %v3780 = vmul.f32 %v3716, %v3716
    %v3781 = vmul.f32 %v3717, %v3717
    %v3782 = vmul.f32 %v3718, %v3718
    %v3783 = vmul.f32 %v3719, %v3719
    %v3784 = vmul.f32 %v3720, %v3720
    %v3785 = vmul.f32 %v3721, %v3721
    %v3786 = vmul.f32 %v3722, %v3722
    %v3787 = vmul.f32 %v3723, %v3723
    %v3788 = vmul.f32 %v3724, %v3724
    %v3789 = vmul.f32 %v3725, %v3725
    %v3790 = vmul.f32 %v3726, %v3726
    %v3791 = vmul.f32 %v3727, %v3727
    %v3792 = vmul.f32 %v3728, %v3728
    %v3793 = vmul.f32 %v3729, %v3729
    %v3794 = vmul.f32 %v3730, %v3730
    %v3795 = vmul.f32 %v3731, %v3731
    %v3796 = vmul.f32 %v3732, %v3732
    %v3797 = vmul.f32 %v3733, %v3733
    %v3798 = vmul.f32 %v3734, %v3734
    %3799 = vmatpush.msra.mxu0 %v3750
    %3800 = vmatpush.msra.mxu0 %v3749
    %3801 = vmatpush.msra.mxu0 %v3748
    %3802 = vmatpush.msra.mxu0 %v3747
    %3803 = vmatpush.msra.mxu0 %v3746
    %3804 = vmatpush.msra.mxu0 %v3745
    %3805 = vmatpush.msra.mxu0 %v3744
    %3806 = vmatpush.msra.mxu0 %v3743
    %3807 = vmatpush.msra.mxu0 %v3742
    %3808 = vmatpush.msra.mxu0 %v3741
    %3809 = vmatpush.msra.mxu0 %v3740
    %3810 = vmatpush.msra.mxu0 %v3739
    %3811 = vmatpush.msra.mxu0 %v3738
    %3812 = vmatpush.msra.mxu0 %v3737
    %3813 = vmatpush.msra.mxu0 %v3736
    %3814 = vmatpush.msra.mxu0 %v3735
    %3815 = vmatmul.f32.gmra.mxu0 %v3093
    %v3816 = vpop.f32.mrf.mxu0
    %v3817 = vadd.f32 0.0, %v3816
    %3818 = vdwg.mxu0
    %3819 = vmatpush.msra.mxu0 %v3766
    %3820 = vmatpush.msra.mxu0 %v3765
    %3821 = vmatpush.msra.mxu0 %v3764
    %3822 = vmatpush.msra.mxu0 %v3763
    %3823 = vmatpush.msra.mxu0 %v3762
    %3824 = vmatpush.msra.mxu0 %v3761
    %3825 = vmatpush.msra.mxu0 %v3760
    %3826 = vmatpush.msra.mxu0 %v3759
    %3827 = vmatpush.msra.mxu0 %v3758
    %3828 = vmatpush.msra.mxu0 %v3757
    %3829 = vmatpush.msra.mxu0 %v3756
    %3830 = vmatpush.msra.mxu0 %v3755
    %3831 = vmatpush.msra.mxu0 %v3754
    %3832 = vmatpush.msra.mxu0 %v3753
    %3833 = vmatpush.msra.mxu0 %v3752
    %3834 = vmatpush.msra.mxu0 %v3751
    %3835 = vmatmul.f32.gmra.mxu0 %v3125
    %v3836 = vpop.f32.mrf.mxu0
    %v3837 = vadd.f32 %v3817, %v3836
    %3838 = vdwg.mxu0
    %3839 = vmatpush.msra.mxu0 %v3782
    %3840 = vmatpush.msra.mxu0 %v3781
    %3841 = vmatpush.msra.mxu0 %v3780
    %3842 = vmatpush.msra.mxu0 %v3779
    %3843 = vmatpush.msra.mxu0 %v3778
    %3844 = vmatpush.msra.mxu0 %v3777
    %3845 = vmatpush.msra.mxu0 %v3776
    %3846 = vmatpush.msra.mxu0 %v3775
    %3847 = vmatpush.msra.mxu0 %v3774
    %3848 = vmatpush.msra.mxu0 %v3773
    %3849 = vmatpush.msra.mxu0 %v3772
    %3850 = vmatpush.msra.mxu0 %v3771
    %3851 = vmatpush.msra.mxu0 %v3770
    %3852 = vmatpush.msra.mxu0 %v3769
    %3853 = vmatpush.msra.mxu0 %v3768
    %3854 = vmatpush.msra.mxu0 %v3767
    %3855 = vmatmul.f32.gmra.mxu0 %v3157
    %v3856 = vpop.f32.mrf.mxu0
    %v3857 = vadd.f32 %v3837, %v3856
    %3858 = vdwg.mxu0
    %3859 = vmatpush.msra.mxu0 %v3798
    %3860 = vmatpush.msra.mxu0 %v3797
    %3861 = vmatpush.msra.mxu0 %v3796
    %3862 = vmatpush.msra.mxu0 %v3795
    %3863 = vmatpush.msra.mxu0 %v3794
    %3864 = vmatpush.msra.mxu0 %v3793
    %3865 = vmatpush.msra.mxu0 %v3792
    %3866 = vmatpush.msra.mxu0 %v3791
    %3867 = vmatpush.msra.mxu0 %v3790
    %3868 = vmatpush.msra.mxu0 %v3789
    %3869 = vmatpush.msra.mxu0 %v3788
    %3870 = vmatpush.msra.mxu0 %v3787
    %3871 = vmatpush.msra.mxu0 %v3786
    %3872 = vmatpush.msra.mxu0 %v3785
    %3873 = vmatpush.msra.mxu0 %v3784
    %3874 = vmatpush.msra.mxu0 %v3783
    %3875 = vmatmul.f32.gmra.mxu0 %v3189
    %v3876 = vpop.f32.mrf.mxu0
    %v3877 = vadd.f32 %v3857, %v3876
    %3878 = vdwg.mxu0
    %v3879 = vmul.f32 %v3877, 0.0025510204
    %v3880 = vadd.f32 %v3879, 1e-05
    %v3881 = vrsqrt.pop %v3880
    %v3882 = vmul.f32 %v3881, %v3880
    %v3883 = vmul.f32 %v3882, %v3881
    %v3884 = vmul.f32 0.5, %v3883
    %v3885 = vsub.f32 1.5, %v3884
    %v3886 = vmul.f32 %v3881, %v3885
    %vm3887 = vweird.f32 %v3880
    %vm3888 = vweird.f32 %v3881
    %vm3889 = vmor %vm3887, %vm3888
    %v3890 = vsel %vm3889, %v3881, %v3886
    %v3891 = vperm.slane %v3890, 0
    %v3892 = vmul.f32 %v3671, %v3891
    %v3893 = vmul.f32 %v3672, %v3891
    %v3894 = vmul.f32 %v3673, %v3891
    %v3895 = vmul.f32 %v3674, %v3891
    %v3896 = vmul.f32 %v3675, %v3891
    %v3897 = vmul.f32 %v3676, %v3891
    %v3898 = vmul.f32 %v3677, %v3891
    %v3899 = vmul.f32 %v3678, %v3891
    %v3900 = vmul.f32 %v3679, %v3891
    %v3901 = vmul.f32 %v3680, %v3891
    %v3902 = vmul.f32 %v3681, %v3891
    %v3903 = vmul.f32 %v3682, %v3891
    %v3904 = vmul.f32 %v3683, %v3891
    %v3905 = vmul.f32 %v3684, %v3891
    %v3906 = vmul.f32 %v3685, %v3891
    %v3907 = vmul.f32 %v3686, %v3891
    %v3908 = vmul.f32 %v3687, %v3891
    %v3909 = vmul.f32 %v3688, %v3891
    %v3910 = vmul.f32 %v3689, %v3891
    %v3911 = vmul.f32 %v3690, %v3891
    %v3912 = vmul.f32 %v3691, %v3891
    %v3913 = vmul.f32 %v3692, %v3891
    %v3914 = vmul.f32 %v3693, %v3891
    %v3915 = vmul.f32 %v3694, %v3891
    %v3916 = vmul.f32 %v3695, %v3891
    %v3917 = vmul.f32 %v3696, %v3891
    %v3918 = vmul.f32 %v3697, %v3891
    %v3919 = vmul.f32 %v3698, %v3891
    %v3920 = vmul.f32 %v3699, %v3891
    %v3921 = vmul.f32 %v3700, %v3891
    %v3922 = vmul.f32 %v3701, %v3891
    %v3923 = vmul.f32 %v3702, %v3891
    %v3924 = vmul.f32 %v3703, %v3891
    %v3925 = vmul.f32 %v3704, %v3891
    %v3926 = vmul.f32 %v3705, %v3891
    %v3927 = vmul.f32 %v3706, %v3891
    %v3928 = vmul.f32 %v3707, %v3891
    %v3929 = vmul.f32 %v3708, %v3891
    %v3930 = vmul.f32 %v3709, %v3891
    %v3931 = vmul.f32 %v3710, %v3891
    %v3932 = vmul.f32 %v3711, %v3891
    %v3933 = vmul.f32 %v3712, %v3891
    %v3934 = vmul.f32 %v3713, %v3891
    %v3935 = vmul.f32 %v3714, %v3891
    %v3936 = vmul.f32 %v3715, %v3891
    %v3937 = vmul.f32 %v3716, %v3891
    %v3938 = vmul.f32 %v3717, %v3891
    %v3939 = vmul.f32 %v3718, %v3891
    %v3940 = vmul.f32 %v3719, %v3891
    %v3941 = vmul.f32 %v3720, %v3891
    %v3942 = vmul.f32 %v3721, %v3891
    %v3943 = vmul.f32 %v3722, %v3891
    %v3944 = vmul.f32 %v3723, %v3891
    %v3945 = vmul.f32 %v3724, %v3891
    %v3946 = vmul.f32 %v3725, %v3891
    %v3947 = vmul.f32 %v3726, %v3891
    %v3948 = vmul.f32 %v3727, %v3891
    %v3949 = vmul.f32 %v3728, %v3891
    %v3950 = vmul.f32 %v3729, %v3891
    %v3951 = vmul.f32 %v3730, %v3891
    %v3952 = vmul.f32 %v3731, %v3891
    %v3953 = vmul.f32 %v3732, %v3891
    %v3954 = vmul.f32 %v3733, %v3891
    %v3955 = vmul.f32 %v3734, %v3891
    %v3957 = vperm.slane %v3074, 0
    %v3959 = vmul.f32 %v3892, %v3957
    %v3960 = vmul.f32 %v3893, %v3957
    %v3961 = vmul.f32 %v3894, %v3957
    %v3962 = vmul.f32 %v3895, %v3957
    %v3963 = vmul.f32 %v3896, %v3957
    %v3964 = vmul.f32 %v3897, %v3957
    %v3965 = vmul.f32 %v3898, %v3957
    %v3966 = vmul.f32 %v3899, %v3957
    %v3967 = vmul.f32 %v3900, %v3957
    %v3968 = vmul.f32 %v3901, %v3957
    %v3969 = vmul.f32 %v3902, %v3957
    %v3970 = vmul.f32 %v3903, %v3957
    %v3971 = vmul.f32 %v3904, %v3957
    %v3972 = vmul.f32 %v3905, %v3957
    %v3973 = vmul.f32 %v3906, %v3957
    %v3974 = vmul.f32 %v3907, %v3957
    %v3975 = vmul.f32 %v3908, %v3957
    %v3976 = vmul.f32 %v3909, %v3957
    %v3977 = vmul.f32 %v3910, %v3957
    %v3978 = vmul.f32 %v3911, %v3957
    %v3979 = vmul.f32 %v3912, %v3957
    %v3980 = vmul.f32 %v3913, %v3957
    %v3981 = vmul.f32 %v3914, %v3957
    %v3982 = vmul.f32 %v3915, %v3957
    %v3983 = vmul.f32 %v3916, %v3957
    %v3984 = vmul.f32 %v3917, %v3957
    %v3985 = vmul.f32 %v3918, %v3957
    %v3986 = vmul.f32 %v3919, %v3957
    %v3987 = vmul.f32 %v3920, %v3957
    %v3988 = vmul.f32 %v3921, %v3957
    %v3989 = vmul.f32 %v3922, %v3957
    %v3990 = vmul.f32 %v3923, %v3957
    %v3991 = vmul.f32 %v3924, %v3957
    %v3992 = vmul.f32 %v3925, %v3957
    %v3993 = vmul.f32 %v3926, %v3957
    %v3994 = vmul.f32 %v3927, %v3957
    %v3995 = vmul.f32 %v3928, %v3957
    %v3996 = vmul.f32 %v3929, %v3957
    %v3997 = vmul.f32 %v3930, %v3957
    %v3998 = vmul.f32 %v3931, %v3957
    %v3999 = vmul.f32 %v3932, %v3957
    %v4000 = vmul.f32 %v3933, %v3957
    %v4001 = vmul.f32 %v3934, %v3957
    %v4002 = vmul.f32 %v3935, %v3957
    %v4003 = vmul.f32 %v3936, %v3957
    %v4004 = vmul.f32 %v3937, %v3957
    %v4005 = vmul.f32 %v3938, %v3957
    %v4006 = vmul.f32 %v3939, %v3957
    %v4007 = vmul.f32 %v3940, %v3957
    %v4008 = vmul.f32 %v3941, %v3957
    %v4009 = vmul.f32 %v3942, %v3957
    %v4010 = vmul.f32 %v3943, %v3957
    %v4011 = vmul.f32 %v3944, %v3957
    %v4012 = vmul.f32 %v3945, %v3957
    %v4013 = vmul.f32 %v3946, %v3957
    %v4014 = vmul.f32 %v3947, %v3957
    %v4015 = vmul.f32 %v3948, %v3957
    %v4016 = vmul.f32 %v3949, %v3957
    %v4017 = vmul.f32 %v3950, %v3957
    %v4018 = vmul.f32 %v3951, %v3957
    %v4019 = vmul.f32 %v3952, %v3957
    %v4020 = vmul.f32 %v3953, %v3957
    %v4021 = vmul.f32 %v3954, %v3957
    %v4022 = vmul.f32 %v3955, %v3957
    %v4024 = vperm.slane %v3076, 0
    %v4026 = vadd.f32 %v3959, %v4024
    %v4027 = vadd.f32 %v3960, %v4024
    %v4028 = vadd.f32 %v3961, %v4024
    %v4029 = vadd.f32 %v3962, %v4024
    %v4030 = vadd.f32 %v3963, %v4024
    %v4031 = vadd.f32 %v3964, %v4024
    %v4032 = vadd.f32 %v3965, %v4024
    %v4033 = vadd.f32 %v3966, %v4024
    %v4034 = vadd.f32 %v3967, %v4024
    %v4035 = vadd.f32 %v3968, %v4024
    %v4036 = vadd.f32 %v3969, %v4024
    %v4037 = vadd.f32 %v3970, %v4024
    %v4038 = vadd.f32 %v3971, %v4024
    %v4039 = vadd.f32 %v3972, %v4024
    %v4040 = vadd.f32 %v3973, %v4024
    %v4041 = vadd.f32 %v3974, %v4024
    %v4042 = vadd.f32 %v3975, %v4024
    %v4043 = vadd.f32 %v3976, %v4024
    %v4044 = vadd.f32 %v3977, %v4024
    %v4045 = vadd.f32 %v3978, %v4024
    %v4046 = vadd.f32 %v3979, %v4024
    %v4047 = vadd.f32 %v3980, %v4024
    %v4048 = vadd.f32 %v3981, %v4024
    %v4049 = vadd.f32 %v3982, %v4024
    %v4050 = vadd.f32 %v3983, %v4024
    %v4051 = vadd.f32 %v3984, %v4024
    %v4052 = vadd.f32 %v3985, %v4024
    %v4053 = vadd.f32 %v3986, %v4024
    %v4054 = vadd.f32 %v3987, %v4024
    %v4055 = vadd.f32 %v3988, %v4024
    %v4056 = vadd.f32 %v3989, %v4024
    %v4057 = vadd.f32 %v3990, %v4024
    %v4058 = vadd.f32 %v3991, %v4024
    %v4059 = vadd.f32 %v3992, %v4024
    %v4060 = vadd.f32 %v3993, %v4024
    %v4061 = vadd.f32 %v3994, %v4024
    %v4062 = vadd.f32 %v3995, %v4024
    %v4063 = vadd.f32 %v3996, %v4024
    %v4064 = vadd.f32 %v3997, %v4024
    %v4065 = vadd.f32 %v3998, %v4024
    %v4066 = vadd.f32 %v3999, %v4024
    %v4067 = vadd.f32 %v4000, %v4024
    %v4068 = vadd.f32 %v4001, %v4024
    %v4069 = vadd.f32 %v4002, %v4024
    %v4070 = vadd.f32 %v4003, %v4024
    %v4071 = vadd.f32 %v4004, %v4024
    %v4072 = vadd.f32 %v4005, %v4024
    %v4073 = vadd.f32 %v4006, %v4024
    %v4074 = vadd.f32 %v4007, %v4024
    %v4075 = vadd.f32 %v4008, %v4024
    %v4076 = vadd.f32 %v4009, %v4024
    %v4077 = vadd.f32 %v4010, %v4024
    %v4078 = vadd.f32 %v4011, %v4024
    %v4079 = vadd.f32 %v4012, %v4024
    %v4080 = vadd.f32 %v4013, %v4024
    %v4081 = vadd.f32 %v4014, %v4024
    %v4082 = vadd.f32 %v4015, %v4024
    %v4083 = vadd.f32 %v4016, %v4024
    %v4084 = vadd.f32 %v4017, %v4024
    %v4085 = vadd.f32 %v4018, %v4024
    %v4086 = vadd.f32 %v4019, %v4024
    %v4087 = vadd.f32 %v4020, %v4024
    %v4088 = vadd.f32 %v4021, %v4024
    %v4089 = vadd.f32 %v4022, %v4024
    %v4090 = vmul.f32 %v4026, %v3354
    %v4091 = vmul.f32 %v4027, %v3359
    %v4092 = vmul.f32 %v4028, %v3364
    %v4093 = vmul.f32 %v4029, %v3369
    %v4094 = vmul.f32 %v4030, %v3374
    %v4095 = vmul.f32 %v4031, %v3379
    %v4096 = vmul.f32 %v4032, %v3384
    %v4097 = vmul.f32 %v4033, %v3389
    %v4098 = vmul.f32 %v4034, %v3394
    %v4099 = vmul.f32 %v4035, %v3399
    %v4100 = vmul.f32 %v4036, %v3404
    %v4101 = vmul.f32 %v4037, %v3409
    %v4102 = vmul.f32 %v4038, %v3414
    %v4103 = vmul.f32 %v4039, %v3419
    %v4104 = vmul.f32 %v4040, %v3424
    %v4105 = vmul.f32 %v4041, %v3429
    %v4106 = vmul.f32 %v4042, %v3434
    %v4107 = vmul.f32 %v4043, %v3439
    %v4108 = vmul.f32 %v4044, %v3444
    %v4109 = vmul.f32 %v4045, %v3449
    %v4110 = vmul.f32 %v4046, %v3454
    %v4111 = vmul.f32 %v4047, %v3459
    %v4112 = vmul.f32 %v4048, %v3464
    %v4113 = vmul.f32 %v4049, %v3469
    %v4114 = vmul.f32 %v4050, %v3474
    %v4115 = vmul.f32 %v4051, %v3479
    %v4116 = vmul.f32 %v4052, %v3484
    %v4117 = vmul.f32 %v4053, %v3489
    %v4118 = vmul.f32 %v4054, %v3494
    %v4119 = vmul.f32 %v4055, %v3499
    %v4120 = vmul.f32 %v4056, %v3504
    %v4121 = vmul.f32 %v4057, %v3509
    %v4122 = vmul.f32 %v4058, %v3514
    %v4123 = vmul.f32 %v4059, %v3519
    %v4124 = vmul.f32 %v4060, %v3524
    %v4125 = vmul.f32 %v4061, %v3529
    %v4126 = vmul.f32 %v4062, %v3534
    %v4127 = vmul.f32 %v4063, %v3539
    %v4128 = vmul.f32 %v4064, %v3544
    %v4129 = vmul.f32 %v4065, %v3549
    %v4130 = vmul.f32 %v4066, %v3554
    %v4131 = vmul.f32 %v4067, %v3559
    %v4132 = vmul.f32 %v4068, %v3564
    %v4133 = vmul.f32 %v4069, %v3569
    %v4134 = vmul.f32 %v4070, %v3574
    %v4135 = vmul.f32 %v4071, %v3579
    %v4136 = vmul.f32 %v4072, %v3584
    %v4137 = vmul.f32 %v4073, %v3589
    %v4138 = vmul.f32 %v4074, %v3594
    %v4139 = vmul.f32 %v4075, %v3599
    %v4140 = vmul.f32 %v4076, %v3604
    %v4141 = vmul.f32 %v4077, %v3609
    %v4142 = vmul.f32 %v4078, %v3614
    %v4143 = vmul.f32 %v4079, %v3619
    %v4144 = vmul.f32 %v4080, %v3624
    %v4145 = vmul.f32 %v4081, %v3629
    %v4146 = vmul.f32 %v4082, %v3634
    %v4147 = vmul.f32 %v4083, %v3639
    %v4148 = vmul.f32 %v4084, %v3644
    %v4149 = vmul.f32 %v4085, %v3649
    %v4150 = vmul.f32 %v4086, %v3654
    %v4151 = vmul.f32 %v4087, %v3659
    %v4152 = vmul.f32 %v4088, %v3664
    %v4153 = vmul.f32 %v4089, %v3669
    %v4154 = vadd.f32 %v4090, 3.0
    %v4155 = vadd.f32 %v4091, 3.0
    %v4156 = vadd.f32 %v4092, 3.0
    %v4157 = vadd.f32 %v4093, 3.0
    %v4158 = vadd.f32 %v4094, 3.0
    %v4159 = vadd.f32 %v4095, 3.0
    %v4160 = vadd.f32 %v4096, 3.0
    %v4161 = vadd.f32 %v4097, 3.0
    %v4162 = vadd.f32 %v4098, 3.0
    %v4163 = vadd.f32 %v4099, 3.0
    %v4164 = vadd.f32 %v4100, 3.0
    %v4165 = vadd.f32 %v4101, 3.0
    %v4166 = vadd.f32 %v4102, 3.0
    %v4167 = vadd.f32 %v4103, 3.0
    %v4168 = vadd.f32 %v4104, 3.0
    %v4169 = vadd.f32 %v4105, 3.0
    %v4170 = vadd.f32 %v4106, 3.0
    %v4171 = vadd.f32 %v4107, 3.0
    %v4172 = vadd.f32 %v4108, 3.0
    %v4173 = vadd.f32 %v4109, 3.0
    %v4174 = vadd.f32 %v4110, 3.0
    %v4175 = vadd.f32 %v4111, 3.0
    %v4176 = vadd.f32 %v4112, 3.0
    %v4177 = vadd.f32 %v4113, 3.0
    %v4178 = vadd.f32 %v4114, 3.0
    %v4179 = vadd.f32 %v4115, 3.0
    %v4180 = vadd.f32 %v4116, 3.0
    %v4181 = vadd.f32 %v4117, 3.0
    %v4182 = vadd.f32 %v4118, 3.0
    %v4183 = vadd.f32 %v4119, 3.0
    %v4184 = vadd.f32 %v4120, 3.0
    %v4185 = vadd.f32 %v4121, 3.0
    %v4186 = vadd.f32 %v4122, 3.0
    %v4187 = vadd.f32 %v4123, 3.0
    %v4188 = vadd.f32 %v4124, 3.0
    %v4189 = vadd.f32 %v4125, 3.0
    %v4190 = vadd.f32 %v4126, 3.0
    %v4191 = vadd.f32 %v4127, 3.0
    %v4192 = vadd.f32 %v4128, 3.0
    %v4193 = vadd.f32 %v4129, 3.0
    %v4194 = vadd.f32 %v4130, 3.0
    %v4195 = vadd.f32 %v4131, 3.0
    %v4196 = vadd.f32 %v4132, 3.0
    %v4197 = vadd.f32 %v4133, 3.0
    %v4198 = vadd.f32 %v4134, 3.0
    %v4199 = vadd.f32 %v4135, 3.0
    %v4200 = vadd.f32 %v4136, 3.0
    %v4201 = vadd.f32 %v4137, 3.0
    %v4202 = vadd.f32 %v4138, 3.0
    %v4203 = vadd.f32 %v4139, 3.0
    %v4204 = vadd.f32 %v4140, 3.0
    %v4205 = vadd.f32 %v4141, 3.0
    %v4206 = vadd.f32 %v4142, 3.0
    %v4207 = vadd.f32 %v4143, 3.0
    %v4208 = vadd.f32 %v4144, 3.0
    %v4209 = vadd.f32 %v4145, 3.0
    %v4210 = vadd.f32 %v4146, 3.0
    %v4211 = vadd.f32 %v4147, 3.0
    %v4212 = vadd.f32 %v4148, 3.0
    %v4213 = vadd.f32 %v4149, 3.0
    %v4214 = vadd.f32 %v4150, 3.0
    %v4215 = vadd.f32 %v4151, 3.0
    %v4216 = vadd.f32 %v4152, 3.0
    %v4217 = vadd.f32 %v4153, 3.0
    %v4218 = vmax.f32 %v4154, 0.0
    %v4219 = vmax.f32 %v4155, 0.0
    %v4220 = vmax.f32 %v4156, 0.0
    %v4221 = vmax.f32 %v4157, 0.0
    %v4222 = vmax.f32 %v4158, 0.0
    %v4223 = vmax.f32 %v4159, 0.0
    %v4224 = vmax.f32 %v4160, 0.0
    %v4225 = vmax.f32 %v4161, 0.0
    %v4226 = vmax.f32 %v4162, 0.0
    %v4227 = vmax.f32 %v4163, 0.0
    %v4228 = vmax.f32 %v4164, 0.0
    %v4229 = vmax.f32 %v4165, 0.0
    %v4230 = vmax.f32 %v4166, 0.0
    %v4231 = vmax.f32 %v4167, 0.0
    %v4232 = vmax.f32 %v4168, 0.0
    %v4233 = vmax.f32 %v4169, 0.0
    %v4234 = vmax.f32 %v4170, 0.0
    %v4235 = vmax.f32 %v4171, 0.0
    %v4236 = vmax.f32 %v4172, 0.0
    %v4237 = vmax.f32 %v4173, 0.0
    %v4238 = vmax.f32 %v4174, 0.0
    %v4239 = vmax.f32 %v4175, 0.0
    %v4240 = vmax.f32 %v4176, 0.0
    %v4241 = vmax.f32 %v4177, 0.0
    %v4242 = vmax.f32 %v4178, 0.0
    %v4243 = vmax.f32 %v4179, 0.0
    %v4244 = vmax.f32 %v4180, 0.0
    %v4245 = vmax.f32 %v4181, 0.0
    %v4246 = vmax.f32 %v4182, 0.0
    %v4247 = vmax.f32 %v4183, 0.0
    %v4248 = vmax.f32 %v4184, 0.0
    %v4249 = vmax.f32 %v4185, 0.0
    %v4250 = vmax.f32 %v4186, 0.0
    %v4251 = vmax.f32 %v4187, 0.0
    %v4252 = vmax.f32 %v4188, 0.0
    %v4253 = vmax.f32 %v4189, 0.0
    %v4254 = vmax.f32 %v4190, 0.0
    %v4255 = vmax.f32 %v4191, 0.0
    %v4256 = vmax.f32 %v4192, 0.0
    %v4257 = vmax.f32 %v4193, 0.0
    %v4258 = vmax.f32 %v4194, 0.0
    %v4259 = vmax.f32 %v4195, 0.0
    %v4260 = vmax.f32 %v4196, 0.0
    %v4261 = vmax.f32 %v4197, 0.0
    %v4262 = vmax.f32 %v4198, 0.0
    %v4263 = vmax.f32 %v4199, 0.0
    %v4264 = vmax.f32 %v4200, 0.0
    %v4265 = vmax.f32 %v4201, 0.0
    %v4266 = vmax.f32 %v4202, 0.0
    %v4267 = vmax.f32 %v4203, 0.0
    %v4268 = vmax.f32 %v4204, 0.0
    %v4269 = vmax.f32 %v4205, 0.0
    %v4270 = vmax.f32 %v4206, 0.0
    %v4271 = vmax.f32 %v4207, 0.0
    %v4272 = vmax.f32 %v4208, 0.0
    %v4273 = vmax.f32 %v4209, 0.0
    %v4274 = vmax.f32 %v4210, 0.0
    %v4275 = vmax.f32 %v4211, 0.0
    %v4276 = vmax.f32 %v4212, 0.0
    %v4277 = vmax.f32 %v4213, 0.0
    %v4278 = vmax.f32 %v4214, 0.0
    %v4279 = vmax.f32 %v4215, 0.0
    %v4280 = vmax.f32 %v4216, 0.0
    %v4281 = vmax.f32 %v4217, 0.0
    %v4282 = vmin.f32 %v4218, 6.0
    %v4283 = vmin.f32 %v4219, 6.0
    %v4284 = vmin.f32 %v4220, 6.0
    %v4285 = vmin.f32 %v4221, 6.0
    %v4286 = vmin.f32 %v4222, 6.0
    %v4287 = vmin.f32 %v4223, 6.0
    %v4288 = vmin.f32 %v4224, 6.0
    %v4289 = vmin.f32 %v4225, 6.0
    %v4290 = vmin.f32 %v4226, 6.0
    %v4291 = vmin.f32 %v4227, 6.0
    %v4292 = vmin.f32 %v4228, 6.0
    %v4293 = vmin.f32 %v4229, 6.0
    %v4294 = vmin.f32 %v4230, 6.0
    %v4295 = vmin.f32 %v4231, 6.0
    %v4296 = vmin.f32 %v4232, 6.0
    %v4297 = vmin.f32 %v4233, 6.0
    %v4298 = vmin.f32 %v4234, 6.0
    %v4299 = vmin.f32 %v4235, 6.0
    %v4300 = vmin.f32 %v4236, 6.0
    %v4301 = vmin.f32 %v4237, 6.0
    %v4302 = vmin.f32 %v4238, 6.0
    %v4303 = vmin.f32 %v4239, 6.0
    %v4304 = vmin.f32 %v4240, 6.0
    %v4305 = vmin.f32 %v4241, 6.0
    %v4306 = vmin.f32 %v4242, 6.0
    %v4307 = vmin.f32 %v4243, 6.0
    %v4308 = vmin.f32 %v4244, 6.0
    %v4309 = vmin.f32 %v4245, 6.0
    %v4310 = vmin.f32 %v4246, 6.0
    %v4311 = vmin.f32 %v4247, 6.0
    %v4312 = vmin.f32 %v4248, 6.0
    %v4313 = vmin.f32 %v4249, 6.0
    %v4314 = vmin.f32 %v4250, 6.0
    %v4315 = vmin.f32 %v4251, 6.0
    %v4316 = vmin.f32 %v4252, 6.0
    %v4317 = vmin.f32 %v4253, 6.0
    %v4318 = vmin.f32 %v4254, 6.0
    %v4319 = vmin.f32 %v4255, 6.0
    %v4320 = vmin.f32 %v4256, 6.0
    %v4321 = vmin.f32 %v4257, 6.0
    %v4322 = vmin.f32 %v4258, 6.0
    %v4323 = vmin.f32 %v4259, 6.0
    %v4324 = vmin.f32 %v4260, 6.0
    %v4325 = vmin.f32 %v4261, 6.0
    %v4326 = vmin.f32 %v4262, 6.0
    %v4327 = vmin.f32 %v4263, 6.0
    %v4328 = vmin.f32 %v4264, 6.0
    %v4329 = vmin.f32 %v4265, 6.0
    %v4330 = vmin.f32 %v4266, 6.0
    %v4331 = vmin.f32 %v4267, 6.0
    %v4332 = vmin.f32 %v4268, 6.0
    %v4333 = vmin.f32 %v4269, 6.0
    %v4334 = vmin.f32 %v4270, 6.0
    %v4335 = vmin.f32 %v4271, 6.0
    %v4336 = vmin.f32 %v4272, 6.0
    %v4337 = vmin.f32 %v4273, 6.0
    %v4338 = vmin.f32 %v4274, 6.0
    %v4339 = vmin.f32 %v4275, 6.0
    %v4340 = vmin.f32 %v4276, 6.0
    %v4341 = vmin.f32 %v4277, 6.0
    %v4342 = vmin.f32 %v4278, 6.0
    %v4343 = vmin.f32 %v4279, 6.0
    %v4344 = vmin.f32 %v4280, 6.0
    %v4345 = vmin.f32 %v4281, 6.0
    %v4346 = vmul.f32 %v4090, %v4282
    %v4347 = vmul.f32 %v4091, %v4283
    %v4348 = vmul.f32 %v4092, %v4284
    %v4349 = vmul.f32 %v4093, %v4285
    %v4350 = vmul.f32 %v4094, %v4286
    %v4351 = vmul.f32 %v4095, %v4287
    %v4352 = vmul.f32 %v4096, %v4288
    %v4353 = vmul.f32 %v4097, %v4289
    %v4354 = vmul.f32 %v4098, %v4290
    %v4355 = vmul.f32 %v4099, %v4291
    %v4356 = vmul.f32 %v4100, %v4292
    %v4357 = vmul.f32 %v4101, %v4293
    %v4358 = vmul.f32 %v4102, %v4294
    %v4359 = vmul.f32 %v4103, %v4295
    %v4360 = vmul.f32 %v4104, %v4296
    %v4361 = vmul.f32 %v4105, %v4297
    %v4362 = vmul.f32 %v4106, %v4298
    %v4363 = vmul.f32 %v4107, %v4299
    %v4364 = vmul.f32 %v4108, %v4300
    %v4365 = vmul.f32 %v4109, %v4301
    %v4366 = vmul.f32 %v4110, %v4302
    %v4367 = vmul.f32 %v4111, %v4303
    %v4368 = vmul.f32 %v4112, %v4304
    %v4369 = vmul.f32 %v4113, %v4305
    %v4370 = vmul.f32 %v4114, %v4306
    %v4371 = vmul.f32 %v4115, %v4307
    %v4372 = vmul.f32 %v4116, %v4308
    %v4373 = vmul.f32 %v4117, %v4309
    %v4374 = vmul.f32 %v4118, %v4310
    %v4375 = vmul.f32 %v4119, %v4311
    %v4376 = vmul.f32 %v4120, %v4312
    %v4377 = vmul.f32 %v4121, %v4313
    %v4378 = vmul.f32 %v4122, %v4314
    %v4379 = vmul.f32 %v4123, %v4315
    %v4380 = vmul.f32 %v4124, %v4316
    %v4381 = vmul.f32 %v4125, %v4317
    %v4382 = vmul.f32 %v4126, %v4318
    %v4383 = vmul.f32 %v4127, %v4319
    %v4384 = vmul.f32 %v4128, %v4320
    %v4385 = vmul.f32 %v4129, %v4321
    %v4386 = vmul.f32 %v4130, %v4322
    %v4387 = vmul.f32 %v4131, %v4323
    %v4388 = vmul.f32 %v4132, %v4324
    %v4389 = vmul.f32 %v4133, %v4325
    %v4390 = vmul.f32 %v4134, %v4326
    %v4391 = vmul.f32 %v4135, %v4327
    %v4392 = vmul.f32 %v4136, %v4328
    %v4393 = vmul.f32 %v4137, %v4329
    %v4394 = vmul.f32 %v4138, %v4330
    %v4395 = vmul.f32 %v4139, %v4331
    %v4396 = vmul.f32 %v4140, %v4332
    %v4397 = vmul.f32 %v4141, %v4333
    %v4398 = vmul.f32 %v4142, %v4334
    %v4399 = vmul.f32 %v4143, %v4335
    %v4400 = vmul.f32 %v4144, %v4336
    %v4401 = vmul.f32 %v4145, %v4337
    %v4402 = vmul.f32 %v4146, %v4338
    %v4403 = vmul.f32 %v4147, %v4339
    %v4404 = vmul.f32 %v4148, %v4340
    %v4405 = vmul.f32 %v4149, %v4341
    %v4406 = vmul.f32 %v4150, %v4342
    %v4407 = vmul.f32 %v4151, %v4343
    %v4408 = vmul.f32 %v4152, %v4344
    %v4409 = vmul.f32 %v4153, %v4345
    %v4410 = vmul.f32 %v4346, 0.16666667
    %v4411 = vmul.f32 %v4347, 0.16666667
    %v4412 = vmul.f32 %v4348, 0.16666667
    %v4413 = vmul.f32 %v4349, 0.16666667
    %v4414 = vmul.f32 %v4350, 0.16666667
    %v4415 = vmul.f32 %v4351, 0.16666667
    %v4416 = vmul.f32 %v4352, 0.16666667
    %v4417 = vmul.f32 %v4353, 0.16666667
    %v4418 = vmul.f32 %v4354, 0.16666667
    %v4419 = vmul.f32 %v4355, 0.16666667
    %v4420 = vmul.f32 %v4356, 0.16666667
    %v4421 = vmul.f32 %v4357, 0.16666667
    %v4422 = vmul.f32 %v4358, 0.16666667
    %v4423 = vmul.f32 %v4359, 0.16666667
    %v4424 = vmul.f32 %v4360, 0.16666667
    %v4425 = vmul.f32 %v4361, 0.16666667
    %v4426 = vmul.f32 %v4362, 0.16666667
    %v4427 = vmul.f32 %v4363, 0.16666667
    %v4428 = vmul.f32 %v4364, 0.16666667
    %v4429 = vmul.f32 %v4365, 0.16666667
    %v4430 = vmul.f32 %v4366, 0.16666667
    %v4431 = vmul.f32 %v4367, 0.16666667
    %v4432 = vmul.f32 %v4368, 0.16666667
    %v4433 = vmul.f32 %v4369, 0.16666667
    %v4434 = vmul.f32 %v4370, 0.16666667
    %v4435 = vmul.f32 %v4371, 0.16666667
    %v4436 = vmul.f32 %v4372, 0.16666667
    %v4437 = vmul.f32 %v4373, 0.16666667
    %v4438 = vmul.f32 %v4374, 0.16666667
    %v4439 = vmul.f32 %v4375, 0.16666667
    %v4440 = vmul.f32 %v4376, 0.16666667
    %v4441 = vmul.f32 %v4377, 0.16666667
    %v4442 = vmul.f32 %v4378, 0.16666667
    %v4443 = vmul.f32 %v4379, 0.16666667
    %v4444 = vmul.f32 %v4380, 0.16666667
    %v4445 = vmul.f32 %v4381, 0.16666667
    %v4446 = vmul.f32 %v4382, 0.16666667
    %v4447 = vmul.f32 %v4383, 0.16666667
    %v4448 = vmul.f32 %v4384, 0.16666667
    %v4449 = vmul.f32 %v4385, 0.16666667
    %v4450 = vmul.f32 %v4386, 0.16666667
    %v4451 = vmul.f32 %v4387, 0.16666667
    %v4452 = vmul.f32 %v4388, 0.16666667
    %v4453 = vmul.f32 %v4389, 0.16666667
    %v4454 = vmul.f32 %v4390, 0.16666667
    %v4455 = vmul.f32 %v4391, 0.16666667
    %v4456 = vmul.f32 %v4392, 0.16666667
    %v4457 = vmul.f32 %v4393, 0.16666667
    %v4458 = vmul.f32 %v4394, 0.16666667
    %v4459 = vmul.f32 %v4395, 0.16666667
    %v4460 = vmul.f32 %v4396, 0.16666667
    %v4461 = vmul.f32 %v4397, 0.16666667
    %v4462 = vmul.f32 %v4398, 0.16666667
    %v4463 = vmul.f32 %v4399, 0.16666667
    %v4464 = vmul.f32 %v4400, 0.16666667
    %v4465 = vmul.f32 %v4401, 0.16666667
    %v4466 = vmul.f32 %v4402, 0.16666667
    %v4467 = vmul.f32 %v4403, 0.16666667
    %v4468 = vmul.f32 %v4404, 0.16666667
    %v4469 = vmul.f32 %v4405, 0.16666667
    %v4470 = vmul.f32 %v4406, 0.16666667
    %v4471 = vmul.f32 %v4407, 0.16666667
    %v4472 = vmul.f32 %v4408, 0.16666667
    %v4473 = vmul.f32 %v4409, 0.16666667
    %s4474 = scalar_lea.vmem [#allocation2], 576
    %v4475 = vld [vmem:[%s4474] sm:$0xf]
    %v4476 = vld [vmem:[%s4474 + $0x4] sm:$0xf]
    %v4477 = vld [vmem:[%s4474 + $0x8] sm:$0xf]
    %v4478 = vld [vmem:[%s4474 + $0xc] sm:$0xf]
    %v4479 = vld [vmem:[%s4474 + $0x10] sm:$0xf]
    %v4480 = vld [vmem:[%s4474 + $0x14] sm:$0xf]
    %v4481 = vld [vmem:[%s4474 + $0x18] sm:$0xf]
    %v4482 = vld [vmem:[%s4474 + $0x1c] sm:$0xf]
    %v4483 = vld [vmem:[%s4474 + $0x20] sm:$0xf]
    %v4484 = vld [vmem:[%s4474 + $0x24] sm:$0xf]
    %v4485 = vld [vmem:[%s4474 + $0x28] sm:$0xf]
    %v4486 = vld [vmem:[%s4474 + $0x2c] sm:$0xf]
    %v4487 = vld [vmem:[%s4474 + $0x30] sm:$0xf]
    %v4488 = vld [vmem:[%s4474 + $0x34] sm:$0xf]
    %v4489 = vld [vmem:[%s4474 + $0x38] sm:$0xf]
    %v4490 = vld [vmem:[%s4474 + $0x3c] sm:$0xf]
    %v4491 = vpack.c.bf16 %v4411, %v4410
    %v4492 = vpack.c.bf16 %v4413, %v4412
    %v4493 = vpack.c.bf16 %v4415, %v4414
    %v4494 = vpack.c.bf16 %v4417, %v4416
    %v4495 = vpack.c.bf16 %v4419, %v4418
    %v4496 = vpack.c.bf16 %v4421, %v4420
    %v4497 = vpack.c.bf16 %v4423, %v4422
    %v4498 = vpack.c.bf16 %v4425, %v4424
    %v4499 = vpack.c.bf16 %v4427, %v4426
    %v4500 = vpack.c.bf16 %v4429, %v4428
    %v4501 = vpack.c.bf16 %v4431, %v4430
    %v4502 = vpack.c.bf16 %v4433, %v4432
    %v4503 = vpack.c.bf16 %v4435, %v4434
    %v4504 = vpack.c.bf16 %v4437, %v4436
    %v4505 = vpack.c.bf16 %v4439, %v4438
    %v4506 = vpack.c.bf16 %v4441, %v4440
    %v4507 = vpack.c.bf16 %v4443, %v4442
    %v4508 = vpack.c.bf16 %v4445, %v4444
    %v4509 = vpack.c.bf16 %v4447, %v4446
    %v4510 = vpack.c.bf16 %v4449, %v4448
    %v4511 = vpack.c.bf16 %v4451, %v4450
    %v4512 = vpack.c.bf16 %v4453, %v4452
    %v4513 = vpack.c.bf16 %v4455, %v4454
    %v4514 = vpack.c.bf16 %v4457, %v4456
    %v4515 = vpack.c.bf16 %v4459, %v4458
    %v4516 = vpack.c.bf16 %v4461, %v4460
    %v4517 = vpack.c.bf16 %v4463, %v4462
    %v4518 = vpack.c.bf16 %v4465, %v4464
    %v4519 = vpack.c.bf16 %v4467, %v4466
    %v4520 = vpack.c.bf16 %v4469, %v4468
    %v4521 = vpack.c.bf16 %v4471, %v4470
    %v4522 = vpack.c.bf16 %v4473, %v4472
    %v4539 = vunpack.c.l.b16 %v4475
    %v4540 = vunpack.c.l.b16 %v4476
    %v4541 = vunpack.c.l.b16 %v4477
    %v4542 = vunpack.c.l.b16 %v4478
    %v4543 = vunpack.c.l.b16 %v4479
    %v4544 = vunpack.c.l.b16 %v4480
    %v4545 = vunpack.c.l.b16 %v4481
    %v4546 = vunpack.c.l.b16 %v4482
    %v4547 = vunpack.c.l.b16 %v4483
    %v4548 = vunpack.c.l.b16 %v4484
    %v4549 = vunpack.c.l.b16 %v4485
    %v4550 = vunpack.c.l.b16 %v4486
    %v4551 = vunpack.c.l.b16 %v4487
    %v4552 = vunpack.c.l.b16 %v4488
    %v4553 = vunpack.c.l.b16 %v4489
    %v4554 = vunpack.c.l.b16 %v4490
    %v4555 = vpack.c.b16 %v4540, %v4539
    %v4556 = vpack.c.b16 %v4542, %v4541
    %v4557 = vpack.c.b16 %v4544, %v4543
    %v4558 = vpack.c.b16 %v4546, %v4545
    %v4559 = vpack.c.b16 %v4548, %v4547
    %v4560 = vpack.c.b16 %v4550, %v4549
    %v4561 = vpack.c.b16 %v4552, %v4551
    %v4562 = vpack.c.b16 %v4554, %v4553
    %4571 = vmatpush.bf16.msra.mxu0 %v4562
    %4572 = vmatpush.bf16.msra.mxu0 %v4561
    %4573 = vmatpush.bf16.msra.mxu0 %v4560
    %4574 = vmatpush.bf16.msra.mxu0 %v4559
    %4575 = vmatpush.bf16.msra.mxu0 %v4558
    %4576 = vmatpush.bf16.msra.mxu0 %v4557
    %4577 = vmatpush.bf16.msra.mxu0 %v4556
    %4578 = vmatpush.bf16.msra.mxu0 %v4555
    %4579 = vmatmul.bf16.gmra.mxu0 %v4491
    %v4580 = vpop.f32.mrf.mxu0
    %v4581 = vadd.f32 0.0, %v4580
    %v4582 = vpop.f32.mrf.mxu0
    %v4583 = vadd.f32 0.0, %v4582
    %4584 = vmatmul.bf16.gmra.mxu0 %v4492
    %v4585 = vpop.f32.mrf.mxu0
    %v4586 = vadd.f32 0.0, %v4585
    %v4587 = vpop.f32.mrf.mxu0
    %v4588 = vadd.f32 0.0, %v4587
    %4589 = vmatmul.bf16.gmra.mxu0 %v4493
    %v4590 = vpop.f32.mrf.mxu0
    %v4591 = vadd.f32 0.0, %v4590
    %v4592 = vpop.f32.mrf.mxu0
    %v4593 = vadd.f32 0.0, %v4592
    %4594 = vmatmul.bf16.gmra.mxu0 %v4494
    %v4595 = vpop.f32.mrf.mxu0
    %v4596 = vadd.f32 0.0, %v4595
    %v4597 = vpop.f32.mrf.mxu0
    %v4598 = vadd.f32 0.0, %v4597
    %4599 = vmatmul.bf16.gmra.mxu0 %v4495
    %v4600 = vpop.f32.mrf.mxu0
    %v4601 = vadd.f32 0.0, %v4600
    %v4602 = vpop.f32.mrf.mxu0
    %v4603 = vadd.f32 0.0, %v4602
    %4604 = vmatmul.bf16.gmra.mxu0 %v4496
    %v4605 = vpop.f32.mrf.mxu0
    %v4606 = vadd.f32 0.0, %v4605
    %v4607 = vpop.f32.mrf.mxu0
    %v4608 = vadd.f32 0.0, %v4607
    %4609 = vmatmul.bf16.gmra.mxu0 %v4497
    %v4610 = vpop.f32.mrf.mxu0
    %v4611 = vadd.f32 0.0, %v4610
    %v4612 = vpop.f32.mrf.mxu0
    %v4613 = vadd.f32 0.0, %v4612
    %4614 = vmatmul.bf16.gmra.mxu0 %v4498
    %v4615 = vpop.f32.mrf.mxu0
    %v4616 = vadd.f32 0.0, %v4615
    %v4617 = vpop.f32.mrf.mxu0
    %v4618 = vadd.f32 0.0, %v4617
    %4619 = vmatmul.bf16.gmra.mxu0 %v4499
    %v4620 = vpop.f32.mrf.mxu0
    %v4621 = vadd.f32 0.0, %v4620
    %v4622 = vpop.f32.mrf.mxu0
    %v4623 = vadd.f32 0.0, %v4622
    %4624 = vmatmul.bf16.gmra.mxu0 %v4500
    %v4625 = vpop.f32.mrf.mxu0
    %v4626 = vadd.f32 0.0, %v4625
    %v4627 = vpop.f32.mrf.mxu0
    %v4628 = vadd.f32 0.0, %v4627
    %4629 = vmatmul.bf16.gmra.mxu0 %v4501
    %v4630 = vpop.f32.mrf.mxu0
    %v4631 = vadd.f32 0.0, %v4630
    %v4632 = vpop.f32.mrf.mxu0
    %v4633 = vadd.f32 0.0, %v4632
    %4634 = vmatmul.bf16.gmra.mxu0 %v4502
    %v4635 = vpop.f32.mrf.mxu0
    %v4636 = vadd.f32 0.0, %v4635
    %v4637 = vpop.f32.mrf.mxu0
    %v4638 = vadd.f32 0.0, %v4637
    %4639 = vmatmul.bf16.gmra.mxu0 %v4503
    %v4640 = vpop.f32.mrf.mxu0
    %v4641 = vadd.f32 0.0, %v4640
    %v4642 = vpop.f32.mrf.mxu0
    %v4643 = vadd.f32 0.0, %v4642
    %4644 = vmatmul.bf16.gmra.mxu0 %v4504
    %v4645 = vpop.f32.mrf.mxu0
    %v4646 = vadd.f32 0.0, %v4645
    %v4647 = vpop.f32.mrf.mxu0
    %v4648 = vadd.f32 0.0, %v4647
    %4649 = vmatmul.bf16.gmra.mxu0 %v4505
    %v4650 = vpop.f32.mrf.mxu0
    %v4651 = vadd.f32 0.0, %v4650
    %v4652 = vpop.f32.mrf.mxu0
    %v4653 = vadd.f32 0.0, %v4652
    %4654 = vmatmul.bf16.gmra.mxu0 %v4506
    %v4655 = vpop.f32.mrf.mxu0
    %v4656 = vadd.f32 0.0, %v4655
    %v4657 = vpop.f32.mrf.mxu0
    %v4658 = vadd.f32 0.0, %v4657
    %4659 = vmatmul.bf16.gmra.mxu0 %v4507
    %v4660 = vpop.f32.mrf.mxu0
    %v4661 = vadd.f32 0.0, %v4660
    %v4662 = vpop.f32.mrf.mxu0
    %v4663 = vadd.f32 0.0, %v4662
    %4664 = vmatmul.bf16.gmra.mxu0 %v4508
    %v4665 = vpop.f32.mrf.mxu0
    %v4666 = vadd.f32 0.0, %v4665
    %v4667 = vpop.f32.mrf.mxu0
    %v4668 = vadd.f32 0.0, %v4667
    %4669 = vmatmul.bf16.gmra.mxu0 %v4509
    %v4670 = vpop.f32.mrf.mxu0
    %v4671 = vadd.f32 0.0, %v4670
    %v4672 = vpop.f32.mrf.mxu0
    %v4673 = vadd.f32 0.0, %v4672
    %4674 = vmatmul.bf16.gmra.mxu0 %v4510
    %v4675 = vpop.f32.mrf.mxu0
    %v4676 = vadd.f32 0.0, %v4675
    %v4677 = vpop.f32.mrf.mxu0
    %v4678 = vadd.f32 0.0, %v4677
    %4679 = vmatmul.bf16.gmra.mxu0 %v4511
    %v4680 = vpop.f32.mrf.mxu0
    %v4681 = vadd.f32 0.0, %v4680
    %v4682 = vpop.f32.mrf.mxu0
    %v4683 = vadd.f32 0.0, %v4682
    %4684 = vmatmul.bf16.gmra.mxu0 %v4512
    %v4685 = vpop.f32.mrf.mxu0
    %v4686 = vadd.f32 0.0, %v4685
    %v4687 = vpop.f32.mrf.mxu0
    %v4688 = vadd.f32 0.0, %v4687
    %4689 = vmatmul.bf16.gmra.mxu0 %v4513
    %v4690 = vpop.f32.mrf.mxu0
    %v4691 = vadd.f32 0.0, %v4690
    %v4692 = vpop.f32.mrf.mxu0
    %v4693 = vadd.f32 0.0, %v4692
    %4694 = vmatmul.bf16.gmra.mxu0 %v4514
    %v4695 = vpop.f32.mrf.mxu0
    %v4696 = vadd.f32 0.0, %v4695
    %v4697 = vpop.f32.mrf.mxu0
    %v4698 = vadd.f32 0.0, %v4697
    %4699 = vmatmul.bf16.gmra.mxu0 %v4515
    %v4700 = vpop.f32.mrf.mxu0
    %v4701 = vadd.f32 0.0, %v4700
    %v4702 = vpop.f32.mrf.mxu0
    %v4703 = vadd.f32 0.0, %v4702
    %4704 = vmatmul.bf16.gmra.mxu0 %v4516
    %v4705 = vpop.f32.mrf.mxu0
    %v4706 = vadd.f32 0.0, %v4705
    %v4707 = vpop.f32.mrf.mxu0
    %v4708 = vadd.f32 0.0, %v4707
    %4709 = vmatmul.bf16.gmra.mxu0 %v4517
    %v4710 = vpop.f32.mrf.mxu0
    %v4711 = vadd.f32 0.0, %v4710
    %v4712 = vpop.f32.mrf.mxu0
    %v4713 = vadd.f32 0.0, %v4712
    %4714 = vmatmul.bf16.gmra.mxu0 %v4518
    %v4715 = vpop.f32.mrf.mxu0
    %v4716 = vadd.f32 0.0, %v4715
    %v4717 = vpop.f32.mrf.mxu0
    %v4718 = vadd.f32 0.0, %v4717
    %4719 = vmatmul.bf16.gmra.mxu0 %v4519
    %v4720 = vpop.f32.mrf.mxu0
    %v4721 = vadd.f32 0.0, %v4720
    %v4722 = vpop.f32.mrf.mxu0
    %v4723 = vadd.f32 0.0, %v4722
    %4724 = vmatmul.bf16.gmra.mxu0 %v4520
    %v4725 = vpop.f32.mrf.mxu0
    %v4726 = vadd.f32 0.0, %v4725
    %v4727 = vpop.f32.mrf.mxu0
    %v4728 = vadd.f32 0.0, %v4727
    %4729 = vmatmul.bf16.gmra.mxu0 %v4521
    %v4730 = vpop.f32.mrf.mxu0
    %v4731 = vadd.f32 0.0, %v4730
    %v4732 = vpop.f32.mrf.mxu0
    %v4733 = vadd.f32 0.0, %v4732
    %4734 = vmatmul.bf16.gmra.mxu0 %v4522
    %v4735 = vpop.f32.mrf.mxu0
    %v4736 = vadd.f32 0.0, %v4735
    %v4737 = vpop.f32.mrf.mxu0
    %v4738 = vadd.f32 0.0, %v4737
    %4739 = vdwg.mxu0
    %v4740 = vld [vmem:[%s4] sm:$0xff]
    %v4741 = vld [vmem:[%s4 + $0x8] sm:$0x1]
    %v4742 = vrot.slane %v4581, 7
    %v4743 = vrot.slane %v4583, 7
    %v4744 = vrot.slane %v4586, 7
    %v4745 = vrot.slane %v4588, 7
    %v4746 = vrot.slane %v4591, 7
    %v4747 = vrot.slane %v4593, 7
    %v4748 = vrot.slane %v4596, 7
    %v4749 = vrot.slane %v4598, 7
    %v4750 = vrot.slane %v4601, 7
    %v4751 = vrot.slane %v4603, 7
    %v4752 = vrot.slane %v4606, 7
    %v4753 = vrot.slane %v4608, 7
    %v4754 = vrot.slane %v4611, 7
    %v4755 = vrot.slane %v4613, 7
    %v4756 = vrot.slane %v4616, 7
    %v4757 = vrot.slane %v4618, 7
    %v4758 = vrot.slane %v4621, 7
    %v4759 = vrot.slane %v4623, 7
    %v4760 = vrot.slane %v4626, 7
    %v4761 = vrot.slane %v4628, 7
    %v4762 = vrot.slane %v4631, 7
    %v4763 = vrot.slane %v4633, 7
    %v4764 = vrot.slane %v4636, 7
    %v4765 = vrot.slane %v4638, 7
    %v4766 = vrot.slane %v4641, 7
    %v4767 = vrot.slane %v4643, 7
    %v4768 = vrot.slane %v4646, 7
    %v4769 = vrot.slane %v4648, 7
    %v4770 = vrot.slane %v4651, 7
    %v4771 = vrot.slane %v4653, 7
    %v4772 = vrot.slane %v4656, 7
    %v4773 = vrot.slane %v4658, 7
    %v4774 = vrot.slane %v4661, 7
    %v4775 = vrot.slane %v4663, 7
    %v4776 = vrot.slane %v4666, 7
    %v4777 = vrot.slane %v4668, 7
    %v4778 = vrot.slane %v4671, 7
    %v4779 = vrot.slane %v4673, 7
    %v4780 = vrot.slane %v4676, 7
    %v4781 = vrot.slane %v4678, 7
    %v4782 = vrot.slane %v4681, 7
    %v4783 = vrot.slane %v4683, 7
    %v4784 = vrot.slane %v4686, 7
    %v4785 = vrot.slane %v4688, 7
    %v4786 = vrot.slane %v4691, 7
    %v4787 = vrot.slane %v4693, 7
    %v4788 = vrot.slane %v4696, 7
    %v4789 = vrot.slane %v4698, 7
    %v4790 = vrot.slane %v4701, 7
    %v4791 = vrot.slane %v4703, 7
    %v4792 = vrot.slane %v4706, 7
    %v4793 = vrot.slane %v4708, 7
    %v4794 = vrot.slane %v4711, 7
    %v4795 = vrot.slane %v4713, 7
    %v4796 = vrot.slane %v4716, 7
    %v4797 = vrot.slane %v4718, 7
    %v4798 = vrot.slane %v4721, 7
    %v4799 = vrot.slane %v4723, 7
    %v4800 = vrot.slane %v4726, 7
    %v4801 = vrot.slane %v4728, 7
    %v4802 = vrot.slane %v4731, 7
    %v4803 = vrot.slane %v4733, 7
    %v4804 = vrot.slane %v4736, 7
    %v4805 = vrot.slane %v4738, 7
    %v4806 = vsel %vm231, %v4804, %v4805
    %v4807 = vsel %vm231, %v4803, %v4804
    %v4808 = vsel %vm231, %v4802, %v4803
    %v4809 = vsel %vm231, %v4801, %v4802
    %v4810 = vsel %vm231, %v4800, %v4801
    %v4811 = vsel %vm231, %v4799, %v4800
    %v4812 = vsel %vm231, %v4798, %v4799
    %v4813 = vsel %vm231, %v4797, %v4798
    %v4814 = vsel %vm231, %v4796, %v4797
    %v4815 = vsel %vm231, %v4795, %v4796
    %v4816 = vsel %vm231, %v4794, %v4795
    %v4817 = vsel %vm231, %v4793, %v4794
    %v4818 = vsel %vm231, %v4792, %v4793
    %v4819 = vsel %vm231, %v4791, %v4792
    %v4820 = vsel %vm231, %v4790, %v4791
    %v4821 = vsel %vm231, %v4789, %v4790
    %v4822 = vsel %vm231, %v4788, %v4789
    %v4823 = vsel %vm231, %v4787, %v4788
    %v4824 = vsel %vm231, %v4786, %v4787
    %v4825 = vsel %vm231, %v4785, %v4786
    %v4826 = vsel %vm231, %v4784, %v4785
    %v4827 = vsel %vm231, %v4783, %v4784
    %v4828 = vsel %vm231, %v4782, %v4783
    %v4829 = vsel %vm231, %v4781, %v4782
    %v4830 = vsel %vm231, %v4780, %v4781
    %v4831 = vsel %vm231, %v4779, %v4780
    %v4832 = vsel %vm231, %v4778, %v4779
    %v4833 = vsel %vm231, %v4777, %v4778
    %v4834 = vsel %vm231, %v4776, %v4777
    %v4835 = vsel %vm231, %v4775, %v4776
    %v4836 = vsel %vm231, %v4774, %v4775
    %v4837 = vsel %vm231, %v4773, %v4774
    %v4838 = vsel %vm231, %v4772, %v4773
    %v4839 = vsel %vm231, %v4771, %v4772
    %v4840 = vsel %vm231, %v4770, %v4771
    %v4841 = vsel %vm231, %v4769, %v4770
    %v4842 = vsel %vm231, %v4768, %v4769
    %v4843 = vsel %vm231, %v4767, %v4768
    %v4844 = vsel %vm231, %v4766, %v4767
    %v4845 = vsel %vm231, %v4765, %v4766
    %v4846 = vsel %vm231, %v4764, %v4765
    %v4847 = vsel %vm231, %v4763, %v4764
    %v4848 = vsel %vm231, %v4762, %v4763
    %v4849 = vsel %vm231, %v4761, %v4762
    %v4850 = vsel %vm231, %v4760, %v4761
    %v4851 = vsel %vm231, %v4759, %v4760
    %v4852 = vsel %vm231, %v4758, %v4759
    %v4853 = vsel %vm231, %v4757, %v4758
    %v4854 = vsel %vm231, %v4756, %v4757
    %v4855 = vsel %vm231, %v4755, %v4756
    %v4856 = vsel %vm231, %v4754, %v4755
    %v4857 = vsel %vm231, %v4753, %v4754
    %v4858 = vsel %vm231, %v4752, %v4753
    %v4859 = vsel %vm231, %v4751, %v4752
    %v4860 = vsel %vm231, %v4750, %v4751
    %v4861 = vsel %vm231, %v4749, %v4750
    %v4862 = vsel %vm231, %v4748, %v4749
    %v4863 = vsel %vm231, %v4747, %v4748
    %v4864 = vsel %vm231, %v4746, %v4747
    %v4865 = vsel %vm231, %v4745, %v4746
    %v4866 = vsel %vm231, %v4744, %v4745
    %v4867 = vsel %vm231, %v4743, %v4744
    %v4868 = vsel %vm231, %v4742, %v4743
    %v4869 = vsel %vm231, %v4805, %v4742
    %v4870 = vperm.slane %v4740, 0
    %v4871 = vmul.f32 %v4807, %v4870
    %v4872 = vmul.f32 %v4806, %v4870
    %v4873 = vmul.f32 %v4869, %v4870
    %v4874 = vmul.f32 %v4868, %v4870
    %v4875 = vmul.f32 %v4867, %v4870
    %v4876 = vmul.f32 %v4866, %v4870
    %v4877 = vmul.f32 %v4865, %v4870
    %v4878 = vmul.f32 %v4864, %v4870
    %v4879 = vmul.f32 %v4863, %v4870
    %v4880 = vmul.f32 %v4862, %v4870
    %v4881 = vmul.f32 %v4861, %v4870
    %v4882 = vmul.f32 %v4860, %v4870
    %v4883 = vmul.f32 %v4859, %v4870
    %v4884 = vmul.f32 %v4858, %v4870
    %v4885 = vmul.f32 %v4857, %v4870
    %v4886 = vmul.f32 %v4856, %v4870
    %v4887 = vmul.f32 %v4855, %v4870
    %v4888 = vmul.f32 %v4854, %v4870
    %v4889 = vmul.f32 %v4853, %v4870
    %v4890 = vmul.f32 %v4852, %v4870
    %v4891 = vmul.f32 %v4851, %v4870
    %v4892 = vmul.f32 %v4850, %v4870
    %v4893 = vmul.f32 %v4849, %v4870
    %v4894 = vmul.f32 %v4848, %v4870
    %v4895 = vmul.f32 %v4847, %v4870
    %v4896 = vmul.f32 %v4846, %v4870
    %v4897 = vmul.f32 %v4845, %v4870
    %v4898 = vmul.f32 %v4844, %v4870
    %v4899 = vmul.f32 %v4843, %v4870
    %v4900 = vmul.f32 %v4842, %v4870
    %v4901 = vmul.f32 %v4841, %v4870
    %v4902 = vmul.f32 %v4840, %v4870
    %v4903 = vmul.f32 %v4839, %v4870
    %v4904 = vmul.f32 %v4838, %v4870
    %v4905 = vmul.f32 %v4837, %v4870
    %v4906 = vmul.f32 %v4836, %v4870
    %v4907 = vmul.f32 %v4835, %v4870
    %v4908 = vmul.f32 %v4834, %v4870
    %v4909 = vmul.f32 %v4833, %v4870
    %v4910 = vmul.f32 %v4832, %v4870
    %v4911 = vmul.f32 %v4831, %v4870
    %v4912 = vmul.f32 %v4830, %v4870
    %v4913 = vmul.f32 %v4829, %v4870
    %v4914 = vmul.f32 %v4828, %v4870
    %v4915 = vmul.f32 %v4827, %v4870
    %v4916 = vmul.f32 %v4826, %v4870
    %v4917 = vmul.f32 %v4825, %v4870
    %v4918 = vmul.f32 %v4824, %v4870
    %v4919 = vmul.f32 %v4823, %v4870
    %v4920 = vmul.f32 %v4822, %v4870
    %v4921 = vmul.f32 %v4821, %v4870
    %v4922 = vmul.f32 %v4820, %v4870
    %v4923 = vmul.f32 %v4819, %v4870
    %v4924 = vmul.f32 %v4818, %v4870
    %v4925 = vmul.f32 %v4817, %v4870
    %v4926 = vmul.f32 %v4816, %v4870
    %v4927 = vmul.f32 %v4815, %v4870
    %v4928 = vmul.f32 %v4814, %v4870
    %v4929 = vmul.f32 %v4813, %v4870
    %v4930 = vmul.f32 %v4812, %v4870
    %v4931 = vmul.f32 %v4811, %v4870
    %v4932 = vmul.f32 %v4810, %v4870
    %v4933 = vmul.f32 %v4809, %v4870
    %v4934 = vmul.f32 %v4808, %v4870
    %v4935 = vperm.slane %v4740, 1
    %v4936 = vmul.f32 %v4736, %v4935
    %v4937 = vmul.f32 %v4738, %v4935
    %v4938 = vmul.f32 %v4581, %v4935
    %v4939 = vmul.f32 %v4583, %v4935
    %v4940 = vmul.f32 %v4586, %v4935
    %v4941 = vmul.f32 %v4588, %v4935
    %v4942 = vmul.f32 %v4591, %v4935
    %v4943 = vmul.f32 %v4593, %v4935
    %v4944 = vmul.f32 %v4596, %v4935
    %v4945 = vmul.f32 %v4598, %v4935
    %v4946 = vmul.f32 %v4601, %v4935
    %v4947 = vmul.f32 %v4603, %v4935
    %v4948 = vmul.f32 %v4606, %v4935
    %v4949 = vmul.f32 %v4608, %v4935
    %v4950 = vmul.f32 %v4611, %v4935
    %v4951 = vmul.f32 %v4613, %v4935
    %v4952 = vmul.f32 %v4616, %v4935
    %v4953 = vmul.f32 %v4618, %v4935
    %v4954 = vmul.f32 %v4621, %v4935
    %v4955 = vmul.f32 %v4623, %v4935
    %v4956 = vmul.f32 %v4626, %v4935
    %v4957 = vmul.f32 %v4628, %v4935
    %v4958 = vmul.f32 %v4631, %v4935
    %v4959 = vmul.f32 %v4633, %v4935
    %v4960 = vmul.f32 %v4636, %v4935
    %v4961 = vmul.f32 %v4638, %v4935
    %v4962 = vmul.f32 %v4641, %v4935
    %v4963 = vmul.f32 %v4643, %v4935
    %v4964 = vmul.f32 %v4646, %v4935
    %v4965 = vmul.f32 %v4648, %v4935
    %v4966 = vmul.f32 %v4651, %v4935
    %v4967 = vmul.f32 %v4653, %v4935
    %v4968 = vmul.f32 %v4656, %v4935
    %v4969 = vmul.f32 %v4658, %v4935
    %v4970 = vmul.f32 %v4661, %v4935
    %v4971 = vmul.f32 %v4663, %v4935
    %v4972 = vmul.f32 %v4666, %v4935
    %v4973 = vmul.f32 %v4668, %v4935
    %v4974 = vmul.f32 %v4671, %v4935
    %v4975 = vmul.f32 %v4673, %v4935
    %v4976 = vmul.f32 %v4676, %v4935
    %v4977 = vmul.f32 %v4678, %v4935
    %v4978 = vmul.f32 %v4681, %v4935
    %v4979 = vmul.f32 %v4683, %v4935
    %v4980 = vmul.f32 %v4686, %v4935
    %v4981 = vmul.f32 %v4688, %v4935
    %v4982 = vmul.f32 %v4691, %v4935
    %v4983 = vmul.f32 %v4693, %v4935
    %v4984 = vmul.f32 %v4696, %v4935
    %v4985 = vmul.f32 %v4698, %v4935
    %v4986 = vmul.f32 %v4701, %v4935
    %v4987 = vmul.f32 %v4703, %v4935
    %v4988 = vmul.f32 %v4706, %v4935
    %v4989 = vmul.f32 %v4708, %v4935
    %v4990 = vmul.f32 %v4711, %v4935
    %v4991 = vmul.f32 %v4713, %v4935
    %v4992 = vmul.f32 %v4716, %v4935
    %v4993 = vmul.f32 %v4718, %v4935
    %v4994 = vmul.f32 %v4721, %v4935
    %v4995 = vmul.f32 %v4723, %v4935
    %v4996 = vmul.f32 %v4726, %v4935
    %v4997 = vmul.f32 %v4728, %v4935
    %v4998 = vmul.f32 %v4731, %v4935
    %v4999 = vmul.f32 %v4733, %v4935
    %v5000 = vadd.f32 %v4871, %v4936
    %v5001 = vadd.f32 %v4872, %v4937
    %v5002 = vadd.f32 %v4873, %v4938
    %v5003 = vadd.f32 %v4874, %v4939
    %v5004 = vadd.f32 %v4875, %v4940
    %v5005 = vadd.f32 %v4876, %v4941
    %v5006 = vadd.f32 %v4877, %v4942
    %v5007 = vadd.f32 %v4878, %v4943
    %v5008 = vadd.f32 %v4879, %v4944
    %v5009 = vadd.f32 %v4880, %v4945
    %v5010 = vadd.f32 %v4881, %v4946
    %v5011 = vadd.f32 %v4882, %v4947
    %v5012 = vadd.f32 %v4883, %v4948
    %v5013 = vadd.f32 %v4884, %v4949
    %v5014 = vadd.f32 %v4885, %v4950
    %v5015 = vadd.f32 %v4886, %v4951
    %v5016 = vadd.f32 %v4887, %v4952
    %v5017 = vadd.f32 %v4888, %v4953
    %v5018 = vadd.f32 %v4889, %v4954
    %v5019 = vadd.f32 %v4890, %v4955
    %v5020 = vadd.f32 %v4891, %v4956
    %v5021 = vadd.f32 %v4892, %v4957
    %v5022 = vadd.f32 %v4893, %v4958
    %v5023 = vadd.f32 %v4894, %v4959
    %v5024 = vadd.f32 %v4895, %v4960
    %v5025 = vadd.f32 %v4896, %v4961
    %v5026 = vadd.f32 %v4897, %v4962
    %v5027 = vadd.f32 %v4898, %v4963
    %v5028 = vadd.f32 %v4899, %v4964
    %v5029 = vadd.f32 %v4900, %v4965
    %v5030 = vadd.f32 %v4901, %v4966
    %v5031 = vadd.f32 %v4902, %v4967
    %v5032 = vadd.f32 %v4903, %v4968
    %v5033 = vadd.f32 %v4904, %v4969
    %v5034 = vadd.f32 %v4905, %v4970
    %v5035 = vadd.f32 %v4906, %v4971
    %v5036 = vadd.f32 %v4907, %v4972
    %v5037 = vadd.f32 %v4908, %v4973
    %v5038 = vadd.f32 %v4909, %v4974
    %v5039 = vadd.f32 %v4910, %v4975
    %v5040 = vadd.f32 %v4911, %v4976
    %v5041 = vadd.f32 %v4912, %v4977
    %v5042 = vadd.f32 %v4913, %v4978
    %v5043 = vadd.f32 %v4914, %v4979
    %v5044 = vadd.f32 %v4915, %v4980
    %v5045 = vadd.f32 %v4916, %v4981
    %v5046 = vadd.f32 %v4917, %v4982
    %v5047 = vadd.f32 %v4918, %v4983
    %v5048 = vadd.f32 %v4919, %v4984
    %v5049 = vadd.f32 %v4920, %v4985
    %v5050 = vadd.f32 %v4921, %v4986
    %v5051 = vadd.f32 %v4922, %v4987
    %v5052 = vadd.f32 %v4923, %v4988
    %v5053 = vadd.f32 %v4924, %v4989
    %v5054 = vadd.f32 %v4925, %v4990
    %v5055 = vadd.f32 %v4926, %v4991
    %v5056 = vadd.f32 %v4927, %v4992
    %v5057 = vadd.f32 %v4928, %v4993
    %v5058 = vadd.f32 %v4929, %v4994
    %v5059 = vadd.f32 %v4930, %v4995
    %v5060 = vadd.f32 %v4931, %v4996
    %v5061 = vadd.f32 %v4932, %v4997
    %v5062 = vadd.f32 %v4933, %v4998
    %v5063 = vadd.f32 %v4934, %v4999
    %v5064 = vrot.slane %v4581, 1
    %v5065 = vrot.slane %v4583, 1
    %v5066 = vrot.slane %v4586, 1
    %v5067 = vrot.slane %v4588, 1
    %v5068 = vrot.slane %v4591, 1
    %v5069 = vrot.slane %v4593, 1
    %v5070 = vrot.slane %v4596, 1
    %v5071 = vrot.slane %v4598, 1
    %v5072 = vrot.slane %v4601, 1
    %v5073 = vrot.slane %v4603, 1
    %v5074 = vrot.slane %v4606, 1
    %v5075 = vrot.slane %v4608, 1
    %v5076 = vrot.slane %v4611, 1
    %v5077 = vrot.slane %v4613, 1
    %v5078 = vrot.slane %v4616, 1
    %v5079 = vrot.slane %v4618, 1
    %v5080 = vrot.slane %v4621, 1
    %v5081 = vrot.slane %v4623, 1
    %v5082 = vrot.slane %v4626, 1
    %v5083 = vrot.slane %v4628, 1
    %v5084 = vrot.slane %v4631, 1
    %v5085 = vrot.slane %v4633, 1
    %v5086 = vrot.slane %v4636, 1
    %v5087 = vrot.slane %v4638, 1
    %v5088 = vrot.slane %v4641, 1
    %v5089 = vrot.slane %v4643, 1
    %v5090 = vrot.slane %v4646, 1
    %v5091 = vrot.slane %v4648, 1
    %v5092 = vrot.slane %v4651, 1
    %v5093 = vrot.slane %v4653, 1
    %v5094 = vrot.slane %v4656, 1
    %v5095 = vrot.slane %v4658, 1
    %v5096 = vrot.slane %v4661, 1
    %v5097 = vrot.slane %v4663, 1
    %v5098 = vrot.slane %v4666, 1
    %v5099 = vrot.slane %v4668, 1
    %v5100 = vrot.slane %v4671, 1
    %v5101 = vrot.slane %v4673, 1
    %v5102 = vrot.slane %v4676, 1
    %v5103 = vrot.slane %v4678, 1
    %v5104 = vrot.slane %v4681, 1
    %v5105 = vrot.slane %v4683, 1
    %v5106 = vrot.slane %v4686, 1
    %v5107 = vrot.slane %v4688, 1
    %v5108 = vrot.slane %v4691, 1
    %v5109 = vrot.slane %v4693, 1
    %v5110 = vrot.slane %v4696, 1
    %v5111 = vrot.slane %v4698, 1
    %v5112 = vrot.slane %v4701, 1
    %v5113 = vrot.slane %v4703, 1
    %v5114 = vrot.slane %v4706, 1
    %v5115 = vrot.slane %v4708, 1
    %v5116 = vrot.slane %v4711, 1
    %v5117 = vrot.slane %v4713, 1
    %v5118 = vrot.slane %v4716, 1
    %v5119 = vrot.slane %v4718, 1
    %v5120 = vrot.slane %v4721, 1
    %v5121 = vrot.slane %v4723, 1
    %v5122 = vrot.slane %v4726, 1
    %v5123 = vrot.slane %v4728, 1
    %v5124 = vrot.slane %v4731, 1
    %v5125 = vrot.slane %v4733, 1
    %v5126 = vrot.slane %v4736, 1
    %v5127 = vrot.slane %v4738, 1
    %v5128 = vsel %vm891, %v5126, %v5127
    %v5129 = vsel %vm891, %v5125, %v5126
    %v5130 = vsel %vm891, %v5124, %v5125
    %v5131 = vsel %vm891, %v5123, %v5124
    %v5132 = vsel %vm891, %v5122, %v5123
    %v5133 = vsel %vm891, %v5121, %v5122
    %v5134 = vsel %vm891, %v5120, %v5121
    %v5135 = vsel %vm891, %v5119, %v5120
    %v5136 = vsel %vm891, %v5118, %v5119
    %v5137 = vsel %vm891, %v5117, %v5118
    %v5138 = vsel %vm891, %v5116, %v5117
    %v5139 = vsel %vm891, %v5115, %v5116
    %v5140 = vsel %vm891, %v5114, %v5115
    %v5141 = vsel %vm891, %v5113, %v5114
    %v5142 = vsel %vm891, %v5112, %v5113
    %v5143 = vsel %vm891, %v5111, %v5112
    %v5144 = vsel %vm891, %v5110, %v5111
    %v5145 = vsel %vm891, %v5109, %v5110
    %v5146 = vsel %vm891, %v5108, %v5109
    %v5147 = vsel %vm891, %v5107, %v5108
    %v5148 = vsel %vm891, %v5106, %v5107
    %v5149 = vsel %vm891, %v5105, %v5106
    %v5150 = vsel %vm891, %v5104, %v5105
    %v5151 = vsel %vm891, %v5103, %v5104
    %v5152 = vsel %vm891, %v5102, %v5103
    %v5153 = vsel %vm891, %v5101, %v5102
    %v5154 = vsel %vm891, %v5100, %v5101
    %v5155 = vsel %vm891, %v5099, %v5100
    %v5156 = vsel %vm891, %v5098, %v5099
    %v5157 = vsel %vm891, %v5097, %v5098
    %v5158 = vsel %vm891, %v5096, %v5097
    %v5159 = vsel %vm891, %v5095, %v5096
    %v5160 = vsel %vm891, %v5094, %v5095
    %v5161 = vsel %vm891, %v5093, %v5094
    %v5162 = vsel %vm891, %v5092, %v5093
    %v5163 = vsel %vm891, %v5091, %v5092
    %v5164 = vsel %vm891, %v5090, %v5091
    %v5165 = vsel %vm891, %v5089, %v5090
    %v5166 = vsel %vm891, %v5088, %v5089
    %v5167 = vsel %vm891, %v5087, %v5088
    %v5168 = vsel %vm891, %v5086, %v5087
    %v5169 = vsel %vm891, %v5085, %v5086
    %v5170 = vsel %vm891, %v5084, %v5085
    %v5171 = vsel %vm891, %v5083, %v5084
    %v5172 = vsel %vm891, %v5082, %v5083
    %v5173 = vsel %vm891, %v5081, %v5082
    %v5174 = vsel %vm891, %v5080, %v5081
    %v5175 = vsel %vm891, %v5079, %v5080
    %v5176 = vsel %vm891, %v5078, %v5079
    %v5177 = vsel %vm891, %v5077, %v5078
    %v5178 = vsel %vm891, %v5076, %v5077
    %v5179 = vsel %vm891, %v5075, %v5076
    %v5180 = vsel %vm891, %v5074, %v5075
    %v5181 = vsel %vm891, %v5073, %v5074
    %v5182 = vsel %vm891, %v5072, %v5073
    %v5183 = vsel %vm891, %v5071, %v5072
    %v5184 = vsel %vm891, %v5070, %v5071
    %v5185 = vsel %vm891, %v5069, %v5070
    %v5186 = vsel %vm891, %v5068, %v5069
    %v5187 = vsel %vm891, %v5067, %v5068
    %v5188 = vsel %vm891, %v5066, %v5067
    %v5189 = vsel %vm891, %v5065, %v5066
    %v5190 = vsel %vm891, %v5064, %v5065
    %v5191 = vsel %vm891, %v5127, %v5064
    %v5192 = vperm.slane %v4740, 2
    %v5193 = vmul.f32 %v5128, %v5192
    %v5194 = vmul.f32 %v5191, %v5192
    %v5195 = vmul.f32 %v5190, %v5192
    %v5196 = vmul.f32 %v5189, %v5192
    %v5197 = vmul.f32 %v5188, %v5192
    %v5198 = vmul.f32 %v5187, %v5192
    %v5199 = vmul.f32 %v5186, %v5192
    %v5200 = vmul.f32 %v5185, %v5192
    %v5201 = vmul.f32 %v5184, %v5192
    %v5202 = vmul.f32 %v5183, %v5192
    %v5203 = vmul.f32 %v5182, %v5192
    %v5204 = vmul.f32 %v5181, %v5192
    %v5205 = vmul.f32 %v5180, %v5192
    %v5206 = vmul.f32 %v5179, %v5192
    %v5207 = vmul.f32 %v5178, %v5192
    %v5208 = vmul.f32 %v5177, %v5192
    %v5209 = vmul.f32 %v5176, %v5192
    %v5210 = vmul.f32 %v5175, %v5192
    %v5211 = vmul.f32 %v5174, %v5192
    %v5212 = vmul.f32 %v5173, %v5192
    %v5213 = vmul.f32 %v5172, %v5192
    %v5214 = vmul.f32 %v5171, %v5192
    %v5215 = vmul.f32 %v5170, %v5192
    %v5216 = vmul.f32 %v5169, %v5192
    %v5217 = vmul.f32 %v5168, %v5192
    %v5218 = vmul.f32 %v5167, %v5192
    %v5219 = vmul.f32 %v5166, %v5192
    %v5220 = vmul.f32 %v5165, %v5192
    %v5221 = vmul.f32 %v5164, %v5192
    %v5222 = vmul.f32 %v5163, %v5192
    %v5223 = vmul.f32 %v5162, %v5192
    %v5224 = vmul.f32 %v5161, %v5192
    %v5225 = vmul.f32 %v5160, %v5192
    %v5226 = vmul.f32 %v5159, %v5192
    %v5227 = vmul.f32 %v5158, %v5192
    %v5228 = vmul.f32 %v5157, %v5192
    %v5229 = vmul.f32 %v5156, %v5192
    %v5230 = vmul.f32 %v5155, %v5192
    %v5231 = vmul.f32 %v5154, %v5192
    %v5232 = vmul.f32 %v5153, %v5192
    %v5233 = vmul.f32 %v5152, %v5192
    %v5234 = vmul.f32 %v5151, %v5192
    %v5235 = vmul.f32 %v5150, %v5192
    %v5236 = vmul.f32 %v5149, %v5192
    %v5237 = vmul.f32 %v5148, %v5192
    %v5238 = vmul.f32 %v5147, %v5192
    %v5239 = vmul.f32 %v5146, %v5192
    %v5240 = vmul.f32 %v5145, %v5192
    %v5241 = vmul.f32 %v5144, %v5192
    %v5242 = vmul.f32 %v5143, %v5192
    %v5243 = vmul.f32 %v5142, %v5192
    %v5244 = vmul.f32 %v5141, %v5192
    %v5245 = vmul.f32 %v5140, %v5192
    %v5246 = vmul.f32 %v5139, %v5192
    %v5247 = vmul.f32 %v5138, %v5192
    %v5248 = vmul.f32 %v5137, %v5192
    %v5249 = vmul.f32 %v5136, %v5192
    %v5250 = vmul.f32 %v5135, %v5192
    %v5251 = vmul.f32 %v5134, %v5192
    %v5252 = vmul.f32 %v5133, %v5192
    %v5253 = vmul.f32 %v5132, %v5192
    %v5254 = vmul.f32 %v5131, %v5192
    %v5255 = vmul.f32 %v5130, %v5192
    %v5256 = vmul.f32 %v5129, %v5192
    %v5257 = vadd.f32 %v5000, %v5193
    %v5258 = vadd.f32 %v5001, %v5194
    %v5259 = vadd.f32 %v5002, %v5195
    %v5260 = vadd.f32 %v5003, %v5196
    %v5261 = vadd.f32 %v5004, %v5197
    %v5262 = vadd.f32 %v5005, %v5198
    %v5263 = vadd.f32 %v5006, %v5199
    %v5264 = vadd.f32 %v5007, %v5200
    %v5265 = vadd.f32 %v5008, %v5201
    %v5266 = vadd.f32 %v5009, %v5202
    %v5267 = vadd.f32 %v5010, %v5203
    %v5268 = vadd.f32 %v5011, %v5204
    %v5269 = vadd.f32 %v5012, %v5205
    %v5270 = vadd.f32 %v5013, %v5206
    %v5271 = vadd.f32 %v5014, %v5207
    %v5272 = vadd.f32 %v5015, %v5208
    %v5273 = vadd.f32 %v5016, %v5209
    %v5274 = vadd.f32 %v5017, %v5210
    %v5275 = vadd.f32 %v5018, %v5211
    %v5276 = vadd.f32 %v5019, %v5212
    %v5277 = vadd.f32 %v5020, %v5213
    %v5278 = vadd.f32 %v5021, %v5214
    %v5279 = vadd.f32 %v5022, %v5215
    %v5280 = vadd.f32 %v5023, %v5216
    %v5281 = vadd.f32 %v5024, %v5217
    %v5282 = vadd.f32 %v5025, %v5218
    %v5283 = vadd.f32 %v5026, %v5219
    %v5284 = vadd.f32 %v5027, %v5220
    %v5285 = vadd.f32 %v5028, %v5221
    %v5286 = vadd.f32 %v5029, %v5222
    %v5287 = vadd.f32 %v5030, %v5223
    %v5288 = vadd.f32 %v5031, %v5224
    %v5289 = vadd.f32 %v5032, %v5225
    %v5290 = vadd.f32 %v5033, %v5226
    %v5291 = vadd.f32 %v5034, %v5227
    %v5292 = vadd.f32 %v5035, %v5228
    %v5293 = vadd.f32 %v5036, %v5229
    %v5294 = vadd.f32 %v5037, %v5230
    %v5295 = vadd.f32 %v5038, %v5231
    %v5296 = vadd.f32 %v5039, %v5232
    %v5297 = vadd.f32 %v5040, %v5233
    %v5298 = vadd.f32 %v5041, %v5234
    %v5299 = vadd.f32 %v5042, %v5235
    %v5300 = vadd.f32 %v5043, %v5236
    %v5301 = vadd.f32 %v5044, %v5237
    %v5302 = vadd.f32 %v5045, %v5238
    %v5303 = vadd.f32 %v5046, %v5239
    %v5304 = vadd.f32 %v5047, %v5240
    %v5305 = vadd.f32 %v5048, %v5241
    %v5306 = vadd.f32 %v5049, %v5242
    %v5307 = vadd.f32 %v5050, %v5243
    %v5308 = vadd.f32 %v5051, %v5244
    %v5309 = vadd.f32 %v5052, %v5245
    %v5310 = vadd.f32 %v5053, %v5246
    %v5311 = vadd.f32 %v5054, %v5247
    %v5312 = vadd.f32 %v5055, %v5248
    %v5313 = vadd.f32 %v5056, %v5249
    %v5314 = vadd.f32 %v5057, %v5250
    %v5315 = vadd.f32 %v5058, %v5251
    %v5316 = vadd.f32 %v5059, %v5252
    %v5317 = vadd.f32 %v5060, %v5253
    %v5318 = vadd.f32 %v5061, %v5254
    %v5319 = vadd.f32 %v5062, %v5255
    %v5320 = vadd.f32 %v5063, %v5256
    %v5321 = vperm.slane %v4740, 3
    %v5322 = vmul.f32 %v4869, %v5321
    %v5323 = vmul.f32 %v4868, %v5321
    %v5324 = vmul.f32 %v4867, %v5321
    %v5325 = vmul.f32 %v4866, %v5321
    %v5326 = vmul.f32 %v4865, %v5321
    %v5327 = vmul.f32 %v4864, %v5321
    %v5328 = vmul.f32 %v4863, %v5321
    %v5329 = vmul.f32 %v4862, %v5321
    %v5330 = vmul.f32 %v4861, %v5321
    %v5331 = vmul.f32 %v4860, %v5321
    %v5332 = vmul.f32 %v4859, %v5321
    %v5333 = vmul.f32 %v4858, %v5321
    %v5334 = vmul.f32 %v4857, %v5321
    %v5335 = vmul.f32 %v4856, %v5321
    %v5336 = vmul.f32 %v4855, %v5321
    %v5337 = vmul.f32 %v4854, %v5321
    %v5338 = vmul.f32 %v4853, %v5321
    %v5339 = vmul.f32 %v4852, %v5321
    %v5340 = vmul.f32 %v4851, %v5321
    %v5341 = vmul.f32 %v4850, %v5321
    %v5342 = vmul.f32 %v4849, %v5321
    %v5343 = vmul.f32 %v4848, %v5321
    %v5344 = vmul.f32 %v4847, %v5321
    %v5345 = vmul.f32 %v4846, %v5321
    %v5346 = vmul.f32 %v4845, %v5321
    %v5347 = vmul.f32 %v4844, %v5321
    %v5348 = vmul.f32 %v4843, %v5321
    %v5349 = vmul.f32 %v4842, %v5321
    %v5350 = vmul.f32 %v4841, %v5321
    %v5351 = vmul.f32 %v4840, %v5321
    %v5352 = vmul.f32 %v4839, %v5321
    %v5353 = vmul.f32 %v4838, %v5321
    %v5354 = vmul.f32 %v4837, %v5321
    %v5355 = vmul.f32 %v4836, %v5321
    %v5356 = vmul.f32 %v4835, %v5321
    %v5357 = vmul.f32 %v4834, %v5321
    %v5358 = vmul.f32 %v4833, %v5321
    %v5359 = vmul.f32 %v4832, %v5321
    %v5360 = vmul.f32 %v4831, %v5321
    %v5361 = vmul.f32 %v4830, %v5321
    %v5362 = vmul.f32 %v4829, %v5321
    %v5363 = vmul.f32 %v4828, %v5321
    %v5364 = vmul.f32 %v4827, %v5321
    %v5365 = vmul.f32 %v4826, %v5321
    %v5366 = vmul.f32 %v4825, %v5321
    %v5367 = vmul.f32 %v4824, %v5321
    %v5368 = vmul.f32 %v4823, %v5321
    %v5369 = vmul.f32 %v4822, %v5321
    %v5370 = vmul.f32 %v4821, %v5321
    %v5371 = vmul.f32 %v4820, %v5321
    %v5372 = vmul.f32 %v4819, %v5321
    %v5373 = vmul.f32 %v4818, %v5321
    %v5374 = vmul.f32 %v4817, %v5321
    %v5375 = vmul.f32 %v4816, %v5321
    %v5376 = vmul.f32 %v4815, %v5321
    %v5377 = vmul.f32 %v4814, %v5321
    %v5378 = vmul.f32 %v4813, %v5321
    %v5379 = vmul.f32 %v4812, %v5321
    %v5380 = vmul.f32 %v4811, %v5321
    %v5381 = vmul.f32 %v4810, %v5321
    %v5382 = vmul.f32 %v4809, %v5321
    %v5383 = vmul.f32 %v4808, %v5321
    %v5384 = vmul.f32 %v4807, %v5321
    %v5385 = vmul.f32 %v4806, %v5321
    %v5386 = vadd.f32 %v5257, %v5322
    %v5387 = vadd.f32 %v5258, %v5323
    %v5388 = vadd.f32 %v5259, %v5324
    %v5389 = vadd.f32 %v5260, %v5325
    %v5390 = vadd.f32 %v5261, %v5326
    %v5391 = vadd.f32 %v5262, %v5327
    %v5392 = vadd.f32 %v5263, %v5328
    %v5393 = vadd.f32 %v5264, %v5329
    %v5394 = vadd.f32 %v5265, %v5330
    %v5395 = vadd.f32 %v5266, %v5331
    %v5396 = vadd.f32 %v5267, %v5332
    %v5397 = vadd.f32 %v5268, %v5333
    %v5398 = vadd.f32 %v5269, %v5334
    %v5399 = vadd.f32 %v5270, %v5335
    %v5400 = vadd.f32 %v5271, %v5336
    %v5401 = vadd.f32 %v5272, %v5337
    %v5402 = vadd.f32 %v5273, %v5338
    %v5403 = vadd.f32 %v5274, %v5339
    %v5404 = vadd.f32 %v5275, %v5340
    %v5405 = vadd.f32 %v5276, %v5341
    %v5406 = vadd.f32 %v5277, %v5342
    %v5407 = vadd.f32 %v5278, %v5343
    %v5408 = vadd.f32 %v5279, %v5344
    %v5409 = vadd.f32 %v5280, %v5345
    %v5410 = vadd.f32 %v5281, %v5346
    %v5411 = vadd.f32 %v5282, %v5347
    %v5412 = vadd.f32 %v5283, %v5348
    %v5413 = vadd.f32 %v5284, %v5349
    %v5414 = vadd.f32 %v5285, %v5350
    %v5415 = vadd.f32 %v5286, %v5351
    %v5416 = vadd.f32 %v5287, %v5352
    %v5417 = vadd.f32 %v5288, %v5353
    %v5418 = vadd.f32 %v5289, %v5354
    %v5419 = vadd.f32 %v5290, %v5355
    %v5420 = vadd.f32 %v5291, %v5356
    %v5421 = vadd.f32 %v5292, %v5357
    %v5422 = vadd.f32 %v5293, %v5358
    %v5423 = vadd.f32 %v5294, %v5359
    %v5424 = vadd.f32 %v5295, %v5360
    %v5425 = vadd.f32 %v5296, %v5361
    %v5426 = vadd.f32 %v5297, %v5362
    %v5427 = vadd.f32 %v5298, %v5363
    %v5428 = vadd.f32 %v5299, %v5364
    %v5429 = vadd.f32 %v5300, %v5365
    %v5430 = vadd.f32 %v5301, %v5366
    %v5431 = vadd.f32 %v5302, %v5367
    %v5432 = vadd.f32 %v5303, %v5368
    %v5433 = vadd.f32 %v5304, %v5369
    %v5434 = vadd.f32 %v5305, %v5370
    %v5435 = vadd.f32 %v5306, %v5371
    %v5436 = vadd.f32 %v5307, %v5372
    %v5437 = vadd.f32 %v5308, %v5373
    %v5438 = vadd.f32 %v5309, %v5374
    %v5439 = vadd.f32 %v5310, %v5375
    %v5440 = vadd.f32 %v5311, %v5376
    %v5441 = vadd.f32 %v5312, %v5377
    %v5442 = vadd.f32 %v5313, %v5378
    %v5443 = vadd.f32 %v5314, %v5379
    %v5444 = vadd.f32 %v5315, %v5380
    %v5445 = vadd.f32 %v5316, %v5381
    %v5446 = vadd.f32 %v5317, %v5382
    %v5447 = vadd.f32 %v5318, %v5383
    %v5448 = vadd.f32 %v5319, %v5384
    %v5449 = vadd.f32 %v5320, %v5385
    %v5450 = vperm.slane %v4740, 4
    %v5451 = vmul.f32 %v4581, %v5450
    %v5452 = vmul.f32 %v4583, %v5450
    %v5453 = vmul.f32 %v4586, %v5450
    %v5454 = vmul.f32 %v4588, %v5450
    %v5455 = vmul.f32 %v4591, %v5450
    %v5456 = vmul.f32 %v4593, %v5450
    %v5457 = vmul.f32 %v4596, %v5450
    %v5458 = vmul.f32 %v4598, %v5450
    %v5459 = vmul.f32 %v4601, %v5450
    %v5460 = vmul.f32 %v4603, %v5450
    %v5461 = vmul.f32 %v4606, %v5450
    %v5462 = vmul.f32 %v4608, %v5450
    %v5463 = vmul.f32 %v4611, %v5450
    %v5464 = vmul.f32 %v4613, %v5450
    %v5465 = vmul.f32 %v4616, %v5450
    %v5466 = vmul.f32 %v4618, %v5450
    %v5467 = vmul.f32 %v4621, %v5450
    %v5468 = vmul.f32 %v4623, %v5450
    %v5469 = vmul.f32 %v4626, %v5450
    %v5470 = vmul.f32 %v4628, %v5450
    %v5471 = vmul.f32 %v4631, %v5450
    %v5472 = vmul.f32 %v4633, %v5450
    %v5473 = vmul.f32 %v4636, %v5450
    %v5474 = vmul.f32 %v4638, %v5450
    %v5475 = vmul.f32 %v4641, %v5450
    %v5476 = vmul.f32 %v4643, %v5450
    %v5477 = vmul.f32 %v4646, %v5450
    %v5478 = vmul.f32 %v4648, %v5450
    %v5479 = vmul.f32 %v4651, %v5450
    %v5480 = vmul.f32 %v4653, %v5450
    %v5481 = vmul.f32 %v4656, %v5450
    %v5482 = vmul.f32 %v4658, %v5450
    %v5483 = vmul.f32 %v4661, %v5450
    %v5484 = vmul.f32 %v4663, %v5450
    %v5485 = vmul.f32 %v4666, %v5450
    %v5486 = vmul.f32 %v4668, %v5450
    %v5487 = vmul.f32 %v4671, %v5450
    %v5488 = vmul.f32 %v4673, %v5450
    %v5489 = vmul.f32 %v4676, %v5450
    %v5490 = vmul.f32 %v4678, %v5450
    %v5491 = vmul.f32 %v4681, %v5450
    %v5492 = vmul.f32 %v4683, %v5450
    %v5493 = vmul.f32 %v4686, %v5450
    %v5494 = vmul.f32 %v4688, %v5450
    %v5495 = vmul.f32 %v4691, %v5450
    %v5496 = vmul.f32 %v4693, %v5450
    %v5497 = vmul.f32 %v4696, %v5450
    %v5498 = vmul.f32 %v4698, %v5450
    %v5499 = vmul.f32 %v4701, %v5450
    %v5500 = vmul.f32 %v4703, %v5450
    %v5501 = vmul.f32 %v4706, %v5450
    %v5502 = vmul.f32 %v4708, %v5450
    %v5503 = vmul.f32 %v4711, %v5450
    %v5504 = vmul.f32 %v4713, %v5450
    %v5505 = vmul.f32 %v4716, %v5450
    %v5506 = vmul.f32 %v4718, %v5450
    %v5507 = vmul.f32 %v4721, %v5450
    %v5508 = vmul.f32 %v4723, %v5450
    %v5509 = vmul.f32 %v4726, %v5450
    %v5510 = vmul.f32 %v4728, %v5450
    %v5511 = vmul.f32 %v4731, %v5450
    %v5512 = vmul.f32 %v4733, %v5450
    %v5513 = vmul.f32 %v4736, %v5450
    %v5514 = vmul.f32 %v4738, %v5450
    %v5515 = vadd.f32 %v5386, %v5451
    %v5516 = vadd.f32 %v5387, %v5452
    %v5517 = vadd.f32 %v5388, %v5453
    %v5518 = vadd.f32 %v5389, %v5454
    %v5519 = vadd.f32 %v5390, %v5455
    %v5520 = vadd.f32 %v5391, %v5456
    %v5521 = vadd.f32 %v5392, %v5457
    %v5522 = vadd.f32 %v5393, %v5458
    %v5523 = vadd.f32 %v5394, %v5459
    %v5524 = vadd.f32 %v5395, %v5460
    %v5525 = vadd.f32 %v5396, %v5461
    %v5526 = vadd.f32 %v5397, %v5462
    %v5527 = vadd.f32 %v5398, %v5463
    %v5528 = vadd.f32 %v5399, %v5464
    %v5529 = vadd.f32 %v5400, %v5465
    %v5530 = vadd.f32 %v5401, %v5466
    %v5531 = vadd.f32 %v5402, %v5467
    %v5532 = vadd.f32 %v5403, %v5468
    %v5533 = vadd.f32 %v5404, %v5469
    %v5534 = vadd.f32 %v5405, %v5470
    %v5535 = vadd.f32 %v5406, %v5471
    %v5536 = vadd.f32 %v5407, %v5472
    %v5537 = vadd.f32 %v5408, %v5473
    %v5538 = vadd.f32 %v5409, %v5474
    %v5539 = vadd.f32 %v5410, %v5475
    %v5540 = vadd.f32 %v5411, %v5476
    %v5541 = vadd.f32 %v5412, %v5477
    %v5542 = vadd.f32 %v5413, %v5478
    %v5543 = vadd.f32 %v5414, %v5479
    %v5544 = vadd.f32 %v5415, %v5480
    %v5545 = vadd.f32 %v5416, %v5481
    %v5546 = vadd.f32 %v5417, %v5482
    %v5547 = vadd.f32 %v5418, %v5483
    %v5548 = vadd.f32 %v5419, %v5484
    %v5549 = vadd.f32 %v5420, %v5485
    %v5550 = vadd.f32 %v5421, %v5486
    %v5551 = vadd.f32 %v5422, %v5487
    %v5552 = vadd.f32 %v5423, %v5488
    %v5553 = vadd.f32 %v5424, %v5489
    %v5554 = vadd.f32 %v5425, %v5490
    %v5555 = vadd.f32 %v5426, %v5491
    %v5556 = vadd.f32 %v5427, %v5492
    %v5557 = vadd.f32 %v5428, %v5493
    %v5558 = vadd.f32 %v5429, %v5494
    %v5559 = vadd.f32 %v5430, %v5495
    %v5560 = vadd.f32 %v5431, %v5496
    %v5561 = vadd.f32 %v5432, %v5497
    %v5562 = vadd.f32 %v5433, %v5498
    %v5563 = vadd.f32 %v5434, %v5499
    %v5564 = vadd.f32 %v5435, %v5500
    %v5565 = vadd.f32 %v5436, %v5501
    %v5566 = vadd.f32 %v5437, %v5502
    %v5567 = vadd.f32 %v5438, %v5503
    %v5568 = vadd.f32 %v5439, %v5504
    %v5569 = vadd.f32 %v5440, %v5505
    %v5570 = vadd.f32 %v5441, %v5506
    %v5571 = vadd.f32 %v5442, %v5507
    %v5572 = vadd.f32 %v5443, %v5508
    %v5573 = vadd.f32 %v5444, %v5509
    %v5574 = vadd.f32 %v5445, %v5510
    %v5575 = vadd.f32 %v5446, %v5511
    %v5576 = vadd.f32 %v5447, %v5512
    %v5577 = vadd.f32 %v5448, %v5513
    %v5578 = vadd.f32 %v5449, %v5514
    %v5579 = vperm.slane %v4740, 5
    %v5580 = vmul.f32 %v5190, %v5579
    %v5581 = vmul.f32 %v5189, %v5579
    %v5582 = vmul.f32 %v5188, %v5579
    %v5583 = vmul.f32 %v5187, %v5579
    %v5584 = vmul.f32 %v5186, %v5579
    %v5585 = vmul.f32 %v5185, %v5579
    %v5586 = vmul.f32 %v5184, %v5579
    %v5587 = vmul.f32 %v5183, %v5579
    %v5588 = vmul.f32 %v5182, %v5579
    %v5589 = vmul.f32 %v5181, %v5579
    %v5590 = vmul.f32 %v5180, %v5579
    %v5591 = vmul.f32 %v5179, %v5579
    %v5592 = vmul.f32 %v5178, %v5579
    %v5593 = vmul.f32 %v5177, %v5579
    %v5594 = vmul.f32 %v5176, %v5579
    %v5595 = vmul.f32 %v5175, %v5579
    %v5596 = vmul.f32 %v5174, %v5579
    %v5597 = vmul.f32 %v5173, %v5579
    %v5598 = vmul.f32 %v5172, %v5579
    %v5599 = vmul.f32 %v5171, %v5579
    %v5600 = vmul.f32 %v5170, %v5579
    %v5601 = vmul.f32 %v5169, %v5579
    %v5602 = vmul.f32 %v5168, %v5579
    %v5603 = vmul.f32 %v5167, %v5579
    %v5604 = vmul.f32 %v5166, %v5579
    %v5605 = vmul.f32 %v5165, %v5579
    %v5606 = vmul.f32 %v5164, %v5579
    %v5607 = vmul.f32 %v5163, %v5579
    %v5608 = vmul.f32 %v5162, %v5579
    %v5609 = vmul.f32 %v5161, %v5579
    %v5610 = vmul.f32 %v5160, %v5579
    %v5611 = vmul.f32 %v5159, %v5579
    %v5612 = vmul.f32 %v5158, %v5579
    %v5613 = vmul.f32 %v5157, %v5579
    %v5614 = vmul.f32 %v5156, %v5579
    %v5615 = vmul.f32 %v5155, %v5579
    %v5616 = vmul.f32 %v5154, %v5579
    %v5617 = vmul.f32 %v5153, %v5579
    %v5618 = vmul.f32 %v5152, %v5579
    %v5619 = vmul.f32 %v5151, %v5579
    %v5620 = vmul.f32 %v5150, %v5579
    %v5621 = vmul.f32 %v5149, %v5579
    %v5622 = vmul.f32 %v5148, %v5579
    %v5623 = vmul.f32 %v5147, %v5579
    %v5624 = vmul.f32 %v5146, %v5579
    %v5625 = vmul.f32 %v5145, %v5579
    %v5626 = vmul.f32 %v5144, %v5579
    %v5627 = vmul.f32 %v5143, %v5579
    %v5628 = vmul.f32 %v5142, %v5579
    %v5629 = vmul.f32 %v5141, %v5579
    %v5630 = vmul.f32 %v5140, %v5579
    %v5631 = vmul.f32 %v5139, %v5579
    %v5632 = vmul.f32 %v5138, %v5579
    %v5633 = vmul.f32 %v5137, %v5579
    %v5634 = vmul.f32 %v5136, %v5579
    %v5635 = vmul.f32 %v5135, %v5579
    %v5636 = vmul.f32 %v5134, %v5579
    %v5637 = vmul.f32 %v5133, %v5579
    %v5638 = vmul.f32 %v5132, %v5579
    %v5639 = vmul.f32 %v5131, %v5579
    %v5640 = vmul.f32 %v5130, %v5579
    %v5641 = vmul.f32 %v5129, %v5579
    %v5642 = vmul.f32 %v5128, %v5579
    %v5643 = vmul.f32 %v5191, %v5579
    %v5644 = vadd.f32 %v5515, %v5580
    %v5645 = vadd.f32 %v5516, %v5581
    %v5646 = vadd.f32 %v5517, %v5582
    %v5647 = vadd.f32 %v5518, %v5583
    %v5648 = vadd.f32 %v5519, %v5584
    %v5649 = vadd.f32 %v5520, %v5585
    %v5650 = vadd.f32 %v5521, %v5586
    %v5651 = vadd.f32 %v5522, %v5587
    %v5652 = vadd.f32 %v5523, %v5588
    %v5653 = vadd.f32 %v5524, %v5589
    %v5654 = vadd.f32 %v5525, %v5590
    %v5655 = vadd.f32 %v5526, %v5591
    %v5656 = vadd.f32 %v5527, %v5592
    %v5657 = vadd.f32 %v5528, %v5593
    %v5658 = vadd.f32 %v5529, %v5594
    %v5659 = vadd.f32 %v5530, %v5595
    %v5660 = vadd.f32 %v5531, %v5596
    %v5661 = vadd.f32 %v5532, %v5597
    %v5662 = vadd.f32 %v5533, %v5598
    %v5663 = vadd.f32 %v5534, %v5599
    %v5664 = vadd.f32 %v5535, %v5600
    %v5665 = vadd.f32 %v5536, %v5601
    %v5666 = vadd.f32 %v5537, %v5602
    %v5667 = vadd.f32 %v5538, %v5603
    %v5668 = vadd.f32 %v5539, %v5604
    %v5669 = vadd.f32 %v5540, %v5605
    %v5670 = vadd.f32 %v5541, %v5606
    %v5671 = vadd.f32 %v5542, %v5607
    %v5672 = vadd.f32 %v5543, %v5608
    %v5673 = vadd.f32 %v5544, %v5609
    %v5674 = vadd.f32 %v5545, %v5610
    %v5675 = vadd.f32 %v5546, %v5611
    %v5676 = vadd.f32 %v5547, %v5612
    %v5677 = vadd.f32 %v5548, %v5613
    %v5678 = vadd.f32 %v5549, %v5614
    %v5679 = vadd.f32 %v5550, %v5615
    %v5680 = vadd.f32 %v5551, %v5616
    %v5681 = vadd.f32 %v5552, %v5617
    %v5682 = vadd.f32 %v5553, %v5618
    %v5683 = vadd.f32 %v5554, %v5619
    %v5684 = vadd.f32 %v5555, %v5620
    %v5685 = vadd.f32 %v5556, %v5621
    %v5686 = vadd.f32 %v5557, %v5622
    %v5687 = vadd.f32 %v5558, %v5623
    %v5688 = vadd.f32 %v5559, %v5624
    %v5689 = vadd.f32 %v5560, %v5625
    %v5690 = vadd.f32 %v5561, %v5626
    %v5691 = vadd.f32 %v5562, %v5627
    %v5692 = vadd.f32 %v5563, %v5628
    %v5693 = vadd.f32 %v5564, %v5629
    %v5694 = vadd.f32 %v5565, %v5630
    %v5695 = vadd.f32 %v5566, %v5631
    %v5696 = vadd.f32 %v5567, %v5632
    %v5697 = vadd.f32 %v5568, %v5633
    %v5698 = vadd.f32 %v5569, %v5634
    %v5699 = vadd.f32 %v5570, %v5635
    %v5700 = vadd.f32 %v5571, %v5636
    %v5701 = vadd.f32 %v5572, %v5637
    %v5702 = vadd.f32 %v5573, %v5638
    %v5703 = vadd.f32 %v5574, %v5639
    %v5704 = vadd.f32 %v5575, %v5640
    %v5705 = vadd.f32 %v5576, %v5641
    %v5706 = vadd.f32 %v5577, %v5642
    %v5707 = vadd.f32 %v5578, %v5643
    %v5708 = vperm.slane %v4740, 6
    %v5709 = vmul.f32 %v4867, %v5708
    %v5710 = vmul.f32 %v4866, %v5708
    %v5711 = vmul.f32 %v4865, %v5708
    %v5712 = vmul.f32 %v4864, %v5708
    %v5713 = vmul.f32 %v4863, %v5708
    %v5714 = vmul.f32 %v4862, %v5708
    %v5715 = vmul.f32 %v4861, %v5708
    %v5716 = vmul.f32 %v4860, %v5708
    %v5717 = vmul.f32 %v4859, %v5708
    %v5718 = vmul.f32 %v4858, %v5708
    %v5719 = vmul.f32 %v4857, %v5708
    %v5720 = vmul.f32 %v4856, %v5708
    %v5721 = vmul.f32 %v4855, %v5708
    %v5722 = vmul.f32 %v4854, %v5708
    %v5723 = vmul.f32 %v4853, %v5708
    %v5724 = vmul.f32 %v4852, %v5708
    %v5725 = vmul.f32 %v4851, %v5708
    %v5726 = vmul.f32 %v4850, %v5708
    %v5727 = vmul.f32 %v4849, %v5708
    %v5728 = vmul.f32 %v4848, %v5708
    %v5729 = vmul.f32 %v4847, %v5708
    %v5730 = vmul.f32 %v4846, %v5708
    %v5731 = vmul.f32 %v4845, %v5708
    %v5732 = vmul.f32 %v4844, %v5708
    %v5733 = vmul.f32 %v4843, %v5708
    %v5734 = vmul.f32 %v4842, %v5708
    %v5735 = vmul.f32 %v4841, %v5708
    %v5736 = vmul.f32 %v4840, %v5708
    %v5737 = vmul.f32 %v4839, %v5708
    %v5738 = vmul.f32 %v4838, %v5708
    %v5739 = vmul.f32 %v4837, %v5708
    %v5740 = vmul.f32 %v4836, %v5708
    %v5741 = vmul.f32 %v4835, %v5708
    %v5742 = vmul.f32 %v4834, %v5708
    %v5743 = vmul.f32 %v4833, %v5708
    %v5744 = vmul.f32 %v4832, %v5708
    %v5745 = vmul.f32 %v4831, %v5708
    %v5746 = vmul.f32 %v4830, %v5708
    %v5747 = vmul.f32 %v4829, %v5708
    %v5748 = vmul.f32 %v4828, %v5708
    %v5749 = vmul.f32 %v4827, %v5708
    %v5750 = vmul.f32 %v4826, %v5708
    %v5751 = vmul.f32 %v4825, %v5708
    %v5752 = vmul.f32 %v4824, %v5708
    %v5753 = vmul.f32 %v4823, %v5708
    %v5754 = vmul.f32 %v4822, %v5708
    %v5755 = vmul.f32 %v4821, %v5708
    %v5756 = vmul.f32 %v4820, %v5708
    %v5757 = vmul.f32 %v4819, %v5708
    %v5758 = vmul.f32 %v4818, %v5708
    %v5759 = vmul.f32 %v4817, %v5708
    %v5760 = vmul.f32 %v4816, %v5708
    %v5761 = vmul.f32 %v4815, %v5708
    %v5762 = vmul.f32 %v4814, %v5708
    %v5763 = vmul.f32 %v4813, %v5708
    %v5764 = vmul.f32 %v4812, %v5708
    %v5765 = vmul.f32 %v4811, %v5708
    %v5766 = vmul.f32 %v4810, %v5708
    %v5767 = vmul.f32 %v4809, %v5708
    %v5768 = vmul.f32 %v4808, %v5708
    %v5769 = vmul.f32 %v4807, %v5708
    %v5770 = vmul.f32 %v4806, %v5708
    %v5771 = vmul.f32 %v4869, %v5708
    %v5772 = vmul.f32 %v4868, %v5708
    %v5773 = vadd.f32 %v5644, %v5709
    %v5774 = vadd.f32 %v5645, %v5710
    %v5775 = vadd.f32 %v5646, %v5711
    %v5776 = vadd.f32 %v5647, %v5712
    %v5777 = vadd.f32 %v5648, %v5713
    %v5778 = vadd.f32 %v5649, %v5714
    %v5779 = vadd.f32 %v5650, %v5715
    %v5780 = vadd.f32 %v5651, %v5716
    %v5781 = vadd.f32 %v5652, %v5717
    %v5782 = vadd.f32 %v5653, %v5718
    %v5783 = vadd.f32 %v5654, %v5719
    %v5784 = vadd.f32 %v5655, %v5720
    %v5785 = vadd.f32 %v5656, %v5721
    %v5786 = vadd.f32 %v5657, %v5722
    %v5787 = vadd.f32 %v5658, %v5723
    %v5788 = vadd.f32 %v5659, %v5724
    %v5789 = vadd.f32 %v5660, %v5725
    %v5790 = vadd.f32 %v5661, %v5726
    %v5791 = vadd.f32 %v5662, %v5727
    %v5792 = vadd.f32 %v5663, %v5728
    %v5793 = vadd.f32 %v5664, %v5729
    %v5794 = vadd.f32 %v5665, %v5730
    %v5795 = vadd.f32 %v5666, %v5731
    %v5796 = vadd.f32 %v5667, %v5732
    %v5797 = vadd.f32 %v5668, %v5733
    %v5798 = vadd.f32 %v5669, %v5734
    %v5799 = vadd.f32 %v5670, %v5735
    %v5800 = vadd.f32 %v5671, %v5736
    %v5801 = vadd.f32 %v5672, %v5737
    %v5802 = vadd.f32 %v5673, %v5738
    %v5803 = vadd.f32 %v5674, %v5739
    %v5804 = vadd.f32 %v5675, %v5740
    %v5805 = vadd.f32 %v5676, %v5741
    %v5806 = vadd.f32 %v5677, %v5742
    %v5807 = vadd.f32 %v5678, %v5743
    %v5808 = vadd.f32 %v5679, %v5744
    %v5809 = vadd.f32 %v5680, %v5745
    %v5810 = vadd.f32 %v5681, %v5746
    %v5811 = vadd.f32 %v5682, %v5747
    %v5812 = vadd.f32 %v5683, %v5748
    %v5813 = vadd.f32 %v5684, %v5749
    %v5814 = vadd.f32 %v5685, %v5750
    %v5815 = vadd.f32 %v5686, %v5751
    %v5816 = vadd.f32 %v5687, %v5752
    %v5817 = vadd.f32 %v5688, %v5753
    %v5818 = vadd.f32 %v5689, %v5754
    %v5819 = vadd.f32 %v5690, %v5755
    %v5820 = vadd.f32 %v5691, %v5756
    %v5821 = vadd.f32 %v5692, %v5757
    %v5822 = vadd.f32 %v5693, %v5758
    %v5823 = vadd.f32 %v5694, %v5759
    %v5824 = vadd.f32 %v5695, %v5760
    %v5825 = vadd.f32 %v5696, %v5761
    %v5826 = vadd.f32 %v5697, %v5762
    %v5827 = vadd.f32 %v5698, %v5763
    %v5828 = vadd.f32 %v5699, %v5764
    %v5829 = vadd.f32 %v5700, %v5765
    %v5830 = vadd.f32 %v5701, %v5766
    %v5831 = vadd.f32 %v5702, %v5767
    %v5832 = vadd.f32 %v5703, %v5768
    %v5833 = vadd.f32 %v5704, %v5769
    %v5834 = vadd.f32 %v5705, %v5770
    %v5835 = vadd.f32 %v5706, %v5771
    %v5836 = vadd.f32 %v5707, %v5772
    %v5837 = vperm.slane %v4740, 7
    %v5838 = vmul.f32 %v4586, %v5837
    %v5839 = vmul.f32 %v4588, %v5837
    %v5840 = vmul.f32 %v4591, %v5837
    %v5841 = vmul.f32 %v4593, %v5837
    %v5842 = vmul.f32 %v4596, %v5837
    %v5843 = vmul.f32 %v4598, %v5837
    %v5844 = vmul.f32 %v4601, %v5837
    %v5845 = vmul.f32 %v4603, %v5837
    %v5846 = vmul.f32 %v4606, %v5837
    %v5847 = vmul.f32 %v4608, %v5837
    %v5848 = vmul.f32 %v4611, %v5837
    %v5849 = vmul.f32 %v4613, %v5837
    %v5850 = vmul.f32 %v4616, %v5837
    %v5851 = vmul.f32 %v4618, %v5837
    %v5852 = vmul.f32 %v4621, %v5837
    %v5853 = vmul.f32 %v4623, %v5837
    %v5854 = vmul.f32 %v4626, %v5837
    %v5855 = vmul.f32 %v4628, %v5837
    %v5856 = vmul.f32 %v4631, %v5837
    %v5857 = vmul.f32 %v4633, %v5837
    %v5858 = vmul.f32 %v4636, %v5837
    %v5859 = vmul.f32 %v4638, %v5837
    %v5860 = vmul.f32 %v4641, %v5837
    %v5861 = vmul.f32 %v4643, %v5837
    %v5862 = vmul.f32 %v4646, %v5837
    %v5863 = vmul.f32 %v4648, %v5837
    %v5864 = vmul.f32 %v4651, %v5837
    %v5865 = vmul.f32 %v4653, %v5837
    %v5866 = vmul.f32 %v4656, %v5837
    %v5867 = vmul.f32 %v4658, %v5837
    %v5868 = vmul.f32 %v4661, %v5837
    %v5869 = vmul.f32 %v4663, %v5837
    %v5870 = vmul.f32 %v4666, %v5837
    %v5871 = vmul.f32 %v4668, %v5837
    %v5872 = vmul.f32 %v4671, %v5837
    %v5873 = vmul.f32 %v4673, %v5837
    %v5874 = vmul.f32 %v4676, %v5837
    %v5875 = vmul.f32 %v4678, %v5837
    %v5876 = vmul.f32 %v4681, %v5837
    %v5877 = vmul.f32 %v4683, %v5837
    %v5878 = vmul.f32 %v4686, %v5837
    %v5879 = vmul.f32 %v4688, %v5837
    %v5880 = vmul.f32 %v4691, %v5837
    %v5881 = vmul.f32 %v4693, %v5837
    %v5882 = vmul.f32 %v4696, %v5837
    %v5883 = vmul.f32 %v4698, %v5837
    %v5884 = vmul.f32 %v4701, %v5837
    %v5885 = vmul.f32 %v4703, %v5837
    %v5886 = vmul.f32 %v4706, %v5837
    %v5887 = vmul.f32 %v4708, %v5837
    %v5888 = vmul.f32 %v4711, %v5837
    %v5889 = vmul.f32 %v4713, %v5837
    %v5890 = vmul.f32 %v4716, %v5837
    %v5891 = vmul.f32 %v4718, %v5837
    %v5892 = vmul.f32 %v4721, %v5837
    %v5893 = vmul.f32 %v4723, %v5837
    %v5894 = vmul.f32 %v4726, %v5837
    %v5895 = vmul.f32 %v4728, %v5837
    %v5896 = vmul.f32 %v4731, %v5837
    %v5897 = vmul.f32 %v4733, %v5837
    %v5898 = vmul.f32 %v4736, %v5837
    %v5899 = vmul.f32 %v4738, %v5837
    %v5900 = vmul.f32 %v4581, %v5837
    %v5901 = vmul.f32 %v4583, %v5837
    %v5902 = vadd.f32 %v5773, %v5838
    %v5903 = vadd.f32 %v5774, %v5839
    %v5904 = vadd.f32 %v5775, %v5840
    %v5905 = vadd.f32 %v5776, %v5841
    %v5906 = vadd.f32 %v5777, %v5842
    %v5907 = vadd.f32 %v5778, %v5843
    %v5908 = vadd.f32 %v5779, %v5844
    %v5909 = vadd.f32 %v5780, %v5845
    %v5910 = vadd.f32 %v5781, %v5846
    %v5911 = vadd.f32 %v5782, %v5847
    %v5912 = vadd.f32 %v5783, %v5848
    %v5913 = vadd.f32 %v5784, %v5849
    %v5914 = vadd.f32 %v5785, %v5850
    %v5915 = vadd.f32 %v5786, %v5851
    %v5916 = vadd.f32 %v5787, %v5852
    %v5917 = vadd.f32 %v5788, %v5853
    %v5918 = vadd.f32 %v5789, %v5854
    %v5919 = vadd.f32 %v5790, %v5855
    %v5920 = vadd.f32 %v5791, %v5856
    %v5921 = vadd.f32 %v5792, %v5857
    %v5922 = vadd.f32 %v5793, %v5858
    %v5923 = vadd.f32 %v5794, %v5859
    %v5924 = vadd.f32 %v5795, %v5860
    %v5925 = vadd.f32 %v5796, %v5861
    %v5926 = vadd.f32 %v5797, %v5862
    %v5927 = vadd.f32 %v5798, %v5863
    %v5928 = vadd.f32 %v5799, %v5864
    %v5929 = vadd.f32 %v5800, %v5865
    %v5930 = vadd.f32 %v5801, %v5866
    %v5931 = vadd.f32 %v5802, %v5867
    %v5932 = vadd.f32 %v5803, %v5868
    %v5933 = vadd.f32 %v5804, %v5869
    %v5934 = vadd.f32 %v5805, %v5870
    %v5935 = vadd.f32 %v5806, %v5871
    %v5936 = vadd.f32 %v5807, %v5872
    %v5937 = vadd.f32 %v5808, %v5873
    %v5938 = vadd.f32 %v5809, %v5874
    %v5939 = vadd.f32 %v5810, %v5875
    %v5940 = vadd.f32 %v5811, %v5876
    %v5941 = vadd.f32 %v5812, %v5877
    %v5942 = vadd.f32 %v5813, %v5878
    %v5943 = vadd.f32 %v5814, %v5879
    %v5944 = vadd.f32 %v5815, %v5880
    %v5945 = vadd.f32 %v5816, %v5881
    %v5946 = vadd.f32 %v5817, %v5882
    %v5947 = vadd.f32 %v5818, %v5883
    %v5948 = vadd.f32 %v5819, %v5884
    %v5949 = vadd.f32 %v5820, %v5885
    %v5950 = vadd.f32 %v5821, %v5886
    %v5951 = vadd.f32 %v5822, %v5887
    %v5952 = vadd.f32 %v5823, %v5888
    %v5953 = vadd.f32 %v5824, %v5889
    %v5954 = vadd.f32 %v5825, %v5890
    %v5955 = vadd.f32 %v5826, %v5891
    %v5956 = vadd.f32 %v5827, %v5892
    %v5957 = vadd.f32 %v5828, %v5893
    %v5958 = vadd.f32 %v5829, %v5894
    %v5959 = vadd.f32 %v5830, %v5895
    %v5960 = vadd.f32 %v5831, %v5896
    %v5961 = vadd.f32 %v5832, %v5897
    %v5962 = vadd.f32 %v5833, %v5898
    %v5963 = vadd.f32 %v5834, %v5899
    %v5964 = vadd.f32 %v5835, %v5900
    %v5965 = vadd.f32 %v5836, %v5901
    %v5966 = vperm.slane %v4741, 0
    %v5967 = vmul.f32 %v5188, %v5966
    %v5968 = vmul.f32 %v5187, %v5966
    %v5969 = vmul.f32 %v5186, %v5966
    %v5970 = vmul.f32 %v5185, %v5966
    %v5971 = vmul.f32 %v5184, %v5966
    %v5972 = vmul.f32 %v5183, %v5966
    %v5973 = vmul.f32 %v5182, %v5966
    %v5974 = vmul.f32 %v5181, %v5966
    %v5975 = vmul.f32 %v5180, %v5966
    %v5976 = vmul.f32 %v5179, %v5966
    %v5977 = vmul.f32 %v5178, %v5966
    %v5978 = vmul.f32 %v5177, %v5966
    %v5979 = vmul.f32 %v5176, %v5966
    %v5980 = vmul.f32 %v5175, %v5966
    %v5981 = vmul.f32 %v5174, %v5966
    %v5982 = vmul.f32 %v5173, %v5966
    %v5983 = vmul.f32 %v5172, %v5966
    %v5984 = vmul.f32 %v5171, %v5966
    %v5985 = vmul.f32 %v5170, %v5966
    %v5986 = vmul.f32 %v5169, %v5966
    %v5987 = vmul.f32 %v5168, %v5966
    %v5988 = vmul.f32 %v5167, %v5966
    %v5989 = vmul.f32 %v5166, %v5966
    %v5990 = vmul.f32 %v5165, %v5966
    %v5991 = vmul.f32 %v5164, %v5966
    %v5992 = vmul.f32 %v5163, %v5966
    %v5993 = vmul.f32 %v5162, %v5966
    %v5994 = vmul.f32 %v5161, %v5966
    %v5995 = vmul.f32 %v5160, %v5966
    %v5996 = vmul.f32 %v5159, %v5966
    %v5997 = vmul.f32 %v5158, %v5966
    %v5998 = vmul.f32 %v5157, %v5966
    %v5999 = vmul.f32 %v5156, %v5966
    %v6000 = vmul.f32 %v5155, %v5966
    %v6001 = vmul.f32 %v5154, %v5966
    %v6002 = vmul.f32 %v5153, %v5966
    %v6003 = vmul.f32 %v5152, %v5966
    %v6004 = vmul.f32 %v5151, %v5966
    %v6005 = vmul.f32 %v5150, %v5966
    %v6006 = vmul.f32 %v5149, %v5966
    %v6007 = vmul.f32 %v5148, %v5966
    %v6008 = vmul.f32 %v5147, %v5966
    %v6009 = vmul.f32 %v5146, %v5966
    %v6010 = vmul.f32 %v5145, %v5966
    %v6011 = vmul.f32 %v5144, %v5966
    %v6012 = vmul.f32 %v5143, %v5966
    %v6013 = vmul.f32 %v5142, %v5966
    %v6014 = vmul.f32 %v5141, %v5966
    %v6015 = vmul.f32 %v5140, %v5966
    %v6016 = vmul.f32 %v5139, %v5966
    %v6017 = vmul.f32 %v5138, %v5966
    %v6018 = vmul.f32 %v5137, %v5966
    %v6019 = vmul.f32 %v5136, %v5966
    %v6020 = vmul.f32 %v5135, %v5966
    %v6021 = vmul.f32 %v5134, %v5966
    %v6022 = vmul.f32 %v5133, %v5966
    %v6023 = vmul.f32 %v5132, %v5966
    %v6024 = vmul.f32 %v5131, %v5966
    %v6025 = vmul.f32 %v5130, %v5966
    %v6026 = vmul.f32 %v5129, %v5966
    %v6027 = vmul.f32 %v5128, %v5966
    %v6028 = vmul.f32 %v5191, %v5966
    %v6029 = vmul.f32 %v5190, %v5966
    %v6030 = vmul.f32 %v5189, %v5966
    %v6031 = vadd.f32 %v5902, %v5967
    %v6032 = vadd.f32 %v5903, %v5968
    %v6033 = vadd.f32 %v5904, %v5969
    %v6034 = vadd.f32 %v5905, %v5970
    %v6035 = vadd.f32 %v5906, %v5971
    %v6036 = vadd.f32 %v5907, %v5972
    %v6037 = vadd.f32 %v5908, %v5973
    %v6038 = vadd.f32 %v5909, %v5974
    %v6039 = vadd.f32 %v5910, %v5975
    %v6040 = vadd.f32 %v5911, %v5976
    %v6041 = vadd.f32 %v5912, %v5977
    %v6042 = vadd.f32 %v5913, %v5978
    %v6043 = vadd.f32 %v5914, %v5979
    %v6044 = vadd.f32 %v5915, %v5980
    %v6045 = vadd.f32 %v5916, %v5981
    %v6046 = vadd.f32 %v5917, %v5982
    %v6047 = vadd.f32 %v5918, %v5983
    %v6048 = vadd.f32 %v5919, %v5984
    %v6049 = vadd.f32 %v5920, %v5985
    %v6050 = vadd.f32 %v5921, %v5986
    %v6051 = vadd.f32 %v5922, %v5987
    %v6052 = vadd.f32 %v5923, %v5988
    %v6053 = vadd.f32 %v5924, %v5989
    %v6054 = vadd.f32 %v5925, %v5990
    %v6055 = vadd.f32 %v5926, %v5991
    %v6056 = vadd.f32 %v5927, %v5992
    %v6057 = vadd.f32 %v5928, %v5993
    %v6058 = vadd.f32 %v5929, %v5994
    %v6059 = vadd.f32 %v5930, %v5995
    %v6060 = vadd.f32 %v5931, %v5996
    %v6061 = vadd.f32 %v5932, %v5997
    %v6062 = vadd.f32 %v5933, %v5998
    %v6063 = vadd.f32 %v5934, %v5999
    %v6064 = vadd.f32 %v5935, %v6000
    %v6065 = vadd.f32 %v5936, %v6001
    %v6066 = vadd.f32 %v5937, %v6002
    %v6067 = vadd.f32 %v5938, %v6003
    %v6068 = vadd.f32 %v5939, %v6004
    %v6069 = vadd.f32 %v5940, %v6005
    %v6070 = vadd.f32 %v5941, %v6006
    %v6071 = vadd.f32 %v5942, %v6007
    %v6072 = vadd.f32 %v5943, %v6008
    %v6073 = vadd.f32 %v5944, %v6009
    %v6074 = vadd.f32 %v5945, %v6010
    %v6075 = vadd.f32 %v5946, %v6011
    %v6076 = vadd.f32 %v5947, %v6012
    %v6077 = vadd.f32 %v5948, %v6013
    %v6078 = vadd.f32 %v5949, %v6014
    %v6079 = vadd.f32 %v5950, %v6015
    %v6080 = vadd.f32 %v5951, %v6016
    %v6081 = vadd.f32 %v5952, %v6017
    %v6082 = vadd.f32 %v5953, %v6018
    %v6083 = vadd.f32 %v5954, %v6019
    %v6084 = vadd.f32 %v5955, %v6020
    %v6085 = vadd.f32 %v5956, %v6021
    %v6086 = vadd.f32 %v5957, %v6022
    %v6087 = vadd.f32 %v5958, %v6023
    %v6088 = vadd.f32 %v5959, %v6024
    %v6089 = vadd.f32 %v5960, %v6025
    %v6090 = vadd.f32 %v5961, %v6026
    %v6091 = vadd.f32 %v5962, %v6027
    %v6092 = vadd.f32 %v5963, %v6028
    %v6093 = vadd.f32 %v5964, %v6029
    %v6094 = vadd.f32 %v5965, %v6030
    %s6095 = scalar_lea.vmem %s3, 2
    %v6096 = vld [vmem:[%s6095] sm:$0x1]
    %v6098 = vperm.slane %v6096, 0
    %v6100 = vadd.f32 %v6031, %v6098
    %v6101 = vadd.f32 %v6032, %v6098
    %v6102 = vadd.f32 %v6033, %v6098
    %v6103 = vadd.f32 %v6034, %v6098
    %v6104 = vadd.f32 %v6035, %v6098
    %v6105 = vadd.f32 %v6036, %v6098
    %v6106 = vadd.f32 %v6037, %v6098
    %v6107 = vadd.f32 %v6038, %v6098
    %v6108 = vadd.f32 %v6039, %v6098
    %v6109 = vadd.f32 %v6040, %v6098
    %v6110 = vadd.f32 %v6041, %v6098
    %v6111 = vadd.f32 %v6042, %v6098
    %v6112 = vadd.f32 %v6043, %v6098
    %v6113 = vadd.f32 %v6044, %v6098
    %v6114 = vadd.f32 %v6045, %v6098
    %v6115 = vadd.f32 %v6046, %v6098
    %v6116 = vadd.f32 %v6047, %v6098
    %v6117 = vadd.f32 %v6048, %v6098
    %v6118 = vadd.f32 %v6049, %v6098
    %v6119 = vadd.f32 %v6050, %v6098
    %v6120 = vadd.f32 %v6051, %v6098
    %v6121 = vadd.f32 %v6052, %v6098
    %v6122 = vadd.f32 %v6053, %v6098
    %v6123 = vadd.f32 %v6054, %v6098
    %v6124 = vadd.f32 %v6055, %v6098
    %v6125 = vadd.f32 %v6056, %v6098
    %v6126 = vadd.f32 %v6057, %v6098
    %v6127 = vadd.f32 %v6058, %v6098
    %v6128 = vadd.f32 %v6059, %v6098
    %v6129 = vadd.f32 %v6060, %v6098
    %v6130 = vadd.f32 %v6061, %v6098
    %v6131 = vadd.f32 %v6062, %v6098
    %v6132 = vadd.f32 %v6063, %v6098
    %v6133 = vadd.f32 %v6064, %v6098
    %v6134 = vadd.f32 %v6065, %v6098
    %v6135 = vadd.f32 %v6066, %v6098
    %v6136 = vadd.f32 %v6067, %v6098
    %v6137 = vadd.f32 %v6068, %v6098
    %v6138 = vadd.f32 %v6069, %v6098
    %v6139 = vadd.f32 %v6070, %v6098
    %v6140 = vadd.f32 %v6071, %v6098
    %v6141 = vadd.f32 %v6072, %v6098
    %v6142 = vadd.f32 %v6073, %v6098
    %v6143 = vadd.f32 %v6074, %v6098
    %v6144 = vadd.f32 %v6075, %v6098
    %v6145 = vadd.f32 %v6076, %v6098
    %v6146 = vadd.f32 %v6077, %v6098
    %v6147 = vadd.f32 %v6078, %v6098
    %v6148 = vadd.f32 %v6079, %v6098
    %v6149 = vadd.f32 %v6080, %v6098
    %v6150 = vadd.f32 %v6081, %v6098
    %v6151 = vadd.f32 %v6082, %v6098
    %v6152 = vadd.f32 %v6083, %v6098
    %v6153 = vadd.f32 %v6084, %v6098
    %v6154 = vadd.f32 %v6085, %v6098
    %v6155 = vadd.f32 %v6086, %v6098
    %v6156 = vadd.f32 %v6087, %v6098
    %v6157 = vadd.f32 %v6088, %v6098
    %v6158 = vadd.f32 %v6089, %v6098
    %v6159 = vadd.f32 %v6090, %v6098
    %v6160 = vadd.f32 %v6091, %v6098
    %v6161 = vadd.f32 %v6092, %v6098
    %v6162 = vadd.f32 %v6093, %v6098
    %v6163 = vadd.f32 %v6094, %v6098
    %v6164 = vadd.f32 %v6100, 3.0
    %v6165 = vadd.f32 %v6101, 3.0
    %v6166 = vadd.f32 %v6102, 3.0
    %v6167 = vadd.f32 %v6103, 3.0
    %v6168 = vadd.f32 %v6104, 3.0
    %v6169 = vadd.f32 %v6105, 3.0
    %v6170 = vadd.f32 %v6106, 3.0
    %v6171 = vadd.f32 %v6107, 3.0
    %v6172 = vadd.f32 %v6108, 3.0
    %v6173 = vadd.f32 %v6109, 3.0
    %v6174 = vadd.f32 %v6110, 3.0
    %v6175 = vadd.f32 %v6111, 3.0
    %v6176 = vadd.f32 %v6112, 3.0
    %v6177 = vadd.f32 %v6113, 3.0
    %v6178 = vadd.f32 %v6114, 3.0
    %v6179 = vadd.f32 %v6115, 3.0
    %v6180 = vadd.f32 %v6116, 3.0
    %v6181 = vadd.f32 %v6117, 3.0
    %v6182 = vadd.f32 %v6118, 3.0
    %v6183 = vadd.f32 %v6119, 3.0
    %v6184 = vadd.f32 %v6120, 3.0
    %v6185 = vadd.f32 %v6121, 3.0
    %v6186 = vadd.f32 %v6122, 3.0
    %v6187 = vadd.f32 %v6123, 3.0
    %v6188 = vadd.f32 %v6124, 3.0
    %v6189 = vadd.f32 %v6125, 3.0
    %v6190 = vadd.f32 %v6126, 3.0
    %v6191 = vadd.f32 %v6127, 3.0
    %v6192 = vadd.f32 %v6128, 3.0
    %v6193 = vadd.f32 %v6129, 3.0
    %v6194 = vadd.f32 %v6130, 3.0
    %v6195 = vadd.f32 %v6131, 3.0
    %v6196 = vadd.f32 %v6132, 3.0
    %v6197 = vadd.f32 %v6133, 3.0
    %v6198 = vadd.f32 %v6134, 3.0
    %v6199 = vadd.f32 %v6135, 3.0
    %v6200 = vadd.f32 %v6136, 3.0
    %v6201 = vadd.f32 %v6137, 3.0
    %v6202 = vadd.f32 %v6138, 3.0
    %v6203 = vadd.f32 %v6139, 3.0
    %v6204 = vadd.f32 %v6140, 3.0
    %v6205 = vadd.f32 %v6141, 3.0
    %v6206 = vadd.f32 %v6142, 3.0
    %v6207 = vadd.f32 %v6143, 3.0
    %v6208 = vadd.f32 %v6144, 3.0
    %v6209 = vadd.f32 %v6145, 3.0
    %v6210 = vadd.f32 %v6146, 3.0
    %v6211 = vadd.f32 %v6147, 3.0
    %v6212 = vadd.f32 %v6148, 3.0
    %v6213 = vadd.f32 %v6149, 3.0
    %v6214 = vadd.f32 %v6150, 3.0
    %v6215 = vadd.f32 %v6151, 3.0
    %v6216 = vadd.f32 %v6152, 3.0
    %v6217 = vadd.f32 %v6153, 3.0
    %v6218 = vadd.f32 %v6154, 3.0
    %v6219 = vadd.f32 %v6155, 3.0
    %v6220 = vadd.f32 %v6156, 3.0
    %v6221 = vadd.f32 %v6157, 3.0
    %v6222 = vadd.f32 %v6158, 3.0
    %v6223 = vadd.f32 %v6159, 3.0
    %v6224 = vadd.f32 %v6160, 3.0
    %v6225 = vadd.f32 %v6161, 3.0
    %v6226 = vadd.f32 %v6162, 3.0
    %v6227 = vadd.f32 %v6163, 3.0
    %v6228 = vmax.f32 %v6164, 0.0
    %v6229 = vmax.f32 %v6165, 0.0
    %v6230 = vmax.f32 %v6166, 0.0
    %v6231 = vmax.f32 %v6167, 0.0
    %v6232 = vmax.f32 %v6168, 0.0
    %v6233 = vmax.f32 %v6169, 0.0
    %v6234 = vmax.f32 %v6170, 0.0
    %v6235 = vmax.f32 %v6171, 0.0
    %v6236 = vmax.f32 %v6172, 0.0
    %v6237 = vmax.f32 %v6173, 0.0
    %v6238 = vmax.f32 %v6174, 0.0
    %v6239 = vmax.f32 %v6175, 0.0
    %v6240 = vmax.f32 %v6176, 0.0
    %v6241 = vmax.f32 %v6177, 0.0
    %v6242 = vmax.f32 %v6178, 0.0
    %v6243 = vmax.f32 %v6179, 0.0
    %v6244 = vmax.f32 %v6180, 0.0
    %v6245 = vmax.f32 %v6181, 0.0
    %v6246 = vmax.f32 %v6182, 0.0
    %v6247 = vmax.f32 %v6183, 0.0
    %v6248 = vmax.f32 %v6184, 0.0
    %v6249 = vmax.f32 %v6185, 0.0
    %v6250 = vmax.f32 %v6186, 0.0
    %v6251 = vmax.f32 %v6187, 0.0
    %v6252 = vmax.f32 %v6188, 0.0
    %v6253 = vmax.f32 %v6189, 0.0
    %v6254 = vmax.f32 %v6190, 0.0
    %v6255 = vmax.f32 %v6191, 0.0
    %v6256 = vmax.f32 %v6192, 0.0
    %v6257 = vmax.f32 %v6193, 0.0
    %v6258 = vmax.f32 %v6194, 0.0
    %v6259 = vmax.f32 %v6195, 0.0
    %v6260 = vmax.f32 %v6196, 0.0
    %v6261 = vmax.f32 %v6197, 0.0
    %v6262 = vmax.f32 %v6198, 0.0
    %v6263 = vmax.f32 %v6199, 0.0
    %v6264 = vmax.f32 %v6200, 0.0
    %v6265 = vmax.f32 %v6201, 0.0
    %v6266 = vmax.f32 %v6202, 0.0
    %v6267 = vmax.f32 %v6203, 0.0
    %v6268 = vmax.f32 %v6204, 0.0
    %v6269 = vmax.f32 %v6205, 0.0
    %v6270 = vmax.f32 %v6206, 0.0
    %v6271 = vmax.f32 %v6207, 0.0
    %v6272 = vmax.f32 %v6208, 0.0
    %v6273 = vmax.f32 %v6209, 0.0
    %v6274 = vmax.f32 %v6210, 0.0
    %v6275 = vmax.f32 %v6211, 0.0
    %v6276 = vmax.f32 %v6212, 0.0
    %v6277 = vmax.f32 %v6213, 0.0
    %v6278 = vmax.f32 %v6214, 0.0
    %v6279 = vmax.f32 %v6215, 0.0
    %v6280 = vmax.f32 %v6216, 0.0
    %v6281 = vmax.f32 %v6217, 0.0
    %v6282 = vmax.f32 %v6218, 0.0
    %v6283 = vmax.f32 %v6219, 0.0
    %v6284 = vmax.f32 %v6220, 0.0
    %v6285 = vmax.f32 %v6221, 0.0
    %v6286 = vmax.f32 %v6222, 0.0
    %v6287 = vmax.f32 %v6223, 0.0
    %v6288 = vmax.f32 %v6224, 0.0
    %v6289 = vmax.f32 %v6225, 0.0
    %v6290 = vmax.f32 %v6226, 0.0
    %v6291 = vmax.f32 %v6227, 0.0
    %v6292 = vmin.f32 %v6228, 6.0
    %v6293 = vmin.f32 %v6229, 6.0
    %v6294 = vmin.f32 %v6230, 6.0
    %v6295 = vmin.f32 %v6231, 6.0
    %v6296 = vmin.f32 %v6232, 6.0
    %v6297 = vmin.f32 %v6233, 6.0
    %v6298 = vmin.f32 %v6234, 6.0
    %v6299 = vmin.f32 %v6235, 6.0
    %v6300 = vmin.f32 %v6236, 6.0
    %v6301 = vmin.f32 %v6237, 6.0
    %v6302 = vmin.f32 %v6238, 6.0
    %v6303 = vmin.f32 %v6239, 6.0
    %v6304 = vmin.f32 %v6240, 6.0
    %v6305 = vmin.f32 %v6241, 6.0
    %v6306 = vmin.f32 %v6242, 6.0
    %v6307 = vmin.f32 %v6243, 6.0
    %v6308 = vmin.f32 %v6244, 6.0
    %v6309 = vmin.f32 %v6245, 6.0
    %v6310 = vmin.f32 %v6246, 6.0
    %v6311 = vmin.f32 %v6247, 6.0
    %v6312 = vmin.f32 %v6248, 6.0
    %v6313 = vmin.f32 %v6249, 6.0
    %v6314 = vmin.f32 %v6250, 6.0
    %v6315 = vmin.f32 %v6251, 6.0
    %v6316 = vmin.f32 %v6252, 6.0
    %v6317 = vmin.f32 %v6253, 6.0
    %v6318 = vmin.f32 %v6254, 6.0
    %v6319 = vmin.f32 %v6255, 6.0
    %v6320 = vmin.f32 %v6256, 6.0
    %v6321 = vmin.f32 %v6257, 6.0
    %v6322 = vmin.f32 %v6258, 6.0
    %v6323 = vmin.f32 %v6259, 6.0
    %v6324 = vmin.f32 %v6260, 6.0
    %v6325 = vmin.f32 %v6261, 6.0
    %v6326 = vmin.f32 %v6262, 6.0
    %v6327 = vmin.f32 %v6263, 6.0
    %v6328 = vmin.f32 %v6264, 6.0
    %v6329 = vmin.f32 %v6265, 6.0
    %v6330 = vmin.f32 %v6266, 6.0
    %v6331 = vmin.f32 %v6267, 6.0
    %v6332 = vmin.f32 %v6268, 6.0
    %v6333 = vmin.f32 %v6269, 6.0
    %v6334 = vmin.f32 %v6270, 6.0
    %v6335 = vmin.f32 %v6271, 6.0
    %v6336 = vmin.f32 %v6272, 6.0
    %v6337 = vmin.f32 %v6273, 6.0
    %v6338 = vmin.f32 %v6274, 6.0
    %v6339 = vmin.f32 %v6275, 6.0
    %v6340 = vmin.f32 %v6276, 6.0
    %v6341 = vmin.f32 %v6277, 6.0
    %v6342 = vmin.f32 %v6278, 6.0
    %v6343 = vmin.f32 %v6279, 6.0
    %v6344 = vmin.f32 %v6280, 6.0
    %v6345 = vmin.f32 %v6281, 6.0
    %v6346 = vmin.f32 %v6282, 6.0
    %v6347 = vmin.f32 %v6283, 6.0
    %v6348 = vmin.f32 %v6284, 6.0
    %v6349 = vmin.f32 %v6285, 6.0
    %v6350 = vmin.f32 %v6286, 6.0
    %v6351 = vmin.f32 %v6287, 6.0
    %v6352 = vmin.f32 %v6288, 6.0
    %v6353 = vmin.f32 %v6289, 6.0
    %v6354 = vmin.f32 %v6290, 6.0
    %v6355 = vmin.f32 %v6291, 6.0
    %v6356 = vmul.f32 %v6100, %v6292
    %v6357 = vmul.f32 %v6101, %v6293
    %v6358 = vmul.f32 %v6102, %v6294
    %v6359 = vmul.f32 %v6103, %v6295
    %v6360 = vmul.f32 %v6104, %v6296
    %v6361 = vmul.f32 %v6105, %v6297
    %v6362 = vmul.f32 %v6106, %v6298
    %v6363 = vmul.f32 %v6107, %v6299
    %v6364 = vmul.f32 %v6108, %v6300
    %v6365 = vmul.f32 %v6109, %v6301
    %v6366 = vmul.f32 %v6110, %v6302
    %v6367 = vmul.f32 %v6111, %v6303
    %v6368 = vmul.f32 %v6112, %v6304
    %v6369 = vmul.f32 %v6113, %v6305
    %v6370 = vmul.f32 %v6114, %v6306
    %v6371 = vmul.f32 %v6115, %v6307
    %v6372 = vmul.f32 %v6116, %v6308
    %v6373 = vmul.f32 %v6117, %v6309
    %v6374 = vmul.f32 %v6118, %v6310
    %v6375 = vmul.f32 %v6119, %v6311
    %v6376 = vmul.f32 %v6120, %v6312
    %v6377 = vmul.f32 %v6121, %v6313
    %v6378 = vmul.f32 %v6122, %v6314
    %v6379 = vmul.f32 %v6123, %v6315
    %v6380 = vmul.f32 %v6124, %v6316
    %v6381 = vmul.f32 %v6125, %v6317
    %v6382 = vmul.f32 %v6126, %v6318
    %v6383 = vmul.f32 %v6127, %v6319
    %v6384 = vmul.f32 %v6128, %v6320
    %v6385 = vmul.f32 %v6129, %v6321
    %v6386 = vmul.f32 %v6130, %v6322
    %v6387 = vmul.f32 %v6131, %v6323
    %v6388 = vmul.f32 %v6132, %v6324
    %v6389 = vmul.f32 %v6133, %v6325
    %v6390 = vmul.f32 %v6134, %v6326
    %v6391 = vmul.f32 %v6135, %v6327
    %v6392 = vmul.f32 %v6136, %v6328
    %v6393 = vmul.f32 %v6137, %v6329
    %v6394 = vmul.f32 %v6138, %v6330
    %v6395 = vmul.f32 %v6139, %v6331
    %v6396 = vmul.f32 %v6140, %v6332
    %v6397 = vmul.f32 %v6141, %v6333
    %v6398 = vmul.f32 %v6142, %v6334
    %v6399 = vmul.f32 %v6143, %v6335
    %v6400 = vmul.f32 %v6144, %v6336
    %v6401 = vmul.f32 %v6145, %v6337
    %v6402 = vmul.f32 %v6146, %v6338
    %v6403 = vmul.f32 %v6147, %v6339
    %v6404 = vmul.f32 %v6148, %v6340
    %v6405 = vmul.f32 %v6149, %v6341
    %v6406 = vmul.f32 %v6150, %v6342
    %v6407 = vmul.f32 %v6151, %v6343
    %v6408 = vmul.f32 %v6152, %v6344
    %v6409 = vmul.f32 %v6153, %v6345
    %v6410 = vmul.f32 %v6154, %v6346
    %v6411 = vmul.f32 %v6155, %v6347
    %v6412 = vmul.f32 %v6156, %v6348
    %v6413 = vmul.f32 %v6157, %v6349
    %v6414 = vmul.f32 %v6158, %v6350
    %v6415 = vmul.f32 %v6159, %v6351
    %v6416 = vmul.f32 %v6160, %v6352
    %v6417 = vmul.f32 %v6161, %v6353
    %v6418 = vmul.f32 %v6162, %v6354
    %v6419 = vmul.f32 %v6163, %v6355
    %v6420 = vmul.f32 %v6356, 0.16666667
    %v6421 = vmul.f32 %v6357, 0.16666667
    %v6422 = vmul.f32 %v6358, 0.16666667
    %v6423 = vmul.f32 %v6359, 0.16666667
    %v6424 = vmul.f32 %v6360, 0.16666667
    %v6425 = vmul.f32 %v6361, 0.16666667
    %v6426 = vmul.f32 %v6362, 0.16666667
    %v6427 = vmul.f32 %v6363, 0.16666667
    %v6428 = vmul.f32 %v6364, 0.16666667
    %v6429 = vmul.f32 %v6365, 0.16666667
    %v6430 = vmul.f32 %v6366, 0.16666667
    %v6431 = vmul.f32 %v6367, 0.16666667
    %v6432 = vmul.f32 %v6368, 0.16666667
    %v6433 = vmul.f32 %v6369, 0.16666667
    %v6434 = vmul.f32 %v6370, 0.16666667
    %v6435 = vmul.f32 %v6371, 0.16666667
    %v6436 = vmul.f32 %v6372, 0.16666667
    %v6437 = vmul.f32 %v6373, 0.16666667
    %v6438 = vmul.f32 %v6374, 0.16666667
    %v6439 = vmul.f32 %v6375, 0.16666667
    %v6440 = vmul.f32 %v6376, 0.16666667
    %v6441 = vmul.f32 %v6377, 0.16666667
    %v6442 = vmul.f32 %v6378, 0.16666667
    %v6443 = vmul.f32 %v6379, 0.16666667
    %v6444 = vmul.f32 %v6380, 0.16666667
    %v6445 = vmul.f32 %v6381, 0.16666667
    %v6446 = vmul.f32 %v6382, 0.16666667
    %v6447 = vmul.f32 %v6383, 0.16666667
    %v6448 = vmul.f32 %v6384, 0.16666667
    %v6449 = vmul.f32 %v6385, 0.16666667
    %v6450 = vmul.f32 %v6386, 0.16666667
    %v6451 = vmul.f32 %v6387, 0.16666667
    %v6452 = vmul.f32 %v6388, 0.16666667
    %v6453 = vmul.f32 %v6389, 0.16666667
    %v6454 = vmul.f32 %v6390, 0.16666667
    %v6455 = vmul.f32 %v6391, 0.16666667
    %v6456 = vmul.f32 %v6392, 0.16666667
    %v6457 = vmul.f32 %v6393, 0.16666667
    %v6458 = vmul.f32 %v6394, 0.16666667
    %v6459 = vmul.f32 %v6395, 0.16666667
    %v6460 = vmul.f32 %v6396, 0.16666667
    %v6461 = vmul.f32 %v6397, 0.16666667
    %v6462 = vmul.f32 %v6398, 0.16666667
    %v6463 = vmul.f32 %v6399, 0.16666667
    %v6464 = vmul.f32 %v6400, 0.16666667
    %v6465 = vmul.f32 %v6401, 0.16666667
    %v6466 = vmul.f32 %v6402, 0.16666667
    %v6467 = vmul.f32 %v6403, 0.16666667
    %v6468 = vmul.f32 %v6404, 0.16666667
    %v6469 = vmul.f32 %v6405, 0.16666667
    %v6470 = vmul.f32 %v6406, 0.16666667
    %v6471 = vmul.f32 %v6407, 0.16666667
    %v6472 = vmul.f32 %v6408, 0.16666667
    %v6473 = vmul.f32 %v6409, 0.16666667
    %v6474 = vmul.f32 %v6410, 0.16666667
    %v6475 = vmul.f32 %v6411, 0.16666667
    %v6476 = vmul.f32 %v6412, 0.16666667
    %v6477 = vmul.f32 %v6413, 0.16666667
    %v6478 = vmul.f32 %v6414, 0.16666667
    %v6479 = vmul.f32 %v6415, 0.16666667
    %v6480 = vmul.f32 %v6416, 0.16666667
    %v6481 = vmul.f32 %v6417, 0.16666667
    %v6482 = vmul.f32 %v6418, 0.16666667
    %v6483 = vmul.f32 %v6419, 0.16666667
    %s6484 = scalar_lea.vmem [#allocation2], 640
    %v6485 = vld [vmem:[%s6484] sm:$0xf]
    %v6486 = vld [vmem:[%s6484 + $0x4] sm:$0xf]
    %v6487 = vld [vmem:[%s6484 + $0x8] sm:$0xf]
    %v6488 = vld [vmem:[%s6484 + $0xc] sm:$0xf]
    %v6489 = vld [vmem:[%s6484 + $0x10] sm:$0xf]
    %v6490 = vld [vmem:[%s6484 + $0x14] sm:$0xf]
    %v6491 = vld [vmem:[%s6484 + $0x18] sm:$0xf]
    %v6492 = vld [vmem:[%s6484 + $0x1c] sm:$0xf]
    %v6493 = vld [vmem:[%s6484 + $0x20] sm:$0xf]
    %v6494 = vld [vmem:[%s6484 + $0x24] sm:$0xf]
    %v6495 = vld [vmem:[%s6484 + $0x28] sm:$0xf]
    %v6496 = vld [vmem:[%s6484 + $0x2c] sm:$0xf]
    %v6497 = vld [vmem:[%s6484 + $0x30] sm:$0xf]
    %v6498 = vld [vmem:[%s6484 + $0x34] sm:$0xf]
    %v6499 = vld [vmem:[%s6484 + $0x38] sm:$0xf]
    %v6500 = vld [vmem:[%s6484 + $0x3c] sm:$0xf]
    %v6501 = vpack.c.bf16 %v6421, %v6420
    %v6502 = vpack.c.bf16 %v6423, %v6422
    %v6503 = vpack.c.bf16 %v6425, %v6424
    %v6504 = vpack.c.bf16 %v6427, %v6426
    %v6505 = vpack.c.bf16 %v6429, %v6428
    %v6506 = vpack.c.bf16 %v6431, %v6430
    %v6507 = vpack.c.bf16 %v6433, %v6432
    %v6508 = vpack.c.bf16 %v6435, %v6434
    %v6509 = vpack.c.bf16 %v6437, %v6436
    %v6510 = vpack.c.bf16 %v6439, %v6438
    %v6511 = vpack.c.bf16 %v6441, %v6440
    %v6512 = vpack.c.bf16 %v6443, %v6442
    %v6513 = vpack.c.bf16 %v6445, %v6444
    %v6514 = vpack.c.bf16 %v6447, %v6446
    %v6515 = vpack.c.bf16 %v6449, %v6448
    %v6516 = vpack.c.bf16 %v6451, %v6450
    %v6517 = vpack.c.bf16 %v6453, %v6452
    %v6518 = vpack.c.bf16 %v6455, %v6454
    %v6519 = vpack.c.bf16 %v6457, %v6456
    %v6520 = vpack.c.bf16 %v6459, %v6458
    %v6521 = vpack.c.bf16 %v6461, %v6460
    %v6522 = vpack.c.bf16 %v6463, %v6462
    %v6523 = vpack.c.bf16 %v6465, %v6464
    %v6524 = vpack.c.bf16 %v6467, %v6466
    %v6525 = vpack.c.bf16 %v6469, %v6468
    %v6526 = vpack.c.bf16 %v6471, %v6470
    %v6527 = vpack.c.bf16 %v6473, %v6472
    %v6528 = vpack.c.bf16 %v6475, %v6474
    %v6529 = vpack.c.bf16 %v6477, %v6476
    %v6530 = vpack.c.bf16 %v6479, %v6478
    %v6531 = vpack.c.bf16 %v6481, %v6480
    %v6532 = vpack.c.bf16 %v6483, %v6482
    %s6533 = scalar_lea.vmem %s3, 3
    %v6534 = vld [vmem:[%s6533] sm:$0x1]
    %v6536 = vperm.slane %v6534, 0
    %v6554 = vunpack.c.l.b16 %v6485
    %v6555 = vunpack.c.l.b16 %v6486
    %v6556 = vunpack.c.l.b16 %v6487
    %v6557 = vunpack.c.l.b16 %v6488
    %v6558 = vunpack.c.l.b16 %v6489
    %v6559 = vunpack.c.l.b16 %v6490
    %v6560 = vunpack.c.l.b16 %v6491
    %v6561 = vunpack.c.l.b16 %v6492
    %v6562 = vunpack.c.l.b16 %v6493
    %v6563 = vunpack.c.l.b16 %v6494
    %v6564 = vunpack.c.l.b16 %v6495
    %v6565 = vunpack.c.l.b16 %v6496
    %v6566 = vunpack.c.l.b16 %v6497
    %v6567 = vunpack.c.l.b16 %v6498
    %v6568 = vunpack.c.l.b16 %v6499
    %v6569 = vunpack.c.l.b16 %v6500
    %v6570 = vpack.c.b16 %v6555, %v6554
    %v6571 = vpack.c.b16 %v6557, %v6556
    %v6572 = vpack.c.b16 %v6559, %v6558
    %v6573 = vpack.c.b16 %v6561, %v6560
    %v6574 = vpack.c.b16 %v6563, %v6562
    %v6575 = vpack.c.b16 %v6565, %v6564
    %v6576 = vpack.c.b16 %v6567, %v6566
    %v6577 = vpack.c.b16 %v6569, %v6568
    %6586 = vmatpush.bf16.msra.mxu0 %v6577
    %6587 = vmatpush.bf16.msra.mxu0 %v6576
    %6588 = vmatpush.bf16.msra.mxu0 %v6575
    %6589 = vmatpush.bf16.msra.mxu0 %v6574
    %6590 = vmatpush.bf16.msra.mxu0 %v6573
    %6591 = vmatpush.bf16.msra.mxu0 %v6572
    %6592 = vmatpush.bf16.msra.mxu0 %v6571
    %6593 = vmatpush.bf16.msra.mxu0 %v6570
    %6594 = vmatmul.bf16.gmra.mxu0 %v6501
    %v6595 = vpop.f32.mrf.mxu0
    %v6596 = vadd.f32 %v6536, %v6595
    %v6597 = vpop.f32.mrf.mxu0
    %v6598 = vadd.f32 %v6536, %v6597
    %6599 = vmatmul.bf16.gmra.mxu0 %v6502
    %v6600 = vpop.f32.mrf.mxu0
    %v6601 = vadd.f32 %v6536, %v6600
    %v6602 = vpop.f32.mrf.mxu0
    %v6603 = vadd.f32 %v6536, %v6602
    %6604 = vmatmul.bf16.gmra.mxu0 %v6503
    %v6605 = vpop.f32.mrf.mxu0
    %v6606 = vadd.f32 %v6536, %v6605
    %v6607 = vpop.f32.mrf.mxu0
    %v6608 = vadd.f32 %v6536, %v6607
    %6609 = vmatmul.bf16.gmra.mxu0 %v6504
    %v6610 = vpop.f32.mrf.mxu0
    %v6611 = vadd.f32 %v6536, %v6610
    %v6612 = vpop.f32.mrf.mxu0
    %v6613 = vadd.f32 %v6536, %v6612
    %6614 = vmatmul.bf16.gmra.mxu0 %v6505
    %v6615 = vpop.f32.mrf.mxu0
    %v6616 = vadd.f32 %v6536, %v6615
    %v6617 = vpop.f32.mrf.mxu0
    %v6618 = vadd.f32 %v6536, %v6617
    %6619 = vmatmul.bf16.gmra.mxu0 %v6506
    %v6620 = vpop.f32.mrf.mxu0
    %v6621 = vadd.f32 %v6536, %v6620
    %v6622 = vpop.f32.mrf.mxu0
    %v6623 = vadd.f32 %v6536, %v6622
    %6624 = vmatmul.bf16.gmra.mxu0 %v6507
    %v6625 = vpop.f32.mrf.mxu0
    %v6626 = vadd.f32 %v6536, %v6625
    %v6627 = vpop.f32.mrf.mxu0
    %v6628 = vadd.f32 %v6536, %v6627
    %6629 = vmatmul.bf16.gmra.mxu0 %v6508
    %v6630 = vpop.f32.mrf.mxu0
    %v6631 = vadd.f32 %v6536, %v6630
    %v6632 = vpop.f32.mrf.mxu0
    %v6633 = vadd.f32 %v6536, %v6632
    %6634 = vmatmul.bf16.gmra.mxu0 %v6509
    %v6635 = vpop.f32.mrf.mxu0
    %v6636 = vadd.f32 %v6536, %v6635
    %v6637 = vpop.f32.mrf.mxu0
    %v6638 = vadd.f32 %v6536, %v6637
    %6639 = vmatmul.bf16.gmra.mxu0 %v6510
    %v6640 = vpop.f32.mrf.mxu0
    %v6641 = vadd.f32 %v6536, %v6640
    %v6642 = vpop.f32.mrf.mxu0
    %v6643 = vadd.f32 %v6536, %v6642
    %6644 = vmatmul.bf16.gmra.mxu0 %v6511
    %v6645 = vpop.f32.mrf.mxu0
    %v6646 = vadd.f32 %v6536, %v6645
    %v6647 = vpop.f32.mrf.mxu0
    %v6648 = vadd.f32 %v6536, %v6647
    %6649 = vmatmul.bf16.gmra.mxu0 %v6512
    %v6650 = vpop.f32.mrf.mxu0
    %v6651 = vadd.f32 %v6536, %v6650
    %v6652 = vpop.f32.mrf.mxu0
    %v6653 = vadd.f32 %v6536, %v6652
    %6654 = vmatmul.bf16.gmra.mxu0 %v6513
    %v6655 = vpop.f32.mrf.mxu0
    %v6656 = vadd.f32 %v6536, %v6655
    %v6657 = vpop.f32.mrf.mxu0
    %v6658 = vadd.f32 %v6536, %v6657
    %6659 = vmatmul.bf16.gmra.mxu0 %v6514
    %v6660 = vpop.f32.mrf.mxu0
    %v6661 = vadd.f32 %v6536, %v6660
    %v6662 = vpop.f32.mrf.mxu0
    %v6663 = vadd.f32 %v6536, %v6662
    %6664 = vmatmul.bf16.gmra.mxu0 %v6515
    %v6665 = vpop.f32.mrf.mxu0
    %v6666 = vadd.f32 %v6536, %v6665
    %v6667 = vpop.f32.mrf.mxu0
    %v6668 = vadd.f32 %v6536, %v6667
    %6669 = vmatmul.bf16.gmra.mxu0 %v6516
    %v6670 = vpop.f32.mrf.mxu0
    %v6671 = vadd.f32 %v6536, %v6670
    %v6672 = vpop.f32.mrf.mxu0
    %v6673 = vadd.f32 %v6536, %v6672
    %6674 = vmatmul.bf16.gmra.mxu0 %v6517
    %v6675 = vpop.f32.mrf.mxu0
    %v6676 = vadd.f32 %v6536, %v6675
    %v6677 = vpop.f32.mrf.mxu0
    %v6678 = vadd.f32 %v6536, %v6677
    %6679 = vmatmul.bf16.gmra.mxu0 %v6518
    %v6680 = vpop.f32.mrf.mxu0
    %v6681 = vadd.f32 %v6536, %v6680
    %v6682 = vpop.f32.mrf.mxu0
    %v6683 = vadd.f32 %v6536, %v6682
    %6684 = vmatmul.bf16.gmra.mxu0 %v6519
    %v6685 = vpop.f32.mrf.mxu0
    %v6686 = vadd.f32 %v6536, %v6685
    %v6687 = vpop.f32.mrf.mxu0
    %v6688 = vadd.f32 %v6536, %v6687
    %6689 = vmatmul.bf16.gmra.mxu0 %v6520
    %v6690 = vpop.f32.mrf.mxu0
    %v6691 = vadd.f32 %v6536, %v6690
    %v6692 = vpop.f32.mrf.mxu0
    %v6693 = vadd.f32 %v6536, %v6692
    %6694 = vmatmul.bf16.gmra.mxu0 %v6521
    %v6695 = vpop.f32.mrf.mxu0
    %v6696 = vadd.f32 %v6536, %v6695
    %v6697 = vpop.f32.mrf.mxu0
    %v6698 = vadd.f32 %v6536, %v6697
    %6699 = vmatmul.bf16.gmra.mxu0 %v6522
    %v6700 = vpop.f32.mrf.mxu0
    %v6701 = vadd.f32 %v6536, %v6700
    %v6702 = vpop.f32.mrf.mxu0
    %v6703 = vadd.f32 %v6536, %v6702
    %6704 = vmatmul.bf16.gmra.mxu0 %v6523
    %v6705 = vpop.f32.mrf.mxu0
    %v6706 = vadd.f32 %v6536, %v6705
    %v6707 = vpop.f32.mrf.mxu0
    %v6708 = vadd.f32 %v6536, %v6707
    %6709 = vmatmul.bf16.gmra.mxu0 %v6524
    %v6710 = vpop.f32.mrf.mxu0
    %v6711 = vadd.f32 %v6536, %v6710
    %v6712 = vpop.f32.mrf.mxu0
    %v6713 = vadd.f32 %v6536, %v6712
    %6714 = vmatmul.bf16.gmra.mxu0 %v6525
    %v6715 = vpop.f32.mrf.mxu0
    %v6716 = vadd.f32 %v6536, %v6715
    %v6717 = vpop.f32.mrf.mxu0
    %v6718 = vadd.f32 %v6536, %v6717
    %6719 = vmatmul.bf16.gmra.mxu0 %v6526
    %v6720 = vpop.f32.mrf.mxu0
    %v6721 = vadd.f32 %v6536, %v6720
    %v6722 = vpop.f32.mrf.mxu0
    %v6723 = vadd.f32 %v6536, %v6722
    %6724 = vmatmul.bf16.gmra.mxu0 %v6527
    %v6725 = vpop.f32.mrf.mxu0
    %v6726 = vadd.f32 %v6536, %v6725
    %v6727 = vpop.f32.mrf.mxu0
    %v6728 = vadd.f32 %v6536, %v6727
    %6729 = vmatmul.bf16.gmra.mxu0 %v6528
    %v6730 = vpop.f32.mrf.mxu0
    %v6731 = vadd.f32 %v6536, %v6730
    %v6732 = vpop.f32.mrf.mxu0
    %v6733 = vadd.f32 %v6536, %v6732
    %6734 = vmatmul.bf16.gmra.mxu0 %v6529
    %v6735 = vpop.f32.mrf.mxu0
    %v6736 = vadd.f32 %v6536, %v6735
    %v6737 = vpop.f32.mrf.mxu0
    %v6738 = vadd.f32 %v6536, %v6737
    %6739 = vmatmul.bf16.gmra.mxu0 %v6530
    %v6740 = vpop.f32.mrf.mxu0
    %v6741 = vadd.f32 %v6536, %v6740
    %v6742 = vpop.f32.mrf.mxu0
    %v6743 = vadd.f32 %v6536, %v6742
    %6744 = vmatmul.bf16.gmra.mxu0 %v6531
    %v6745 = vpop.f32.mrf.mxu0
    %v6746 = vadd.f32 %v6536, %v6745
    %v6747 = vpop.f32.mrf.mxu0
    %v6748 = vadd.f32 %v6536, %v6747
    %6749 = vmatmul.bf16.gmra.mxu0 %v6532
    %v6750 = vpop.f32.mrf.mxu0
    %v6751 = vadd.f32 %v6536, %v6750
    %v6752 = vpop.f32.mrf.mxu0
    %v6753 = vadd.f32 %v6536, %v6752
    %6754 = vdwg.mxu0
    %s6755 = scalar_lea.vmem %s3, 4
    %v6756 = vld [vmem:[%s6755] sm:$0x1]
    %s6757 = scalar_lea.vmem %s3, 5
    %v6758 = vld [vmem:[%s6757] sm:$0x1]
    %6759 = vmatpush.msra.mxu0 %v6633
    %6760 = vmatpush.msra.mxu0 %v6631
    %6761 = vmatpush.msra.mxu0 %v6628
    %6762 = vmatpush.msra.mxu0 %v6626
    %6763 = vmatpush.msra.mxu0 %v6623
    %6764 = vmatpush.msra.mxu0 %v6621
    %6765 = vmatpush.msra.mxu0 %v6618
    %6766 = vmatpush.msra.mxu0 %v6616
    %6767 = vmatpush.msra.mxu0 %v6613
    %6768 = vmatpush.msra.mxu0 %v6611
    %6769 = vmatpush.msra.mxu0 %v6608
    %6770 = vmatpush.msra.mxu0 %v6606
    %6771 = vmatpush.msra.mxu0 %v6603
    %6772 = vmatpush.msra.mxu0 %v6601
    %6773 = vmatpush.msra.mxu0 %v6598
    %6774 = vmatpush.msra.mxu0 %v6596
    %6775 = vmatmul.f32.gmra.mxu0 %v3093
    %v6776 = vpop.f32.mrf.mxu0
    %v6777 = vadd.f32 0.0, %v6776
    %6778 = vdwg.mxu0
    %6779 = vmatpush.msra.mxu0 %v6673
    %6780 = vmatpush.msra.mxu0 %v6671
    %6781 = vmatpush.msra.mxu0 %v6668
    %6782 = vmatpush.msra.mxu0 %v6666
    %6783 = vmatpush.msra.mxu0 %v6663
    %6784 = vmatpush.msra.mxu0 %v6661
    %6785 = vmatpush.msra.mxu0 %v6658
    %6786 = vmatpush.msra.mxu0 %v6656
    %6787 = vmatpush.msra.mxu0 %v6653
    %6788 = vmatpush.msra.mxu0 %v6651
    %6789 = vmatpush.msra.mxu0 %v6648
    %6790 = vmatpush.msra.mxu0 %v6646
    %6791 = vmatpush.msra.mxu0 %v6643
    %6792 = vmatpush.msra.mxu0 %v6641
    %6793 = vmatpush.msra.mxu0 %v6638
    %6794 = vmatpush.msra.mxu0 %v6636
    %6795 = vmatmul.f32.gmra.mxu0 %v3125
    %v6796 = vpop.f32.mrf.mxu0
    %v6797 = vadd.f32 %v6777, %v6796
    %6798 = vdwg.mxu0
    %6799 = vmatpush.msra.mxu0 %v6713
    %6800 = vmatpush.msra.mxu0 %v6711
    %6801 = vmatpush.msra.mxu0 %v6708
    %6802 = vmatpush.msra.mxu0 %v6706
    %6803 = vmatpush.msra.mxu0 %v6703
    %6804 = vmatpush.msra.mxu0 %v6701
    %6805 = vmatpush.msra.mxu0 %v6698
    %6806 = vmatpush.msra.mxu0 %v6696
    %6807 = vmatpush.msra.mxu0 %v6693
    %6808 = vmatpush.msra.mxu0 %v6691
    %6809 = vmatpush.msra.mxu0 %v6688
    %6810 = vmatpush.msra.mxu0 %v6686
    %6811 = vmatpush.msra.mxu0 %v6683
    %6812 = vmatpush.msra.mxu0 %v6681
    %6813 = vmatpush.msra.mxu0 %v6678
    %6814 = vmatpush.msra.mxu0 %v6676
    %6815 = vmatmul.f32.gmra.mxu0 %v3157
    %v6816 = vpop.f32.mrf.mxu0
    %v6817 = vadd.f32 %v6797, %v6816
    %6818 = vdwg.mxu0
    %6819 = vmatpush.msra.mxu0 %v6753
    %6820 = vmatpush.msra.mxu0 %v6751
    %6821 = vmatpush.msra.mxu0 %v6748
    %6822 = vmatpush.msra.mxu0 %v6746
    %6823 = vmatpush.msra.mxu0 %v6743
    %6824 = vmatpush.msra.mxu0 %v6741
    %6825 = vmatpush.msra.mxu0 %v6738
    %6826 = vmatpush.msra.mxu0 %v6736
    %6827 = vmatpush.msra.mxu0 %v6733
    %6828 = vmatpush.msra.mxu0 %v6731
    %6829 = vmatpush.msra.mxu0 %v6728
    %6830 = vmatpush.msra.mxu0 %v6726
    %6831 = vmatpush.msra.mxu0 %v6723
    %6832 = vmatpush.msra.mxu0 %v6721
    %6833 = vmatpush.msra.mxu0 %v6718
    %6834 = vmatpush.msra.mxu0 %v6716
    %6835 = vmatmul.f32.gmra.mxu0 %v3189
    %v6836 = vpop.f32.mrf.mxu0
    %v6837 = vadd.f32 %v6817, %v6836
    %6838 = vdwg.mxu0
    %v6839 = vmul.f32 %v6837, 0.0025510204
    %v6840 = vperm.slane %v6839, 0
    %v6841 = vsub.f32 %v6596, %v6840
    %v6842 = vsub.f32 %v6598, %v6840
    %v6843 = vsub.f32 %v6601, %v6840
    %v6844 = vsub.f32 %v6603, %v6840
    %v6845 = vsub.f32 %v6606, %v6840
    %v6846 = vsub.f32 %v6608, %v6840
    %v6847 = vsub.f32 %v6611, %v6840
    %v6848 = vsub.f32 %v6613, %v6840
    %v6849 = vsub.f32 %v6616, %v6840
    %v6850 = vsub.f32 %v6618, %v6840
    %v6851 = vsub.f32 %v6621, %v6840
    %v6852 = vsub.f32 %v6623, %v6840
    %v6853 = vsub.f32 %v6626, %v6840
    %v6854 = vsub.f32 %v6628, %v6840
    %v6855 = vsub.f32 %v6631, %v6840
    %v6856 = vsub.f32 %v6633, %v6840
    %v6857 = vsub.f32 %v6636, %v6840
    %v6858 = vsub.f32 %v6638, %v6840
    %v6859 = vsub.f32 %v6641, %v6840
    %v6860 = vsub.f32 %v6643, %v6840
    %v6861 = vsub.f32 %v6646, %v6840
    %v6862 = vsub.f32 %v6648, %v6840
    %v6863 = vsub.f32 %v6651, %v6840
    %v6864 = vsub.f32 %v6653, %v6840
    %v6865 = vsub.f32 %v6656, %v6840
    %v6866 = vsub.f32 %v6658, %v6840
    %v6867 = vsub.f32 %v6661, %v6840
    %v6868 = vsub.f32 %v6663, %v6840
    %v6869 = vsub.f32 %v6666, %v6840
    %v6870 = vsub.f32 %v6668, %v6840
    %v6871 = vsub.f32 %v6671, %v6840
    %v6872 = vsub.f32 %v6673, %v6840
    %v6873 = vsub.f32 %v6676, %v6840
    %v6874 = vsub.f32 %v6678, %v6840
    %v6875 = vsub.f32 %v6681, %v6840
    %v6876 = vsub.f32 %v6683, %v6840
    %v6877 = vsub.f32 %v6686, %v6840
    %v6878 = vsub.f32 %v6688, %v6840
    %v6879 = vsub.f32 %v6691, %v6840
    %v6880 = vsub.f32 %v6693, %v6840
    %v6881 = vsub.f32 %v6696, %v6840
    %v6882 = vsub.f32 %v6698, %v6840
    %v6883 = vsub.f32 %v6701, %v6840
    %v6884 = vsub.f32 %v6703, %v6840
    %v6885 = vsub.f32 %v6706, %v6840
    %v6886 = vsub.f32 %v6708, %v6840
    %v6887 = vsub.f32 %v6711, %v6840
    %v6888 = vsub.f32 %v6713, %v6840
    %v6889 = vsub.f32 %v6716, %v6840
    %v6890 = vsub.f32 %v6718, %v6840
    %v6891 = vsub.f32 %v6721, %v6840
    %v6892 = vsub.f32 %v6723, %v6840
    %v6893 = vsub.f32 %v6726, %v6840
    %v6894 = vsub.f32 %v6728, %v6840
    %v6895 = vsub.f32 %v6731, %v6840
    %v6896 = vsub.f32 %v6733, %v6840
    %v6897 = vsub.f32 %v6736, %v6840
    %v6898 = vsub.f32 %v6738, %v6840
    %v6899 = vsub.f32 %v6741, %v6840
    %v6900 = vsub.f32 %v6743, %v6840
    %v6901 = vsub.f32 %v6746, %v6840
    %v6902 = vsub.f32 %v6748, %v6840
    %v6903 = vsub.f32 %v6751, %v6840
    %v6904 = vsub.f32 %v6753, %v6840
    %v6905 = vmul.f32 %v6841, %v3354
    %v6906 = vmul.f32 %v6842, %v3359
    %v6907 = vmul.f32 %v6843, %v3364
    %v6908 = vmul.f32 %v6844, %v3369
    %v6909 = vmul.f32 %v6845, %v3374
    %v6910 = vmul.f32 %v6846, %v3379
    %v6911 = vmul.f32 %v6847, %v3384
    %v6912 = vmul.f32 %v6848, %v3389
    %v6913 = vmul.f32 %v6849, %v3394
    %v6914 = vmul.f32 %v6850, %v3399
    %v6915 = vmul.f32 %v6851, %v3404
    %v6916 = vmul.f32 %v6852, %v3409
    %v6917 = vmul.f32 %v6853, %v3414
    %v6918 = vmul.f32 %v6854, %v3419
    %v6919 = vmul.f32 %v6855, %v3424
    %v6920 = vmul.f32 %v6856, %v3429
    %v6921 = vmul.f32 %v6857, %v3434
    %v6922 = vmul.f32 %v6858, %v3439
    %v6923 = vmul.f32 %v6859, %v3444
    %v6924 = vmul.f32 %v6860, %v3449
    %v6925 = vmul.f32 %v6861, %v3454
    %v6926 = vmul.f32 %v6862, %v3459
    %v6927 = vmul.f32 %v6863, %v3464
    %v6928 = vmul.f32 %v6864, %v3469
    %v6929 = vmul.f32 %v6865, %v3474
    %v6930 = vmul.f32 %v6866, %v3479
    %v6931 = vmul.f32 %v6867, %v3484
    %v6932 = vmul.f32 %v6868, %v3489
    %v6933 = vmul.f32 %v6869, %v3494
    %v6934 = vmul.f32 %v6870, %v3499
    %v6935 = vmul.f32 %v6871, %v3504
    %v6936 = vmul.f32 %v6872, %v3509
    %v6937 = vmul.f32 %v6873, %v3514
    %v6938 = vmul.f32 %v6874, %v3519
    %v6939 = vmul.f32 %v6875, %v3524
    %v6940 = vmul.f32 %v6876, %v3529
    %v6941 = vmul.f32 %v6877, %v3534
    %v6942 = vmul.f32 %v6878, %v3539
    %v6943 = vmul.f32 %v6879, %v3544
    %v6944 = vmul.f32 %v6880, %v3549
    %v6945 = vmul.f32 %v6881, %v3554
    %v6946 = vmul.f32 %v6882, %v3559
    %v6947 = vmul.f32 %v6883, %v3564
    %v6948 = vmul.f32 %v6884, %v3569
    %v6949 = vmul.f32 %v6885, %v3574
    %v6950 = vmul.f32 %v6886, %v3579
    %v6951 = vmul.f32 %v6887, %v3584
    %v6952 = vmul.f32 %v6888, %v3589
    %v6953 = vmul.f32 %v6889, %v3594
    %v6954 = vmul.f32 %v6890, %v3599
    %v6955 = vmul.f32 %v6891, %v3604
    %v6956 = vmul.f32 %v6892, %v3609
    %v6957 = vmul.f32 %v6893, %v3614
    %v6958 = vmul.f32 %v6894, %v3619
    %v6959 = vmul.f32 %v6895, %v3624
    %v6960 = vmul.f32 %v6896, %v3629
    %v6961 = vmul.f32 %v6897, %v3634
    %v6962 = vmul.f32 %v6898, %v3639
    %v6963 = vmul.f32 %v6899, %v3644
    %v6964 = vmul.f32 %v6900, %v3649
    %v6965 = vmul.f32 %v6901, %v3654
    %v6966 = vmul.f32 %v6902, %v3659
    %v6967 = vmul.f32 %v6903, %v3664
    %v6968 = vmul.f32 %v6904, %v3669
    %v6969 = vmul.f32 %v6905, %v6905
    %v6970 = vmul.f32 %v6906, %v6906
    %v6971 = vmul.f32 %v6907, %v6907
    %v6972 = vmul.f32 %v6908, %v6908
    %v6973 = vmul.f32 %v6909, %v6909
    %v6974 = vmul.f32 %v6910, %v6910
    %v6975 = vmul.f32 %v6911, %v6911
    %v6976 = vmul.f32 %v6912, %v6912
    %v6977 = vmul.f32 %v6913, %v6913
    %v6978 = vmul.f32 %v6914, %v6914
    %v6979 = vmul.f32 %v6915, %v6915
    %v6980 = vmul.f32 %v6916, %v6916
    %v6981 = vmul.f32 %v6917, %v6917
    %v6982 = vmul.f32 %v6918, %v6918
    %v6983 = vmul.f32 %v6919, %v6919
    %v6984 = vmul.f32 %v6920, %v6920
    %v6985 = vmul.f32 %v6921, %v6921
    %v6986 = vmul.f32 %v6922, %v6922
    %v6987 = vmul.f32 %v6923, %v6923
    %v6988 = vmul.f32 %v6924, %v6924
    %v6989 = vmul.f32 %v6925, %v6925
    %v6990 = vmul.f32 %v6926, %v6926
    %v6991 = vmul.f32 %v6927, %v6927
    %v6992 = vmul.f32 %v6928, %v6928
    %v6993 = vmul.f32 %v6929, %v6929
    %v6994 = vmul.f32 %v6930, %v6930
    %v6995 = vmul.f32 %v6931, %v6931
    %v6996 = vmul.f32 %v6932, %v6932
    %v6997 = vmul.f32 %v6933, %v6933
    %v6998 = vmul.f32 %v6934, %v6934
    %v6999 = vmul.f32 %v6935, %v6935
    %v7000 = vmul.f32 %v6936, %v6936
    %v7001 = vmul.f32 %v6937, %v6937
    %v7002 = vmul.f32 %v6938, %v6938
    %v7003 = vmul.f32 %v6939, %v6939
    %v7004 = vmul.f32 %v6940, %v6940
    %v7005 = vmul.f32 %v6941, %v6941
    %v7006 = vmul.f32 %v6942, %v6942
    %v7007 = vmul.f32 %v6943, %v6943
    %v7008 = vmul.f32 %v6944, %v6944
    %v7009 = vmul.f32 %v6945, %v6945
    %v7010 = vmul.f32 %v6946, %v6946
    %v7011 = vmul.f32 %v6947, %v6947
    %v7012 = vmul.f32 %v6948, %v6948
    %v7013 = vmul.f32 %v6949, %v6949
    %v7014 = vmul.f32 %v6950, %v6950
    %v7015 = vmul.f32 %v6951, %v6951
    %v7016 = vmul.f32 %v6952, %v6952
    %v7017 = vmul.f32 %v6953, %v6953
    %v7018 = vmul.f32 %v6954, %v6954
    %v7019 = vmul.f32 %v6955, %v6955
    %v7020 = vmul.f32 %v6956, %v6956
    %v7021 = vmul.f32 %v6957, %v6957
    %v7022 = vmul.f32 %v6958, %v6958
    %v7023 = vmul.f32 %v6959, %v6959
    %v7024 = vmul.f32 %v6960, %v6960
    %v7025 = vmul.f32 %v6961, %v6961
    %v7026 = vmul.f32 %v6962, %v6962
    %v7027 = vmul.f32 %v6963, %v6963
    %v7028 = vmul.f32 %v6964, %v6964
    %v7029 = vmul.f32 %v6965, %v6965
    %v7030 = vmul.f32 %v6966, %v6966
    %v7031 = vmul.f32 %v6967, %v6967
    %v7032 = vmul.f32 %v6968, %v6968
    %7033 = vmatpush.msra.mxu0 %v6984
    %7034 = vmatpush.msra.mxu0 %v6983
    %7035 = vmatpush.msra.mxu0 %v6982
    %7036 = vmatpush.msra.mxu0 %v6981
    %7037 = vmatpush.msra.mxu0 %v6980
    %7038 = vmatpush.msra.mxu0 %v6979
    %7039 = vmatpush.msra.mxu0 %v6978
    %7040 = vmatpush.msra.mxu0 %v6977
    %7041 = vmatpush.msra.mxu0 %v6976
    %7042 = vmatpush.msra.mxu0 %v6975
    %7043 = vmatpush.msra.mxu0 %v6974
    %7044 = vmatpush.msra.mxu0 %v6973
    %7045 = vmatpush.msra.mxu0 %v6972
    %7046 = vmatpush.msra.mxu0 %v6971
    %7047 = vmatpush.msra.mxu0 %v6970
    %7048 = vmatpush.msra.mxu0 %v6969
    %7049 = vmatmul.f32.gmra.mxu0 %v3093
    %v7050 = vpop.f32.mrf.mxu0
    %v7051 = vadd.f32 0.0, %v7050
    %7052 = vdwg.mxu0
    %7053 = vmatpush.msra.mxu0 %v7000
    %7054 = vmatpush.msra.mxu0 %v6999
    %7055 = vmatpush.msra.mxu0 %v6998
    %7056 = vmatpush.msra.mxu0 %v6997
    %7057 = vmatpush.msra.mxu0 %v6996
    %7058 = vmatpush.msra.mxu0 %v6995
    %7059 = vmatpush.msra.mxu0 %v6994
    %7060 = vmatpush.msra.mxu0 %v6993
    %7061 = vmatpush.msra.mxu0 %v6992
    %7062 = vmatpush.msra.mxu0 %v6991
    %7063 = vmatpush.msra.mxu0 %v6990
    %7064 = vmatpush.msra.mxu0 %v6989
    %7065 = vmatpush.msra.mxu0 %v6988
    %7066 = vmatpush.msra.mxu0 %v6987
    %7067 = vmatpush.msra.mxu0 %v6986
    %7068 = vmatpush.msra.mxu0 %v6985
    %7069 = vmatmul.f32.gmra.mxu0 %v3125
    %v7070 = vpop.f32.mrf.mxu0
    %v7071 = vadd.f32 %v7051, %v7070
    %7072 = vdwg.mxu0
    %7073 = vmatpush.msra.mxu0 %v7016
    %7074 = vmatpush.msra.mxu0 %v7015
    %7075 = vmatpush.msra.mxu0 %v7014
    %7076 = vmatpush.msra.mxu0 %v7013
    %7077 = vmatpush.msra.mxu0 %v7012
    %7078 = vmatpush.msra.mxu0 %v7011
    %7079 = vmatpush.msra.mxu0 %v7010
    %7080 = vmatpush.msra.mxu0 %v7009
    %7081 = vmatpush.msra.mxu0 %v7008
    %7082 = vmatpush.msra.mxu0 %v7007
    %7083 = vmatpush.msra.mxu0 %v7006
    %7084 = vmatpush.msra.mxu0 %v7005
    %7085 = vmatpush.msra.mxu0 %v7004
    %7086 = vmatpush.msra.mxu0 %v7003
    %7087 = vmatpush.msra.mxu0 %v7002
    %7088 = vmatpush.msra.mxu0 %v7001
    %7089 = vmatmul.f32.gmra.mxu0 %v3157
    %v7090 = vpop.f32.mrf.mxu0
    %v7091 = vadd.f32 %v7071, %v7090
    %7092 = vdwg.mxu0
    %7093 = vmatpush.msra.mxu0 %v7032
    %7094 = vmatpush.msra.mxu0 %v7031
    %7095 = vmatpush.msra.mxu0 %v7030
    %7096 = vmatpush.msra.mxu0 %v7029
    %7097 = vmatpush.msra.mxu0 %v7028
    %7098 = vmatpush.msra.mxu0 %v7027
    %7099 = vmatpush.msra.mxu0 %v7026
    %7100 = vmatpush.msra.mxu0 %v7025
    %7101 = vmatpush.msra.mxu0 %v7024
    %7102 = vmatpush.msra.mxu0 %v7023
    %7103 = vmatpush.msra.mxu0 %v7022
    %7104 = vmatpush.msra.mxu0 %v7021
    %7105 = vmatpush.msra.mxu0 %v7020
    %7106 = vmatpush.msra.mxu0 %v7019
    %7107 = vmatpush.msra.mxu0 %v7018
    %7108 = vmatpush.msra.mxu0 %v7017
    %7109 = vmatmul.f32.gmra.mxu0 %v3189
    %v7110 = vpop.f32.mrf.mxu0
    %v7111 = vadd.f32 %v7091, %v7110
    %7112 = vdwg.mxu0
    %v7113 = vmul.f32 %v7111, 0.0025510204
    %v7114 = vadd.f32 %v7113, 1e-05
    %v7115 = vrsqrt.pop %v7114
    %v7116 = vmul.f32 %v7115, %v7114
    %v7117 = vmul.f32 %v7116, %v7115
    %v7118 = vmul.f32 0.5, %v7117
    %v7119 = vsub.f32 1.5, %v7118
    %v7120 = vmul.f32 %v7115, %v7119
    %vm7121 = vweird.f32 %v7114
    %vm7122 = vweird.f32 %v7115
    %vm7123 = vmor %vm7121, %vm7122
    %v7124 = vsel %vm7123, %v7115, %v7120
    %v7125 = vperm.slane %v7124, 0
    %v7126 = vmul.f32 %v6905, %v7125
    %v7127 = vmul.f32 %v6906, %v7125
    %v7128 = vmul.f32 %v6907, %v7125
    %v7129 = vmul.f32 %v6908, %v7125
    %v7130 = vmul.f32 %v6909, %v7125
    %v7131 = vmul.f32 %v6910, %v7125
    %v7132 = vmul.f32 %v6911, %v7125
    %v7133 = vmul.f32 %v6912, %v7125
    %v7134 = vmul.f32 %v6913, %v7125
    %v7135 = vmul.f32 %v6914, %v7125
    %v7136 = vmul.f32 %v6915, %v7125
    %v7137 = vmul.f32 %v6916, %v7125
    %v7138 = vmul.f32 %v6917, %v7125
    %v7139 = vmul.f32 %v6918, %v7125
    %v7140 = vmul.f32 %v6919, %v7125
    %v7141 = vmul.f32 %v6920, %v7125
    %v7142 = vmul.f32 %v6921, %v7125
    %v7143 = vmul.f32 %v6922, %v7125
    %v7144 = vmul.f32 %v6923, %v7125
    %v7145 = vmul.f32 %v6924, %v7125
    %v7146 = vmul.f32 %v6925, %v7125
    %v7147 = vmul.f32 %v6926, %v7125
    %v7148 = vmul.f32 %v6927, %v7125
    %v7149 = vmul.f32 %v6928, %v7125
    %v7150 = vmul.f32 %v6929, %v7125
    %v7151 = vmul.f32 %v6930, %v7125
    %v7152 = vmul.f32 %v6931, %v7125
    %v7153 = vmul.f32 %v6932, %v7125
    %v7154 = vmul.f32 %v6933, %v7125
    %v7155 = vmul.f32 %v6934, %v7125
    %v7156 = vmul.f32 %v6935, %v7125
    %v7157 = vmul.f32 %v6936, %v7125
    %v7158 = vmul.f32 %v6937, %v7125
    %v7159 = vmul.f32 %v6938, %v7125
    %v7160 = vmul.f32 %v6939, %v7125
    %v7161 = vmul.f32 %v6940, %v7125
    %v7162 = vmul.f32 %v6941, %v7125
    %v7163 = vmul.f32 %v6942, %v7125
    %v7164 = vmul.f32 %v6943, %v7125
    %v7165 = vmul.f32 %v6944, %v7125
    %v7166 = vmul.f32 %v6945, %v7125
    %v7167 = vmul.f32 %v6946, %v7125
    %v7168 = vmul.f32 %v6947, %v7125
    %v7169 = vmul.f32 %v6948, %v7125
    %v7170 = vmul.f32 %v6949, %v7125
    %v7171 = vmul.f32 %v6950, %v7125
    %v7172 = vmul.f32 %v6951, %v7125
    %v7173 = vmul.f32 %v6952, %v7125
    %v7174 = vmul.f32 %v6953, %v7125
    %v7175 = vmul.f32 %v6954, %v7125
    %v7176 = vmul.f32 %v6955, %v7125
    %v7177 = vmul.f32 %v6956, %v7125
    %v7178 = vmul.f32 %v6957, %v7125
    %v7179 = vmul.f32 %v6958, %v7125
    %v7180 = vmul.f32 %v6959, %v7125
    %v7181 = vmul.f32 %v6960, %v7125
    %v7182 = vmul.f32 %v6961, %v7125
    %v7183 = vmul.f32 %v6962, %v7125
    %v7184 = vmul.f32 %v6963, %v7125
    %v7185 = vmul.f32 %v6964, %v7125
    %v7186 = vmul.f32 %v6965, %v7125
    %v7187 = vmul.f32 %v6966, %v7125
    %v7188 = vmul.f32 %v6967, %v7125
    %v7189 = vmul.f32 %v6968, %v7125
    %v7191 = vperm.slane %v6756, 0
    %v7193 = vmul.f32 %v7126, %v7191
    %v7194 = vmul.f32 %v7127, %v7191
    %v7195 = vmul.f32 %v7128, %v7191
    %v7196 = vmul.f32 %v7129, %v7191
    %v7197 = vmul.f32 %v7130, %v7191
    %v7198 = vmul.f32 %v7131, %v7191
    %v7199 = vmul.f32 %v7132, %v7191
    %v7200 = vmul.f32 %v7133, %v7191
    %v7201 = vmul.f32 %v7134, %v7191
    %v7202 = vmul.f32 %v7135, %v7191
    %v7203 = vmul.f32 %v7136, %v7191
    %v7204 = vmul.f32 %v7137, %v7191
    %v7205 = vmul.f32 %v7138, %v7191
    %v7206 = vmul.f32 %v7139, %v7191
    %v7207 = vmul.f32 %v7140, %v7191
    %v7208 = vmul.f32 %v7141, %v7191
    %v7209 = vmul.f32 %v7142, %v7191
    %v7210 = vmul.f32 %v7143, %v7191
    %v7211 = vmul.f32 %v7144, %v7191
    %v7212 = vmul.f32 %v7145, %v7191
    %v7213 = vmul.f32 %v7146, %v7191
    %v7214 = vmul.f32 %v7147, %v7191
    %v7215 = vmul.f32 %v7148, %v7191
    %v7216 = vmul.f32 %v7149, %v7191
    %v7217 = vmul.f32 %v7150, %v7191
    %v7218 = vmul.f32 %v7151, %v7191
    %v7219 = vmul.f32 %v7152, %v7191
    %v7220 = vmul.f32 %v7153, %v7191
    %v7221 = vmul.f32 %v7154, %v7191
    %v7222 = vmul.f32 %v7155, %v7191
    %v7223 = vmul.f32 %v7156, %v7191
    %v7224 = vmul.f32 %v7157, %v7191
    %v7225 = vmul.f32 %v7158, %v7191
    %v7226 = vmul.f32 %v7159, %v7191
    %v7227 = vmul.f32 %v7160, %v7191
    %v7228 = vmul.f32 %v7161, %v7191
    %v7229 = vmul.f32 %v7162, %v7191
    %v7230 = vmul.f32 %v7163, %v7191
    %v7231 = vmul.f32 %v7164, %v7191
    %v7232 = vmul.f32 %v7165, %v7191
    %v7233 = vmul.f32 %v7166, %v7191
    %v7234 = vmul.f32 %v7167, %v7191
    %v7235 = vmul.f32 %v7168, %v7191
    %v7236 = vmul.f32 %v7169, %v7191
    %v7237 = vmul.f32 %v7170, %v7191
    %v7238 = vmul.f32 %v7171, %v7191
    %v7239 = vmul.f32 %v7172, %v7191
    %v7240 = vmul.f32 %v7173, %v7191
    %v7241 = vmul.f32 %v7174, %v7191
    %v7242 = vmul.f32 %v7175, %v7191
    %v7243 = vmul.f32 %v7176, %v7191
    %v7244 = vmul.f32 %v7177, %v7191
    %v7245 = vmul.f32 %v7178, %v7191
    %v7246 = vmul.f32 %v7179, %v7191
    %v7247 = vmul.f32 %v7180, %v7191
    %v7248 = vmul.f32 %v7181, %v7191
    %v7249 = vmul.f32 %v7182, %v7191
    %v7250 = vmul.f32 %v7183, %v7191
    %v7251 = vmul.f32 %v7184, %v7191
    %v7252 = vmul.f32 %v7185, %v7191
    %v7253 = vmul.f32 %v7186, %v7191
    %v7254 = vmul.f32 %v7187, %v7191
    %v7255 = vmul.f32 %v7188, %v7191
    %v7256 = vmul.f32 %v7189, %v7191
    %v7258 = vperm.slane %v6758, 0
    %v7260 = vadd.f32 %v7193, %v7258
    %v7261 = vadd.f32 %v7194, %v7258
    %v7262 = vadd.f32 %v7195, %v7258
    %v7263 = vadd.f32 %v7196, %v7258
    %v7264 = vadd.f32 %v7197, %v7258
    %v7265 = vadd.f32 %v7198, %v7258
    %v7266 = vadd.f32 %v7199, %v7258
    %v7267 = vadd.f32 %v7200, %v7258
    %v7268 = vadd.f32 %v7201, %v7258
    %v7269 = vadd.f32 %v7202, %v7258
    %v7270 = vadd.f32 %v7203, %v7258
    %v7271 = vadd.f32 %v7204, %v7258
    %v7272 = vadd.f32 %v7205, %v7258
    %v7273 = vadd.f32 %v7206, %v7258
    %v7274 = vadd.f32 %v7207, %v7258
    %v7275 = vadd.f32 %v7208, %v7258
    %v7276 = vadd.f32 %v7209, %v7258
    %v7277 = vadd.f32 %v7210, %v7258
    %v7278 = vadd.f32 %v7211, %v7258
    %v7279 = vadd.f32 %v7212, %v7258
    %v7280 = vadd.f32 %v7213, %v7258
    %v7281 = vadd.f32 %v7214, %v7258
    %v7282 = vadd.f32 %v7215, %v7258
    %v7283 = vadd.f32 %v7216, %v7258
    %v7284 = vadd.f32 %v7217, %v7258
    %v7285 = vadd.f32 %v7218, %v7258
    %v7286 = vadd.f32 %v7219, %v7258
    %v7287 = vadd.f32 %v7220, %v7258
    %v7288 = vadd.f32 %v7221, %v7258
    %v7289 = vadd.f32 %v7222, %v7258
    %v7290 = vadd.f32 %v7223, %v7258
    %v7291 = vadd.f32 %v7224, %v7258
    %v7292 = vadd.f32 %v7225, %v7258
    %v7293 = vadd.f32 %v7226, %v7258
    %v7294 = vadd.f32 %v7227, %v7258
    %v7295 = vadd.f32 %v7228, %v7258
    %v7296 = vadd.f32 %v7229, %v7258
    %v7297 = vadd.f32 %v7230, %v7258
    %v7298 = vadd.f32 %v7231, %v7258
    %v7299 = vadd.f32 %v7232, %v7258
    %v7300 = vadd.f32 %v7233, %v7258
    %v7301 = vadd.f32 %v7234, %v7258
    %v7302 = vadd.f32 %v7235, %v7258
    %v7303 = vadd.f32 %v7236, %v7258
    %v7304 = vadd.f32 %v7237, %v7258
    %v7305 = vadd.f32 %v7238, %v7258
    %v7306 = vadd.f32 %v7239, %v7258
    %v7307 = vadd.f32 %v7240, %v7258
    %v7308 = vadd.f32 %v7241, %v7258
    %v7309 = vadd.f32 %v7242, %v7258
    %v7310 = vadd.f32 %v7243, %v7258
    %v7311 = vadd.f32 %v7244, %v7258
    %v7312 = vadd.f32 %v7245, %v7258
    %v7313 = vadd.f32 %v7246, %v7258
    %v7314 = vadd.f32 %v7247, %v7258
    %v7315 = vadd.f32 %v7248, %v7258
    %v7316 = vadd.f32 %v7249, %v7258
    %v7317 = vadd.f32 %v7250, %v7258
    %v7318 = vadd.f32 %v7251, %v7258
    %v7319 = vadd.f32 %v7252, %v7258
    %v7320 = vadd.f32 %v7253, %v7258
    %v7321 = vadd.f32 %v7254, %v7258
    %v7322 = vadd.f32 %v7255, %v7258
    %v7323 = vadd.f32 %v7256, %v7258
    %v7324 = vmul.f32 %v7260, %v3354
    %v7325 = vmul.f32 %v7261, %v3359
    %v7326 = vmul.f32 %v7262, %v3364
    %v7327 = vmul.f32 %v7263, %v3369
    %v7328 = vmul.f32 %v7264, %v3374
    %v7329 = vmul.f32 %v7265, %v3379
    %v7330 = vmul.f32 %v7266, %v3384
    %v7331 = vmul.f32 %v7267, %v3389
    %v7332 = vmul.f32 %v7268, %v3394
    %v7333 = vmul.f32 %v7269, %v3399
    %v7334 = vmul.f32 %v7270, %v3404
    %v7335 = vmul.f32 %v7271, %v3409
    %v7336 = vmul.f32 %v7272, %v3414
    %v7337 = vmul.f32 %v7273, %v3419
    %v7338 = vmul.f32 %v7274, %v3424
    %v7339 = vmul.f32 %v7275, %v3429
    %v7340 = vmul.f32 %v7276, %v3434
    %v7341 = vmul.f32 %v7277, %v3439
    %v7342 = vmul.f32 %v7278, %v3444
    %v7343 = vmul.f32 %v7279, %v3449
    %v7344 = vmul.f32 %v7280, %v3454
    %v7345 = vmul.f32 %v7281, %v3459
    %v7346 = vmul.f32 %v7282, %v3464
    %v7347 = vmul.f32 %v7283, %v3469
    %v7348 = vmul.f32 %v7284, %v3474
    %v7349 = vmul.f32 %v7285, %v3479
    %v7350 = vmul.f32 %v7286, %v3484
    %v7351 = vmul.f32 %v7287, %v3489
    %v7352 = vmul.f32 %v7288, %v3494
    %v7353 = vmul.f32 %v7289, %v3499
    %v7354 = vmul.f32 %v7290, %v3504
    %v7355 = vmul.f32 %v7291, %v3509
    %v7356 = vmul.f32 %v7292, %v3514
    %v7357 = vmul.f32 %v7293, %v3519
    %v7358 = vmul.f32 %v7294, %v3524
    %v7359 = vmul.f32 %v7295, %v3529
    %v7360 = vmul.f32 %v7296, %v3534
    %v7361 = vmul.f32 %v7297, %v3539
    %v7362 = vmul.f32 %v7298, %v3544
    %v7363 = vmul.f32 %v7299, %v3549
    %v7364 = vmul.f32 %v7300, %v3554
    %v7365 = vmul.f32 %v7301, %v3559
    %v7366 = vmul.f32 %v7302, %v3564
    %v7367 = vmul.f32 %v7303, %v3569
    %v7368 = vmul.f32 %v7304, %v3574
    %v7369 = vmul.f32 %v7305, %v3579
    %v7370 = vmul.f32 %v7306, %v3584
    %v7371 = vmul.f32 %v7307, %v3589
    %v7372 = vmul.f32 %v7308, %v3594
    %v7373 = vmul.f32 %v7309, %v3599
    %v7374 = vmul.f32 %v7310, %v3604
    %v7375 = vmul.f32 %v7311, %v3609
    %v7376 = vmul.f32 %v7312, %v3614
    %v7377 = vmul.f32 %v7313, %v3619
    %v7378 = vmul.f32 %v7314, %v3624
    %v7379 = vmul.f32 %v7315, %v3629
    %v7380 = vmul.f32 %v7316, %v3634
    %v7381 = vmul.f32 %v7317, %v3639
    %v7382 = vmul.f32 %v7318, %v3644
    %v7383 = vmul.f32 %v7319, %v3649
    %v7384 = vmul.f32 %v7320, %v3654
    %v7385 = vmul.f32 %v7321, %v3659
    %v7386 = vmul.f32 %v7322, %v3664
    %v7387 = vmul.f32 %v7323, %v3669
    %7388 = vst [vmem:[#allocation5] sm:$0xff] %v7324
    %7389 = vst [vmem:[#allocation5 + $0x8] sm:$0xff] %v7325
    %7390 = vst [vmem:[#allocation5 + $0x10] sm:$0xff] %v7326
    %7391 = vst [vmem:[#allocation5 + $0x18] sm:$0xff] %v7327
    %7392 = vst [vmem:[#allocation5 + $0x20] sm:$0xff] %v7328
    %7393 = vst [vmem:[#allocation5 + $0x28] sm:$0xff] %v7329
    %7394 = vst [vmem:[#allocation5 + $0x30] sm:$0xff] %v7330
    %7395 = vst [vmem:[#allocation5 + $0x38] sm:$0xff] %v7331
    %7396 = vst [vmem:[#allocation5 + $0x40] sm:$0xff] %v7332
    %7397 = vst [vmem:[#allocation5 + $0x48] sm:$0xff] %v7333
    %7398 = vst [vmem:[#allocation5 + $0x50] sm:$0xff] %v7334
    %7399 = vst [vmem:[#allocation5 + $0x58] sm:$0xff] %v7335
    %7400 = vst [vmem:[#allocation5 + $0x60] sm:$0xff] %v7336
    %7401 = vst [vmem:[#allocation5 + $0x68] sm:$0xff] %v7337
    %7402 = vst [vmem:[#allocation5 + $0x70] sm:$0xff] %v7338
    %7403 = vst [vmem:[#allocation5 + $0x78] sm:$0xff] %v7339
    %7404 = vst [vmem:[#allocation5 + $0x80] sm:$0xff] %v7340
    %7405 = vst [vmem:[#allocation5 + $0x88] sm:$0xff] %v7341
    %7406 = vst [vmem:[#allocation5 + $0x90] sm:$0xff] %v7342
    %7407 = vst [vmem:[#allocation5 + $0x98] sm:$0xff] %v7343
    %7408 = vst [vmem:[#allocation5 + $0xa0] sm:$0xff] %v7344
    %7409 = vst [vmem:[#allocation5 + $0xa8] sm:$0xff] %v7345
    %7410 = vst [vmem:[#allocation5 + $0xb0] sm:$0xff] %v7346
    %7411 = vst [vmem:[#allocation5 + $0xb8] sm:$0xff] %v7347
    %7412 = vst [vmem:[#allocation5 + $0xc0] sm:$0xff] %v7348
    %7413 = vst [vmem:[#allocation5 + $0xc8] sm:$0xff] %v7349
    %7414 = vst [vmem:[#allocation5 + $0xd0] sm:$0xff] %v7350
    %7415 = vst [vmem:[#allocation5 + $0xd8] sm:$0xff] %v7351
    %7416 = vst [vmem:[#allocation5 + $0xe0] sm:$0xff] %v7352
    %7417 = vst [vmem:[#allocation5 + $0xe8] sm:$0xff] %v7353
    %7418 = vst [vmem:[#allocation5 + $0xf0] sm:$0xff] %v7354
    %7419 = vst [vmem:[#allocation5 + $0xf8] sm:$0xff] %v7355
    %7420 = vst [vmem:[#allocation5 + $0x100] sm:$0xff] %v7356
    %7421 = vst [vmem:[#allocation5 + $0x108] sm:$0xff] %v7357
    %7422 = vst [vmem:[#allocation5 + $0x110] sm:$0xff] %v7358
    %7423 = vst [vmem:[#allocation5 + $0x118] sm:$0xff] %v7359
    %7424 = vst [vmem:[#allocation5 + $0x120] sm:$0xff] %v7360
    %7425 = vst [vmem:[#allocation5 + $0x128] sm:$0xff] %v7361
    %7426 = vst [vmem:[#allocation5 + $0x130] sm:$0xff] %v7362
    %7427 = vst [vmem:[#allocation5 + $0x138] sm:$0xff] %v7363
    %7428 = vst [vmem:[#allocation5 + $0x140] sm:$0xff] %v7364
    %7429 = vst [vmem:[#allocation5 + $0x148] sm:$0xff] %v7365
    %7430 = vst [vmem:[#allocation5 + $0x150] sm:$0xff] %v7366
    %7431 = vst [vmem:[#allocation5 + $0x158] sm:$0xff] %v7367
    %7432 = vst [vmem:[#allocation5 + $0x160] sm:$0xff] %v7368
    %7433 = vst [vmem:[#allocation5 + $0x168] sm:$0xff] %v7369
    %7434 = vst [vmem:[#allocation5 + $0x170] sm:$0xff] %v7370
    %7435 = vst [vmem:[#allocation5 + $0x178] sm:$0xff] %v7371
    %7436 = vst [vmem:[#allocation5 + $0x180] sm:$0xff] %v7372
    %7437 = vst [vmem:[#allocation5 + $0x188] sm:$0xff] %v7373
    %7438 = vst [vmem:[#allocation5 + $0x190] sm:$0xff] %v7374
    %7439 = vst [vmem:[#allocation5 + $0x198] sm:$0xff] %v7375
    %7440 = vst [vmem:[#allocation5 + $0x1a0] sm:$0xff] %v7376
    %7441 = vst [vmem:[#allocation5 + $0x1a8] sm:$0xff] %v7377
    %7442 = vst [vmem:[#allocation5 + $0x1b0] sm:$0xff] %v7378
    %7443 = vst [vmem:[#allocation5 + $0x1b8] sm:$0xff] %v7379
    %7444 = vst [vmem:[#allocation5 + $0x1c0] sm:$0xff] %v7380
    %7445 = vst [vmem:[#allocation5 + $0x1c8] sm:$0xff] %v7381
    %7446 = vst [vmem:[#allocation5 + $0x1d0] sm:$0xff] %v7382
    %7447 = vst [vmem:[#allocation5 + $0x1d8] sm:$0xff] %v7383
    %7448 = vst [vmem:[#allocation5 + $0x1e0] sm:$0xff] %v7384
    %7449 = vst [vmem:[#allocation5 + $0x1e8] sm:$0xff] %v7385
    %7450 = vst [vmem:[#allocation5 + $0x1f0] sm:$0xff] %v7386
    %7451 = vst [vmem:[#allocation5 + $0x1f8] sm:$0xff] %v7387
    // Predicated region
    $region26: #{tpu_custom_call.1} parent=1 // pred_check
      _
    $region27: #{tpu_custom_call.1} parent=1 // pred_check_branch
      %7453 = sbr.rel (0) target = $region29
    $region28: #{tpu_custom_call.1} parent=1 // pred_region
      %7455 = vsyncadd [#allocation4], 0
      %s7456 = sshll.u32 [#allocation5], 4
      %s7457 = int_to_ptr.vmem [resolvable:$true] %s7456
      %s7458 = sshll.u32 %s5, 4
      %s7459 = int_to_ptr.hbm [resolvable:$true] %s7458
      %7464 = dma.vmem_to_hbm [thread:$0]  %s7457, 8192, %s7459, [#allocation4], 128, 128, 8
    $region29: #{tpu_custom_call.1} parent=1 // pred_fallthru
      _
    // Predicated region
    $region30: #{tpu_custom_call.1} parent=1 // pred_check
      _
    $region31: #{tpu_custom_call.1} parent=1 // pred_check_branch
      %7466 = sbr.rel (0) target = $region33
    $region32: #{tpu_custom_call.1} parent=1 // pred_region
      %7468 = dma.done [#allocation4], 8192
    $region33: #{tpu_custom_call.1} parent=1 // pred_fallthru
      _
    %7469 = vsyncpa [#allocation3], 1
    %7470 = vsyncpa [#allocation4], 1

</llo_original>
